<compile_context>
chip_gen: v6e
topology: v6e:2x2x1
jax: 0.10.0
libtpu: 0.0.40
codegen_flags: <defaults>
</compile_context>

<pallas_src>
import jax
import jax.numpy as jnp
from jax.experimental import pallas as pl
from jax.experimental.pallas import tpu as pltpu

KSIZE = 3  # 3x3 convolution


def _feature_kernel(x_ref, ws_ref, bs_ref, wd_ref, bd_ref, o_ref, xpad_ref, fpad_ref):
    """Fused shallow-conv -> (RSTB identity) -> deep-conv + residual for one batch element.

    x_ref   : (1, H, W, Cin)        NHWC input tile
    ws_ref  : (9, Cin, Cout)        shallow 3x3 weights, tap-major (HWIO flattened)
    bs_ref  : (1, Cout)             shallow bias
    wd_ref  : (9, Cout, Cout)       deep 3x3 weights, tap-major
    bd_ref  : (1, Cout)             deep bias
    o_ref   : (1, H*W, Cout)        output tile
    xpad_ref: VMEM (H+2, W+2, Cin)  zero-padded input scratch
    fpad_ref: VMEM (H+2, W+2, Cout) zero-padded shallow-feature scratch
    """
    H, W, Cin = x_ref.shape[1], x_ref.shape[2], x_ref.shape[3]
    Cout = o_ref.shape[2]
    HW = H * W

    # ---- shallow conv: zero-pad the halo in VMEM (no HBM-side jnp.pad) ----
    xpad_ref[...] = jnp.zeros_like(xpad_ref)
    xpad_ref[1:H + 1, 1:W + 1, :] = x_ref[0]

    # 9 tap-wise MXU matmuls: (H*W, Cin) @ (Cin, Cout), f32 accumulation.
    f = jnp.zeros((HW, Cout), jnp.float32)
    for di in range(KSIZE):
        for dj in range(KSIZE):
            patch = xpad_ref[di:di + H, dj:dj + W, :].reshape(HW, Cin)
            f = f + jnp.dot(patch, ws_ref[di * KSIZE + dj],
                            preferred_element_type=jnp.float32)
    f = f + bs_ref[...]

    # TODO(synk): RSTB source is not provided with the module; the RSTB stack is applied as identity.

    # ---- deep conv over f (f never leaves VMEM) + residual ----
    fpad_ref[...] = jnp.zeros_like(fpad_ref)
    fpad_ref[1:H + 1, 1:W + 1, :] = f.reshape(H, W, Cout)

    acc = jnp.zeros((HW, Cout), jnp.float32)
    for di in range(KSIZE):
        for dj in range(KSIZE):
            patch = fpad_ref[di:di + H, dj:dj + W, :].reshape(HW, Cout)
            acc = acc + jnp.dot(patch, wd_ref[di * KSIZE + dj],
                                preferred_element_type=jnp.float32)

    o_ref[...] = (acc + bd_ref[...] + f)[None].astype(o_ref.dtype)


def feature_forward(img_nchw, params):
    """Full `feature.forward`: NCHW in, NCHW out (matches the PyTorch module)."""
    N, Cin, H, W = img_nchw.shape
    Cout = params["w_shallow"].shape[-1]
    HW = H * W

    x = jnp.transpose(img_nchw, (0, 2, 3, 1))                       # NCHW -> NHWC (tiny)
    ws = params["w_shallow"].reshape(KSIZE * KSIZE, Cin, Cout)      # HWIO -> (tap, Cin, Cout)
    wd = params["w_deep"].reshape(KSIZE * KSIZE, Cout, Cout)
    bs = params["b_shallow"].reshape(1, Cout)
    bd = params["b_deep"].reshape(1, Cout)

    out = pl.pallas_call(
        _feature_kernel,
        out_shape=jax.ShapeDtypeStruct((N, HW, Cout), img_nchw.dtype),
        grid=(N,),
        in_specs=[
            pl.BlockSpec((1, H, W, Cin), lambda n: (n, 0, 0, 0)),
            pl.BlockSpec((KSIZE * KSIZE, Cin, Cout), lambda n: (0, 0, 0)),
            pl.BlockSpec((1, Cout), lambda n: (0, 0)),
            pl.BlockSpec((KSIZE * KSIZE, Cout, Cout), lambda n: (0, 0, 0)),
            pl.BlockSpec((1, Cout), lambda n: (0, 0)),
        ],
        out_specs=pl.BlockSpec((1, HW, Cout), lambda n: (n, 0, 0)),
        scratch_shapes=[
            pltpu.VMEM((H + 2, W + 2, Cin), jnp.float32),
            pltpu.VMEM((H + 2, W + 2, Cout), jnp.float32),
        ],
        compiler_params=pltpu.CompilerParams(dimension_semantics=("parallel",)),
    )(x, ws, bs, wd, bd)

    # (N, H*W, Cout) -> NCHW (trivial XLA rearrangement of a tiny output)
    return jnp.transpose(out.reshape(N, H, W, Cout), (0, 3, 1, 2))


def init_params(key, cin, cout):
    """Deterministic synthetic parameters in HWIO layout.

    NOTE: real PyTorch Conv2d weights are OIHW; loading a checkpoint requires
    a (2, 3, 1, 0) permute to HWIO before the reshape used above.
    """
    k0, k1, k2, k3 = jax.random.split(key, 4)
    return {
        "w_shallow": jax.random.normal(k0, (KSIZE, KSIZE, cin, cout), jnp.float32) * 0.1,
        "b_shallow": jax.random.normal(k1, (cout,), jnp.float32) * 0.1,
        "w_deep": jax.random.normal(k2, (KSIZE, KSIZE, cout, cout), jnp.float32) * 0.1,
        "b_deep": jax.random.normal(k3, (cout,), jnp.float32) * 0.1,
    }


def reference_forward(img_nchw, params):
    """Pure-JAX reference (lax conv, highest precision) for correctness checking."""
    dn = ("NHWC", "HWIO", "NHWC")
    x = jnp.transpose(img_nchw, (0, 2, 3, 1))
    f = jax.lax.conv_general_dilated(
        x, params["w_shallow"], (1, 1), "SAME", dimension_numbers=dn,
        precision=jax.lax.Precision.HIGHEST) + params["b_shallow"]
    out = jax.lax.conv_general_dilated(
        f, params["w_deep"], (1, 1), "SAME", dimension_numbers=dn,
        precision=jax.lax.Precision.HIGHEST) + params["b_deep"] + f
    return jnp.transpose(out, (0, 3, 1, 2))


if __name__ == "__main__":
    key = jax.random.PRNGKey(0)
    k_img, k_par = jax.random.split(key)

    # input_dimension=(3,16,16), output_dimension=(8,16,16), batch=2
    N, C_IN, C_OUT, H, W = 2, 3, 8, 16, 16
    img = jax.random.normal(k_img, (N, C_IN, H, W), jnp.float32)
    params = init_params(k_par, C_IN, C_OUT)

    out = jax.block_until_ready(jax.jit(feature_forward)(img, params))
    ref = jax.block_until_ready(reference_forward(img, params))

    assert out.shape == (N, C_OUT, H, W)
    # MXU matmuls may use reduced-precision passes internally -> MXU-level tolerance.
    err = float(jnp.max(jnp.abs(out - ref)))
    assert jnp.allclose(out, ref, atol=2e-2, rtol=2e-2), f"max abs err = {err}"
    print("KERNEL_OK")
</pallas_src>

<mosaic_0001>
module attributes {stable_mosaic.version = 11 : i64} {
  func.func @_feature_kernel(%arg0: i32, %arg1: memref<1x16x16x3xf32, #tpu.memory_space<vmem>>, %arg2: memref<9x3x8xf32, #tpu.memory_space<vmem>>, %arg3: memref<1x8xf32, #tpu.memory_space<vmem>>, %arg4: memref<9x8x8xf32, #tpu.memory_space<vmem>>, %arg5: memref<1x8xf32, #tpu.memory_space<vmem>>, %arg6: memref<1x256x8xf32, #tpu.memory_space<vmem>>, %arg7: memref<18x18x3xf32, #tpu.memory_space<vmem>>, %arg8: memref<18x18x8xf32, #tpu.memory_space<vmem>>) attributes {dimension_semantics = [#tpu.dimension_semantics<parallel>], iteration_bounds = array<i64: 2>, scalar_prefetch = 0 : i64, scratch_operands = 2 : i64, tpu.core_type = #tpu.core_type<tc>, window_params = [{transform_indices = @transform_0, window_bounds = array<i64: 1, 16, 16, 3>}, {pipeline_mode = #tpu.pipeline_mode<synchronous>, transform_indices = @transform_1, window_bounds = array<i64: 9, 3, 8>}, {pipeline_mode = #tpu.pipeline_mode<synchronous>, transform_indices = @transform_2, window_bounds = array<i64: 1, 8>}, {pipeline_mode = #tpu.pipeline_mode<synchronous>, transform_indices = @transform_3, window_bounds = array<i64: 9, 8, 8>}, {pipeline_mode = #tpu.pipeline_mode<synchronous>, transform_indices = @transform_4, window_bounds = array<i64: 1, 8>}, {transform_indices = @transform_5, window_bounds = array<i64: 1, 256, 8>}]} {
    %cst = arith.constant 0.000000e+00 : f32
    %0 = vector.broadcast %cst : f32 to vector<18x18x3xf32>
    %c0 = arith.constant 0 : index
    %c0_0 = arith.constant 0 : index
    %c0_1 = arith.constant 0 : index
    %1 = vector.load %arg7[%c0, %c0_0, %c0_1] : memref<18x18x3xf32, #tpu.memory_space<vmem>>, vector<18x18x3xf32>
    tpu.vector_store %arg7[%c0, %c0_0, %c0_1], %0 {strides = array<i32>} : memref<18x18x3xf32, #tpu.memory_space<vmem>>, vector<18x18x3xf32>,
    %c0_2 = arith.constant 0 : index
    %c0_3 = arith.constant 0 : index
    %c0_4 = arith.constant 0 : index
    %c0_5 = arith.constant 0 : index
    %2 = vector.load %arg1[%c0_2, %c0_3, %c0_4, %c0_5] : memref<1x16x16x3xf32, #tpu.memory_space<vmem>>, vector<1x16x16x3xf32>
    %3 = vector.shape_cast %2 : vector<1x16x16x3xf32> to vector<16x16x3xf32>
    %c1 = arith.constant 1 : index
    %c1_6 = arith.constant 1 : index
    %c0_7 = arith.constant 0 : index
    %4 = vector.load %arg7[%c1, %c1_6, %c0_7] : memref<18x18x3xf32, #tpu.memory_space<vmem>>, vector<16x16x3xf32>
    tpu.vector_store %arg7[%c1, %c1_6, %c0_7], %3 {strides = array<i32>} : memref<18x18x3xf32, #tpu.memory_space<vmem>>, vector<16x16x3xf32>,
    %cst_8 = arith.constant 0.000000e+00 : f32
    %5 = vector.broadcast %cst_8 : f32 to vector<256x8xf32>
    %c0_9 = arith.constant 0 : index
    %c0_10 = arith.constant 0 : index
    %c0_11 = arith.constant 0 : index
    %6 = vector.load %arg7[%c0_9, %c0_10, %c0_11] : memref<18x18x3xf32, #tpu.memory_space<vmem>>, vector<16x16x3xf32>
    %7 = vector.shape_cast %6 : vector<16x16x3xf32> to vector<256x3xf32>
    %c0_12 = arith.constant 0 : index
    %c0_13 = arith.constant 0 : index
    %c0_14 = arith.constant 0 : index
    %8 = vector.load %arg2[%c0_12, %c0_13, %c0_14] : memref<9x3x8xf32, #tpu.memory_space<vmem>>, vector<1x3x8xf32>
    %9 = vector.shape_cast %8 : vector<1x3x8xf32> to vector<3x8xf32>
    %cst_15 = arith.constant dense<0.000000e+00> : vector<256x8xf32>
    %10 = tpu.matmul %7, %9, %cst_15 {dimension_numbers = #tpu.dot_dimension_numbers<[1], [0], [0], [1], [0, 0, 1, 1], [], []>} : vector<256x3xf32>, vector<3x8xf32>, vector<256x8xf32> -> vector<256x8xf32>
    %11 = arith.addf %5, %10 : vector<256x8xf32>
    %c0_16 = arith.constant 0 : index
    %c1_17 = arith.constant 1 : index
    %c0_18 = arith.constant 0 : index
    %12 = vector.load %arg7[%c0_16, %c1_17, %c0_18] : memref<18x18x3xf32, #tpu.memory_space<vmem>>, vector<16x16x3xf32>
    %13 = vector.shape_cast %12 : vector<16x16x3xf32> to vector<256x3xf32>
    %c1_19 = arith.constant 1 : index
    %c0_20 = arith.constant 0 : index
    %c0_21 = arith.constant 0 : index
    %14 = vector.load %arg2[%c1_19, %c0_20, %c0_21] : memref<9x3x8xf32, #tpu.memory_space<vmem>>, vector<1x3x8xf32>
    %15 = vector.shape_cast %14 : vector<1x3x8xf32> to vector<3x8xf32>
    %cst_22 = arith.constant dense<0.000000e+00> : vector<256x8xf32>
    %16 = tpu.matmul %13, %15, %cst_22 {dimension_numbers = #tpu.dot_dimension_numbers<[1], [0], [0], [1], [0, 0, 1, 1], [], []>} : vector<256x3xf32>, vector<3x8xf32>, vector<256x8xf32> -> vector<256x8xf32>
    %17 = arith.addf %11, %16 : vector<256x8xf32>
    %c0_23 = arith.constant 0 : index
    %c2 = arith.constant 2 : index
    %c0_24 = arith.constant 0 : index
    %18 = vector.load %arg7[%c0_23, %c2, %c0_24] : memref<18x18x3xf32, #tpu.memory_space<vmem>>, vector<16x16x3xf32>
    %19 = vector.shape_cast %18 : vector<16x16x3xf32> to vector<256x3xf32>
    %c2_25 = arith.constant 2 : index
    %c0_26 = arith.constant 0 : index
    %c0_27 = arith.constant 0 : index
    %20 = vector.load %arg2[%c2_25, %c0_26, %c0_27] : memref<9x3x8xf32, #tpu.memory_space<vmem>>, vector<1x3x8xf32>
    %21 = vector.shape_cast %20 : vector<1x3x8xf32> to vector<3x8xf32>
    %cst_28 = arith.constant dense<0.000000e+00> : vector<256x8xf32>
    %22 = tpu.matmul %19, %21, %cst_28 {dimension_numbers = #tpu.dot_dimension_numbers<[1], [0], [0], [1], [0, 0, 1, 1], [], []>} : vector<256x3xf32>, vector<3x8xf32>, vector<256x8xf32> -> vector<256x8xf32>
    %23 = arith.addf %17, %22 : vector<256x8xf32>
    %c1_29 = arith.constant 1 : index
    %c0_30 = arith.constant 0 : index
    %c0_31 = arith.constant 0 : index
    %24 = vector.load %arg7[%c1_29, %c0_30, %c0_31] : memref<18x18x3xf32, #tpu.memory_space<vmem>>, vector<16x16x3xf32>
    %25 = vector.shape_cast %24 : vector<16x16x3xf32> to vector<256x3xf32>
    %c3 = arith.constant 3 : index
    %c0_32 = arith.constant 0 : index
    %c0_33 = arith.constant 0 : index
    %26 = vector.load %arg2[%c3, %c0_32, %c0_33] : memref<9x3x8xf32, #tpu.memory_space<vmem>>, vector<1x3x8xf32>
    %27 = vector.shape_cast %26 : vector<1x3x8xf32> to vector<3x8xf32>
    %cst_34 = arith.constant dense<0.000000e+00> : vector<256x8xf32>
    %28 = tpu.matmul %25, %27, %cst_34 {dimension_numbers = #tpu.dot_dimension_numbers<[1], [0], [0], [1], [0, 0, 1, 1], [], []>} : vector<256x3xf32>, vector<3x8xf32>, vector<256x8xf32> -> vector<256x8xf32>
    %29 = arith.addf %23, %28 : vector<256x8xf32>
    %c1_35 = arith.constant 1 : index
    %c1_36 = arith.constant 1 : index
    %c0_37 = arith.constant 0 : index
    %30 = vector.load %arg7[%c1_35, %c1_36, %c0_37] : memref<18x18x3xf32, #tpu.memory_space<vmem>>, vector<16x16x3xf32>
    %31 = vector.shape_cast %30 : vector<16x16x3xf32> to vector<256x3xf32>
    %c4 = arith.constant 4 : index
    %c0_38 = arith.constant 0 : index
    %c0_39 = arith.constant 0 : index
    %32 = vector.load %arg2[%c4, %c0_38, %c0_39] : memref<9x3x8xf32, #tpu.memory_space<vmem>>, vector<1x3x8xf32>
    %33 = vector.shape_cast %32 : vector<1x3x8xf32> to vector<3x8xf32>
    %cst_40 = arith.constant dense<0.000000e+00> : vector<256x8xf32>
    %34 = tpu.matmul %31, %33, %cst_40 {dimension_numbers = #tpu.dot_dimension_numbers<[1], [0], [0], [1], [0, 0, 1, 1], [], []>} : vector<256x3xf32>, vector<3x8xf32>, vector<256x8xf32> -> vector<256x8xf32>
    %35 = arith.addf %29, %34 : vector<256x8xf32>
    %c1_41 = arith.constant 1 : index
    %c2_42 = arith.constant 2 : index
    %c0_43 = arith.constant 0 : index
    %36 = vector.load %arg7[%c1_41, %c2_42, %c0_43] : memref<18x18x3xf32, #tpu.memory_space<vmem>>, vector<16x16x3xf32>
    %37 = vector.shape_cast %36 : vector<16x16x3xf32> to vector<256x3xf32>
    %c5 = arith.constant 5 : index
    %c0_44 = arith.constant 0 : index
    %c0_45 = arith.constant 0 : index
    %38 = vector.load %arg2[%c5, %c0_44, %c0_45] : memref<9x3x8xf32, #tpu.memory_space<vmem>>, vector<1x3x8xf32>
    %39 = vector.shape_cast %38 : vector<1x3x8xf32> to vector<3x8xf32>
    %cst_46 = arith.constant dense<0.000000e+00> : vector<256x8xf32>
    %40 = tpu.matmul %37, %39, %cst_46 {dimension_numbers = #tpu.dot_dimension_numbers<[1], [0], [0], [1], [0, 0, 1, 1], [], []>} : vector<256x3xf32>, vector<3x8xf32>, vector<256x8xf32> -> vector<256x8xf32>
    %41 = arith.addf %35, %40 : vector<256x8xf32>
    %c2_47 = arith.constant 2 : index
    %c0_48 = arith.constant 0 : index
    %c0_49 = arith.constant 0 : index
    %42 = vector.load %arg7[%c2_47, %c0_48, %c0_49] : memref<18x18x3xf32, #tpu.memory_space<vmem>>, vector<16x16x3xf32>
    %43 = vector.shape_cast %42 : vector<16x16x3xf32> to vector<256x3xf32>
    %c6 = arith.constant 6 : index
    %c0_50 = arith.constant 0 : index
    %c0_51 = arith.constant 0 : index
    %44 = vector.load %arg2[%c6, %c0_50, %c0_51] : memref<9x3x8xf32, #tpu.memory_space<vmem>>, vector<1x3x8xf32>
    %45 = vector.shape_cast %44 : vector<1x3x8xf32> to vector<3x8xf32>
    %cst_52 = arith.constant dense<0.000000e+00> : vector<256x8xf32>
    %46 = tpu.matmul %43, %45, %cst_52 {dimension_numbers = #tpu.dot_dimension_numbers<[1], [0], [0], [1], [0, 0, 1, 1], [], []>} : vector<256x3xf32>, vector<3x8xf32>, vector<256x8xf32> -> vector<256x8xf32>
    %47 = arith.addf %41, %46 : vector<256x8xf32>
    %c2_53 = arith.constant 2 : index
    %c1_54 = arith.constant 1 : index
    %c0_55 = arith.constant 0 : index
    %48 = vector.load %arg7[%c2_53, %c1_54, %c0_55] : memref<18x18x3xf32, #tpu.memory_space<vmem>>, vector<16x16x3xf32>
    %49 = vector.shape_cast %48 : vector<16x16x3xf32> to vector<256x3xf32>
    %c7 = arith.constant 7 : index
    %c0_56 = arith.constant 0 : index
    %c0_57 = arith.constant 0 : index
    %50 = vector.load %arg2[%c7, %c0_56, %c0_57] : memref<9x3x8xf32, #tpu.memory_space<vmem>>, vector<1x3x8xf32>
    %51 = vector.shape_cast %50 : vector<1x3x8xf32> to vector<3x8xf32>
    %cst_58 = arith.constant dense<0.000000e+00> : vector<256x8xf32>
    %52 = tpu.matmul %49, %51, %cst_58 {dimension_numbers = #tpu.dot_dimension_numbers<[1], [0], [0], [1], [0, 0, 1, 1], [], []>} : vector<256x3xf32>, vector<3x8xf32>, vector<256x8xf32> -> vector<256x8xf32>
    %53 = arith.addf %47, %52 : vector<256x8xf32>
    %c2_59 = arith.constant 2 : index
    %c2_60 = arith.constant 2 : index
    %c0_61 = arith.constant 0 : index
    %54 = vector.load %arg7[%c2_59, %c2_60, %c0_61] : memref<18x18x3xf32, #tpu.memory_space<vmem>>, vector<16x16x3xf32>
    %55 = vector.shape_cast %54 : vector<16x16x3xf32> to vector<256x3xf32>
    %c8 = arith.constant 8 : index
    %c0_62 = arith.constant 0 : index
    %c0_63 = arith.constant 0 : index
    %56 = vector.load %arg2[%c8, %c0_62, %c0_63] : memref<9x3x8xf32, #tpu.memory_space<vmem>>, vector<1x3x8xf32>
    %57 = vector.shape_cast %56 : vector<1x3x8xf32> to vector<3x8xf32>
    %cst_64 = arith.constant dense<0.000000e+00> : vector<256x8xf32>
    %58 = tpu.matmul %55, %57, %cst_64 {dimension_numbers = #tpu.dot_dimension_numbers<[1], [0], [0], [1], [0, 0, 1, 1], [], []>} : vector<256x3xf32>, vector<3x8xf32>, vector<256x8xf32> -> vector<256x8xf32>
    %59 = arith.addf %53, %58 : vector<256x8xf32>
    %c0_65 = arith.constant 0 : index
    %c0_66 = arith.constant 0 : index
    %60 = vector.load %arg3[%c0_65, %c0_66] : memref<1x8xf32, #tpu.memory_space<vmem>>, vector<1x8xf32>
    %61 = vector.broadcast %60 : vector<1x8xf32> to vector<256x8xf32>
    %62 = arith.addf %59, %61 : vector<256x8xf32>
    %cst_67 = arith.constant 0.000000e+00 : f32
    %63 = vector.broadcast %cst_67 : f32 to vector<18x18x8xf32>
    %c0_68 = arith.constant 0 : index
    %c0_69 = arith.constant 0 : index
    %c0_70 = arith.constant 0 : index
    %64 = vector.load %arg8[%c0_68, %c0_69, %c0_70] : memref<18x18x8xf32, #tpu.memory_space<vmem>>, vector<18x18x8xf32>
    tpu.vector_store %arg8[%c0_68, %c0_69, %c0_70], %63 {strides = array<i32>} : memref<18x18x8xf32, #tpu.memory_space<vmem>>, vector<18x18x8xf32>,
    %65 = vector.shape_cast %62 : vector<256x8xf32> to vector<16x16x8xf32>
    %c1_71 = arith.constant 1 : index
    %c1_72 = arith.constant 1 : index
    %c0_73 = arith.constant 0 : index
    %66 = vector.load %arg8[%c1_71, %c1_72, %c0_73] : memref<18x18x8xf32, #tpu.memory_space<vmem>>, vector<16x16x8xf32>
    tpu.vector_store %arg8[%c1_71, %c1_72, %c0_73], %65 {strides = array<i32>} : memref<18x18x8xf32, #tpu.memory_space<vmem>>, vector<16x16x8xf32>,
    %cst_74 = arith.constant 0.000000e+00 : f32
    %67 = vector.broadcast %cst_74 : f32 to vector<256x8xf32>
    %c0_75 = arith.constant 0 : index
    %c0_76 = arith.constant 0 : index
    %c0_77 = arith.constant 0 : index
    %68 = vector.load %arg8[%c0_75, %c0_76, %c0_77] : memref<18x18x8xf32, #tpu.memory_space<vmem>>, vector<16x16x8xf32>
    %69 = vector.shape_cast %68 : vector<16x16x8xf32> to vector<256x8xf32>
    %c0_78 = arith.constant 0 : index
    %c0_79 = arith.constant 0 : index
    %c0_80 = arith.constant 0 : index
    %70 = vector.load %arg4[%c0_78, %c0_79, %c0_80] : memref<9x8x8xf32, #tpu.memory_space<vmem>>, vector<1x8x8xf32>
    %71 = vector.shape_cast %70 : vector<1x8x8xf32> to vector<8x8xf32>
    %cst_81 = arith.constant dense<0.000000e+00> : vector<256x8xf32>
    %72 = tpu.matmul %69, %71, %cst_81 {dimension_numbers = #tpu.dot_dimension_numbers<[1], [0], [0], [1], [0, 0, 1, 1], [], []>} : vector<256x8xf32>, vector<8x8xf32>, vector<256x8xf32> -> vector<256x8xf32>
    %73 = arith.addf %67, %72 : vector<256x8xf32>
    %c0_82 = arith.constant 0 : index
    %c1_83 = arith.constant 1 : index
    %c0_84 = arith.constant 0 : index
    %74 = vector.load %arg8[%c0_82, %c1_83, %c0_84] : memref<18x18x8xf32, #tpu.memory_space<vmem>>, vector<16x16x8xf32>
    %75 = vector.shape_cast %74 : vector<16x16x8xf32> to vector<256x8xf32>
    %c1_85 = arith.constant 1 : index
    %c0_86 = arith.constant 0 : index
    %c0_87 = arith.constant 0 : index
    %76 = vector.load %arg4[%c1_85, %c0_86, %c0_87] : memref<9x8x8xf32, #tpu.memory_space<vmem>>, vector<1x8x8xf32>
    %77 = vector.shape_cast %76 : vector<1x8x8xf32> to vector<8x8xf32>
    %cst_88 = arith.constant dense<0.000000e+00> : vector<256x8xf32>
    %78 = tpu.matmul %75, %77, %cst_88 {dimension_numbers = #tpu.dot_dimension_numbers<[1], [0], [0], [1], [0, 0, 1, 1], [], []>} : vector<256x8xf32>, vector<8x8xf32>, vector<256x8xf32> -> vector<256x8xf32>
    %79 = arith.addf %73, %78 : vector<256x8xf32>
    %c0_89 = arith.constant 0 : index
    %c2_90 = arith.constant 2 : index
    %c0_91 = arith.constant 0 : index
    %80 = vector.load %arg8[%c0_89, %c2_90, %c0_91] : memref<18x18x8xf32, #tpu.memory_space<vmem>>, vector<16x16x8xf32>
    %81 = vector.shape_cast %80 : vector<16x16x8xf32> to vector<256x8xf32>
    %c2_92 = arith.constant 2 : index
    %c0_93 = arith.constant 0 : index
    %c0_94 = arith.constant 0 : index
    %82 = vector.load %arg4[%c2_92, %c0_93, %c0_94] : memref<9x8x8xf32, #tpu.memory_space<vmem>>, vector<1x8x8xf32>
    %83 = vector.shape_cast %82 : vector<1x8x8xf32> to vector<8x8xf32>
    %cst_95 = arith.constant dense<0.000000e+00> : vector<256x8xf32>
    %84 = tpu.matmul %81, %83, %cst_95 {dimension_numbers = #tpu.dot_dimension_numbers<[1], [0], [0], [1], [0, 0, 1, 1], [], []>} : vector<256x8xf32>, vector<8x8xf32>, vector<256x8xf32> -> vector<256x8xf32>
    %85 = arith.addf %79, %84 : vector<256x8xf32>
    %c1_96 = arith.constant 1 : index
    %c0_97 = arith.constant 0 : index
    %c0_98 = arith.constant 0 : index
    %86 = vector.load %arg8[%c1_96, %c0_97, %c0_98] : memref<18x18x8xf32, #tpu.memory_space<vmem>>, vector<16x16x8xf32>
    %87 = vector.shape_cast %86 : vector<16x16x8xf32> to vector<256x8xf32>
    %c3_99 = arith.constant 3 : index
    %c0_100 = arith.constant 0 : index
    %c0_101 = arith.constant 0 : index
    %88 = vector.load %arg4[%c3_99, %c0_100, %c0_101] : memref<9x8x8xf32, #tpu.memory_space<vmem>>, vector<1x8x8xf32>
    %89 = vector.shape_cast %88 : vector<1x8x8xf32> to vector<8x8xf32>
    %cst_102 = arith.constant dense<0.000000e+00> : vector<256x8xf32>
    %90 = tpu.matmul %87, %89, %cst_102 {dimension_numbers = #tpu.dot_dimension_numbers<[1], [0], [0], [1], [0, 0, 1, 1], [], []>} : vector<256x8xf32>, vector<8x8xf32>, vector<256x8xf32> -> vector<256x8xf32>
    %91 = arith.addf %85, %90 : vector<256x8xf32>
    %c1_103 = arith.constant 1 : index
    %c1_104 = arith.constant 1 : index
    %c0_105 = arith.constant 0 : index
    %92 = vector.load %arg8[%c1_103, %c1_104, %c0_105] : memref<18x18x8xf32, #tpu.memory_space<vmem>>, vector<16x16x8xf32>
    %93 = vector.shape_cast %92 : vector<16x16x8xf32> to vector<256x8xf32>
    %c4_106 = arith.constant 4 : index
    %c0_107 = arith.constant 0 : index
    %c0_108 = arith.constant 0 : index
    %94 = vector.load %arg4[%c4_106, %c0_107, %c0_108] : memref<9x8x8xf32, #tpu.memory_space<vmem>>, vector<1x8x8xf32>
    %95 = vector.shape_cast %94 : vector<1x8x8xf32> to vector<8x8xf32>
    %cst_109 = arith.constant dense<0.000000e+00> : vector<256x8xf32>
    %96 = tpu.matmul %93, %95, %cst_109 {dimension_numbers = #tpu.dot_dimension_numbers<[1], [0], [0], [1], [0, 0, 1, 1], [], []>} : vector<256x8xf32>, vector<8x8xf32>, vector<256x8xf32> -> vector<256x8xf32>
    %97 = arith.addf %91, %96 : vector<256x8xf32>
    %c1_110 = arith.constant 1 : index
    %c2_111 = arith.constant 2 : index
    %c0_112 = arith.constant 0 : index
    %98 = vector.load %arg8[%c1_110, %c2_111, %c0_112] : memref<18x18x8xf32, #tpu.memory_space<vmem>>, vector<16x16x8xf32>
    %99 = vector.shape_cast %98 : vector<16x16x8xf32> to vector<256x8xf32>
    %c5_113 = arith.constant 5 : index
    %c0_114 = arith.constant 0 : index
    %c0_115 = arith.constant 0 : index
    %100 = vector.load %arg4[%c5_113, %c0_114, %c0_115] : memref<9x8x8xf32, #tpu.memory_space<vmem>>, vector<1x8x8xf32>
    %101 = vector.shape_cast %100 : vector<1x8x8xf32> to vector<8x8xf32>
    %cst_116 = arith.constant dense<0.000000e+00> : vector<256x8xf32>
    %102 = tpu.matmul %99, %101, %cst_116 {dimension_numbers = #tpu.dot_dimension_numbers<[1], [0], [0], [1], [0, 0, 1, 1], [], []>} : vector<256x8xf32>, vector<8x8xf32>, vector<256x8xf32> -> vector<256x8xf32>
    %103 = arith.addf %97, %102 : vector<256x8xf32>
    %c2_117 = arith.constant 2 : index
    %c0_118 = arith.constant 0 : index
    %c0_119 = arith.constant 0 : index
    %104 = vector.load %arg8[%c2_117, %c0_118, %c0_119] : memref<18x18x8xf32, #tpu.memory_space<vmem>>, vector<16x16x8xf32>
    %105 = vector.shape_cast %104 : vector<16x16x8xf32> to vector<256x8xf32>
    %c6_120 = arith.constant 6 : index
    %c0_121 = arith.constant 0 : index
    %c0_122 = arith.constant 0 : index
    %106 = vector.load %arg4[%c6_120, %c0_121, %c0_122] : memref<9x8x8xf32, #tpu.memory_space<vmem>>, vector<1x8x8xf32>
    %107 = vector.shape_cast %106 : vector<1x8x8xf32> to vector<8x8xf32>
    %cst_123 = arith.constant dense<0.000000e+00> : vector<256x8xf32>
    %108 = tpu.matmul %105, %107, %cst_123 {dimension_numbers = #tpu.dot_dimension_numbers<[1], [0], [0], [1], [0, 0, 1, 1], [], []>} : vector<256x8xf32>, vector<8x8xf32>, vector<256x8xf32> -> vector<256x8xf32>
    %109 = arith.addf %103, %108 : vector<256x8xf32>
    %c2_124 = arith.constant 2 : index
    %c1_125 = arith.constant 1 : index
    %c0_126 = arith.constant 0 : index
    %110 = vector.load %arg8[%c2_124, %c1_125, %c0_126] : memref<18x18x8xf32, #tpu.memory_space<vmem>>, vector<16x16x8xf32>
    %111 = vector.shape_cast %110 : vector<16x16x8xf32> to vector<256x8xf32>
    %c7_127 = arith.constant 7 : index
    %c0_128 = arith.constant 0 : index
    %c0_129 = arith.constant 0 : index
    %112 = vector.load %arg4[%c7_127, %c0_128, %c0_129] : memref<9x8x8xf32, #tpu.memory_space<vmem>>, vector<1x8x8xf32>
    %113 = vector.shape_cast %112 : vector<1x8x8xf32> to vector<8x8xf32>
    %cst_130 = arith.constant dense<0.000000e+00> : vector<256x8xf32>
    %114 = tpu.matmul %111, %113, %cst_130 {dimension_numbers = #tpu.dot_dimension_numbers<[1], [0], [0], [1], [0, 0, 1, 1], [], []>} : vector<256x8xf32>, vector<8x8xf32>, vector<256x8xf32> -> vector<256x8xf32>
    %115 = arith.addf %109, %114 : vector<256x8xf32>
    %c2_131 = arith.constant 2 : index
    %c2_132 = arith.constant 2 : index
    %c0_133 = arith.constant 0 : index
    %116 = vector.load %arg8[%c2_131, %c2_132, %c0_133] : memref<18x18x8xf32, #tpu.memory_space<vmem>>, vector<16x16x8xf32>
    %117 = vector.shape_cast %116 : vector<16x16x8xf32> to vector<256x8xf32>
    %c8_134 = arith.constant 8 : index
    %c0_135 = arith.constant 0 : index
    %c0_136 = arith.constant 0 : index
    %118 = vector.load %arg4[%c8_134, %c0_135, %c0_136] : memref<9x8x8xf32, #tpu.memory_space<vmem>>, vector<1x8x8xf32>
    %119 = vector.shape_cast %118 : vector<1x8x8xf32> to vector<8x8xf32>
    %cst_137 = arith.constant dense<0.000000e+00> : vector<256x8xf32>
    %120 = tpu.matmul %117, %119, %cst_137 {dimension_numbers = #tpu.dot_dimension_numbers<[1], [0], [0], [1], [0, 0, 1, 1], [], []>} : vector<256x8xf32>, vector<8x8xf32>, vector<256x8xf32> -> vector<256x8xf32>
    %121 = arith.addf %115, %120 : vector<256x8xf32>
    %c0_138 = arith.constant 0 : index
    %c0_139 = arith.constant 0 : index
    %122 = vector.load %arg5[%c0_138, %c0_139] : memref<1x8xf32, #tpu.memory_space<vmem>>, vector<1x8xf32>
    %123 = vector.broadcast %122 : vector<1x8xf32> to vector<256x8xf32>
    %124 = arith.addf %121, %123 : vector<256x8xf32>
    %125 = arith.addf %124, %62 : vector<256x8xf32>
    %126 = vector.shape_cast %125 : vector<256x8xf32> to vector<1x256x8xf32>
    %c0_140 = arith.constant 0 : index
    %c0_141 = arith.constant 0 : index
    %c0_142 = arith.constant 0 : index
    %127 = vector.load %arg6[%c0_140, %c0_141, %c0_142] : memref<1x256x8xf32, #tpu.memory_space<vmem>>, vector<1x256x8xf32>
    tpu.vector_store %arg6[%c0_140, %c0_141, %c0_142], %126 {strides = array<i32>} : memref<1x256x8xf32, #tpu.memory_space<vmem>>, vector<1x256x8xf32>,
    return
  }
  func.func @transform_0(%arg0: i32) -> (i32, i32, i32, i32) {
    %c0_i32 = arith.constant 0 : i32
    %c0_i32_0 = arith.constant 0 : i32
    %c0_i32_1 = arith.constant 0 : i32
    %c0_i32_2 = arith.constant 0 : i32
    return %arg0, %c0_i32, %c0_i32_0, %c0_i32_1 : i32, i32, i32, i32
  }
  func.func @transform_1(%arg0: i32) -> (i32, i32, i32) {
    %c0_i32 = arith.constant 0 : i32
    %c0_i32_0 = arith.constant 0 : i32
    %c0_i32_1 = arith.constant 0 : i32
    %c0_i32_2 = arith.constant 0 : i32
    return %c0_i32, %c0_i32_0, %c0_i32_1 : i32, i32, i32
  }
  func.func @transform_2(%arg0: i32) -> (i32, i32) {
    %c0_i32 = arith.constant 0 : i32
    %c0_i32_0 = arith.constant 0 : i32
    %c0_i32_1 = arith.constant 0 : i32
    return %c0_i32, %c0_i32_0 : i32, i32
  }
  func.func @transform_3(%arg0: i32) -> (i32, i32, i32) {
    %c0_i32 = arith.constant 0 : i32
    %c0_i32_0 = arith.constant 0 : i32
    %c0_i32_1 = arith.constant 0 : i32
    %c0_i32_2 = arith.constant 0 : i32
    return %c0_i32, %c0_i32_0, %c0_i32_1 : i32, i32, i32
  }
  func.func @transform_4(%arg0: i32) -> (i32, i32) {
    %c0_i32 = arith.constant 0 : i32
    %c0_i32_0 = arith.constant 0 : i32
    %c0_i32_1 = arith.constant 0 : i32
    return %c0_i32, %c0_i32_0 : i32, i32
  }
  func.func @transform_5(%arg0: i32) -> (i32, i32, i32) {
    %c0_i32 = arith.constant 0 : i32
    %c0_i32_0 = arith.constant 0 : i32
    %c0_i32_1 = arith.constant 0 : i32
    return %arg0, %c0_i32, %c0_i32_0 : i32, i32, i32
  }
}

</mosaic_0001>

<llo_original>
// kernel: feature_forward.1
$region0: #{feature_forward.1}
  #allocation0 [shape = 'u32[]', space=smem, size = 0x4, offset = 0x4, fixed_abs, tag = 'smem constant byte address 0x4 - core index']
  #allocation1 [shape = 'u32[144,128]{1,0:T(1,128)}', space=vmem, size = 0x12000, scoped, tag = 'internal scratch']
  #allocation2 [shape = 'f32[18,18,3]{2,1,0:T(8,128)}', space=vmem, size = 0x36000, scoped, tag = 'scratch operand']
  #allocation3 [shape = 'f32[18,18,8]{2,1,0:T(8,128)}', space=vmem, size = 0x36000, scoped, tag = 'scratch operand']
  %s0 = inlined_call_operand.vmem [shape: f32[2,16,16,3], index: 0, kind: input, shape index: {}]
  %s1 = inlined_call_operand.vmem [shape: f32[9,3,8], index: 1, kind: input, shape index: {}]
  %s2 = inlined_call_operand.vmem [shape: f32[1,8], index: 2, kind: input, shape index: {}]
  %s3 = inlined_call_operand.vmem [shape: f32[9,8,8], index: 3, kind: input, shape index: {}]
  %s4 = inlined_call_operand.vmem [shape: f32[1,8], index: 4, kind: input, shape index: {}]
  %s5 = inlined_call_operand.vmem [shape: f32[2,256,8], index: 5, kind: output, shape index: {}]
  %s6 = sld [smem:[#allocation0]]
  $region53: #{feature_forward.1} parent=0
    _
  %s8 = ssub.s32 1, %s6
  %s9 = scalar_select 0, %s8, %s6
  loop: start=0, step=1, limit=4
  $region2: #{feature_forward.1} parent=0 // loop_pre_header
    _
  $region3: #{feature_forward.1} parent=0 // loop_header
    %s11 = sphi 0, %s15
    %p12 = scmp.ge.s32.totalorder %s11, 4
    %s21 = sphi 0, %s23
    %s24 = sphi 0, %s21
    %s25 = sphi 0, %s24
    %s41 = sphi 0, %s25
    %s45 = sphi 0, %s45
    %s47 = sphi 0, %s45
    %s48 = sphi 0, %s47
    %s62 = sphi 0, %s48
    %s66 = sphi 0, %s66
    %s68 = sphi 0, %s66
    %s69 = sphi 0, %s68
    %s83 = sphi 0, %s69
    %s87 = sphi 0, %s87
    %s89 = sphi 0, %s87
    %s90 = sphi 0, %s89
    %s104 = sphi 0, %s90
    %s108 = sphi 0, %s108
    %s110 = sphi 0, %s108
    %s111 = sphi 0, %s110
    %s125 = sphi 0, %s111
    %s131 = sphi 0, %s133
    %s134 = sphi 0, %s131
    %s135 = sphi 0, %s134
    %s151 = sphi 0, %s135
  $region4: #{feature_forward.1} parent=0 // loop_header_branch
    %14 = sbr.rel (%p12) target = $region8
  $region5: #{feature_forward.1} parent=0 // loop_body
    %s16 = ssub.s32 %s11, 1
    %s17 = ssub.s32 %s11, 2
    %s18 = sadd.s32 %s11, 1
    %s19 = ssub.s32 %s11, %s18
    %p20 = scmp.eq.s32.totalorder %s19, 0
    %s22 = sadd.s32 %s21, 1
    %s23 = scalar_select %p20, %s21, %s22
    %p26 = pneg %p20
    %p27 = scmp.eq.s32.totalorder %s11, 1
    %p28 = por %p26, %p27
    %p29 = scmp.ne.s32.totalorder %s21, %s24
    %p30 = scmp.eq.s32.totalorder %s11, 0
    %p31 = por %p29, %p30
    %p32 = scmp.ne.s32.totalorder %s21, %s24
    %p33 = scmp.eq.s32.totalorder %s16, 1
    %p34 = por %p32, %p33
    %p35 = scmp.ne.s32.totalorder %s24, %s25
    %p36 = scmp.eq.s32.totalorder %s16, 0
    %p37 = por %p35, %p36
    %p38 = scmp.ne.s32.totalorder %s24, %s25
    %p39 = scmp.eq.s32.totalorder %s17, 1
    %p40 = por %p38, %p39
    %p42 = scmp.ne.s32.totalorder %s25, %s41
    %p43 = scmp.eq.s32.totalorder %s17, 0
    %p44 = por %p42, %p43
    %s46 = sadd.s32 %s45, 1
    %p49 = scmp.eq.s32.totalorder %s11, 1
    %p50 = scmp.ne.s32.totalorder %s45, %s47
    %p51 = scmp.eq.s32.totalorder %s11, 0
    %p52 = por %p50, %p51
    %p53 = scmp.ne.s32.totalorder %s45, %s47
    %p54 = scmp.eq.s32.totalorder %s16, 1
    %p55 = por %p53, %p54
    %p56 = scmp.ne.s32.totalorder %s47, %s48
    %p57 = scmp.eq.s32.totalorder %s16, 0
    %p58 = por %p56, %p57
    %p59 = scmp.ne.s32.totalorder %s47, %s48
    %p60 = scmp.eq.s32.totalorder %s17, 1
    %p61 = por %p59, %p60
    %p63 = scmp.ne.s32.totalorder %s48, %s62
    %p64 = scmp.eq.s32.totalorder %s17, 0
    %p65 = por %p63, %p64
    %s67 = sadd.s32 %s66, 1
    %p70 = scmp.eq.s32.totalorder %s11, 1
    %p71 = scmp.ne.s32.totalorder %s66, %s68
    %p72 = scmp.eq.s32.totalorder %s11, 0
    %p73 = por %p71, %p72
    %p74 = scmp.ne.s32.totalorder %s66, %s68
    %p75 = scmp.eq.s32.totalorder %s16, 1
    %p76 = por %p74, %p75
    %p77 = scmp.ne.s32.totalorder %s68, %s69
    %p78 = scmp.eq.s32.totalorder %s16, 0
    %p79 = por %p77, %p78
    %p80 = scmp.ne.s32.totalorder %s68, %s69
    %p81 = scmp.eq.s32.totalorder %s17, 1
    %p82 = por %p80, %p81
    %p84 = scmp.ne.s32.totalorder %s69, %s83
    %p85 = scmp.eq.s32.totalorder %s17, 0
    %p86 = por %p84, %p85
    %s88 = sadd.s32 %s87, 1
    %p91 = scmp.eq.s32.totalorder %s11, 1
    %p92 = scmp.ne.s32.totalorder %s87, %s89
    %p93 = scmp.eq.s32.totalorder %s11, 0
    %p94 = por %p92, %p93
    %p95 = scmp.ne.s32.totalorder %s87, %s89
    %p96 = scmp.eq.s32.totalorder %s16, 1
    %p97 = por %p95, %p96
    %p98 = scmp.ne.s32.totalorder %s89, %s90
    %p99 = scmp.eq.s32.totalorder %s16, 0
    %p100 = por %p98, %p99
    %p101 = scmp.ne.s32.totalorder %s89, %s90
    %p102 = scmp.eq.s32.totalorder %s17, 1
    %p103 = por %p101, %p102
    %p105 = scmp.ne.s32.totalorder %s90, %s104
    %p106 = scmp.eq.s32.totalorder %s17, 0
    %p107 = por %p105, %p106
    %s109 = sadd.s32 %s108, 1
    %p112 = scmp.eq.s32.totalorder %s11, 1
    %p113 = scmp.ne.s32.totalorder %s108, %s110
    %p114 = scmp.eq.s32.totalorder %s11, 0
    %p115 = por %p113, %p114
    %p116 = scmp.ne.s32.totalorder %s108, %s110
    %p117 = scmp.eq.s32.totalorder %s16, 1
    %p118 = por %p116, %p117
    %p119 = scmp.ne.s32.totalorder %s110, %s111
    %p120 = scmp.eq.s32.totalorder %s16, 0
    %p121 = por %p119, %p120
    %p122 = scmp.ne.s32.totalorder %s110, %s111
    %p123 = scmp.eq.s32.totalorder %s17, 1
    %p124 = por %p122, %p123
    %p126 = scmp.ne.s32.totalorder %s111, %s125
    %p127 = scmp.eq.s32.totalorder %s17, 0
    %p128 = por %p126, %p127
    %s129 = ssub.s32 %s11, %s18
    %p130 = scmp.eq.s32.totalorder %s129, 0
    %s132 = sadd.s32 %s131, 1
    %s133 = scalar_select %p130, %s131, %s132
    %p136 = pneg %p130
    %p137 = scmp.eq.s32.totalorder %s11, 1
    %p138 = por %p136, %p137
    %p139 = scmp.ne.s32.totalorder %s131, %s134
    %p140 = scmp.eq.s32.totalorder %s11, 0
    %p141 = por %p139, %p140
    %p142 = scmp.ne.s32.totalorder %s131, %s134
    %p143 = scmp.eq.s32.totalorder %s16, 1
    %p144 = por %p142, %p143
    %p145 = scmp.ne.s32.totalorder %s134, %s135
    %p146 = scmp.eq.s32.totalorder %s16, 0
    %p147 = por %p145, %p146
    %p148 = scmp.ne.s32.totalorder %s134, %s135
    %p149 = scmp.eq.s32.totalorder %s17, 1
    %p150 = por %p148, %p149
    %p152 = scmp.ne.s32.totalorder %s135, %s151
    %p153 = scmp.eq.s32.totalorder %s17, 0
    %p154 = por %p152, %p153
    %p155 = scmp.le.s32.totalorder 1, %s11
    %p156 = scmp.lt.s32.totalorder %s11, 3
    %p157 = pnand %p155, %p156
    %p158 = pneg %p157
    // Predicated region
    $region9: #{feature_forward.1} parent=5 // pred_check
      _
    $region10: #{feature_forward.1} parent=5 // pred_check_branch
      %160 = sbr.rel (%p157) target = $region12
    $region11: #{feature_forward.1} parent=5 // pred_region
      %s161 = ssub.s32 %s11, 1
      // Predicated region
      $region13: #{feature_forward.1} parent=11 // pred_check
        %p162 = pneg %p58
      $region14: #{feature_forward.1} parent=11 // pred_check_branch
        %164 = sbr.rel (%p162) target = $region16
      $region15: #{feature_forward.1} parent=11 // pred_region
        _
      $region16: #{feature_forward.1} parent=11 // pred_fallthru
        _
      // Predicated region
      $region17: #{feature_forward.1} parent=11 // pred_check
        %p165 = pneg %p79
      $region18: #{feature_forward.1} parent=11 // pred_check_branch
        %167 = sbr.rel (%p165) target = $region20
      $region19: #{feature_forward.1} parent=11 // pred_region
        _
      $region20: #{feature_forward.1} parent=11 // pred_fallthru
        _
      // Predicated region
      $region21: #{feature_forward.1} parent=11 // pred_check
        %p168 = pneg %p100
      $region22: #{feature_forward.1} parent=11 // pred_check_branch
        %170 = sbr.rel (%p168) target = $region24
      $region23: #{feature_forward.1} parent=11 // pred_region
        _
      $region24: #{feature_forward.1} parent=11 // pred_fallthru
        _
      // Predicated region
      $region25: #{feature_forward.1} parent=11 // pred_check
        %p171 = pneg %p121
      $region26: #{feature_forward.1} parent=11 // pred_check_branch
        %173 = sbr.rel (%p171) target = $region28
      $region27: #{feature_forward.1} parent=11 // pred_region
        _
      $region28: #{feature_forward.1} parent=11 // pred_fallthru
        _
    $region12: #{feature_forward.1} parent=5 // pred_fallthru
      _
    %p174 = scmp.lt.s32.totalorder %s11, 2
    // Predicated region
    $region29: #{feature_forward.1} parent=5 // pred_check
      %p175 = pneg %p174
    $region30: #{feature_forward.1} parent=5 // pred_check_branch
      %177 = sbr.rel (%p175) target = $region32
    $region31: #{feature_forward.1} parent=5 // pred_region
      // Predicated region
      $region33: #{feature_forward.1} parent=31 // pred_check
        %p178 = pneg %p31
      $region34: #{feature_forward.1} parent=31 // pred_check_branch
        %180 = sbr.rel (%p178) target = $region36
      $region35: #{feature_forward.1} parent=31 // pred_region
        %p181 = scmp.lt.s32.totalorder %s11, 1
        %s182 = scalar_select %p181, %s11, 1
        %s183 = smul.addr %s182, 32
        %s184 = smul.addr %s183, 8
        %s185 = scalar_lea.vmem %s0, %s184
      $region36: #{feature_forward.1} parent=31 // pred_fallthru
        _
    $region32: #{feature_forward.1} parent=5 // pred_fallthru
      _
    %p186 = scmp.le.s32.totalorder 1, %s11
    %p187 = scmp.lt.s32.totalorder %s11, 3
    %p188 = pnand %p186, %p187
    %p189 = pneg %p188
    // Predicated region
    $region37: #{feature_forward.1} parent=5 // pred_check
      _
    $region38: #{feature_forward.1} parent=5 // pred_check_branch
      %191 = sbr.rel (%p188) target = $region40
    $region39: #{feature_forward.1} parent=5 // pred_region
      %s192 = ssub.s32 %s11, 1
      %p193 = scmp.lt.s32.totalorder %s16, 1
      %s194 = scalar_select %p193, %s16, 1
      %s195 = smul.addr %s194, 32
      %s196 = smul.addr %s195, 8
      %s197 = scalar_lea.vmem %s0, %s196
      %p198 = pneg %p37
      %p199 = pneg %p34
      %p200 = pneg %p58
      %p201 = pneg %p55
      %p202 = pneg %p79
      %p203 = pneg %p76
      %p204 = pneg %p100
      %p205 = pneg %p97
      %p206 = pneg %p121
      %p207 = pneg %p118
      %p208 = pneg %p147
      %p209 = pneg %p144
      %p210 = scmp.lt.s32.totalorder %s16, 1
      %s211 = scalar_select %p210, %s16, 1
      %s212 = smul.addr %s211, 32
      %s213 = smul.addr %s212, 8
      %s214 = scalar_lea.vmem %s5, %s213
      %p215 = scmp.lt.s32.totalorder %s16, 1
      %s216 = scalar_select %p215, %s16, 1
      %s217 = smul.addr %s216, 32
      %s218 = smul.addr %s217, 8
      %s219 = scalar_lea.vmem %s0, %s218
      %p220 = scmp.lt.s32.totalorder %s16, 1
      %s221 = scalar_select %p220, %s16, 1
      %s222 = smul.addr %s221, 32
      %s223 = smul.addr %s222, 8
      %s224 = scalar_lea.vmem %s5, %s223
      %vm225 = vcmask 23552
      %226 = vst.msk [vmem:[#allocation2] sm:$0xff] %vm225, 0.0
      %227 = vst.msk [vmem:[#allocation2 + $0x8] sm:$0xff] %vm225, 0.0
      %vm228 = vcmask 17408
      %229 = vst.msk [vmem:[#allocation2 + $0x10] sm:$0x3] %vm228, 0.0
      %230 = vst.msk [vmem:[#allocation2 + $0x18] sm:$0xff] %vm225, 0.0
      %231 = vst.msk [vmem:[#allocation2 + $0x20] sm:$0xff] %vm225, 0.0
      %232 = vst.msk [vmem:[#allocation2 + $0x28] sm:$0x3] %vm228, 0.0
      %233 = vst.msk [vmem:[#allocation2 + $0x30] sm:$0xff] %vm225, 0.0
      %234 = vst.msk [vmem:[#allocation2 + $0x38] sm:$0xff] %vm225, 0.0
      %235 = vst.msk [vmem:[#allocation2 + $0x40] sm:$0x3] %vm228, 0.0
      %236 = vst.msk [vmem:[#allocation2 + $0x48] sm:$0xff] %vm225, 0.0
      %237 = vst.msk [vmem:[#allocation2 + $0x50] sm:$0xff] %vm225, 0.0
      %238 = vst.msk [vmem:[#allocation2 + $0x58] sm:$0x3] %vm228, 0.0
      %239 = vst.msk [vmem:[#allocation2 + $0x60] sm:$0xff] %vm225, 0.0
      %240 = vst.msk [vmem:[#allocation2 + $0x68] sm:$0xff] %vm225, 0.0
      %241 = vst.msk [vmem:[#allocation2 + $0x70] sm:$0x3] %vm228, 0.0
      %242 = vst.msk [vmem:[#allocation2 + $0x78] sm:$0xff] %vm225, 0.0
      %243 = vst.msk [vmem:[#allocation2 + $0x80] sm:$0xff] %vm225, 0.0
      %244 = vst.msk [vmem:[#allocation2 + $0x88] sm:$0x3] %vm228, 0.0
      %245 = vst.msk [vmem:[#allocation2 + $0x90] sm:$0xff] %vm225, 0.0
      %246 = vst.msk [vmem:[#allocation2 + $0x98] sm:$0xff] %vm225, 0.0
      %247 = vst.msk [vmem:[#allocation2 + $0xa0] sm:$0x3] %vm228, 0.0
      %248 = vst.msk [vmem:[#allocation2 + $0xa8] sm:$0xff] %vm225, 0.0
      %249 = vst.msk [vmem:[#allocation2 + $0xb0] sm:$0xff] %vm225, 0.0
      %250 = vst.msk [vmem:[#allocation2 + $0xb8] sm:$0x3] %vm228, 0.0
      %251 = vst.msk [vmem:[#allocation2 + $0xc0] sm:$0xff] %vm225, 0.0
      %252 = vst.msk [vmem:[#allocation2 + $0xc8] sm:$0xff] %vm225, 0.0
      %253 = vst.msk [vmem:[#allocation2 + $0xd0] sm:$0x3] %vm228, 0.0
      %254 = vst.msk [vmem:[#allocation2 + $0xd8] sm:$0xff] %vm225, 0.0
      %255 = vst.msk [vmem:[#allocation2 + $0xe0] sm:$0xff] %vm225, 0.0
      %256 = vst.msk [vmem:[#allocation2 + $0xe8] sm:$0x3] %vm228, 0.0
      %257 = vst.msk [vmem:[#allocation2 + $0xf0] sm:$0xff] %vm225, 0.0
      %258 = vst.msk [vmem:[#allocation2 + $0xf8] sm:$0xff] %vm225, 0.0
      %259 = vst.msk [vmem:[#allocation2 + $0x100] sm:$0x3] %vm228, 0.0
      %260 = vst.msk [vmem:[#allocation2 + $0x108] sm:$0xff] %vm225, 0.0
      %261 = vst.msk [vmem:[#allocation2 + $0x110] sm:$0xff] %vm225, 0.0
      %262 = vst.msk [vmem:[#allocation2 + $0x118] sm:$0x3] %vm228, 0.0
      %263 = vst.msk [vmem:[#allocation2 + $0x120] sm:$0xff] %vm225, 0.0
      %264 = vst.msk [vmem:[#allocation2 + $0x128] sm:$0xff] %vm225, 0.0
      %265 = vst.msk [vmem:[#allocation2 + $0x130] sm:$0x3] %vm228, 0.0
      %266 = vst.msk [vmem:[#allocation2 + $0x138] sm:$0xff] %vm225, 0.0
      %267 = vst.msk [vmem:[#allocation2 + $0x140] sm:$0xff] %vm225, 0.0
      %268 = vst.msk [vmem:[#allocation2 + $0x148] sm:$0x3] %vm228, 0.0
      %269 = vst.msk [vmem:[#allocation2 + $0x150] sm:$0xff] %vm225, 0.0
      %270 = vst.msk [vmem:[#allocation2 + $0x158] sm:$0xff] %vm225, 0.0
      %271 = vst.msk [vmem:[#allocation2 + $0x160] sm:$0x3] %vm228, 0.0
      %272 = vst.msk [vmem:[#allocation2 + $0x168] sm:$0xff] %vm225, 0.0
      %273 = vst.msk [vmem:[#allocation2 + $0x170] sm:$0xff] %vm225, 0.0
      %274 = vst.msk [vmem:[#allocation2 + $0x178] sm:$0x3] %vm228, 0.0
      %275 = vst.msk [vmem:[#allocation2 + $0x180] sm:$0xff] %vm225, 0.0
      %276 = vst.msk [vmem:[#allocation2 + $0x188] sm:$0xff] %vm225, 0.0
      %277 = vst.msk [vmem:[#allocation2 + $0x190] sm:$0x3] %vm228, 0.0
      %278 = vst.msk [vmem:[#allocation2 + $0x198] sm:$0xff] %vm225, 0.0
      %279 = vst.msk [vmem:[#allocation2 + $0x1a0] sm:$0xff] %vm225, 0.0
      %280 = vst.msk [vmem:[#allocation2 + $0x1a8] sm:$0x3] %vm228, 0.0
      %v281 = vld [vmem:[%s219] sm:$0xff]
      %v282 = vld [vmem:[%s219 + $0x8] sm:$0xff]
      %v283 = vld [vmem:[%s219 + $0x10] sm:$0xff]
      %v284 = vld [vmem:[%s219 + $0x18] sm:$0xff]
      %v285 = vld [vmem:[%s219 + $0x20] sm:$0xff]
      %v286 = vld [vmem:[%s219 + $0x28] sm:$0xff]
      %v287 = vld [vmem:[%s219 + $0x30] sm:$0xff]
      %v288 = vld [vmem:[%s219 + $0x38] sm:$0xff]
      %v289 = vld [vmem:[%s219 + $0x40] sm:$0xff]
      %v290 = vld [vmem:[%s219 + $0x48] sm:$0xff]
      %v291 = vld [vmem:[%s219 + $0x50] sm:$0xff]
      %v292 = vld [vmem:[%s219 + $0x58] sm:$0xff]
      %v293 = vld [vmem:[%s219 + $0x60] sm:$0xff]
      %v294 = vld [vmem:[%s219 + $0x68] sm:$0xff]
      %v295 = vld [vmem:[%s219 + $0x70] sm:$0xff]
      %v296 = vld [vmem:[%s219 + $0x78] sm:$0xff]
      %v297 = vld [vmem:[%s219 + $0x80] sm:$0xff]
      %v298 = vld [vmem:[%s219 + $0x88] sm:$0xff]
      %v299 = vld [vmem:[%s219 + $0x90] sm:$0xff]
      %v300 = vld [vmem:[%s219 + $0x98] sm:$0xff]
      %v301 = vld [vmem:[%s219 + $0xa0] sm:$0xff]
      %v302 = vld [vmem:[%s219 + $0xa8] sm:$0xff]
      %v303 = vld [vmem:[%s219 + $0xb0] sm:$0xff]
      %v304 = vld [vmem:[%s219 + $0xb8] sm:$0xff]
      %v305 = vld [vmem:[%s219 + $0xc0] sm:$0xff]
      %v306 = vld [vmem:[%s219 + $0xc8] sm:$0xff]
      %v307 = vld [vmem:[%s219 + $0xd0] sm:$0xff]
      %v308 = vld [vmem:[%s219 + $0xd8] sm:$0xff]
      %v309 = vld [vmem:[%s219 + $0xe0] sm:$0xff]
      %v310 = vld [vmem:[%s219 + $0xe8] sm:$0xff]
      %v311 = vld [vmem:[%s219 + $0xf0] sm:$0xff]
      %v312 = vld [vmem:[%s219 + $0xf8] sm:$0xff]
      %s313 = scalar_lea.vmem [#allocation2], 24
      %314 = vst.msk [vmem:[%s313 + $0x1] sm:$0xff] %vm225, %v281
      %315 = vst.msk [vmem:[%s313 + $0x9] sm:$0xff] %vm225, %v282
      %316 = vst.msk [vmem:[%s313 + $0x19] sm:$0xff] %vm225, %v283
      %317 = vst.msk [vmem:[%s313 + $0x21] sm:$0xff] %vm225, %v284
      %318 = vst.msk [vmem:[%s313 + $0x31] sm:$0xff] %vm225, %v285
      %319 = vst.msk [vmem:[%s313 + $0x39] sm:$0xff] %vm225, %v286
      %320 = vst.msk [vmem:[%s313 + $0x49] sm:$0xff] %vm225, %v287
      %321 = vst.msk [vmem:[%s313 + $0x51] sm:$0xff] %vm225, %v288
      %322 = vst.msk [vmem:[%s313 + $0x61] sm:$0xff] %vm225, %v289
      %323 = vst.msk [vmem:[%s313 + $0x69] sm:$0xff] %vm225, %v290
      %324 = vst.msk [vmem:[%s313 + $0x79] sm:$0xff] %vm225, %v291
      %325 = vst.msk [vmem:[%s313 + $0x81] sm:$0xff] %vm225, %v292
      %326 = vst.msk [vmem:[%s313 + $0x91] sm:$0xff] %vm225, %v293
      %327 = vst.msk [vmem:[%s313 + $0x99] sm:$0xff] %vm225, %v294
      %328 = vst.msk [vmem:[%s313 + $0xa9] sm:$0xff] %vm225, %v295
      %329 = vst.msk [vmem:[%s313 + $0xb1] sm:$0xff] %vm225, %v296
      %330 = vst.msk [vmem:[%s313 + $0xc1] sm:$0xff] %vm225, %v297
      %331 = vst.msk [vmem:[%s313 + $0xc9] sm:$0xff] %vm225, %v298
      %332 = vst.msk [vmem:[%s313 + $0xd9] sm:$0xff] %vm225, %v299
      %333 = vst.msk [vmem:[%s313 + $0xe1] sm:$0xff] %vm225, %v300
      %334 = vst.msk [vmem:[%s313 + $0xf1] sm:$0xff] %vm225, %v301
      %335 = vst.msk [vmem:[%s313 + $0xf9] sm:$0xff] %vm225, %v302
      %336 = vst.msk [vmem:[%s313 + $0x109] sm:$0xff] %vm225, %v303
      %337 = vst.msk [vmem:[%s313 + $0x111] sm:$0xff] %vm225, %v304
      %338 = vst.msk [vmem:[%s313 + $0x121] sm:$0xff] %vm225, %v305
      %339 = vst.msk [vmem:[%s313 + $0x129] sm:$0xff] %vm225, %v306
      %340 = vst.msk [vmem:[%s313 + $0x139] sm:$0xff] %vm225, %v307
      %341 = vst.msk [vmem:[%s313 + $0x141] sm:$0xff] %vm225, %v308
      %342 = vst.msk [vmem:[%s313 + $0x151] sm:$0xff] %vm225, %v309
      %343 = vst.msk [vmem:[%s313 + $0x159] sm:$0xff] %vm225, %v310
      %344 = vst.msk [vmem:[%s313 + $0x169] sm:$0xff] %vm225, %v311
      %345 = vst.msk [vmem:[%s313 + $0x171] sm:$0xff] %vm225, %v312
      %v346 = vld [vmem:[#allocation2] sm:$0xff]
      %v347 = vld [vmem:[#allocation2 + $0x8] sm:$0xff]
      %v348 = vld [vmem:[#allocation2 + $0x18] sm:$0xff]
      %v349 = vld [vmem:[#allocation2 + $0x20] sm:$0xff]
      %v350 = vld [vmem:[#allocation2 + $0x30] sm:$0xff]
      %v351 = vld [vmem:[#allocation2 + $0x38] sm:$0xff]
      %v352 = vld [vmem:[#allocation2 + $0x48] sm:$0xff]
      %v353 = vld [vmem:[#allocation2 + $0x50] sm:$0xff]
      %v354 = vld [vmem:[#allocation2 + $0x60] sm:$0xff]
      %v355 = vld [vmem:[#allocation2 + $0x68] sm:$0xff]
      %v356 = vld [vmem:[#allocation2 + $0x78] sm:$0xff]
      %v357 = vld [vmem:[#allocation2 + $0x80] sm:$0xff]
      %v358 = vld [vmem:[#allocation2 + $0x90] sm:$0xff]
      %v359 = vld [vmem:[#allocation2 + $0x98] sm:$0xff]
      %v360 = vld [vmem:[#allocation2 + $0xa8] sm:$0xff]
      %v361 = vld [vmem:[#allocation2 + $0xb0] sm:$0xff]
      %v362 = vld [vmem:[#allocation2 + $0xc0] sm:$0xff]
      %v363 = vld [vmem:[#allocation2 + $0xc8] sm:$0xff]
      %v364 = vld [vmem:[#allocation2 + $0xd8] sm:$0xff]
      %v365 = vld [vmem:[#allocation2 + $0xe0] sm:$0xff]
      %v366 = vld [vmem:[#allocation2 + $0xf0] sm:$0xff]
      %v367 = vld [vmem:[#allocation2 + $0xf8] sm:$0xff]
      %v368 = vld [vmem:[#allocation2 + $0x108] sm:$0xff]
      %v369 = vld [vmem:[#allocation2 + $0x110] sm:$0xff]
      %v370 = vld [vmem:[#allocation2 + $0x120] sm:$0xff]
      %v371 = vld [vmem:[#allocation2 + $0x128] sm:$0xff]
      %v372 = vld [vmem:[#allocation2 + $0x138] sm:$0xff]
      %v373 = vld [vmem:[#allocation2 + $0x140] sm:$0xff]
      %v374 = vld [vmem:[#allocation2 + $0x150] sm:$0xff]
      %v375 = vld [vmem:[#allocation2 + $0x158] sm:$0xff]
      %v376 = vld [vmem:[#allocation2 + $0x168] sm:$0xff]
      %v377 = vld [vmem:[#allocation2 + $0x170] sm:$0xff]
      %v378 = vld [vmem:[%s1] sm:$0x7]
      %v379 = vld [vmem:[#allocation2 + $0x1] sm:$0xff]
      %v380 = vld [vmem:[#allocation2 + $0x9] sm:$0xff]
      %v381 = vld [vmem:[#allocation2 + $0x19] sm:$0xff]
      %v382 = vld [vmem:[#allocation2 + $0x21] sm:$0xff]
      %v383 = vld [vmem:[#allocation2 + $0x31] sm:$0xff]
      %v384 = vld [vmem:[#allocation2 + $0x39] sm:$0xff]
      %v385 = vld [vmem:[#allocation2 + $0x49] sm:$0xff]
      %v386 = vld [vmem:[#allocation2 + $0x51] sm:$0xff]
      %v387 = vld [vmem:[#allocation2 + $0x61] sm:$0xff]
      %v388 = vld [vmem:[#allocation2 + $0x69] sm:$0xff]
      %v389 = vld [vmem:[#allocation2 + $0x79] sm:$0xff]
      %v390 = vld [vmem:[#allocation2 + $0x81] sm:$0xff]
      %v391 = vld [vmem:[#allocation2 + $0x91] sm:$0xff]
      %v392 = vld [vmem:[#allocation2 + $0x99] sm:$0xff]
      %v393 = vld [vmem:[#allocation2 + $0xa9] sm:$0xff]
      %v394 = vld [vmem:[#allocation2 + $0xb1] sm:$0xff]
      %v395 = vld [vmem:[#allocation2 + $0xc1] sm:$0xff]
      %v396 = vld [vmem:[#allocation2 + $0xc9] sm:$0xff]
      %v397 = vld [vmem:[#allocation2 + $0xd9] sm:$0xff]
      %v398 = vld [vmem:[#allocation2 + $0xe1] sm:$0xff]
      %v399 = vld [vmem:[#allocation2 + $0xf1] sm:$0xff]
      %v400 = vld [vmem:[#allocation2 + $0xf9] sm:$0xff]
      %v401 = vld [vmem:[#allocation2 + $0x109] sm:$0xff]
      %v402 = vld [vmem:[#allocation2 + $0x111] sm:$0xff]
      %v403 = vld [vmem:[#allocation2 + $0x121] sm:$0xff]
      %v404 = vld [vmem:[#allocation2 + $0x129] sm:$0xff]
      %v405 = vld [vmem:[#allocation2 + $0x139] sm:$0xff]
      %v406 = vld [vmem:[#allocation2 + $0x141] sm:$0xff]
      %v407 = vld [vmem:[#allocation2 + $0x151] sm:$0xff]
      %v408 = vld [vmem:[#allocation2 + $0x159] sm:$0xff]
      %v409 = vld [vmem:[#allocation2 + $0x169] sm:$0xff]
      %v410 = vld [vmem:[#allocation2 + $0x171] sm:$0xff]
      %s411 = scalar_lea.vmem %s1, 4
      %v412 = vld [vmem:[%s411] sm:$0x7]
      %v414 = vsel %vm225, %v379, 0
      %v417 = vsel %vm225, %v380, 0
      %v420 = vsel %vm225, %v381, 0
      %v423 = vsel %vm225, %v382, 0
      %v426 = vsel %vm225, %v383, 0
      %v429 = vsel %vm225, %v384, 0
      %v432 = vsel %vm225, %v385, 0
      %v435 = vsel %vm225, %v386, 0
      %v438 = vsel %vm225, %v387, 0
      %v441 = vsel %vm225, %v388, 0
      %v444 = vsel %vm225, %v389, 0
      %v447 = vsel %vm225, %v390, 0
      %v450 = vsel %vm225, %v391, 0
      %v453 = vsel %vm225, %v392, 0
      %v456 = vsel %vm225, %v393, 0
      %v459 = vsel %vm225, %v394, 0
      %v462 = vsel %vm225, %v395, 0
      %v465 = vsel %vm225, %v396, 0
      %v468 = vsel %vm225, %v397, 0
      %v471 = vsel %vm225, %v398, 0
      %v474 = vsel %vm225, %v399, 0
      %v477 = vsel %vm225, %v400, 0
      %v480 = vsel %vm225, %v401, 0
      %v483 = vsel %vm225, %v402, 0
      %v486 = vsel %vm225, %v403, 0
      %v489 = vsel %vm225, %v404, 0
      %v492 = vsel %vm225, %v405, 0
      %v495 = vsel %vm225, %v406, 0
      %v498 = vsel %vm225, %v407, 0
      %v501 = vsel %vm225, %v408, 0
      %v504 = vsel %vm225, %v409, 0
      %v507 = vsel %vm225, %v410, 0
      %vm509 = vcmask 1042432
      %v511 = vsel %vm509, %v412, 0
      %513 = vmatprep.subr.mxu0 0.0
      %514 = vmatpush1.msra.mxu0 0.0
      %515 = vmatprep.subr.mxu0 0.0
      %516 = vmatpush1.msra.mxu0 0.0
      %517 = vmatprep.subr.mxu0 0.0
      %518 = vmatpush1.msra.mxu0 0.0
      %519 = vmatprep.subr.mxu0 0.0
      %520 = vmatpush1.msra.mxu0 0.0
      %521 = vmatprep.subr.mxu0 0.0
      %522 = vmatpush1.msra.mxu0 0.0
      %523 = vmatprep.subr.mxu0 0.0
      %524 = vmatpush1.msra.mxu0 0.0
      %525 = vmatprep.subr.mxu0 0.0
      %526 = vmatpush1.msra.mxu0 0.0
      %527 = vmatprep.subr.mxu0 0.0
      %528 = vmatpush1.msra.mxu0 0.0
      %529 = vmatprep.subr.mxu0 0.0
      %530 = vmatpush1.msra.mxu0 0.0
      %531 = vmatprep.subr.mxu0 0.0
      %532 = vmatpush1.msra.mxu0 0.0
      %533 = vmatprep.subr.mxu0 0.0
      %534 = vmatpush1.msra.mxu0 0.0
      %535 = vmatprep.subr.mxu0 0.0
      %536 = vmatpush1.msra.mxu0 0.0
      %537 = vmatprep.subr.mxu0 0.0
      %538 = vmatpush1.msra.mxu0 0.0
      %539 = vmatprep.subr.mxu0 0.0
      %540 = vmatpush1.msra.mxu0 0.0
      %541 = vmatprep.subr.mxu0 0.0
      %542 = vmatpush1.msra.mxu0 0.0
      %543 = vmatprep.subr.mxu0 0.0
      %544 = vmatpush1.msra.mxu0 %v511
      %545 = vmatprep.subr.mxu0 0.0
      %546 = vmatpush2.msra.mxu0 0.0
      %547 = vmatprep.subr.mxu0 0.0
      %548 = vmatpush2.msra.mxu0 0.0
      %549 = vmatprep.subr.mxu0 0.0
      %550 = vmatpush2.msra.mxu0 0.0
      %551 = vmatprep.subr.mxu0 0.0
      %552 = vmatpush2.msra.mxu0 0.0
      %553 = vmatprep.subr.mxu0 0.0
      %554 = vmatpush2.msra.mxu0 0.0
      %555 = vmatprep.subr.mxu0 0.0
      %556 = vmatpush2.msra.mxu0 0.0
      %557 = vmatprep.subr.mxu0 0.0
      %558 = vmatpush2.msra.mxu0 0.0
      %559 = vmatprep.subr.mxu0 0.0
      %560 = vmatpush2.msra.mxu0 0.0
      %561 = vmatprep.subr.mxu0 0.0
      %562 = vmatpush2.msra.mxu0 0.0
      %563 = vmatprep.subr.mxu0 0.0
      %564 = vmatpush2.msra.mxu0 0.0
      %565 = vmatprep.subr.mxu0 0.0
      %566 = vmatpush2.msra.mxu0 0.0
      %567 = vmatprep.subr.mxu0 0.0
      %568 = vmatpush2.msra.mxu0 0.0
      %569 = vmatprep.subr.mxu0 0.0
      %570 = vmatpush2.msra.mxu0 0.0
      %571 = vmatprep.subr.mxu0 0.0
      %572 = vmatpush2.msra.mxu0 0.0
      %573 = vmatprep.subr.mxu0 0.0
      %574 = vmatpush2.msra.mxu0 0.0
      %575 = vmatprep.subr.mxu0 0.0
      %576 = vmatpush2.msra.mxu0 0.0
      %577 = vmatprep.mubr.f32.mxu0 0.0
      %578 = vmatmul.mubr.f32.gmra.mxu0 %v414
      %v579 = vpop.f32.mrf.mxu0
      %v580 = vadd.f32 0.0, %v579
      %v581 = vpop.f32.mrf.mxu0
      %582 = vmatprep.mubr.f32.mxu0 0.0
      %583 = vmatmul.mubr.f32.gmra.mxu0 %v417
      %v584 = vpop.f32.mrf.mxu0
      %v585 = vadd.f32 0.0, %v584
      %v586 = vpop.f32.mrf.mxu0
      %587 = vmatprep.mubr.f32.mxu0 0.0
      %588 = vmatmul.mubr.f32.gmra.mxu0 %v420
      %v589 = vpop.f32.mrf.mxu0
      %v590 = vadd.f32 0.0, %v589
      %v591 = vpop.f32.mrf.mxu0
      %592 = vmatprep.mubr.f32.mxu0 0.0
      %593 = vmatmul.mubr.f32.gmra.mxu0 %v423
      %v594 = vpop.f32.mrf.mxu0
      %v595 = vadd.f32 0.0, %v594
      %v596 = vpop.f32.mrf.mxu0
      %597 = vmatprep.mubr.f32.mxu0 0.0
      %598 = vmatmul.mubr.f32.gmra.mxu0 %v426
      %v599 = vpop.f32.mrf.mxu0
      %v600 = vadd.f32 0.0, %v599
      %v601 = vpop.f32.mrf.mxu0
      %602 = vmatprep.mubr.f32.mxu0 0.0
      %603 = vmatmul.mubr.f32.gmra.mxu0 %v429
      %v604 = vpop.f32.mrf.mxu0
      %v605 = vadd.f32 0.0, %v604
      %v606 = vpop.f32.mrf.mxu0
      %607 = vmatprep.mubr.f32.mxu0 0.0
      %608 = vmatmul.mubr.f32.gmra.mxu0 %v432
      %v609 = vpop.f32.mrf.mxu0
      %v610 = vadd.f32 0.0, %v609
      %v611 = vpop.f32.mrf.mxu0
      %612 = vmatprep.mubr.f32.mxu0 0.0
      %613 = vmatmul.mubr.f32.gmra.mxu0 %v435
      %v614 = vpop.f32.mrf.mxu0
      %v615 = vadd.f32 0.0, %v614
      %v616 = vpop.f32.mrf.mxu0
      %617 = vmatprep.mubr.f32.mxu0 0.0
      %618 = vmatmul.mubr.f32.gmra.mxu0 %v438
      %v619 = vpop.f32.mrf.mxu0
      %v620 = vadd.f32 0.0, %v619
      %v621 = vpop.f32.mrf.mxu0
      %622 = vmatprep.mubr.f32.mxu0 0.0
      %623 = vmatmul.mubr.f32.gmra.mxu0 %v441
      %v624 = vpop.f32.mrf.mxu0
      %v625 = vadd.f32 0.0, %v624
      %v626 = vpop.f32.mrf.mxu0
      %627 = vmatprep.mubr.f32.mxu0 0.0
      %628 = vmatmul.mubr.f32.gmra.mxu0 %v444
      %v629 = vpop.f32.mrf.mxu0
      %v630 = vadd.f32 0.0, %v629
      %v631 = vpop.f32.mrf.mxu0
      %632 = vmatprep.mubr.f32.mxu0 0.0
      %633 = vmatmul.mubr.f32.gmra.mxu0 %v447
      %v634 = vpop.f32.mrf.mxu0
      %v635 = vadd.f32 0.0, %v634
      %v636 = vpop.f32.mrf.mxu0
      %637 = vmatprep.mubr.f32.mxu0 0.0
      %638 = vmatmul.mubr.f32.gmra.mxu0 %v450
      %v639 = vpop.f32.mrf.mxu0
      %v640 = vadd.f32 0.0, %v639
      %v641 = vpop.f32.mrf.mxu0
      %642 = vmatprep.mubr.f32.mxu0 0.0
      %643 = vmatmul.mubr.f32.gmra.mxu0 %v453
      %v644 = vpop.f32.mrf.mxu0
      %v645 = vadd.f32 0.0, %v644
      %v646 = vpop.f32.mrf.mxu0
      %647 = vmatprep.mubr.f32.mxu0 0.0
      %648 = vmatmul.mubr.f32.gmra.mxu0 %v456
      %v649 = vpop.f32.mrf.mxu0
      %v650 = vadd.f32 0.0, %v649
      %v651 = vpop.f32.mrf.mxu0
      %652 = vmatprep.mubr.f32.mxu0 0.0
      %653 = vmatmul.mubr.f32.gmra.mxu0 %v459
      %v654 = vpop.f32.mrf.mxu0
      %v655 = vadd.f32 0.0, %v654
      %v656 = vpop.f32.mrf.mxu0
      %657 = vmatprep.mubr.f32.mxu0 0.0
      %658 = vmatmul.mubr.f32.gmra.mxu0 %v462
      %v659 = vpop.f32.mrf.mxu0
      %v660 = vadd.f32 0.0, %v659
      %v661 = vpop.f32.mrf.mxu0
      %662 = vmatprep.mubr.f32.mxu0 0.0
      %663 = vmatmul.mubr.f32.gmra.mxu0 %v465
      %v664 = vpop.f32.mrf.mxu0
      %v665 = vadd.f32 0.0, %v664
      %v666 = vpop.f32.mrf.mxu0
      %667 = vmatprep.mubr.f32.mxu0 0.0
      %668 = vmatmul.mubr.f32.gmra.mxu0 %v468
      %v669 = vpop.f32.mrf.mxu0
      %v670 = vadd.f32 0.0, %v669
      %v671 = vpop.f32.mrf.mxu0
      %672 = vmatprep.mubr.f32.mxu0 0.0
      %673 = vmatmul.mubr.f32.gmra.mxu0 %v471
      %v674 = vpop.f32.mrf.mxu0
      %v675 = vadd.f32 0.0, %v674
      %v676 = vpop.f32.mrf.mxu0
      %677 = vmatprep.mubr.f32.mxu0 0.0
      %678 = vmatmul.mubr.f32.gmra.mxu0 %v474
      %v679 = vpop.f32.mrf.mxu0
      %v680 = vadd.f32 0.0, %v679
      %v681 = vpop.f32.mrf.mxu0
      %682 = vmatprep.mubr.f32.mxu0 0.0
      %683 = vmatmul.mubr.f32.gmra.mxu0 %v477
      %v684 = vpop.f32.mrf.mxu0
      %v685 = vadd.f32 0.0, %v684
      %v686 = vpop.f32.mrf.mxu0
      %687 = vmatprep.mubr.f32.mxu0 0.0
      %688 = vmatmul.mubr.f32.gmra.mxu0 %v480
      %v689 = vpop.f32.mrf.mxu0
      %v690 = vadd.f32 0.0, %v689
      %v691 = vpop.f32.mrf.mxu0
      %692 = vmatprep.mubr.f32.mxu0 0.0
      %693 = vmatmul.mubr.f32.gmra.mxu0 %v483
      %v694 = vpop.f32.mrf.mxu0
      %v695 = vadd.f32 0.0, %v694
      %v696 = vpop.f32.mrf.mxu0
      %697 = vmatprep.mubr.f32.mxu0 0.0
      %698 = vmatmul.mubr.f32.gmra.mxu0 %v486
      %v699 = vpop.f32.mrf.mxu0
      %v700 = vadd.f32 0.0, %v699
      %v701 = vpop.f32.mrf.mxu0
      %702 = vmatprep.mubr.f32.mxu0 0.0
      %703 = vmatmul.mubr.f32.gmra.mxu0 %v489
      %v704 = vpop.f32.mrf.mxu0
      %v705 = vadd.f32 0.0, %v704
      %v706 = vpop.f32.mrf.mxu0
      %707 = vmatprep.mubr.f32.mxu0 0.0
      %708 = vmatmul.mubr.f32.gmra.mxu0 %v492
      %v709 = vpop.f32.mrf.mxu0
      %v710 = vadd.f32 0.0, %v709
      %v711 = vpop.f32.mrf.mxu0
      %712 = vmatprep.mubr.f32.mxu0 0.0
      %713 = vmatmul.mubr.f32.gmra.mxu0 %v495
      %v714 = vpop.f32.mrf.mxu0
      %v715 = vadd.f32 0.0, %v714
      %v716 = vpop.f32.mrf.mxu0
      %717 = vmatprep.mubr.f32.mxu0 0.0
      %718 = vmatmul.mubr.f32.gmra.mxu0 %v498
      %v719 = vpop.f32.mrf.mxu0
      %v720 = vadd.f32 0.0, %v719
      %v721 = vpop.f32.mrf.mxu0
      %722 = vmatprep.mubr.f32.mxu0 0.0
      %723 = vmatmul.mubr.f32.gmra.mxu0 %v501
      %v724 = vpop.f32.mrf.mxu0
      %v725 = vadd.f32 0.0, %v724
      %v726 = vpop.f32.mrf.mxu0
      %727 = vmatprep.mubr.f32.mxu0 0.0
      %728 = vmatmul.mubr.f32.gmra.mxu0 %v504
      %v729 = vpop.f32.mrf.mxu0
      %v730 = vadd.f32 0.0, %v729
      %v731 = vpop.f32.mrf.mxu0
      %732 = vmatprep.mubr.f32.mxu0 0.0
      %733 = vmatmul.mubr.f32.gmra.mxu0 %v507
      %v734 = vpop.f32.mrf.mxu0
      %v735 = vadd.f32 0.0, %v734
      %v736 = vpop.f32.mrf.mxu0
      %737 = vdwg.mxu0
      %v739 = vsel %vm225, %v346, 0
      %v742 = vsel %vm225, %v347, 0
      %v745 = vsel %vm225, %v348, 0
      %v748 = vsel %vm225, %v349, 0
      %v751 = vsel %vm225, %v350, 0
      %v754 = vsel %vm225, %v351, 0
      %v757 = vsel %vm225, %v352, 0
      %v760 = vsel %vm225, %v353, 0
      %v763 = vsel %vm225, %v354, 0
      %v766 = vsel %vm225, %v355, 0
      %v769 = vsel %vm225, %v356, 0
      %v772 = vsel %vm225, %v357, 0
      %v775 = vsel %vm225, %v358, 0
      %v778 = vsel %vm225, %v359, 0
      %v781 = vsel %vm225, %v360, 0
      %v784 = vsel %vm225, %v361, 0
      %v787 = vsel %vm225, %v362, 0
      %v790 = vsel %vm225, %v363, 0
      %v793 = vsel %vm225, %v364, 0
      %v796 = vsel %vm225, %v365, 0
      %v799 = vsel %vm225, %v366, 0
      %v802 = vsel %vm225, %v367, 0
      %v805 = vsel %vm225, %v368, 0
      %v808 = vsel %vm225, %v369, 0
      %v811 = vsel %vm225, %v370, 0
      %v814 = vsel %vm225, %v371, 0
      %v817 = vsel %vm225, %v372, 0
      %v820 = vsel %vm225, %v373, 0
      %v823 = vsel %vm225, %v374, 0
      %v826 = vsel %vm225, %v375, 0
      %v829 = vsel %vm225, %v376, 0
      %v832 = vsel %vm225, %v377, 0
      %v835 = vsel %vm509, %v378, 0
      %837 = vmatprep.subr.mxu0 0.0
      %838 = vmatpush1.msra.mxu0 0.0
      %839 = vmatprep.subr.mxu0 0.0
      %840 = vmatpush1.msra.mxu0 0.0
      %841 = vmatprep.subr.mxu0 0.0
      %842 = vmatpush1.msra.mxu0 0.0
      %843 = vmatprep.subr.mxu0 0.0
      %844 = vmatpush1.msra.mxu0 0.0
      %845 = vmatprep.subr.mxu0 0.0
      %846 = vmatpush1.msra.mxu0 0.0
      %847 = vmatprep.subr.mxu0 0.0
      %848 = vmatpush1.msra.mxu0 0.0
      %849 = vmatprep.subr.mxu0 0.0
      %850 = vmatpush1.msra.mxu0 0.0
      %851 = vmatprep.subr.mxu0 0.0
      %852 = vmatpush1.msra.mxu0 0.0
      %853 = vmatprep.subr.mxu0 0.0
      %854 = vmatpush1.msra.mxu0 0.0
      %855 = vmatprep.subr.mxu0 0.0
      %856 = vmatpush1.msra.mxu0 0.0
      %857 = vmatprep.subr.mxu0 0.0
      %858 = vmatpush1.msra.mxu0 0.0
      %859 = vmatprep.subr.mxu0 0.0
      %860 = vmatpush1.msra.mxu0 0.0
      %861 = vmatprep.subr.mxu0 0.0
      %862 = vmatpush1.msra.mxu0 0.0
      %863 = vmatprep.subr.mxu0 0.0
      %864 = vmatpush1.msra.mxu0 0.0
      %865 = vmatprep.subr.mxu0 0.0
      %866 = vmatpush1.msra.mxu0 0.0
      %867 = vmatprep.subr.mxu0 0.0
      %868 = vmatpush1.msra.mxu0 %v835
      %869 = vmatprep.subr.mxu0 0.0
      %870 = vmatpush2.msra.mxu0 0.0
      %871 = vmatprep.subr.mxu0 0.0
      %872 = vmatpush2.msra.mxu0 0.0
      %873 = vmatprep.subr.mxu0 0.0
      %874 = vmatpush2.msra.mxu0 0.0
      %875 = vmatprep.subr.mxu0 0.0
      %876 = vmatpush2.msra.mxu0 0.0
      %877 = vmatprep.subr.mxu0 0.0
      %878 = vmatpush2.msra.mxu0 0.0
      %879 = vmatprep.subr.mxu0 0.0
      %880 = vmatpush2.msra.mxu0 0.0
      %881 = vmatprep.subr.mxu0 0.0
      %882 = vmatpush2.msra.mxu0 0.0
      %883 = vmatprep.subr.mxu0 0.0
      %884 = vmatpush2.msra.mxu0 0.0
      %885 = vmatprep.subr.mxu0 0.0
      %886 = vmatpush2.msra.mxu0 0.0
      %887 = vmatprep.subr.mxu0 0.0
      %888 = vmatpush2.msra.mxu0 0.0
      %889 = vmatprep.subr.mxu0 0.0
      %890 = vmatpush2.msra.mxu0 0.0
      %891 = vmatprep.subr.mxu0 0.0
      %892 = vmatpush2.msra.mxu0 0.0
      %893 = vmatprep.subr.mxu0 0.0
      %894 = vmatpush2.msra.mxu0 0.0
      %895 = vmatprep.subr.mxu0 0.0
      %896 = vmatpush2.msra.mxu0 0.0
      %897 = vmatprep.subr.mxu0 0.0
      %898 = vmatpush2.msra.mxu0 0.0
      %899 = vmatprep.subr.mxu0 0.0
      %900 = vmatpush2.msra.mxu0 0.0
      %901 = vmatprep.mubr.f32.mxu0 0.0
      %902 = vmatmul.mubr.f32.gmra.mxu0 %v739
      %v903 = vpop.f32.mrf.mxu0
      %v904 = vadd.f32 %v580, %v903
      %v905 = vpop.f32.mrf.mxu0
      %906 = vmatprep.mubr.f32.mxu0 0.0
      %907 = vmatmul.mubr.f32.gmra.mxu0 %v742
      %v908 = vpop.f32.mrf.mxu0
      %v909 = vadd.f32 %v585, %v908
      %v910 = vpop.f32.mrf.mxu0
      %911 = vmatprep.mubr.f32.mxu0 0.0
      %912 = vmatmul.mubr.f32.gmra.mxu0 %v745
      %v913 = vpop.f32.mrf.mxu0
      %v914 = vadd.f32 %v590, %v913
      %v915 = vpop.f32.mrf.mxu0
      %916 = vmatprep.mubr.f32.mxu0 0.0
      %917 = vmatmul.mubr.f32.gmra.mxu0 %v748
      %v918 = vpop.f32.mrf.mxu0
      %v919 = vadd.f32 %v595, %v918
      %v920 = vpop.f32.mrf.mxu0
      %921 = vmatprep.mubr.f32.mxu0 0.0
      %922 = vmatmul.mubr.f32.gmra.mxu0 %v751
      %v923 = vpop.f32.mrf.mxu0
      %v924 = vadd.f32 %v600, %v923
      %v925 = vpop.f32.mrf.mxu0
      %926 = vmatprep.mubr.f32.mxu0 0.0
      %927 = vmatmul.mubr.f32.gmra.mxu0 %v754
      %v928 = vpop.f32.mrf.mxu0
      %v929 = vadd.f32 %v605, %v928
      %v930 = vpop.f32.mrf.mxu0
      %931 = vmatprep.mubr.f32.mxu0 0.0
      %932 = vmatmul.mubr.f32.gmra.mxu0 %v757
      %v933 = vpop.f32.mrf.mxu0
      %v934 = vadd.f32 %v610, %v933
      %v935 = vpop.f32.mrf.mxu0
      %936 = vmatprep.mubr.f32.mxu0 0.0
      %937 = vmatmul.mubr.f32.gmra.mxu0 %v760
      %v938 = vpop.f32.mrf.mxu0
      %v939 = vadd.f32 %v615, %v938
      %v940 = vpop.f32.mrf.mxu0
      %941 = vmatprep.mubr.f32.mxu0 0.0
      %942 = vmatmul.mubr.f32.gmra.mxu0 %v763
      %v943 = vpop.f32.mrf.mxu0
      %v944 = vadd.f32 %v620, %v943
      %v945 = vpop.f32.mrf.mxu0
      %946 = vmatprep.mubr.f32.mxu0 0.0
      %947 = vmatmul.mubr.f32.gmra.mxu0 %v766
      %v948 = vpop.f32.mrf.mxu0
      %v949 = vadd.f32 %v625, %v948
      %v950 = vpop.f32.mrf.mxu0
      %951 = vmatprep.mubr.f32.mxu0 0.0
      %952 = vmatmul.mubr.f32.gmra.mxu0 %v769
      %v953 = vpop.f32.mrf.mxu0
      %v954 = vadd.f32 %v630, %v953
      %v955 = vpop.f32.mrf.mxu0
      %956 = vmatprep.mubr.f32.mxu0 0.0
      %957 = vmatmul.mubr.f32.gmra.mxu0 %v772
      %v958 = vpop.f32.mrf.mxu0
      %v959 = vadd.f32 %v635, %v958
      %v960 = vpop.f32.mrf.mxu0
      %961 = vmatprep.mubr.f32.mxu0 0.0
      %962 = vmatmul.mubr.f32.gmra.mxu0 %v775
      %v963 = vpop.f32.mrf.mxu0
      %v964 = vadd.f32 %v640, %v963
      %v965 = vpop.f32.mrf.mxu0
      %966 = vmatprep.mubr.f32.mxu0 0.0
      %967 = vmatmul.mubr.f32.gmra.mxu0 %v778
      %v968 = vpop.f32.mrf.mxu0
      %v969 = vadd.f32 %v645, %v968
      %v970 = vpop.f32.mrf.mxu0
      %971 = vmatprep.mubr.f32.mxu0 0.0
      %972 = vmatmul.mubr.f32.gmra.mxu0 %v781
      %v973 = vpop.f32.mrf.mxu0
      %v974 = vadd.f32 %v650, %v973
      %v975 = vpop.f32.mrf.mxu0
      %976 = vmatprep.mubr.f32.mxu0 0.0
      %977 = vmatmul.mubr.f32.gmra.mxu0 %v784
      %v978 = vpop.f32.mrf.mxu0
      %v979 = vadd.f32 %v655, %v978
      %v980 = vpop.f32.mrf.mxu0
      %981 = vmatprep.mubr.f32.mxu0 0.0
      %982 = vmatmul.mubr.f32.gmra.mxu0 %v787
      %v983 = vpop.f32.mrf.mxu0
      %v984 = vadd.f32 %v660, %v983
      %v985 = vpop.f32.mrf.mxu0
      %986 = vmatprep.mubr.f32.mxu0 0.0
      %987 = vmatmul.mubr.f32.gmra.mxu0 %v790
      %v988 = vpop.f32.mrf.mxu0
      %v989 = vadd.f32 %v665, %v988
      %v990 = vpop.f32.mrf.mxu0
      %991 = vmatprep.mubr.f32.mxu0 0.0
      %992 = vmatmul.mubr.f32.gmra.mxu0 %v793
      %v993 = vpop.f32.mrf.mxu0
      %v994 = vadd.f32 %v670, %v993
      %v995 = vpop.f32.mrf.mxu0
      %996 = vmatprep.mubr.f32.mxu0 0.0
      %997 = vmatmul.mubr.f32.gmra.mxu0 %v796
      %v998 = vpop.f32.mrf.mxu0
      %v999 = vadd.f32 %v675, %v998
      %v1000 = vpop.f32.mrf.mxu0
      %1001 = vmatprep.mubr.f32.mxu0 0.0
      %1002 = vmatmul.mubr.f32.gmra.mxu0 %v799
      %v1003 = vpop.f32.mrf.mxu0
      %v1004 = vadd.f32 %v680, %v1003
      %v1005 = vpop.f32.mrf.mxu0
      %1006 = vmatprep.mubr.f32.mxu0 0.0
      %1007 = vmatmul.mubr.f32.gmra.mxu0 %v802
      %v1008 = vpop.f32.mrf.mxu0
      %v1009 = vadd.f32 %v685, %v1008
      %v1010 = vpop.f32.mrf.mxu0
      %1011 = vmatprep.mubr.f32.mxu0 0.0
      %1012 = vmatmul.mubr.f32.gmra.mxu0 %v805
      %v1013 = vpop.f32.mrf.mxu0
      %v1014 = vadd.f32 %v690, %v1013
      %v1015 = vpop.f32.mrf.mxu0
      %1016 = vmatprep.mubr.f32.mxu0 0.0
      %1017 = vmatmul.mubr.f32.gmra.mxu0 %v808
      %v1018 = vpop.f32.mrf.mxu0
      %v1019 = vadd.f32 %v695, %v1018
      %v1020 = vpop.f32.mrf.mxu0
      %1021 = vmatprep.mubr.f32.mxu0 0.0
      %1022 = vmatmul.mubr.f32.gmra.mxu0 %v811
      %v1023 = vpop.f32.mrf.mxu0
      %v1024 = vadd.f32 %v700, %v1023
      %v1025 = vpop.f32.mrf.mxu0
      %1026 = vmatprep.mubr.f32.mxu0 0.0
      %1027 = vmatmul.mubr.f32.gmra.mxu0 %v814
      %v1028 = vpop.f32.mrf.mxu0
      %v1029 = vadd.f32 %v705, %v1028
      %v1030 = vpop.f32.mrf.mxu0
      %1031 = vmatprep.mubr.f32.mxu0 0.0
      %1032 = vmatmul.mubr.f32.gmra.mxu0 %v817
      %v1033 = vpop.f32.mrf.mxu0
      %v1034 = vadd.f32 %v710, %v1033
      %v1035 = vpop.f32.mrf.mxu0
      %1036 = vmatprep.mubr.f32.mxu0 0.0
      %1037 = vmatmul.mubr.f32.gmra.mxu0 %v820
      %v1038 = vpop.f32.mrf.mxu0
      %v1039 = vadd.f32 %v715, %v1038
      %v1040 = vpop.f32.mrf.mxu0
      %1041 = vmatprep.mubr.f32.mxu0 0.0
      %1042 = vmatmul.mubr.f32.gmra.mxu0 %v823
      %v1043 = vpop.f32.mrf.mxu0
      %v1044 = vadd.f32 %v720, %v1043
      %v1045 = vpop.f32.mrf.mxu0
      %1046 = vmatprep.mubr.f32.mxu0 0.0
      %1047 = vmatmul.mubr.f32.gmra.mxu0 %v826
      %v1048 = vpop.f32.mrf.mxu0
      %v1049 = vadd.f32 %v725, %v1048
      %v1050 = vpop.f32.mrf.mxu0
      %1051 = vmatprep.mubr.f32.mxu0 0.0
      %1052 = vmatmul.mubr.f32.gmra.mxu0 %v829
      %v1053 = vpop.f32.mrf.mxu0
      %v1054 = vadd.f32 %v730, %v1053
      %v1055 = vpop.f32.mrf.mxu0
      %1056 = vmatprep.mubr.f32.mxu0 0.0
      %1057 = vmatmul.mubr.f32.gmra.mxu0 %v832
      %v1058 = vpop.f32.mrf.mxu0
      %v1059 = vadd.f32 %v735, %v1058
      %v1060 = vpop.f32.mrf.mxu0
      %1061 = vdwg.mxu0
      %v1062 = vld [vmem:[#allocation2 + $0x2] sm:$0xff]
      %v1063 = vld [vmem:[#allocation2 + $0xa] sm:$0xff]
      %v1064 = vld [vmem:[#allocation2 + $0x1a] sm:$0xff]
      %v1065 = vld [vmem:[#allocation2 + $0x22] sm:$0xff]
      %v1066 = vld [vmem:[#allocation2 + $0x32] sm:$0xff]
      %v1067 = vld [vmem:[#allocation2 + $0x3a] sm:$0xff]
      %v1068 = vld [vmem:[#allocation2 + $0x4a] sm:$0xff]
      %v1069 = vld [vmem:[#allocation2 + $0x52] sm:$0xff]
      %v1070 = vld [vmem:[#allocation2 + $0x62] sm:$0xff]
      %v1071 = vld [vmem:[#allocation2 + $0x6a] sm:$0xff]
      %v1072 = vld [vmem:[#allocation2 + $0x7a] sm:$0xff]
      %v1073 = vld [vmem:[#allocation2 + $0x82] sm:$0xff]
      %v1074 = vld [vmem:[#allocation2 + $0x92] sm:$0xff]
      %v1075 = vld [vmem:[#allocation2 + $0x9a] sm:$0xff]
      %v1076 = vld [vmem:[#allocation2 + $0xaa] sm:$0xff]
      %v1077 = vld [vmem:[#allocation2 + $0xb2] sm:$0xff]
      %v1078 = vld [vmem:[#allocation2 + $0xc2] sm:$0xff]
      %v1079 = vld [vmem:[#allocation2 + $0xca] sm:$0xff]
      %v1080 = vld [vmem:[#allocation2 + $0xda] sm:$0xff]
      %v1081 = vld [vmem:[#allocation2 + $0xe2] sm:$0xff]
      %v1082 = vld [vmem:[#allocation2 + $0xf2] sm:$0xff]
      %v1083 = vld [vmem:[#allocation2 + $0xfa] sm:$0xff]
      %v1084 = vld [vmem:[#allocation2 + $0x10a] sm:$0xff]
      %v1085 = vld [vmem:[#allocation2 + $0x112] sm:$0xff]
      %v1086 = vld [vmem:[#allocation2 + $0x122] sm:$0xff]
      %v1087 = vld [vmem:[#allocation2 + $0x12a] sm:$0xff]
      %v1088 = vld [vmem:[#allocation2 + $0x13a] sm:$0xff]
      %v1089 = vld [vmem:[#allocation2 + $0x142] sm:$0xff]
      %v1090 = vld [vmem:[#allocation2 + $0x152] sm:$0xff]
      %v1091 = vld [vmem:[#allocation2 + $0x15a] sm:$0xff]
      %v1092 = vld [vmem:[#allocation2 + $0x16a] sm:$0xff]
      %v1093 = vld [vmem:[#allocation2 + $0x172] sm:$0xff]
      %s1094 = scalar_lea.vmem %s1, 8
      %v1095 = vld [vmem:[%s1094] sm:$0x7]
      %v1097 = vsel %vm225, %v1062, 0
      %v1100 = vsel %vm225, %v1063, 0
      %v1103 = vsel %vm225, %v1064, 0
      %v1106 = vsel %vm225, %v1065, 0
      %v1109 = vsel %vm225, %v1066, 0
      %v1112 = vsel %vm225, %v1067, 0
      %v1115 = vsel %vm225, %v1068, 0
      %v1118 = vsel %vm225, %v1069, 0
      %v1121 = vsel %vm225, %v1070, 0
      %v1124 = vsel %vm225, %v1071, 0
      %v1127 = vsel %vm225, %v1072, 0
      %v1130 = vsel %vm225, %v1073, 0
      %v1133 = vsel %vm225, %v1074, 0
      %v1136 = vsel %vm225, %v1075, 0
      %v1139 = vsel %vm225, %v1076, 0
      %v1142 = vsel %vm225, %v1077, 0
      %v1145 = vsel %vm225, %v1078, 0
      %v1148 = vsel %vm225, %v1079, 0
      %v1151 = vsel %vm225, %v1080, 0
      %v1154 = vsel %vm225, %v1081, 0
      %v1157 = vsel %vm225, %v1082, 0
      %v1160 = vsel %vm225, %v1083, 0
      %v1163 = vsel %vm225, %v1084, 0
      %v1166 = vsel %vm225, %v1085, 0
      %v1169 = vsel %vm225, %v1086, 0
      %v1172 = vsel %vm225, %v1087, 0
      %v1175 = vsel %vm225, %v1088, 0
      %v1178 = vsel %vm225, %v1089, 0
      %v1181 = vsel %vm225, %v1090, 0
      %v1184 = vsel %vm225, %v1091, 0
      %v1187 = vsel %vm225, %v1092, 0
      %v1190 = vsel %vm225, %v1093, 0
      %v1193 = vsel %vm509, %v1095, 0
      %1195 = vmatprep.subr.mxu0 0.0
      %1196 = vmatpush1.msra.mxu0 0.0
      %1197 = vmatprep.subr.mxu0 0.0
      %1198 = vmatpush1.msra.mxu0 0.0
      %1199 = vmatprep.subr.mxu0 0.0
      %1200 = vmatpush1.msra.mxu0 0.0
      %1201 = vmatprep.subr.mxu0 0.0
      %1202 = vmatpush1.msra.mxu0 0.0
      %1203 = vmatprep.subr.mxu0 0.0
      %1204 = vmatpush1.msra.mxu0 0.0
      %1205 = vmatprep.subr.mxu0 0.0
      %1206 = vmatpush1.msra.mxu0 0.0
      %1207 = vmatprep.subr.mxu0 0.0
      %1208 = vmatpush1.msra.mxu0 0.0
      %1209 = vmatprep.subr.mxu0 0.0
      %1210 = vmatpush1.msra.mxu0 0.0
      %1211 = vmatprep.subr.mxu0 0.0
      %1212 = vmatpush1.msra.mxu0 0.0
      %1213 = vmatprep.subr.mxu0 0.0
      %1214 = vmatpush1.msra.mxu0 0.0
      %1215 = vmatprep.subr.mxu0 0.0
      %1216 = vmatpush1.msra.mxu0 0.0
      %1217 = vmatprep.subr.mxu0 0.0
      %1218 = vmatpush1.msra.mxu0 0.0
      %1219 = vmatprep.subr.mxu0 0.0
      %1220 = vmatpush1.msra.mxu0 0.0
      %1221 = vmatprep.subr.mxu0 0.0
      %1222 = vmatpush1.msra.mxu0 0.0
      %1223 = vmatprep.subr.mxu0 0.0
      %1224 = vmatpush1.msra.mxu0 0.0
      %1225 = vmatprep.subr.mxu0 0.0
      %1226 = vmatpush1.msra.mxu0 %v1193
      %1227 = vmatprep.subr.mxu0 0.0
      %1228 = vmatpush2.msra.mxu0 0.0
      %1229 = vmatprep.subr.mxu0 0.0
      %1230 = vmatpush2.msra.mxu0 0.0
      %1231 = vmatprep.subr.mxu0 0.0
      %1232 = vmatpush2.msra.mxu0 0.0
      %1233 = vmatprep.subr.mxu0 0.0
      %1234 = vmatpush2.msra.mxu0 0.0
      %1235 = vmatprep.subr.mxu0 0.0
      %1236 = vmatpush2.msra.mxu0 0.0
      %1237 = vmatprep.subr.mxu0 0.0
      %1238 = vmatpush2.msra.mxu0 0.0
      %1239 = vmatprep.subr.mxu0 0.0
      %1240 = vmatpush2.msra.mxu0 0.0
      %1241 = vmatprep.subr.mxu0 0.0
      %1242 = vmatpush2.msra.mxu0 0.0
      %1243 = vmatprep.subr.mxu0 0.0
      %1244 = vmatpush2.msra.mxu0 0.0
      %1245 = vmatprep.subr.mxu0 0.0
      %1246 = vmatpush2.msra.mxu0 0.0
      %1247 = vmatprep.subr.mxu0 0.0
      %1248 = vmatpush2.msra.mxu0 0.0
      %1249 = vmatprep.subr.mxu0 0.0
      %1250 = vmatpush2.msra.mxu0 0.0
      %1251 = vmatprep.subr.mxu0 0.0
      %1252 = vmatpush2.msra.mxu0 0.0
      %1253 = vmatprep.subr.mxu0 0.0
      %1254 = vmatpush2.msra.mxu0 0.0
      %1255 = vmatprep.subr.mxu0 0.0
      %1256 = vmatpush2.msra.mxu0 0.0
      %1257 = vmatprep.subr.mxu0 0.0
      %1258 = vmatpush2.msra.mxu0 0.0
      %1259 = vmatprep.mubr.f32.mxu0 0.0
      %1260 = vmatmul.mubr.f32.gmra.mxu0 %v1097
      %v1261 = vpop.f32.mrf.mxu0
      %v1262 = vadd.f32 0.0, %v1261
      %v1263 = vpop.f32.mrf.mxu0
      %1264 = vmatprep.mubr.f32.mxu0 0.0
      %1265 = vmatmul.mubr.f32.gmra.mxu0 %v1100
      %v1266 = vpop.f32.mrf.mxu0
      %v1267 = vadd.f32 0.0, %v1266
      %v1268 = vpop.f32.mrf.mxu0
      %1269 = vmatprep.mubr.f32.mxu0 0.0
      %1270 = vmatmul.mubr.f32.gmra.mxu0 %v1103
      %v1271 = vpop.f32.mrf.mxu0
      %v1272 = vadd.f32 0.0, %v1271
      %v1273 = vpop.f32.mrf.mxu0
      %1274 = vmatprep.mubr.f32.mxu0 0.0
      %1275 = vmatmul.mubr.f32.gmra.mxu0 %v1106
      %v1276 = vpop.f32.mrf.mxu0
      %v1277 = vadd.f32 0.0, %v1276
      %v1278 = vpop.f32.mrf.mxu0
      %1279 = vmatprep.mubr.f32.mxu0 0.0
      %1280 = vmatmul.mubr.f32.gmra.mxu0 %v1109
      %v1281 = vpop.f32.mrf.mxu0
      %v1282 = vadd.f32 0.0, %v1281
      %v1283 = vpop.f32.mrf.mxu0
      %1284 = vmatprep.mubr.f32.mxu0 0.0
      %1285 = vmatmul.mubr.f32.gmra.mxu0 %v1112
      %v1286 = vpop.f32.mrf.mxu0
      %v1287 = vadd.f32 0.0, %v1286
      %v1288 = vpop.f32.mrf.mxu0
      %1289 = vmatprep.mubr.f32.mxu0 0.0
      %1290 = vmatmul.mubr.f32.gmra.mxu0 %v1115
      %v1291 = vpop.f32.mrf.mxu0
      %v1292 = vadd.f32 0.0, %v1291
      %v1293 = vpop.f32.mrf.mxu0
      %1294 = vmatprep.mubr.f32.mxu0 0.0
      %1295 = vmatmul.mubr.f32.gmra.mxu0 %v1118
      %v1296 = vpop.f32.mrf.mxu0
      %v1297 = vadd.f32 0.0, %v1296
      %v1298 = vpop.f32.mrf.mxu0
      %1299 = vmatprep.mubr.f32.mxu0 0.0
      %1300 = vmatmul.mubr.f32.gmra.mxu0 %v1121
      %v1301 = vpop.f32.mrf.mxu0
      %v1302 = vadd.f32 0.0, %v1301
      %v1303 = vpop.f32.mrf.mxu0
      %1304 = vmatprep.mubr.f32.mxu0 0.0
      %1305 = vmatmul.mubr.f32.gmra.mxu0 %v1124
      %v1306 = vpop.f32.mrf.mxu0
      %v1307 = vadd.f32 0.0, %v1306
      %v1308 = vpop.f32.mrf.mxu0
      %1309 = vmatprep.mubr.f32.mxu0 0.0
      %1310 = vmatmul.mubr.f32.gmra.mxu0 %v1127
      %v1311 = vpop.f32.mrf.mxu0
      %v1312 = vadd.f32 0.0, %v1311
      %v1313 = vpop.f32.mrf.mxu0
      %1314 = vmatprep.mubr.f32.mxu0 0.0
      %1315 = vmatmul.mubr.f32.gmra.mxu0 %v1130
      %v1316 = vpop.f32.mrf.mxu0
      %v1317 = vadd.f32 0.0, %v1316
      %v1318 = vpop.f32.mrf.mxu0
      %1319 = vmatprep.mubr.f32.mxu0 0.0
      %1320 = vmatmul.mubr.f32.gmra.mxu0 %v1133
      %v1321 = vpop.f32.mrf.mxu0
      %v1322 = vadd.f32 0.0, %v1321
      %v1323 = vpop.f32.mrf.mxu0
      %1324 = vmatprep.mubr.f32.mxu0 0.0
      %1325 = vmatmul.mubr.f32.gmra.mxu0 %v1136
      %v1326 = vpop.f32.mrf.mxu0
      %v1327 = vadd.f32 0.0, %v1326
      %v1328 = vpop.f32.mrf.mxu0
      %1329 = vmatprep.mubr.f32.mxu0 0.0
      %1330 = vmatmul.mubr.f32.gmra.mxu0 %v1139
      %v1331 = vpop.f32.mrf.mxu0
      %v1332 = vadd.f32 0.0, %v1331
      %v1333 = vpop.f32.mrf.mxu0
      %1334 = vmatprep.mubr.f32.mxu0 0.0
      %1335 = vmatmul.mubr.f32.gmra.mxu0 %v1142
      %v1336 = vpop.f32.mrf.mxu0
      %v1337 = vadd.f32 0.0, %v1336
      %v1338 = vpop.f32.mrf.mxu0
      %1339 = vmatprep.mubr.f32.mxu0 0.0
      %1340 = vmatmul.mubr.f32.gmra.mxu0 %v1145
      %v1341 = vpop.f32.mrf.mxu0
      %v1342 = vadd.f32 0.0, %v1341
      %v1343 = vpop.f32.mrf.mxu0
      %1344 = vmatprep.mubr.f32.mxu0 0.0
      %1345 = vmatmul.mubr.f32.gmra.mxu0 %v1148
      %v1346 = vpop.f32.mrf.mxu0
      %v1347 = vadd.f32 0.0, %v1346
      %v1348 = vpop.f32.mrf.mxu0
      %1349 = vmatprep.mubr.f32.mxu0 0.0
      %1350 = vmatmul.mubr.f32.gmra.mxu0 %v1151
      %v1351 = vpop.f32.mrf.mxu0
      %v1352 = vadd.f32 0.0, %v1351
      %v1353 = vpop.f32.mrf.mxu0
      %1354 = vmatprep.mubr.f32.mxu0 0.0
      %1355 = vmatmul.mubr.f32.gmra.mxu0 %v1154
      %v1356 = vpop.f32.mrf.mxu0
      %v1357 = vadd.f32 0.0, %v1356
      %v1358 = vpop.f32.mrf.mxu0
      %1359 = vmatprep.mubr.f32.mxu0 0.0
      %1360 = vmatmul.mubr.f32.gmra.mxu0 %v1157
      %v1361 = vpop.f32.mrf.mxu0
      %v1362 = vadd.f32 0.0, %v1361
      %v1363 = vpop.f32.mrf.mxu0
      %1364 = vmatprep.mubr.f32.mxu0 0.0
      %1365 = vmatmul.mubr.f32.gmra.mxu0 %v1160
      %v1366 = vpop.f32.mrf.mxu0
      %v1367 = vadd.f32 0.0, %v1366
      %v1368 = vpop.f32.mrf.mxu0
      %1369 = vmatprep.mubr.f32.mxu0 0.0
      %1370 = vmatmul.mubr.f32.gmra.mxu0 %v1163
      %v1371 = vpop.f32.mrf.mxu0
      %v1372 = vadd.f32 0.0, %v1371
      %v1373 = vpop.f32.mrf.mxu0
      %1374 = vmatprep.mubr.f32.mxu0 0.0
      %1375 = vmatmul.mubr.f32.gmra.mxu0 %v1166
      %v1376 = vpop.f32.mrf.mxu0
      %v1377 = vadd.f32 0.0, %v1376
      %v1378 = vpop.f32.mrf.mxu0
      %1379 = vmatprep.mubr.f32.mxu0 0.0
      %1380 = vmatmul.mubr.f32.gmra.mxu0 %v1169
      %v1381 = vpop.f32.mrf.mxu0
      %v1382 = vadd.f32 0.0, %v1381
      %v1383 = vpop.f32.mrf.mxu0
      %1384 = vmatprep.mubr.f32.mxu0 0.0
      %1385 = vmatmul.mubr.f32.gmra.mxu0 %v1172
      %v1386 = vpop.f32.mrf.mxu0
      %v1387 = vadd.f32 0.0, %v1386
      %v1388 = vpop.f32.mrf.mxu0
      %1389 = vmatprep.mubr.f32.mxu0 0.0
      %1390 = vmatmul.mubr.f32.gmra.mxu0 %v1175
      %v1391 = vpop.f32.mrf.mxu0
      %v1392 = vadd.f32 0.0, %v1391
      %v1393 = vpop.f32.mrf.mxu0
      %1394 = vmatprep.mubr.f32.mxu0 0.0
      %1395 = vmatmul.mubr.f32.gmra.mxu0 %v1178
      %v1396 = vpop.f32.mrf.mxu0
      %v1397 = vadd.f32 0.0, %v1396
      %v1398 = vpop.f32.mrf.mxu0
      %1399 = vmatprep.mubr.f32.mxu0 0.0
      %1400 = vmatmul.mubr.f32.gmra.mxu0 %v1181
      %v1401 = vpop.f32.mrf.mxu0
      %v1402 = vadd.f32 0.0, %v1401
      %v1403 = vpop.f32.mrf.mxu0
      %1404 = vmatprep.mubr.f32.mxu0 0.0
      %1405 = vmatmul.mubr.f32.gmra.mxu0 %v1184
      %v1406 = vpop.f32.mrf.mxu0
      %v1407 = vadd.f32 0.0, %v1406
      %v1408 = vpop.f32.mrf.mxu0
      %1409 = vmatprep.mubr.f32.mxu0 0.0
      %1410 = vmatmul.mubr.f32.gmra.mxu0 %v1187
      %v1411 = vpop.f32.mrf.mxu0
      %v1412 = vadd.f32 0.0, %v1411
      %v1413 = vpop.f32.mrf.mxu0
      %1414 = vmatprep.mubr.f32.mxu0 0.0
      %1415 = vmatmul.mubr.f32.gmra.mxu0 %v1190
      %v1416 = vpop.f32.mrf.mxu0
      %v1417 = vadd.f32 0.0, %v1416
      %v1418 = vpop.f32.mrf.mxu0
      %1419 = vdwg.mxu0
      %v1420 = vadd.f32 %v904, %v1262
      %v1421 = vadd.f32 %v909, %v1267
      %v1422 = vadd.f32 %v914, %v1272
      %v1423 = vadd.f32 %v919, %v1277
      %v1424 = vadd.f32 %v924, %v1282
      %v1425 = vadd.f32 %v929, %v1287
      %v1426 = vadd.f32 %v934, %v1292
      %v1427 = vadd.f32 %v939, %v1297
      %v1428 = vadd.f32 %v944, %v1302
      %v1429 = vadd.f32 %v949, %v1307
      %v1430 = vadd.f32 %v954, %v1312
      %v1431 = vadd.f32 %v959, %v1317
      %v1432 = vadd.f32 %v964, %v1322
      %v1433 = vadd.f32 %v969, %v1327
      %v1434 = vadd.f32 %v974, %v1332
      %v1435 = vadd.f32 %v979, %v1337
      %v1436 = vadd.f32 %v984, %v1342
      %v1437 = vadd.f32 %v989, %v1347
      %v1438 = vadd.f32 %v994, %v1352
      %v1439 = vadd.f32 %v999, %v1357
      %v1440 = vadd.f32 %v1004, %v1362
      %v1441 = vadd.f32 %v1009, %v1367
      %v1442 = vadd.f32 %v1014, %v1372
      %v1443 = vadd.f32 %v1019, %v1377
      %v1444 = vadd.f32 %v1024, %v1382
      %v1445 = vadd.f32 %v1029, %v1387
      %v1446 = vadd.f32 %v1034, %v1392
      %v1447 = vadd.f32 %v1039, %v1397
      %v1448 = vadd.f32 %v1044, %v1402
      %v1449 = vadd.f32 %v1049, %v1407
      %v1450 = vadd.f32 %v1054, %v1412
      %v1451 = vadd.f32 %v1059, %v1417
      %v1452 = vld [vmem:[%s313] sm:$0xff]
      %v1453 = vld [vmem:[%s313 + $0x8] sm:$0xff]
      %v1454 = vld [vmem:[%s313 + $0x18] sm:$0xff]
      %v1455 = vld [vmem:[%s313 + $0x20] sm:$0xff]
      %v1456 = vld [vmem:[%s313 + $0x30] sm:$0xff]
      %v1457 = vld [vmem:[%s313 + $0x38] sm:$0xff]
      %v1458 = vld [vmem:[%s313 + $0x48] sm:$0xff]
      %v1459 = vld [vmem:[%s313 + $0x50] sm:$0xff]
      %v1460 = vld [vmem:[%s313 + $0x60] sm:$0xff]
      %v1461 = vld [vmem:[%s313 + $0x68] sm:$0xff]
      %v1462 = vld [vmem:[%s313 + $0x78] sm:$0xff]
      %v1463 = vld [vmem:[%s313 + $0x80] sm:$0xff]
      %v1464 = vld [vmem:[%s313 + $0x90] sm:$0xff]
      %v1465 = vld [vmem:[%s313 + $0x98] sm:$0xff]
      %v1466 = vld [vmem:[%s313 + $0xa8] sm:$0xff]
      %v1467 = vld [vmem:[%s313 + $0xb0] sm:$0xff]
      %v1468 = vld [vmem:[%s313 + $0xc0] sm:$0xff]
      %v1469 = vld [vmem:[%s313 + $0xc8] sm:$0xff]
      %v1470 = vld [vmem:[%s313 + $0xd8] sm:$0xff]
      %v1471 = vld [vmem:[%s313 + $0xe0] sm:$0xff]
      %v1472 = vld [vmem:[%s313 + $0xf0] sm:$0xff]
      %v1473 = vld [vmem:[%s313 + $0xf8] sm:$0xff]
      %v1474 = vld [vmem:[%s313 + $0x108] sm:$0xff]
      %v1475 = vld [vmem:[%s313 + $0x110] sm:$0xff]
      %v1476 = vld [vmem:[%s313 + $0x120] sm:$0xff]
      %v1477 = vld [vmem:[%s313 + $0x128] sm:$0xff]
      %v1478 = vld [vmem:[%s313 + $0x138] sm:$0xff]
      %v1479 = vld [vmem:[%s313 + $0x140] sm:$0xff]
      %v1480 = vld [vmem:[%s313 + $0x150] sm:$0xff]
      %v1481 = vld [vmem:[%s313 + $0x158] sm:$0xff]
      %v1482 = vld [vmem:[%s313 + $0x168] sm:$0xff]
      %v1483 = vld [vmem:[%s313 + $0x170] sm:$0xff]
      %s1484 = scalar_lea.vmem %s1, 12
      %v1485 = vld [vmem:[%s1484] sm:$0x7]
      %v1487 = vsel %vm225, %v1452, 0
      %v1490 = vsel %vm225, %v1453, 0
      %v1493 = vsel %vm225, %v1454, 0
      %v1496 = vsel %vm225, %v1455, 0
      %v1499 = vsel %vm225, %v1456, 0
      %v1502 = vsel %vm225, %v1457, 0
      %v1505 = vsel %vm225, %v1458, 0
      %v1508 = vsel %vm225, %v1459, 0
      %v1511 = vsel %vm225, %v1460, 0
      %v1514 = vsel %vm225, %v1461, 0
      %v1517 = vsel %vm225, %v1462, 0
      %v1520 = vsel %vm225, %v1463, 0
      %v1523 = vsel %vm225, %v1464, 0
      %v1526 = vsel %vm225, %v1465, 0
      %v1529 = vsel %vm225, %v1466, 0
      %v1532 = vsel %vm225, %v1467, 0
      %v1535 = vsel %vm225, %v1468, 0
      %v1538 = vsel %vm225, %v1469, 0
      %v1541 = vsel %vm225, %v1470, 0
      %v1544 = vsel %vm225, %v1471, 0
      %v1547 = vsel %vm225, %v1472, 0
      %v1550 = vsel %vm225, %v1473, 0
      %v1553 = vsel %vm225, %v1474, 0
      %v1556 = vsel %vm225, %v1475, 0
      %v1559 = vsel %vm225, %v1476, 0
      %v1562 = vsel %vm225, %v1477, 0
      %v1565 = vsel %vm225, %v1478, 0
      %v1568 = vsel %vm225, %v1479, 0
      %v1571 = vsel %vm225, %v1480, 0
      %v1574 = vsel %vm225, %v1481, 0
      %v1577 = vsel %vm225, %v1482, 0
      %v1580 = vsel %vm225, %v1483, 0
      %v1583 = vsel %vm509, %v1485, 0
      %1585 = vmatprep.subr.mxu0 0.0
      %1586 = vmatpush1.msra.mxu0 0.0
      %1587 = vmatprep.subr.mxu0 0.0
      %1588 = vmatpush1.msra.mxu0 0.0
      %1589 = vmatprep.subr.mxu0 0.0
      %1590 = vmatpush1.msra.mxu0 0.0
      %1591 = vmatprep.subr.mxu0 0.0
      %1592 = vmatpush1.msra.mxu0 0.0
      %1593 = vmatprep.subr.mxu0 0.0
      %1594 = vmatpush1.msra.mxu0 0.0
      %1595 = vmatprep.subr.mxu0 0.0
      %1596 = vmatpush1.msra.mxu0 0.0
      %1597 = vmatprep.subr.mxu0 0.0
      %1598 = vmatpush1.msra.mxu0 0.0
      %1599 = vmatprep.subr.mxu0 0.0
      %1600 = vmatpush1.msra.mxu0 0.0
      %1601 = vmatprep.subr.mxu0 0.0
      %1602 = vmatpush1.msra.mxu0 0.0
      %1603 = vmatprep.subr.mxu0 0.0
      %1604 = vmatpush1.msra.mxu0 0.0
      %1605 = vmatprep.subr.mxu0 0.0
      %1606 = vmatpush1.msra.mxu0 0.0
      %1607 = vmatprep.subr.mxu0 0.0
      %1608 = vmatpush1.msra.mxu0 0.0
      %1609 = vmatprep.subr.mxu0 0.0
      %1610 = vmatpush1.msra.mxu0 0.0
      %1611 = vmatprep.subr.mxu0 0.0
      %1612 = vmatpush1.msra.mxu0 0.0
      %1613 = vmatprep.subr.mxu0 0.0
      %1614 = vmatpush1.msra.mxu0 0.0
      %1615 = vmatprep.subr.mxu0 0.0
      %1616 = vmatpush1.msra.mxu0 %v1583
      %1617 = vmatprep.subr.mxu0 0.0
      %1618 = vmatpush2.msra.mxu0 0.0
      %1619 = vmatprep.subr.mxu0 0.0
      %1620 = vmatpush2.msra.mxu0 0.0
      %1621 = vmatprep.subr.mxu0 0.0
      %1622 = vmatpush2.msra.mxu0 0.0
      %1623 = vmatprep.subr.mxu0 0.0
      %1624 = vmatpush2.msra.mxu0 0.0
      %1625 = vmatprep.subr.mxu0 0.0
      %1626 = vmatpush2.msra.mxu0 0.0
      %1627 = vmatprep.subr.mxu0 0.0
      %1628 = vmatpush2.msra.mxu0 0.0
      %1629 = vmatprep.subr.mxu0 0.0
      %1630 = vmatpush2.msra.mxu0 0.0
      %1631 = vmatprep.subr.mxu0 0.0
      %1632 = vmatpush2.msra.mxu0 0.0
      %1633 = vmatprep.subr.mxu0 0.0
      %1634 = vmatpush2.msra.mxu0 0.0
      %1635 = vmatprep.subr.mxu0 0.0
      %1636 = vmatpush2.msra.mxu0 0.0
      %1637 = vmatprep.subr.mxu0 0.0
      %1638 = vmatpush2.msra.mxu0 0.0
      %1639 = vmatprep.subr.mxu0 0.0
      %1640 = vmatpush2.msra.mxu0 0.0
      %1641 = vmatprep.subr.mxu0 0.0
      %1642 = vmatpush2.msra.mxu0 0.0
      %1643 = vmatprep.subr.mxu0 0.0
      %1644 = vmatpush2.msra.mxu0 0.0
      %1645 = vmatprep.subr.mxu0 0.0
      %1646 = vmatpush2.msra.mxu0 0.0
      %1647 = vmatprep.subr.mxu0 0.0
      %1648 = vmatpush2.msra.mxu0 0.0
      %1649 = vmatprep.mubr.f32.mxu0 0.0
      %1650 = vmatmul.mubr.f32.gmra.mxu0 %v1487
      %v1651 = vpop.f32.mrf.mxu0
      %v1652 = vadd.f32 0.0, %v1651
      %v1653 = vpop.f32.mrf.mxu0
      %1654 = vmatprep.mubr.f32.mxu0 0.0
      %1655 = vmatmul.mubr.f32.gmra.mxu0 %v1490
      %v1656 = vpop.f32.mrf.mxu0
      %v1657 = vadd.f32 0.0, %v1656
      %v1658 = vpop.f32.mrf.mxu0
      %1659 = vmatprep.mubr.f32.mxu0 0.0
      %1660 = vmatmul.mubr.f32.gmra.mxu0 %v1493
      %v1661 = vpop.f32.mrf.mxu0
      %v1662 = vadd.f32 0.0, %v1661
      %v1663 = vpop.f32.mrf.mxu0
      %1664 = vmatprep.mubr.f32.mxu0 0.0
      %1665 = vmatmul.mubr.f32.gmra.mxu0 %v1496
      %v1666 = vpop.f32.mrf.mxu0
      %v1667 = vadd.f32 0.0, %v1666
      %v1668 = vpop.f32.mrf.mxu0
      %1669 = vmatprep.mubr.f32.mxu0 0.0
      %1670 = vmatmul.mubr.f32.gmra.mxu0 %v1499
      %v1671 = vpop.f32.mrf.mxu0
      %v1672 = vadd.f32 0.0, %v1671
      %v1673 = vpop.f32.mrf.mxu0
      %1674 = vmatprep.mubr.f32.mxu0 0.0
      %1675 = vmatmul.mubr.f32.gmra.mxu0 %v1502
      %v1676 = vpop.f32.mrf.mxu0
      %v1677 = vadd.f32 0.0, %v1676
      %v1678 = vpop.f32.mrf.mxu0
      %1679 = vmatprep.mubr.f32.mxu0 0.0
      %1680 = vmatmul.mubr.f32.gmra.mxu0 %v1505
      %v1681 = vpop.f32.mrf.mxu0
      %v1682 = vadd.f32 0.0, %v1681
      %v1683 = vpop.f32.mrf.mxu0
      %1684 = vmatprep.mubr.f32.mxu0 0.0
      %1685 = vmatmul.mubr.f32.gmra.mxu0 %v1508
      %v1686 = vpop.f32.mrf.mxu0
      %v1687 = vadd.f32 0.0, %v1686
      %v1688 = vpop.f32.mrf.mxu0
      %1689 = vmatprep.mubr.f32.mxu0 0.0
      %1690 = vmatmul.mubr.f32.gmra.mxu0 %v1511
      %v1691 = vpop.f32.mrf.mxu0
      %v1692 = vadd.f32 0.0, %v1691
      %v1693 = vpop.f32.mrf.mxu0
      %1694 = vmatprep.mubr.f32.mxu0 0.0
      %1695 = vmatmul.mubr.f32.gmra.mxu0 %v1514
      %v1696 = vpop.f32.mrf.mxu0
      %v1697 = vadd.f32 0.0, %v1696
      %v1698 = vpop.f32.mrf.mxu0
      %1699 = vmatprep.mubr.f32.mxu0 0.0
      %1700 = vmatmul.mubr.f32.gmra.mxu0 %v1517
      %v1701 = vpop.f32.mrf.mxu0
      %v1702 = vadd.f32 0.0, %v1701
      %v1703 = vpop.f32.mrf.mxu0
      %1704 = vmatprep.mubr.f32.mxu0 0.0
      %1705 = vmatmul.mubr.f32.gmra.mxu0 %v1520
      %v1706 = vpop.f32.mrf.mxu0
      %v1707 = vadd.f32 0.0, %v1706
      %v1708 = vpop.f32.mrf.mxu0
      %1709 = vmatprep.mubr.f32.mxu0 0.0
      %1710 = vmatmul.mubr.f32.gmra.mxu0 %v1523
      %v1711 = vpop.f32.mrf.mxu0
      %v1712 = vadd.f32 0.0, %v1711
      %v1713 = vpop.f32.mrf.mxu0
      %1714 = vmatprep.mubr.f32.mxu0 0.0
      %1715 = vmatmul.mubr.f32.gmra.mxu0 %v1526
      %v1716 = vpop.f32.mrf.mxu0
      %v1717 = vadd.f32 0.0, %v1716
      %v1718 = vpop.f32.mrf.mxu0
      %1719 = vmatprep.mubr.f32.mxu0 0.0
      %1720 = vmatmul.mubr.f32.gmra.mxu0 %v1529
      %v1721 = vpop.f32.mrf.mxu0
      %v1722 = vadd.f32 0.0, %v1721
      %v1723 = vpop.f32.mrf.mxu0
      %1724 = vmatprep.mubr.f32.mxu0 0.0
      %1725 = vmatmul.mubr.f32.gmra.mxu0 %v1532
      %v1726 = vpop.f32.mrf.mxu0
      %v1727 = vadd.f32 0.0, %v1726
      %v1728 = vpop.f32.mrf.mxu0
      %1729 = vmatprep.mubr.f32.mxu0 0.0
      %1730 = vmatmul.mubr.f32.gmra.mxu0 %v1535
      %v1731 = vpop.f32.mrf.mxu0
      %v1732 = vadd.f32 0.0, %v1731
      %v1733 = vpop.f32.mrf.mxu0
      %1734 = vmatprep.mubr.f32.mxu0 0.0
      %1735 = vmatmul.mubr.f32.gmra.mxu0 %v1538
      %v1736 = vpop.f32.mrf.mxu0
      %v1737 = vadd.f32 0.0, %v1736
      %v1738 = vpop.f32.mrf.mxu0
      %1739 = vmatprep.mubr.f32.mxu0 0.0
      %1740 = vmatmul.mubr.f32.gmra.mxu0 %v1541
      %v1741 = vpop.f32.mrf.mxu0
      %v1742 = vadd.f32 0.0, %v1741
      %v1743 = vpop.f32.mrf.mxu0
      %1744 = vmatprep.mubr.f32.mxu0 0.0
      %1745 = vmatmul.mubr.f32.gmra.mxu0 %v1544
      %v1746 = vpop.f32.mrf.mxu0
      %v1747 = vadd.f32 0.0, %v1746
      %v1748 = vpop.f32.mrf.mxu0
      %1749 = vmatprep.mubr.f32.mxu0 0.0
      %1750 = vmatmul.mubr.f32.gmra.mxu0 %v1547
      %v1751 = vpop.f32.mrf.mxu0
      %v1752 = vadd.f32 0.0, %v1751
      %v1753 = vpop.f32.mrf.mxu0
      %1754 = vmatprep.mubr.f32.mxu0 0.0
      %1755 = vmatmul.mubr.f32.gmra.mxu0 %v1550
      %v1756 = vpop.f32.mrf.mxu0
      %v1757 = vadd.f32 0.0, %v1756
      %v1758 = vpop.f32.mrf.mxu0
      %1759 = vmatprep.mubr.f32.mxu0 0.0
      %1760 = vmatmul.mubr.f32.gmra.mxu0 %v1553
      %v1761 = vpop.f32.mrf.mxu0
      %v1762 = vadd.f32 0.0, %v1761
      %v1763 = vpop.f32.mrf.mxu0
      %1764 = vmatprep.mubr.f32.mxu0 0.0
      %1765 = vmatmul.mubr.f32.gmra.mxu0 %v1556
      %v1766 = vpop.f32.mrf.mxu0
      %v1767 = vadd.f32 0.0, %v1766
      %v1768 = vpop.f32.mrf.mxu0
      %1769 = vmatprep.mubr.f32.mxu0 0.0
      %1770 = vmatmul.mubr.f32.gmra.mxu0 %v1559
      %v1771 = vpop.f32.mrf.mxu0
      %v1772 = vadd.f32 0.0, %v1771
      %v1773 = vpop.f32.mrf.mxu0
      %1774 = vmatprep.mubr.f32.mxu0 0.0
      %1775 = vmatmul.mubr.f32.gmra.mxu0 %v1562
      %v1776 = vpop.f32.mrf.mxu0
      %v1777 = vadd.f32 0.0, %v1776
      %v1778 = vpop.f32.mrf.mxu0
      %1779 = vmatprep.mubr.f32.mxu0 0.0
      %1780 = vmatmul.mubr.f32.gmra.mxu0 %v1565
      %v1781 = vpop.f32.mrf.mxu0
      %v1782 = vadd.f32 0.0, %v1781
      %v1783 = vpop.f32.mrf.mxu0
      %1784 = vmatprep.mubr.f32.mxu0 0.0
      %1785 = vmatmul.mubr.f32.gmra.mxu0 %v1568
      %v1786 = vpop.f32.mrf.mxu0
      %v1787 = vadd.f32 0.0, %v1786
      %v1788 = vpop.f32.mrf.mxu0
      %1789 = vmatprep.mubr.f32.mxu0 0.0
      %1790 = vmatmul.mubr.f32.gmra.mxu0 %v1571
      %v1791 = vpop.f32.mrf.mxu0
      %v1792 = vadd.f32 0.0, %v1791
      %v1793 = vpop.f32.mrf.mxu0
      %1794 = vmatprep.mubr.f32.mxu0 0.0
      %1795 = vmatmul.mubr.f32.gmra.mxu0 %v1574
      %v1796 = vpop.f32.mrf.mxu0
      %v1797 = vadd.f32 0.0, %v1796
      %v1798 = vpop.f32.mrf.mxu0
      %1799 = vmatprep.mubr.f32.mxu0 0.0
      %1800 = vmatmul.mubr.f32.gmra.mxu0 %v1577
      %v1801 = vpop.f32.mrf.mxu0
      %v1802 = vadd.f32 0.0, %v1801
      %v1803 = vpop.f32.mrf.mxu0
      %1804 = vmatprep.mubr.f32.mxu0 0.0
      %1805 = vmatmul.mubr.f32.gmra.mxu0 %v1580
      %v1806 = vpop.f32.mrf.mxu0
      %v1807 = vadd.f32 0.0, %v1806
      %v1808 = vpop.f32.mrf.mxu0
      %1809 = vdwg.mxu0
      %v1810 = vadd.f32 %v1420, %v1652
      %v1811 = vadd.f32 %v1421, %v1657
      %v1812 = vadd.f32 %v1422, %v1662
      %v1813 = vadd.f32 %v1423, %v1667
      %v1814 = vadd.f32 %v1424, %v1672
      %v1815 = vadd.f32 %v1425, %v1677
      %v1816 = vadd.f32 %v1426, %v1682
      %v1817 = vadd.f32 %v1427, %v1687
      %v1818 = vadd.f32 %v1428, %v1692
      %v1819 = vadd.f32 %v1429, %v1697
      %v1820 = vadd.f32 %v1430, %v1702
      %v1821 = vadd.f32 %v1431, %v1707
      %v1822 = vadd.f32 %v1432, %v1712
      %v1823 = vadd.f32 %v1433, %v1717
      %v1824 = vadd.f32 %v1434, %v1722
      %v1825 = vadd.f32 %v1435, %v1727
      %v1826 = vadd.f32 %v1436, %v1732
      %v1827 = vadd.f32 %v1437, %v1737
      %v1828 = vadd.f32 %v1438, %v1742
      %v1829 = vadd.f32 %v1439, %v1747
      %v1830 = vadd.f32 %v1440, %v1752
      %v1831 = vadd.f32 %v1441, %v1757
      %v1832 = vadd.f32 %v1442, %v1762
      %v1833 = vadd.f32 %v1443, %v1767
      %v1834 = vadd.f32 %v1444, %v1772
      %v1835 = vadd.f32 %v1445, %v1777
      %v1836 = vadd.f32 %v1446, %v1782
      %v1837 = vadd.f32 %v1447, %v1787
      %v1838 = vadd.f32 %v1448, %v1792
      %v1839 = vadd.f32 %v1449, %v1797
      %v1840 = vadd.f32 %v1450, %v1802
      %v1841 = vadd.f32 %v1451, %v1807
      %v1842 = vld [vmem:[%s313 + $0x1] sm:$0xff]
      %v1843 = vld [vmem:[%s313 + $0x9] sm:$0xff]
      %v1844 = vld [vmem:[%s313 + $0x19] sm:$0xff]
      %v1845 = vld [vmem:[%s313 + $0x21] sm:$0xff]
      %v1846 = vld [vmem:[%s313 + $0x31] sm:$0xff]
      %v1847 = vld [vmem:[%s313 + $0x39] sm:$0xff]
      %v1848 = vld [vmem:[%s313 + $0x49] sm:$0xff]
      %v1849 = vld [vmem:[%s313 + $0x51] sm:$0xff]
      %v1850 = vld [vmem:[%s313 + $0x61] sm:$0xff]
      %v1851 = vld [vmem:[%s313 + $0x69] sm:$0xff]
      %v1852 = vld [vmem:[%s313 + $0x79] sm:$0xff]
      %v1853 = vld [vmem:[%s313 + $0x81] sm:$0xff]
      %v1854 = vld [vmem:[%s313 + $0x91] sm:$0xff]
      %v1855 = vld [vmem:[%s313 + $0x99] sm:$0xff]
      %v1856 = vld [vmem:[%s313 + $0xa9] sm:$0xff]
      %v1857 = vld [vmem:[%s313 + $0xb1] sm:$0xff]
      %v1858 = vld [vmem:[%s313 + $0xc1] sm:$0xff]
      %v1859 = vld [vmem:[%s313 + $0xc9] sm:$0xff]
      %v1860 = vld [vmem:[%s313 + $0xd9] sm:$0xff]
      %v1861 = vld [vmem:[%s313 + $0xe1] sm:$0xff]
      %v1862 = vld [vmem:[%s313 + $0xf1] sm:$0xff]
      %v1863 = vld [vmem:[%s313 + $0xf9] sm:$0xff]
      %v1864 = vld [vmem:[%s313 + $0x109] sm:$0xff]
      %v1865 = vld [vmem:[%s313 + $0x111] sm:$0xff]
      %v1866 = vld [vmem:[%s313 + $0x121] sm:$0xff]
      %v1867 = vld [vmem:[%s313 + $0x129] sm:$0xff]
      %v1868 = vld [vmem:[%s313 + $0x139] sm:$0xff]
      %v1869 = vld [vmem:[%s313 + $0x141] sm:$0xff]
      %v1870 = vld [vmem:[%s313 + $0x151] sm:$0xff]
      %v1871 = vld [vmem:[%s313 + $0x159] sm:$0xff]
      %v1872 = vld [vmem:[%s313 + $0x169] sm:$0xff]
      %v1873 = vld [vmem:[%s313 + $0x171] sm:$0xff]
      %s1874 = scalar_lea.vmem %s1, 16
      %v1875 = vld [vmem:[%s1874] sm:$0x7]
      %v1877 = vsel %vm225, %v1842, 0
      %v1880 = vsel %vm225, %v1843, 0
      %v1883 = vsel %vm225, %v1844, 0
      %v1886 = vsel %vm225, %v1845, 0
      %v1889 = vsel %vm225, %v1846, 0
      %v1892 = vsel %vm225, %v1847, 0
      %v1895 = vsel %vm225, %v1848, 0
      %v1898 = vsel %vm225, %v1849, 0
      %v1901 = vsel %vm225, %v1850, 0
      %v1904 = vsel %vm225, %v1851, 0
      %v1907 = vsel %vm225, %v1852, 0
      %v1910 = vsel %vm225, %v1853, 0
      %v1913 = vsel %vm225, %v1854, 0
      %v1916 = vsel %vm225, %v1855, 0
      %v1919 = vsel %vm225, %v1856, 0
      %v1922 = vsel %vm225, %v1857, 0
      %v1925 = vsel %vm225, %v1858, 0
      %v1928 = vsel %vm225, %v1859, 0
      %v1931 = vsel %vm225, %v1860, 0
      %v1934 = vsel %vm225, %v1861, 0
      %v1937 = vsel %vm225, %v1862, 0
      %v1940 = vsel %vm225, %v1863, 0
      %v1943 = vsel %vm225, %v1864, 0
      %v1946 = vsel %vm225, %v1865, 0
      %v1949 = vsel %vm225, %v1866, 0
      %v1952 = vsel %vm225, %v1867, 0
      %v1955 = vsel %vm225, %v1868, 0
      %v1958 = vsel %vm225, %v1869, 0
      %v1961 = vsel %vm225, %v1870, 0
      %v1964 = vsel %vm225, %v1871, 0
      %v1967 = vsel %vm225, %v1872, 0
      %v1970 = vsel %vm225, %v1873, 0
      %v1973 = vsel %vm509, %v1875, 0
      %1975 = vmatprep.subr.mxu0 0.0
      %1976 = vmatpush1.msra.mxu0 0.0
      %1977 = vmatprep.subr.mxu0 0.0
      %1978 = vmatpush1.msra.mxu0 0.0
      %1979 = vmatprep.subr.mxu0 0.0
      %1980 = vmatpush1.msra.mxu0 0.0
      %1981 = vmatprep.subr.mxu0 0.0
      %1982 = vmatpush1.msra.mxu0 0.0
      %1983 = vmatprep.subr.mxu0 0.0
      %1984 = vmatpush1.msra.mxu0 0.0
      %1985 = vmatprep.subr.mxu0 0.0
      %1986 = vmatpush1.msra.mxu0 0.0
      %1987 = vmatprep.subr.mxu0 0.0
      %1988 = vmatpush1.msra.mxu0 0.0
      %1989 = vmatprep.subr.mxu0 0.0
      %1990 = vmatpush1.msra.mxu0 0.0
      %1991 = vmatprep.subr.mxu0 0.0
      %1992 = vmatpush1.msra.mxu0 0.0
      %1993 = vmatprep.subr.mxu0 0.0
      %1994 = vmatpush1.msra.mxu0 0.0
      %1995 = vmatprep.subr.mxu0 0.0
      %1996 = vmatpush1.msra.mxu0 0.0
      %1997 = vmatprep.subr.mxu0 0.0
      %1998 = vmatpush1.msra.mxu0 0.0
      %1999 = vmatprep.subr.mxu0 0.0
      %2000 = vmatpush1.msra.mxu0 0.0
      %2001 = vmatprep.subr.mxu0 0.0
      %2002 = vmatpush1.msra.mxu0 0.0
      %2003 = vmatprep.subr.mxu0 0.0
      %2004 = vmatpush1.msra.mxu0 0.0
      %2005 = vmatprep.subr.mxu0 0.0
      %2006 = vmatpush1.msra.mxu0 %v1973
      %2007 = vmatprep.subr.mxu0 0.0
      %2008 = vmatpush2.msra.mxu0 0.0
      %2009 = vmatprep.subr.mxu0 0.0
      %2010 = vmatpush2.msra.mxu0 0.0
      %2011 = vmatprep.subr.mxu0 0.0
      %2012 = vmatpush2.msra.mxu0 0.0
      %2013 = vmatprep.subr.mxu0 0.0
      %2014 = vmatpush2.msra.mxu0 0.0
      %2015 = vmatprep.subr.mxu0 0.0
      %2016 = vmatpush2.msra.mxu0 0.0
      %2017 = vmatprep.subr.mxu0 0.0
      %2018 = vmatpush2.msra.mxu0 0.0
      %2019 = vmatprep.subr.mxu0 0.0
      %2020 = vmatpush2.msra.mxu0 0.0
      %2021 = vmatprep.subr.mxu0 0.0
      %2022 = vmatpush2.msra.mxu0 0.0
      %2023 = vmatprep.subr.mxu0 0.0
      %2024 = vmatpush2.msra.mxu0 0.0
      %2025 = vmatprep.subr.mxu0 0.0
      %2026 = vmatpush2.msra.mxu0 0.0
      %2027 = vmatprep.subr.mxu0 0.0
      %2028 = vmatpush2.msra.mxu0 0.0
      %2029 = vmatprep.subr.mxu0 0.0
      %2030 = vmatpush2.msra.mxu0 0.0
      %2031 = vmatprep.subr.mxu0 0.0
      %2032 = vmatpush2.msra.mxu0 0.0
      %2033 = vmatprep.subr.mxu0 0.0
      %2034 = vmatpush2.msra.mxu0 0.0
      %2035 = vmatprep.subr.mxu0 0.0
      %2036 = vmatpush2.msra.mxu0 0.0
      %2037 = vmatprep.subr.mxu0 0.0
      %2038 = vmatpush2.msra.mxu0 0.0
      %2039 = vmatprep.mubr.f32.mxu0 0.0
      %2040 = vmatmul.mubr.f32.gmra.mxu0 %v1877
      %v2041 = vpop.f32.mrf.mxu0
      %v2042 = vadd.f32 0.0, %v2041
      %v2043 = vpop.f32.mrf.mxu0
      %2044 = vmatprep.mubr.f32.mxu0 0.0
      %2045 = vmatmul.mubr.f32.gmra.mxu0 %v1880
      %v2046 = vpop.f32.mrf.mxu0
      %v2047 = vadd.f32 0.0, %v2046
      %v2048 = vpop.f32.mrf.mxu0
      %2049 = vmatprep.mubr.f32.mxu0 0.0
      %2050 = vmatmul.mubr.f32.gmra.mxu0 %v1883
      %v2051 = vpop.f32.mrf.mxu0
      %v2052 = vadd.f32 0.0, %v2051
      %v2053 = vpop.f32.mrf.mxu0
      %2054 = vmatprep.mubr.f32.mxu0 0.0
      %2055 = vmatmul.mubr.f32.gmra.mxu0 %v1886
      %v2056 = vpop.f32.mrf.mxu0
      %v2057 = vadd.f32 0.0, %v2056
      %v2058 = vpop.f32.mrf.mxu0
      %2059 = vmatprep.mubr.f32.mxu0 0.0
      %2060 = vmatmul.mubr.f32.gmra.mxu0 %v1889
      %v2061 = vpop.f32.mrf.mxu0
      %v2062 = vadd.f32 0.0, %v2061
      %v2063 = vpop.f32.mrf.mxu0
      %2064 = vmatprep.mubr.f32.mxu0 0.0
      %2065 = vmatmul.mubr.f32.gmra.mxu0 %v1892
      %v2066 = vpop.f32.mrf.mxu0
      %v2067 = vadd.f32 0.0, %v2066
      %v2068 = vpop.f32.mrf.mxu0
      %2069 = vmatprep.mubr.f32.mxu0 0.0
      %2070 = vmatmul.mubr.f32.gmra.mxu0 %v1895
      %v2071 = vpop.f32.mrf.mxu0
      %v2072 = vadd.f32 0.0, %v2071
      %v2073 = vpop.f32.mrf.mxu0
      %2074 = vmatprep.mubr.f32.mxu0 0.0
      %2075 = vmatmul.mubr.f32.gmra.mxu0 %v1898
      %v2076 = vpop.f32.mrf.mxu0
      %v2077 = vadd.f32 0.0, %v2076
      %v2078 = vpop.f32.mrf.mxu0
      %2079 = vmatprep.mubr.f32.mxu0 0.0
      %2080 = vmatmul.mubr.f32.gmra.mxu0 %v1901
      %v2081 = vpop.f32.mrf.mxu0
      %v2082 = vadd.f32 0.0, %v2081
      %v2083 = vpop.f32.mrf.mxu0
      %2084 = vmatprep.mubr.f32.mxu0 0.0
      %2085 = vmatmul.mubr.f32.gmra.mxu0 %v1904
      %v2086 = vpop.f32.mrf.mxu0
      %v2087 = vadd.f32 0.0, %v2086
      %v2088 = vpop.f32.mrf.mxu0
      %2089 = vmatprep.mubr.f32.mxu0 0.0
      %2090 = vmatmul.mubr.f32.gmra.mxu0 %v1907
      %v2091 = vpop.f32.mrf.mxu0
      %v2092 = vadd.f32 0.0, %v2091
      %v2093 = vpop.f32.mrf.mxu0
      %2094 = vmatprep.mubr.f32.mxu0 0.0
      %2095 = vmatmul.mubr.f32.gmra.mxu0 %v1910
      %v2096 = vpop.f32.mrf.mxu0
      %v2097 = vadd.f32 0.0, %v2096
      %v2098 = vpop.f32.mrf.mxu0
      %2099 = vmatprep.mubr.f32.mxu0 0.0
      %2100 = vmatmul.mubr.f32.gmra.mxu0 %v1913
      %v2101 = vpop.f32.mrf.mxu0
      %v2102 = vadd.f32 0.0, %v2101
      %v2103 = vpop.f32.mrf.mxu0
      %2104 = vmatprep.mubr.f32.mxu0 0.0
      %2105 = vmatmul.mubr.f32.gmra.mxu0 %v1916
      %v2106 = vpop.f32.mrf.mxu0
      %v2107 = vadd.f32 0.0, %v2106
      %v2108 = vpop.f32.mrf.mxu0
      %2109 = vmatprep.mubr.f32.mxu0 0.0
      %2110 = vmatmul.mubr.f32.gmra.mxu0 %v1919
      %v2111 = vpop.f32.mrf.mxu0
      %v2112 = vadd.f32 0.0, %v2111
      %v2113 = vpop.f32.mrf.mxu0
      %2114 = vmatprep.mubr.f32.mxu0 0.0
      %2115 = vmatmul.mubr.f32.gmra.mxu0 %v1922
      %v2116 = vpop.f32.mrf.mxu0
      %v2117 = vadd.f32 0.0, %v2116
      %v2118 = vpop.f32.mrf.mxu0
      %2119 = vmatprep.mubr.f32.mxu0 0.0
      %2120 = vmatmul.mubr.f32.gmra.mxu0 %v1925
      %v2121 = vpop.f32.mrf.mxu0
      %v2122 = vadd.f32 0.0, %v2121
      %v2123 = vpop.f32.mrf.mxu0
      %2124 = vmatprep.mubr.f32.mxu0 0.0
      %2125 = vmatmul.mubr.f32.gmra.mxu0 %v1928
      %v2126 = vpop.f32.mrf.mxu0
      %v2127 = vadd.f32 0.0, %v2126
      %v2128 = vpop.f32.mrf.mxu0
      %2129 = vmatprep.mubr.f32.mxu0 0.0
      %2130 = vmatmul.mubr.f32.gmra.mxu0 %v1931
      %v2131 = vpop.f32.mrf.mxu0
      %v2132 = vadd.f32 0.0, %v2131
      %v2133 = vpop.f32.mrf.mxu0
      %2134 = vmatprep.mubr.f32.mxu0 0.0
      %2135 = vmatmul.mubr.f32.gmra.mxu0 %v1934
      %v2136 = vpop.f32.mrf.mxu0
      %v2137 = vadd.f32 0.0, %v2136
      %v2138 = vpop.f32.mrf.mxu0
      %2139 = vmatprep.mubr.f32.mxu0 0.0
      %2140 = vmatmul.mubr.f32.gmra.mxu0 %v1937
      %v2141 = vpop.f32.mrf.mxu0
      %v2142 = vadd.f32 0.0, %v2141
      %v2143 = vpop.f32.mrf.mxu0
      %2144 = vmatprep.mubr.f32.mxu0 0.0
      %2145 = vmatmul.mubr.f32.gmra.mxu0 %v1940
      %v2146 = vpop.f32.mrf.mxu0
      %v2147 = vadd.f32 0.0, %v2146
      %v2148 = vpop.f32.mrf.mxu0
      %2149 = vmatprep.mubr.f32.mxu0 0.0
      %2150 = vmatmul.mubr.f32.gmra.mxu0 %v1943
      %v2151 = vpop.f32.mrf.mxu0
      %v2152 = vadd.f32 0.0, %v2151
      %v2153 = vpop.f32.mrf.mxu0
      %2154 = vmatprep.mubr.f32.mxu0 0.0
      %2155 = vmatmul.mubr.f32.gmra.mxu0 %v1946
      %v2156 = vpop.f32.mrf.mxu0
      %v2157 = vadd.f32 0.0, %v2156
      %v2158 = vpop.f32.mrf.mxu0
      %2159 = vmatprep.mubr.f32.mxu0 0.0
      %2160 = vmatmul.mubr.f32.gmra.mxu0 %v1949
      %v2161 = vpop.f32.mrf.mxu0
      %v2162 = vadd.f32 0.0, %v2161
      %v2163 = vpop.f32.mrf.mxu0
      %2164 = vmatprep.mubr.f32.mxu0 0.0
      %2165 = vmatmul.mubr.f32.gmra.mxu0 %v1952
      %v2166 = vpop.f32.mrf.mxu0
      %v2167 = vadd.f32 0.0, %v2166
      %v2168 = vpop.f32.mrf.mxu0
      %2169 = vmatprep.mubr.f32.mxu0 0.0
      %2170 = vmatmul.mubr.f32.gmra.mxu0 %v1955
      %v2171 = vpop.f32.mrf.mxu0
      %v2172 = vadd.f32 0.0, %v2171
      %v2173 = vpop.f32.mrf.mxu0
      %2174 = vmatprep.mubr.f32.mxu0 0.0
      %2175 = vmatmul.mubr.f32.gmra.mxu0 %v1958
      %v2176 = vpop.f32.mrf.mxu0
      %v2177 = vadd.f32 0.0, %v2176
      %v2178 = vpop.f32.mrf.mxu0
      %2179 = vmatprep.mubr.f32.mxu0 0.0
      %2180 = vmatmul.mubr.f32.gmra.mxu0 %v1961
      %v2181 = vpop.f32.mrf.mxu0
      %v2182 = vadd.f32 0.0, %v2181
      %v2183 = vpop.f32.mrf.mxu0
      %2184 = vmatprep.mubr.f32.mxu0 0.0
      %2185 = vmatmul.mubr.f32.gmra.mxu0 %v1964
      %v2186 = vpop.f32.mrf.mxu0
      %v2187 = vadd.f32 0.0, %v2186
      %v2188 = vpop.f32.mrf.mxu0
      %2189 = vmatprep.mubr.f32.mxu0 0.0
      %2190 = vmatmul.mubr.f32.gmra.mxu0 %v1967
      %v2191 = vpop.f32.mrf.mxu0
      %v2192 = vadd.f32 0.0, %v2191
      %v2193 = vpop.f32.mrf.mxu0
      %2194 = vmatprep.mubr.f32.mxu0 0.0
      %2195 = vmatmul.mubr.f32.gmra.mxu0 %v1970
      %v2196 = vpop.f32.mrf.mxu0
      %v2197 = vadd.f32 0.0, %v2196
      %v2198 = vpop.f32.mrf.mxu0
      %2199 = vdwg.mxu0
      %v2200 = vadd.f32 %v1810, %v2042
      %v2201 = vadd.f32 %v1811, %v2047
      %v2202 = vadd.f32 %v1812, %v2052
      %v2203 = vadd.f32 %v1813, %v2057
      %v2204 = vadd.f32 %v1814, %v2062
      %v2205 = vadd.f32 %v1815, %v2067
      %v2206 = vadd.f32 %v1816, %v2072
      %v2207 = vadd.f32 %v1817, %v2077
      %v2208 = vadd.f32 %v1818, %v2082
      %v2209 = vadd.f32 %v1819, %v2087
      %v2210 = vadd.f32 %v1820, %v2092
      %v2211 = vadd.f32 %v1821, %v2097
      %v2212 = vadd.f32 %v1822, %v2102
      %v2213 = vadd.f32 %v1823, %v2107
      %v2214 = vadd.f32 %v1824, %v2112
      %v2215 = vadd.f32 %v1825, %v2117
      %v2216 = vadd.f32 %v1826, %v2122
      %v2217 = vadd.f32 %v1827, %v2127
      %v2218 = vadd.f32 %v1828, %v2132
      %v2219 = vadd.f32 %v1829, %v2137
      %v2220 = vadd.f32 %v1830, %v2142
      %v2221 = vadd.f32 %v1831, %v2147
      %v2222 = vadd.f32 %v1832, %v2152
      %v2223 = vadd.f32 %v1833, %v2157
      %v2224 = vadd.f32 %v1834, %v2162
      %v2225 = vadd.f32 %v1835, %v2167
      %v2226 = vadd.f32 %v1836, %v2172
      %v2227 = vadd.f32 %v1837, %v2177
      %v2228 = vadd.f32 %v1838, %v2182
      %v2229 = vadd.f32 %v1839, %v2187
      %v2230 = vadd.f32 %v1840, %v2192
      %v2231 = vadd.f32 %v1841, %v2197
      %v2232 = vld [vmem:[%s313 + $0x2] sm:$0xff]
      %v2233 = vld [vmem:[%s313 + $0xa] sm:$0xff]
      %v2234 = vld [vmem:[%s313 + $0x1a] sm:$0xff]
      %v2235 = vld [vmem:[%s313 + $0x22] sm:$0xff]
      %v2236 = vld [vmem:[%s313 + $0x32] sm:$0xff]
      %v2237 = vld [vmem:[%s313 + $0x3a] sm:$0xff]
      %v2238 = vld [vmem:[%s313 + $0x4a] sm:$0xff]
      %v2239 = vld [vmem:[%s313 + $0x52] sm:$0xff]
      %v2240 = vld [vmem:[%s313 + $0x62] sm:$0xff]
      %v2241 = vld [vmem:[%s313 + $0x6a] sm:$0xff]
      %v2242 = vld [vmem:[%s313 + $0x7a] sm:$0xff]
      %v2243 = vld [vmem:[%s313 + $0x82] sm:$0xff]
      %v2244 = vld [vmem:[%s313 + $0x92] sm:$0xff]
      %v2245 = vld [vmem:[%s313 + $0x9a] sm:$0xff]
      %v2246 = vld [vmem:[%s313 + $0xaa] sm:$0xff]
      %v2247 = vld [vmem:[%s313 + $0xb2] sm:$0xff]
      %v2248 = vld [vmem:[%s313 + $0xc2] sm:$0xff]
      %v2249 = vld [vmem:[%s313 + $0xca] sm:$0xff]
      %v2250 = vld [vmem:[%s313 + $0xda] sm:$0xff]
      %v2251 = vld [vmem:[%s313 + $0xe2] sm:$0xff]
      %v2252 = vld [vmem:[%s313 + $0xf2] sm:$0xff]
      %v2253 = vld [vmem:[%s313 + $0xfa] sm:$0xff]
      %v2254 = vld [vmem:[%s313 + $0x10a] sm:$0xff]
      %v2255 = vld [vmem:[%s313 + $0x112] sm:$0xff]
      %v2256 = vld [vmem:[%s313 + $0x122] sm:$0xff]
      %v2257 = vld [vmem:[%s313 + $0x12a] sm:$0xff]
      %v2258 = vld [vmem:[%s313 + $0x13a] sm:$0xff]
      %v2259 = vld [vmem:[%s313 + $0x142] sm:$0xff]
      %v2260 = vld [vmem:[%s313 + $0x152] sm:$0xff]
      %v2261 = vld [vmem:[%s313 + $0x15a] sm:$0xff]
      %v2262 = vld [vmem:[%s313 + $0x16a] sm:$0xff]
      %v2263 = vld [vmem:[%s313 + $0x172] sm:$0xff]
      %s2264 = scalar_lea.vmem %s1, 20
      %v2265 = vld [vmem:[%s2264] sm:$0x7]
      %v2267 = vsel %vm225, %v2232, 0
      %v2270 = vsel %vm225, %v2233, 0
      %v2273 = vsel %vm225, %v2234, 0
      %v2276 = vsel %vm225, %v2235, 0
      %v2279 = vsel %vm225, %v2236, 0
      %v2282 = vsel %vm225, %v2237, 0
      %v2285 = vsel %vm225, %v2238, 0
      %v2288 = vsel %vm225, %v2239, 0
      %v2291 = vsel %vm225, %v2240, 0
      %v2294 = vsel %vm225, %v2241, 0
      %v2297 = vsel %vm225, %v2242, 0
      %v2300 = vsel %vm225, %v2243, 0
      %v2303 = vsel %vm225, %v2244, 0
      %v2306 = vsel %vm225, %v2245, 0
      %v2309 = vsel %vm225, %v2246, 0
      %v2312 = vsel %vm225, %v2247, 0
      %v2315 = vsel %vm225, %v2248, 0
      %v2318 = vsel %vm225, %v2249, 0
      %v2321 = vsel %vm225, %v2250, 0
      %v2324 = vsel %vm225, %v2251, 0
      %v2327 = vsel %vm225, %v2252, 0
      %v2330 = vsel %vm225, %v2253, 0
      %v2333 = vsel %vm225, %v2254, 0
      %v2336 = vsel %vm225, %v2255, 0
      %v2339 = vsel %vm225, %v2256, 0
      %v2342 = vsel %vm225, %v2257, 0
      %v2345 = vsel %vm225, %v2258, 0
      %v2348 = vsel %vm225, %v2259, 0
      %v2351 = vsel %vm225, %v2260, 0
      %v2354 = vsel %vm225, %v2261, 0
      %v2357 = vsel %vm225, %v2262, 0
      %v2360 = vsel %vm225, %v2263, 0
      %v2363 = vsel %vm509, %v2265, 0
      %2365 = vmatprep.subr.mxu0 0.0
      %2366 = vmatpush1.msra.mxu0 0.0
      %2367 = vmatprep.subr.mxu0 0.0
      %2368 = vmatpush1.msra.mxu0 0.0
      %2369 = vmatprep.subr.mxu0 0.0
      %2370 = vmatpush1.msra.mxu0 0.0
      %2371 = vmatprep.subr.mxu0 0.0
      %2372 = vmatpush1.msra.mxu0 0.0
      %2373 = vmatprep.subr.mxu0 0.0
      %2374 = vmatpush1.msra.mxu0 0.0
      %2375 = vmatprep.subr.mxu0 0.0
      %2376 = vmatpush1.msra.mxu0 0.0
      %2377 = vmatprep.subr.mxu0 0.0
      %2378 = vmatpush1.msra.mxu0 0.0
      %2379 = vmatprep.subr.mxu0 0.0
      %2380 = vmatpush1.msra.mxu0 0.0
      %2381 = vmatprep.subr.mxu0 0.0
      %2382 = vmatpush1.msra.mxu0 0.0
      %2383 = vmatprep.subr.mxu0 0.0
      %2384 = vmatpush1.msra.mxu0 0.0
      %2385 = vmatprep.subr.mxu0 0.0
      %2386 = vmatpush1.msra.mxu0 0.0
      %2387 = vmatprep.subr.mxu0 0.0
      %2388 = vmatpush1.msra.mxu0 0.0
      %2389 = vmatprep.subr.mxu0 0.0
      %2390 = vmatpush1.msra.mxu0 0.0
      %2391 = vmatprep.subr.mxu0 0.0
      %2392 = vmatpush1.msra.mxu0 0.0
      %2393 = vmatprep.subr.mxu0 0.0
      %2394 = vmatpush1.msra.mxu0 0.0
      %2395 = vmatprep.subr.mxu0 0.0
      %2396 = vmatpush1.msra.mxu0 %v2363
      %2397 = vmatprep.subr.mxu0 0.0
      %2398 = vmatpush2.msra.mxu0 0.0
      %2399 = vmatprep.subr.mxu0 0.0
      %2400 = vmatpush2.msra.mxu0 0.0
      %2401 = vmatprep.subr.mxu0 0.0
      %2402 = vmatpush2.msra.mxu0 0.0
      %2403 = vmatprep.subr.mxu0 0.0
      %2404 = vmatpush2.msra.mxu0 0.0
      %2405 = vmatprep.subr.mxu0 0.0
      %2406 = vmatpush2.msra.mxu0 0.0
      %2407 = vmatprep.subr.mxu0 0.0
      %2408 = vmatpush2.msra.mxu0 0.0
      %2409 = vmatprep.subr.mxu0 0.0
      %2410 = vmatpush2.msra.mxu0 0.0
      %2411 = vmatprep.subr.mxu0 0.0
      %2412 = vmatpush2.msra.mxu0 0.0
      %2413 = vmatprep.subr.mxu0 0.0
      %2414 = vmatpush2.msra.mxu0 0.0
      %2415 = vmatprep.subr.mxu0 0.0
      %2416 = vmatpush2.msra.mxu0 0.0
      %2417 = vmatprep.subr.mxu0 0.0
      %2418 = vmatpush2.msra.mxu0 0.0
      %2419 = vmatprep.subr.mxu0 0.0
      %2420 = vmatpush2.msra.mxu0 0.0
      %2421 = vmatprep.subr.mxu0 0.0
      %2422 = vmatpush2.msra.mxu0 0.0
      %2423 = vmatprep.subr.mxu0 0.0
      %2424 = vmatpush2.msra.mxu0 0.0
      %2425 = vmatprep.subr.mxu0 0.0
      %2426 = vmatpush2.msra.mxu0 0.0
      %2427 = vmatprep.subr.mxu0 0.0
      %2428 = vmatpush2.msra.mxu0 0.0
      %2429 = vmatprep.mubr.f32.mxu0 0.0
      %2430 = vmatmul.mubr.f32.gmra.mxu0 %v2267
      %v2431 = vpop.f32.mrf.mxu0
      %v2432 = vadd.f32 0.0, %v2431
      %v2433 = vpop.f32.mrf.mxu0
      %2434 = vmatprep.mubr.f32.mxu0 0.0
      %2435 = vmatmul.mubr.f32.gmra.mxu0 %v2270
      %v2436 = vpop.f32.mrf.mxu0
      %v2437 = vadd.f32 0.0, %v2436
      %v2438 = vpop.f32.mrf.mxu0
      %2439 = vmatprep.mubr.f32.mxu0 0.0
      %2440 = vmatmul.mubr.f32.gmra.mxu0 %v2273
      %v2441 = vpop.f32.mrf.mxu0
      %v2442 = vadd.f32 0.0, %v2441
      %v2443 = vpop.f32.mrf.mxu0
      %2444 = vmatprep.mubr.f32.mxu0 0.0
      %2445 = vmatmul.mubr.f32.gmra.mxu0 %v2276
      %v2446 = vpop.f32.mrf.mxu0
      %v2447 = vadd.f32 0.0, %v2446
      %v2448 = vpop.f32.mrf.mxu0
      %2449 = vmatprep.mubr.f32.mxu0 0.0
      %2450 = vmatmul.mubr.f32.gmra.mxu0 %v2279
      %v2451 = vpop.f32.mrf.mxu0
      %v2452 = vadd.f32 0.0, %v2451
      %v2453 = vpop.f32.mrf.mxu0
      %2454 = vmatprep.mubr.f32.mxu0 0.0
      %2455 = vmatmul.mubr.f32.gmra.mxu0 %v2282
      %v2456 = vpop.f32.mrf.mxu0
      %v2457 = vadd.f32 0.0, %v2456
      %v2458 = vpop.f32.mrf.mxu0
      %2459 = vmatprep.mubr.f32.mxu0 0.0
      %2460 = vmatmul.mubr.f32.gmra.mxu0 %v2285
      %v2461 = vpop.f32.mrf.mxu0
      %v2462 = vadd.f32 0.0, %v2461
      %v2463 = vpop.f32.mrf.mxu0
      %2464 = vmatprep.mubr.f32.mxu0 0.0
      %2465 = vmatmul.mubr.f32.gmra.mxu0 %v2288
      %v2466 = vpop.f32.mrf.mxu0
      %v2467 = vadd.f32 0.0, %v2466
      %v2468 = vpop.f32.mrf.mxu0
      %2469 = vmatprep.mubr.f32.mxu0 0.0
      %2470 = vmatmul.mubr.f32.gmra.mxu0 %v2291
      %v2471 = vpop.f32.mrf.mxu0
      %v2472 = vadd.f32 0.0, %v2471
      %v2473 = vpop.f32.mrf.mxu0
      %2474 = vmatprep.mubr.f32.mxu0 0.0
      %2475 = vmatmul.mubr.f32.gmra.mxu0 %v2294
      %v2476 = vpop.f32.mrf.mxu0
      %v2477 = vadd.f32 0.0, %v2476
      %v2478 = vpop.f32.mrf.mxu0
      %2479 = vmatprep.mubr.f32.mxu0 0.0
      %2480 = vmatmul.mubr.f32.gmra.mxu0 %v2297
      %v2481 = vpop.f32.mrf.mxu0
      %v2482 = vadd.f32 0.0, %v2481
      %v2483 = vpop.f32.mrf.mxu0
      %2484 = vmatprep.mubr.f32.mxu0 0.0
      %2485 = vmatmul.mubr.f32.gmra.mxu0 %v2300
      %v2486 = vpop.f32.mrf.mxu0
      %v2487 = vadd.f32 0.0, %v2486
      %v2488 = vpop.f32.mrf.mxu0
      %2489 = vmatprep.mubr.f32.mxu0 0.0
      %2490 = vmatmul.mubr.f32.gmra.mxu0 %v2303
      %v2491 = vpop.f32.mrf.mxu0
      %v2492 = vadd.f32 0.0, %v2491
      %v2493 = vpop.f32.mrf.mxu0
      %2494 = vmatprep.mubr.f32.mxu0 0.0
      %2495 = vmatmul.mubr.f32.gmra.mxu0 %v2306
      %v2496 = vpop.f32.mrf.mxu0
      %v2497 = vadd.f32 0.0, %v2496
      %v2498 = vpop.f32.mrf.mxu0
      %2499 = vmatprep.mubr.f32.mxu0 0.0
      %2500 = vmatmul.mubr.f32.gmra.mxu0 %v2309
      %v2501 = vpop.f32.mrf.mxu0
      %v2502 = vadd.f32 0.0, %v2501
      %v2503 = vpop.f32.mrf.mxu0
      %2504 = vmatprep.mubr.f32.mxu0 0.0
      %2505 = vmatmul.mubr.f32.gmra.mxu0 %v2312
      %v2506 = vpop.f32.mrf.mxu0
      %v2507 = vadd.f32 0.0, %v2506
      %v2508 = vpop.f32.mrf.mxu0
      %2509 = vmatprep.mubr.f32.mxu0 0.0
      %2510 = vmatmul.mubr.f32.gmra.mxu0 %v2315
      %v2511 = vpop.f32.mrf.mxu0
      %v2512 = vadd.f32 0.0, %v2511
      %v2513 = vpop.f32.mrf.mxu0
      %2514 = vmatprep.mubr.f32.mxu0 0.0
      %2515 = vmatmul.mubr.f32.gmra.mxu0 %v2318
      %v2516 = vpop.f32.mrf.mxu0
      %v2517 = vadd.f32 0.0, %v2516
      %v2518 = vpop.f32.mrf.mxu0
      %2519 = vmatprep.mubr.f32.mxu0 0.0
      %2520 = vmatmul.mubr.f32.gmra.mxu0 %v2321
      %v2521 = vpop.f32.mrf.mxu0
      %v2522 = vadd.f32 0.0, %v2521
      %v2523 = vpop.f32.mrf.mxu0
      %2524 = vmatprep.mubr.f32.mxu0 0.0
      %2525 = vmatmul.mubr.f32.gmra.mxu0 %v2324
      %v2526 = vpop.f32.mrf.mxu0
      %v2527 = vadd.f32 0.0, %v2526
      %v2528 = vpop.f32.mrf.mxu0
      %2529 = vmatprep.mubr.f32.mxu0 0.0
      %2530 = vmatmul.mubr.f32.gmra.mxu0 %v2327
      %v2531 = vpop.f32.mrf.mxu0
      %v2532 = vadd.f32 0.0, %v2531
      %v2533 = vpop.f32.mrf.mxu0
      %2534 = vmatprep.mubr.f32.mxu0 0.0
      %2535 = vmatmul.mubr.f32.gmra.mxu0 %v2330
      %v2536 = vpop.f32.mrf.mxu0
      %v2537 = vadd.f32 0.0, %v2536
      %v2538 = vpop.f32.mrf.mxu0
      %2539 = vmatprep.mubr.f32.mxu0 0.0
      %2540 = vmatmul.mubr.f32.gmra.mxu0 %v2333
      %v2541 = vpop.f32.mrf.mxu0
      %v2542 = vadd.f32 0.0, %v2541
      %v2543 = vpop.f32.mrf.mxu0
      %2544 = vmatprep.mubr.f32.mxu0 0.0
      %2545 = vmatmul.mubr.f32.gmra.mxu0 %v2336
      %v2546 = vpop.f32.mrf.mxu0
      %v2547 = vadd.f32 0.0, %v2546
      %v2548 = vpop.f32.mrf.mxu0
      %2549 = vmatprep.mubr.f32.mxu0 0.0
      %2550 = vmatmul.mubr.f32.gmra.mxu0 %v2339
      %v2551 = vpop.f32.mrf.mxu0
      %v2552 = vadd.f32 0.0, %v2551
      %v2553 = vpop.f32.mrf.mxu0
      %2554 = vmatprep.mubr.f32.mxu0 0.0
      %2555 = vmatmul.mubr.f32.gmra.mxu0 %v2342
      %v2556 = vpop.f32.mrf.mxu0
      %v2557 = vadd.f32 0.0, %v2556
      %v2558 = vpop.f32.mrf.mxu0
      %2559 = vmatprep.mubr.f32.mxu0 0.0
      %2560 = vmatmul.mubr.f32.gmra.mxu0 %v2345
      %v2561 = vpop.f32.mrf.mxu0
      %v2562 = vadd.f32 0.0, %v2561
      %v2563 = vpop.f32.mrf.mxu0
      %2564 = vmatprep.mubr.f32.mxu0 0.0
      %2565 = vmatmul.mubr.f32.gmra.mxu0 %v2348
      %v2566 = vpop.f32.mrf.mxu0
      %v2567 = vadd.f32 0.0, %v2566
      %v2568 = vpop.f32.mrf.mxu0
      %2569 = vmatprep.mubr.f32.mxu0 0.0
      %2570 = vmatmul.mubr.f32.gmra.mxu0 %v2351
      %v2571 = vpop.f32.mrf.mxu0
      %v2572 = vadd.f32 0.0, %v2571
      %v2573 = vpop.f32.mrf.mxu0
      %2574 = vmatprep.mubr.f32.mxu0 0.0
      %2575 = vmatmul.mubr.f32.gmra.mxu0 %v2354
      %v2576 = vpop.f32.mrf.mxu0
      %v2577 = vadd.f32 0.0, %v2576
      %v2578 = vpop.f32.mrf.mxu0
      %2579 = vmatprep.mubr.f32.mxu0 0.0
      %2580 = vmatmul.mubr.f32.gmra.mxu0 %v2357
      %v2581 = vpop.f32.mrf.mxu0
      %v2582 = vadd.f32 0.0, %v2581
      %v2583 = vpop.f32.mrf.mxu0
      %2584 = vmatprep.mubr.f32.mxu0 0.0
      %2585 = vmatmul.mubr.f32.gmra.mxu0 %v2360
      %v2586 = vpop.f32.mrf.mxu0
      %v2587 = vadd.f32 0.0, %v2586
      %v2588 = vpop.f32.mrf.mxu0
      %2589 = vdwg.mxu0
      %v2590 = vadd.f32 %v2200, %v2432
      %v2591 = vadd.f32 %v2201, %v2437
      %v2592 = vadd.f32 %v2202, %v2442
      %v2593 = vadd.f32 %v2203, %v2447
      %v2594 = vadd.f32 %v2204, %v2452
      %v2595 = vadd.f32 %v2205, %v2457
      %v2596 = vadd.f32 %v2206, %v2462
      %v2597 = vadd.f32 %v2207, %v2467
      %v2598 = vadd.f32 %v2208, %v2472
      %v2599 = vadd.f32 %v2209, %v2477
      %v2600 = vadd.f32 %v2210, %v2482
      %v2601 = vadd.f32 %v2211, %v2487
      %v2602 = vadd.f32 %v2212, %v2492
      %v2603 = vadd.f32 %v2213, %v2497
      %v2604 = vadd.f32 %v2214, %v2502
      %v2605 = vadd.f32 %v2215, %v2507
      %v2606 = vadd.f32 %v2216, %v2512
      %v2607 = vadd.f32 %v2217, %v2517
      %v2608 = vadd.f32 %v2218, %v2522
      %v2609 = vadd.f32 %v2219, %v2527
      %v2610 = vadd.f32 %v2220, %v2532
      %v2611 = vadd.f32 %v2221, %v2537
      %v2612 = vadd.f32 %v2222, %v2542
      %v2613 = vadd.f32 %v2223, %v2547
      %v2614 = vadd.f32 %v2224, %v2552
      %v2615 = vadd.f32 %v2225, %v2557
      %v2616 = vadd.f32 %v2226, %v2562
      %v2617 = vadd.f32 %v2227, %v2567
      %v2618 = vadd.f32 %v2228, %v2572
      %v2619 = vadd.f32 %v2229, %v2577
      %v2620 = vadd.f32 %v2230, %v2582
      %v2621 = vadd.f32 %v2231, %v2587
      %s2622 = scalar_lea.vmem [#allocation2], 48
      %v2623 = vld [vmem:[%s2622] sm:$0xff]
      %v2624 = vld [vmem:[%s2622 + $0x8] sm:$0xff]
      %v2625 = vld [vmem:[%s2622 + $0x18] sm:$0xff]
      %v2626 = vld [vmem:[%s2622 + $0x20] sm:$0xff]
      %v2627 = vld [vmem:[%s2622 + $0x30] sm:$0xff]
      %v2628 = vld [vmem:[%s2622 + $0x38] sm:$0xff]
      %v2629 = vld [vmem:[%s2622 + $0x48] sm:$0xff]
      %v2630 = vld [vmem:[%s2622 + $0x50] sm:$0xff]
      %v2631 = vld [vmem:[%s2622 + $0x60] sm:$0xff]
      %v2632 = vld [vmem:[%s2622 + $0x68] sm:$0xff]
      %v2633 = vld [vmem:[%s2622 + $0x78] sm:$0xff]
      %v2634 = vld [vmem:[%s2622 + $0x80] sm:$0xff]
      %v2635 = vld [vmem:[%s2622 + $0x90] sm:$0xff]
      %v2636 = vld [vmem:[%s2622 + $0x98] sm:$0xff]
      %v2637 = vld [vmem:[%s2622 + $0xa8] sm:$0xff]
      %v2638 = vld [vmem:[%s2622 + $0xb0] sm:$0xff]
      %v2639 = vld [vmem:[%s2622 + $0xc0] sm:$0xff]
      %v2640 = vld [vmem:[%s2622 + $0xc8] sm:$0xff]
      %v2641 = vld [vmem:[%s2622 + $0xd8] sm:$0xff]
      %v2642 = vld [vmem:[%s2622 + $0xe0] sm:$0xff]
      %v2643 = vld [vmem:[%s2622 + $0xf0] sm:$0xff]
      %v2644 = vld [vmem:[%s2622 + $0xf8] sm:$0xff]
      %v2645 = vld [vmem:[%s2622 + $0x108] sm:$0xff]
      %v2646 = vld [vmem:[%s2622 + $0x110] sm:$0xff]
      %v2647 = vld [vmem:[%s2622 + $0x120] sm:$0xff]
      %v2648 = vld [vmem:[%s2622 + $0x128] sm:$0xff]
      %v2649 = vld [vmem:[%s2622 + $0x138] sm:$0xff]
      %v2650 = vld [vmem:[%s2622 + $0x140] sm:$0xff]
      %v2651 = vld [vmem:[%s2622 + $0x150] sm:$0xff]
      %v2652 = vld [vmem:[%s2622 + $0x158] sm:$0xff]
      %v2653 = vld [vmem:[%s2622 + $0x168] sm:$0xff]
      %v2654 = vld [vmem:[%s2622 + $0x170] sm:$0xff]
      %s2655 = scalar_lea.vmem %s1, 24
      %v2656 = vld [vmem:[%s2655] sm:$0x7]
      %v2658 = vsel %vm225, %v2623, 0
      %v2661 = vsel %vm225, %v2624, 0
      %v2664 = vsel %vm225, %v2625, 0
      %v2667 = vsel %vm225, %v2626, 0
      %v2670 = vsel %vm225, %v2627, 0
      %v2673 = vsel %vm225, %v2628, 0
      %v2676 = vsel %vm225, %v2629, 0
      %v2679 = vsel %vm225, %v2630, 0
      %v2682 = vsel %vm225, %v2631, 0
      %v2685 = vsel %vm225, %v2632, 0
      %v2688 = vsel %vm225, %v2633, 0
      %v2691 = vsel %vm225, %v2634, 0
      %v2694 = vsel %vm225, %v2635, 0
      %v2697 = vsel %vm225, %v2636, 0
      %v2700 = vsel %vm225, %v2637, 0
      %v2703 = vsel %vm225, %v2638, 0
      %v2706 = vsel %vm225, %v2639, 0
      %v2709 = vsel %vm225, %v2640, 0
      %v2712 = vsel %vm225, %v2641, 0
      %v2715 = vsel %vm225, %v2642, 0
      %v2718 = vsel %vm225, %v2643, 0
      %v2721 = vsel %vm225, %v2644, 0
      %v2724 = vsel %vm225, %v2645, 0
      %v2727 = vsel %vm225, %v2646, 0
      %v2730 = vsel %vm225, %v2647, 0
      %v2733 = vsel %vm225, %v2648, 0
      %v2736 = vsel %vm225, %v2649, 0
      %v2739 = vsel %vm225, %v2650, 0
      %v2742 = vsel %vm225, %v2651, 0
      %v2745 = vsel %vm225, %v2652, 0
      %v2748 = vsel %vm225, %v2653, 0
      %v2751 = vsel %vm225, %v2654, 0
      %v2754 = vsel %vm509, %v2656, 0
      %2756 = vmatprep.subr.mxu0 0.0
      %2757 = vmatpush1.msra.mxu0 0.0
      %2758 = vmatprep.subr.mxu0 0.0
      %2759 = vmatpush1.msra.mxu0 0.0
      %2760 = vmatprep.subr.mxu0 0.0
      %2761 = vmatpush1.msra.mxu0 0.0
      %2762 = vmatprep.subr.mxu0 0.0
      %2763 = vmatpush1.msra.mxu0 0.0
      %2764 = vmatprep.subr.mxu0 0.0
      %2765 = vmatpush1.msra.mxu0 0.0
      %2766 = vmatprep.subr.mxu0 0.0
      %2767 = vmatpush1.msra.mxu0 0.0
      %2768 = vmatprep.subr.mxu0 0.0
      %2769 = vmatpush1.msra.mxu0 0.0
      %2770 = vmatprep.subr.mxu0 0.0
      %2771 = vmatpush1.msra.mxu0 0.0
      %2772 = vmatprep.subr.mxu0 0.0
      %2773 = vmatpush1.msra.mxu0 0.0
      %2774 = vmatprep.subr.mxu0 0.0
      %2775 = vmatpush1.msra.mxu0 0.0
      %2776 = vmatprep.subr.mxu0 0.0
      %2777 = vmatpush1.msra.mxu0 0.0
      %2778 = vmatprep.subr.mxu0 0.0
      %2779 = vmatpush1.msra.mxu0 0.0
      %2780 = vmatprep.subr.mxu0 0.0
      %2781 = vmatpush1.msra.mxu0 0.0
      %2782 = vmatprep.subr.mxu0 0.0
      %2783 = vmatpush1.msra.mxu0 0.0
      %2784 = vmatprep.subr.mxu0 0.0
      %2785 = vmatpush1.msra.mxu0 0.0
      %2786 = vmatprep.subr.mxu0 0.0
      %2787 = vmatpush1.msra.mxu0 %v2754
      %2788 = vmatprep.subr.mxu0 0.0
      %2789 = vmatpush2.msra.mxu0 0.0
      %2790 = vmatprep.subr.mxu0 0.0
      %2791 = vmatpush2.msra.mxu0 0.0
      %2792 = vmatprep.subr.mxu0 0.0
      %2793 = vmatpush2.msra.mxu0 0.0
      %2794 = vmatprep.subr.mxu0 0.0
      %2795 = vmatpush2.msra.mxu0 0.0
      %2796 = vmatprep.subr.mxu0 0.0
      %2797 = vmatpush2.msra.mxu0 0.0
      %2798 = vmatprep.subr.mxu0 0.0
      %2799 = vmatpush2.msra.mxu0 0.0
      %2800 = vmatprep.subr.mxu0 0.0
      %2801 = vmatpush2.msra.mxu0 0.0
      %2802 = vmatprep.subr.mxu0 0.0
      %2803 = vmatpush2.msra.mxu0 0.0
      %2804 = vmatprep.subr.mxu0 0.0
      %2805 = vmatpush2.msra.mxu0 0.0
      %2806 = vmatprep.subr.mxu0 0.0
      %2807 = vmatpush2.msra.mxu0 0.0
      %2808 = vmatprep.subr.mxu0 0.0
      %2809 = vmatpush2.msra.mxu0 0.0
      %2810 = vmatprep.subr.mxu0 0.0
      %2811 = vmatpush2.msra.mxu0 0.0
      %2812 = vmatprep.subr.mxu0 0.0
      %2813 = vmatpush2.msra.mxu0 0.0
      %2814 = vmatprep.subr.mxu0 0.0
      %2815 = vmatpush2.msra.mxu0 0.0
      %2816 = vmatprep.subr.mxu0 0.0
      %2817 = vmatpush2.msra.mxu0 0.0
      %2818 = vmatprep.subr.mxu0 0.0
      %2819 = vmatpush2.msra.mxu0 0.0
      %2820 = vmatprep.mubr.f32.mxu0 0.0
      %2821 = vmatmul.mubr.f32.gmra.mxu0 %v2658
      %v2822 = vpop.f32.mrf.mxu0
      %v2823 = vadd.f32 0.0, %v2822
      %v2824 = vpop.f32.mrf.mxu0
      %2825 = vmatprep.mubr.f32.mxu0 0.0
      %2826 = vmatmul.mubr.f32.gmra.mxu0 %v2661
      %v2827 = vpop.f32.mrf.mxu0
      %v2828 = vadd.f32 0.0, %v2827
      %v2829 = vpop.f32.mrf.mxu0
      %2830 = vmatprep.mubr.f32.mxu0 0.0
      %2831 = vmatmul.mubr.f32.gmra.mxu0 %v2664
      %v2832 = vpop.f32.mrf.mxu0
      %v2833 = vadd.f32 0.0, %v2832
      %v2834 = vpop.f32.mrf.mxu0
      %2835 = vmatprep.mubr.f32.mxu0 0.0
      %2836 = vmatmul.mubr.f32.gmra.mxu0 %v2667
      %v2837 = vpop.f32.mrf.mxu0
      %v2838 = vadd.f32 0.0, %v2837
      %v2839 = vpop.f32.mrf.mxu0
      %2840 = vmatprep.mubr.f32.mxu0 0.0
      %2841 = vmatmul.mubr.f32.gmra.mxu0 %v2670
      %v2842 = vpop.f32.mrf.mxu0
      %v2843 = vadd.f32 0.0, %v2842
      %v2844 = vpop.f32.mrf.mxu0
      %2845 = vmatprep.mubr.f32.mxu0 0.0
      %2846 = vmatmul.mubr.f32.gmra.mxu0 %v2673
      %v2847 = vpop.f32.mrf.mxu0
      %v2848 = vadd.f32 0.0, %v2847
      %v2849 = vpop.f32.mrf.mxu0
      %2850 = vmatprep.mubr.f32.mxu0 0.0
      %2851 = vmatmul.mubr.f32.gmra.mxu0 %v2676
      %v2852 = vpop.f32.mrf.mxu0
      %v2853 = vadd.f32 0.0, %v2852
      %v2854 = vpop.f32.mrf.mxu0
      %2855 = vmatprep.mubr.f32.mxu0 0.0
      %2856 = vmatmul.mubr.f32.gmra.mxu0 %v2679
      %v2857 = vpop.f32.mrf.mxu0
      %v2858 = vadd.f32 0.0, %v2857
      %v2859 = vpop.f32.mrf.mxu0
      %2860 = vmatprep.mubr.f32.mxu0 0.0
      %2861 = vmatmul.mubr.f32.gmra.mxu0 %v2682
      %v2862 = vpop.f32.mrf.mxu0
      %v2863 = vadd.f32 0.0, %v2862
      %v2864 = vpop.f32.mrf.mxu0
      %2865 = vmatprep.mubr.f32.mxu0 0.0
      %2866 = vmatmul.mubr.f32.gmra.mxu0 %v2685
      %v2867 = vpop.f32.mrf.mxu0
      %v2868 = vadd.f32 0.0, %v2867
      %v2869 = vpop.f32.mrf.mxu0
      %2870 = vmatprep.mubr.f32.mxu0 0.0
      %2871 = vmatmul.mubr.f32.gmra.mxu0 %v2688
      %v2872 = vpop.f32.mrf.mxu0
      %v2873 = vadd.f32 0.0, %v2872
      %v2874 = vpop.f32.mrf.mxu0
      %2875 = vmatprep.mubr.f32.mxu0 0.0
      %2876 = vmatmul.mubr.f32.gmra.mxu0 %v2691
      %v2877 = vpop.f32.mrf.mxu0
      %v2878 = vadd.f32 0.0, %v2877
      %v2879 = vpop.f32.mrf.mxu0
      %2880 = vmatprep.mubr.f32.mxu0 0.0
      %2881 = vmatmul.mubr.f32.gmra.mxu0 %v2694
      %v2882 = vpop.f32.mrf.mxu0
      %v2883 = vadd.f32 0.0, %v2882
      %v2884 = vpop.f32.mrf.mxu0
      %2885 = vmatprep.mubr.f32.mxu0 0.0
      %2886 = vmatmul.mubr.f32.gmra.mxu0 %v2697
      %v2887 = vpop.f32.mrf.mxu0
      %v2888 = vadd.f32 0.0, %v2887
      %v2889 = vpop.f32.mrf.mxu0
      %2890 = vmatprep.mubr.f32.mxu0 0.0
      %2891 = vmatmul.mubr.f32.gmra.mxu0 %v2700
      %v2892 = vpop.f32.mrf.mxu0
      %v2893 = vadd.f32 0.0, %v2892
      %v2894 = vpop.f32.mrf.mxu0
      %2895 = vmatprep.mubr.f32.mxu0 0.0
      %2896 = vmatmul.mubr.f32.gmra.mxu0 %v2703
      %v2897 = vpop.f32.mrf.mxu0
      %v2898 = vadd.f32 0.0, %v2897
      %v2899 = vpop.f32.mrf.mxu0
      %2900 = vmatprep.mubr.f32.mxu0 0.0
      %2901 = vmatmul.mubr.f32.gmra.mxu0 %v2706
      %v2902 = vpop.f32.mrf.mxu0
      %v2903 = vadd.f32 0.0, %v2902
      %v2904 = vpop.f32.mrf.mxu0
      %2905 = vmatprep.mubr.f32.mxu0 0.0
      %2906 = vmatmul.mubr.f32.gmra.mxu0 %v2709
      %v2907 = vpop.f32.mrf.mxu0
      %v2908 = vadd.f32 0.0, %v2907
      %v2909 = vpop.f32.mrf.mxu0
      %2910 = vmatprep.mubr.f32.mxu0 0.0
      %2911 = vmatmul.mubr.f32.gmra.mxu0 %v2712
      %v2912 = vpop.f32.mrf.mxu0
      %v2913 = vadd.f32 0.0, %v2912
      %v2914 = vpop.f32.mrf.mxu0
      %2915 = vmatprep.mubr.f32.mxu0 0.0
      %2916 = vmatmul.mubr.f32.gmra.mxu0 %v2715
      %v2917 = vpop.f32.mrf.mxu0
      %v2918 = vadd.f32 0.0, %v2917
      %v2919 = vpop.f32.mrf.mxu0
      %2920 = vmatprep.mubr.f32.mxu0 0.0
      %2921 = vmatmul.mubr.f32.gmra.mxu0 %v2718
      %v2922 = vpop.f32.mrf.mxu0
      %v2923 = vadd.f32 0.0, %v2922
      %v2924 = vpop.f32.mrf.mxu0
      %2925 = vmatprep.mubr.f32.mxu0 0.0
      %2926 = vmatmul.mubr.f32.gmra.mxu0 %v2721
      %v2927 = vpop.f32.mrf.mxu0
      %v2928 = vadd.f32 0.0, %v2927
      %v2929 = vpop.f32.mrf.mxu0
      %2930 = vmatprep.mubr.f32.mxu0 0.0
      %2931 = vmatmul.mubr.f32.gmra.mxu0 %v2724
      %v2932 = vpop.f32.mrf.mxu0
      %v2933 = vadd.f32 0.0, %v2932
      %v2934 = vpop.f32.mrf.mxu0
      %2935 = vmatprep.mubr.f32.mxu0 0.0
      %2936 = vmatmul.mubr.f32.gmra.mxu0 %v2727
      %v2937 = vpop.f32.mrf.mxu0
      %v2938 = vadd.f32 0.0, %v2937
      %v2939 = vpop.f32.mrf.mxu0
      %2940 = vmatprep.mubr.f32.mxu0 0.0
      %2941 = vmatmul.mubr.f32.gmra.mxu0 %v2730
      %v2942 = vpop.f32.mrf.mxu0
      %v2943 = vadd.f32 0.0, %v2942
      %v2944 = vpop.f32.mrf.mxu0
      %2945 = vmatprep.mubr.f32.mxu0 0.0
      %2946 = vmatmul.mubr.f32.gmra.mxu0 %v2733
      %v2947 = vpop.f32.mrf.mxu0
      %v2948 = vadd.f32 0.0, %v2947
      %v2949 = vpop.f32.mrf.mxu0
      %2950 = vmatprep.mubr.f32.mxu0 0.0
      %2951 = vmatmul.mubr.f32.gmra.mxu0 %v2736
      %v2952 = vpop.f32.mrf.mxu0
      %v2953 = vadd.f32 0.0, %v2952
      %v2954 = vpop.f32.mrf.mxu0
      %2955 = vmatprep.mubr.f32.mxu0 0.0
      %2956 = vmatmul.mubr.f32.gmra.mxu0 %v2739
      %v2957 = vpop.f32.mrf.mxu0
      %v2958 = vadd.f32 0.0, %v2957
      %v2959 = vpop.f32.mrf.mxu0
      %2960 = vmatprep.mubr.f32.mxu0 0.0
      %2961 = vmatmul.mubr.f32.gmra.mxu0 %v2742
      %v2962 = vpop.f32.mrf.mxu0
      %v2963 = vadd.f32 0.0, %v2962
      %v2964 = vpop.f32.mrf.mxu0
      %2965 = vmatprep.mubr.f32.mxu0 0.0
      %2966 = vmatmul.mubr.f32.gmra.mxu0 %v2745
      %v2967 = vpop.f32.mrf.mxu0
      %v2968 = vadd.f32 0.0, %v2967
      %v2969 = vpop.f32.mrf.mxu0
      %2970 = vmatprep.mubr.f32.mxu0 0.0
      %2971 = vmatmul.mubr.f32.gmra.mxu0 %v2748
      %v2972 = vpop.f32.mrf.mxu0
      %v2973 = vadd.f32 0.0, %v2972
      %v2974 = vpop.f32.mrf.mxu0
      %2975 = vmatprep.mubr.f32.mxu0 0.0
      %2976 = vmatmul.mubr.f32.gmra.mxu0 %v2751
      %v2977 = vpop.f32.mrf.mxu0
      %v2978 = vadd.f32 0.0, %v2977
      %v2979 = vpop.f32.mrf.mxu0
      %2980 = vdwg.mxu0
      %v2981 = vadd.f32 %v2590, %v2823
      %v2982 = vadd.f32 %v2591, %v2828
      %v2983 = vadd.f32 %v2592, %v2833
      %v2984 = vadd.f32 %v2593, %v2838
      %v2985 = vadd.f32 %v2594, %v2843
      %v2986 = vadd.f32 %v2595, %v2848
      %v2987 = vadd.f32 %v2596, %v2853
      %v2988 = vadd.f32 %v2597, %v2858
      %v2989 = vadd.f32 %v2598, %v2863
      %v2990 = vadd.f32 %v2599, %v2868
      %v2991 = vadd.f32 %v2600, %v2873
      %v2992 = vadd.f32 %v2601, %v2878
      %v2993 = vadd.f32 %v2602, %v2883
      %v2994 = vadd.f32 %v2603, %v2888
      %v2995 = vadd.f32 %v2604, %v2893
      %v2996 = vadd.f32 %v2605, %v2898
      %v2997 = vadd.f32 %v2606, %v2903
      %v2998 = vadd.f32 %v2607, %v2908
      %v2999 = vadd.f32 %v2608, %v2913
      %v3000 = vadd.f32 %v2609, %v2918
      %v3001 = vadd.f32 %v2610, %v2923
      %v3002 = vadd.f32 %v2611, %v2928
      %v3003 = vadd.f32 %v2612, %v2933
      %v3004 = vadd.f32 %v2613, %v2938
      %v3005 = vadd.f32 %v2614, %v2943
      %v3006 = vadd.f32 %v2615, %v2948
      %v3007 = vadd.f32 %v2616, %v2953
      %v3008 = vadd.f32 %v2617, %v2958
      %v3009 = vadd.f32 %v2618, %v2963
      %v3010 = vadd.f32 %v2619, %v2968
      %v3011 = vadd.f32 %v2620, %v2973
      %v3012 = vadd.f32 %v2621, %v2978
      %v3013 = vld [vmem:[%s2622 + $0x1] sm:$0xff]
      %v3014 = vld [vmem:[%s2622 + $0x9] sm:$0xff]
      %v3015 = vld [vmem:[%s2622 + $0x19] sm:$0xff]
      %v3016 = vld [vmem:[%s2622 + $0x21] sm:$0xff]
      %v3017 = vld [vmem:[%s2622 + $0x31] sm:$0xff]
      %v3018 = vld [vmem:[%s2622 + $0x39] sm:$0xff]
      %v3019 = vld [vmem:[%s2622 + $0x49] sm:$0xff]
      %v3020 = vld [vmem:[%s2622 + $0x51] sm:$0xff]
      %v3021 = vld [vmem:[%s2622 + $0x61] sm:$0xff]
      %v3022 = vld [vmem:[%s2622 + $0x69] sm:$0xff]
      %v3023 = vld [vmem:[%s2622 + $0x79] sm:$0xff]
      %v3024 = vld [vmem:[%s2622 + $0x81] sm:$0xff]
      %v3025 = vld [vmem:[%s2622 + $0x91] sm:$0xff]
      %v3026 = vld [vmem:[%s2622 + $0x99] sm:$0xff]
      %v3027 = vld [vmem:[%s2622 + $0xa9] sm:$0xff]
      %v3028 = vld [vmem:[%s2622 + $0xb1] sm:$0xff]
      %v3029 = vld [vmem:[%s2622 + $0xc1] sm:$0xff]
      %v3030 = vld [vmem:[%s2622 + $0xc9] sm:$0xff]
      %v3031 = vld [vmem:[%s2622 + $0xd9] sm:$0xff]
      %v3032 = vld [vmem:[%s2622 + $0xe1] sm:$0xff]
      %v3033 = vld [vmem:[%s2622 + $0xf1] sm:$0xff]
      %v3034 = vld [vmem:[%s2622 + $0xf9] sm:$0xff]
      %v3035 = vld [vmem:[%s2622 + $0x109] sm:$0xff]
      %v3036 = vld [vmem:[%s2622 + $0x111] sm:$0xff]
      %v3037 = vld [vmem:[%s2622 + $0x121] sm:$0xff]
      %v3038 = vld [vmem:[%s2622 + $0x129] sm:$0xff]
      %v3039 = vld [vmem:[%s2622 + $0x139] sm:$0xff]
      %v3040 = vld [vmem:[%s2622 + $0x141] sm:$0xff]
      %v3041 = vld [vmem:[%s2622 + $0x151] sm:$0xff]
      %v3042 = vld [vmem:[%s2622 + $0x159] sm:$0xff]
      %v3043 = vld [vmem:[%s2622 + $0x169] sm:$0xff]
      %v3044 = vld [vmem:[%s2622 + $0x171] sm:$0xff]
      %s3045 = scalar_lea.vmem %s1, 28
      %v3046 = vld [vmem:[%s3045] sm:$0x7]
      %v3048 = vsel %vm225, %v3013, 0
      %v3051 = vsel %vm225, %v3014, 0
      %v3054 = vsel %vm225, %v3015, 0
      %v3057 = vsel %vm225, %v3016, 0
      %v3060 = vsel %vm225, %v3017, 0
      %v3063 = vsel %vm225, %v3018, 0
      %v3066 = vsel %vm225, %v3019, 0
      %v3069 = vsel %vm225, %v3020, 0
      %v3072 = vsel %vm225, %v3021, 0
      %v3075 = vsel %vm225, %v3022, 0
      %v3078 = vsel %vm225, %v3023, 0
      %v3081 = vsel %vm225, %v3024, 0
      %v3084 = vsel %vm225, %v3025, 0
      %v3087 = vsel %vm225, %v3026, 0
      %v3090 = vsel %vm225, %v3027, 0
      %v3093 = vsel %vm225, %v3028, 0
      %v3096 = vsel %vm225, %v3029, 0
      %v3099 = vsel %vm225, %v3030, 0
      %v3102 = vsel %vm225, %v3031, 0
      %v3105 = vsel %vm225, %v3032, 0
      %v3108 = vsel %vm225, %v3033, 0
      %v3111 = vsel %vm225, %v3034, 0
      %v3114 = vsel %vm225, %v3035, 0
      %v3117 = vsel %vm225, %v3036, 0
      %v3120 = vsel %vm225, %v3037, 0
      %v3123 = vsel %vm225, %v3038, 0
      %v3126 = vsel %vm225, %v3039, 0
      %v3129 = vsel %vm225, %v3040, 0
      %v3132 = vsel %vm225, %v3041, 0
      %v3135 = vsel %vm225, %v3042, 0
      %v3138 = vsel %vm225, %v3043, 0
      %v3141 = vsel %vm225, %v3044, 0
      %v3144 = vsel %vm509, %v3046, 0
      %3146 = vmatprep.subr.mxu0 0.0
      %3147 = vmatpush1.msra.mxu0 0.0
      %3148 = vmatprep.subr.mxu0 0.0
      %3149 = vmatpush1.msra.mxu0 0.0
      %3150 = vmatprep.subr.mxu0 0.0
      %3151 = vmatpush1.msra.mxu0 0.0
      %3152 = vmatprep.subr.mxu0 0.0
      %3153 = vmatpush1.msra.mxu0 0.0
      %3154 = vmatprep.subr.mxu0 0.0
      %3155 = vmatpush1.msra.mxu0 0.0
      %3156 = vmatprep.subr.mxu0 0.0
      %3157 = vmatpush1.msra.mxu0 0.0
      %3158 = vmatprep.subr.mxu0 0.0
      %3159 = vmatpush1.msra.mxu0 0.0
      %3160 = vmatprep.subr.mxu0 0.0
      %3161 = vmatpush1.msra.mxu0 0.0
      %3162 = vmatprep.subr.mxu0 0.0
      %3163 = vmatpush1.msra.mxu0 0.0
      %3164 = vmatprep.subr.mxu0 0.0
      %3165 = vmatpush1.msra.mxu0 0.0
      %3166 = vmatprep.subr.mxu0 0.0
      %3167 = vmatpush1.msra.mxu0 0.0
      %3168 = vmatprep.subr.mxu0 0.0
      %3169 = vmatpush1.msra.mxu0 0.0
      %3170 = vmatprep.subr.mxu0 0.0
      %3171 = vmatpush1.msra.mxu0 0.0
      %3172 = vmatprep.subr.mxu0 0.0
      %3173 = vmatpush1.msra.mxu0 0.0
      %3174 = vmatprep.subr.mxu0 0.0
      %3175 = vmatpush1.msra.mxu0 0.0
      %3176 = vmatprep.subr.mxu0 0.0
      %3177 = vmatpush1.msra.mxu0 %v3144
      %3178 = vmatprep.subr.mxu0 0.0
      %3179 = vmatpush2.msra.mxu0 0.0
      %3180 = vmatprep.subr.mxu0 0.0
      %3181 = vmatpush2.msra.mxu0 0.0
      %3182 = vmatprep.subr.mxu0 0.0
      %3183 = vmatpush2.msra.mxu0 0.0
      %3184 = vmatprep.subr.mxu0 0.0
      %3185 = vmatpush2.msra.mxu0 0.0
      %3186 = vmatprep.subr.mxu0 0.0
      %3187 = vmatpush2.msra.mxu0 0.0
      %3188 = vmatprep.subr.mxu0 0.0
      %3189 = vmatpush2.msra.mxu0 0.0
      %3190 = vmatprep.subr.mxu0 0.0
      %3191 = vmatpush2.msra.mxu0 0.0
      %3192 = vmatprep.subr.mxu0 0.0
      %3193 = vmatpush2.msra.mxu0 0.0
      %3194 = vmatprep.subr.mxu0 0.0
      %3195 = vmatpush2.msra.mxu0 0.0
      %3196 = vmatprep.subr.mxu0 0.0
      %3197 = vmatpush2.msra.mxu0 0.0
      %3198 = vmatprep.subr.mxu0 0.0
      %3199 = vmatpush2.msra.mxu0 0.0
      %3200 = vmatprep.subr.mxu0 0.0
      %3201 = vmatpush2.msra.mxu0 0.0
      %3202 = vmatprep.subr.mxu0 0.0
      %3203 = vmatpush2.msra.mxu0 0.0
      %3204 = vmatprep.subr.mxu0 0.0
      %3205 = vmatpush2.msra.mxu0 0.0
      %3206 = vmatprep.subr.mxu0 0.0
      %3207 = vmatpush2.msra.mxu0 0.0
      %3208 = vmatprep.subr.mxu0 0.0
      %3209 = vmatpush2.msra.mxu0 0.0
      %3210 = vmatprep.mubr.f32.mxu0 0.0
      %3211 = vmatmul.mubr.f32.gmra.mxu0 %v3048
      %v3212 = vpop.f32.mrf.mxu0
      %v3213 = vadd.f32 0.0, %v3212
      %v3214 = vpop.f32.mrf.mxu0
      %3215 = vmatprep.mubr.f32.mxu0 0.0
      %3216 = vmatmul.mubr.f32.gmra.mxu0 %v3051
      %v3217 = vpop.f32.mrf.mxu0
      %v3218 = vadd.f32 0.0, %v3217
      %v3219 = vpop.f32.mrf.mxu0
      %3220 = vmatprep.mubr.f32.mxu0 0.0
      %3221 = vmatmul.mubr.f32.gmra.mxu0 %v3054
      %v3222 = vpop.f32.mrf.mxu0
      %v3223 = vadd.f32 0.0, %v3222
      %v3224 = vpop.f32.mrf.mxu0
      %3225 = vmatprep.mubr.f32.mxu0 0.0
      %3226 = vmatmul.mubr.f32.gmra.mxu0 %v3057
      %v3227 = vpop.f32.mrf.mxu0
      %v3228 = vadd.f32 0.0, %v3227
      %v3229 = vpop.f32.mrf.mxu0
      %3230 = vmatprep.mubr.f32.mxu0 0.0
      %3231 = vmatmul.mubr.f32.gmra.mxu0 %v3060
      %v3232 = vpop.f32.mrf.mxu0
      %v3233 = vadd.f32 0.0, %v3232
      %v3234 = vpop.f32.mrf.mxu0
      %3235 = vmatprep.mubr.f32.mxu0 0.0
      %3236 = vmatmul.mubr.f32.gmra.mxu0 %v3063
      %v3237 = vpop.f32.mrf.mxu0
      %v3238 = vadd.f32 0.0, %v3237
      %v3239 = vpop.f32.mrf.mxu0
      %3240 = vmatprep.mubr.f32.mxu0 0.0
      %3241 = vmatmul.mubr.f32.gmra.mxu0 %v3066
      %v3242 = vpop.f32.mrf.mxu0
      %v3243 = vadd.f32 0.0, %v3242
      %v3244 = vpop.f32.mrf.mxu0
      %3245 = vmatprep.mubr.f32.mxu0 0.0
      %3246 = vmatmul.mubr.f32.gmra.mxu0 %v3069
      %v3247 = vpop.f32.mrf.mxu0
      %v3248 = vadd.f32 0.0, %v3247
      %v3249 = vpop.f32.mrf.mxu0
      %3250 = vmatprep.mubr.f32.mxu0 0.0
      %3251 = vmatmul.mubr.f32.gmra.mxu0 %v3072
      %v3252 = vpop.f32.mrf.mxu0
      %v3253 = vadd.f32 0.0, %v3252
      %v3254 = vpop.f32.mrf.mxu0
      %3255 = vmatprep.mubr.f32.mxu0 0.0
      %3256 = vmatmul.mubr.f32.gmra.mxu0 %v3075
      %v3257 = vpop.f32.mrf.mxu0
      %v3258 = vadd.f32 0.0, %v3257
      %v3259 = vpop.f32.mrf.mxu0
      %3260 = vmatprep.mubr.f32.mxu0 0.0
      %3261 = vmatmul.mubr.f32.gmra.mxu0 %v3078
      %v3262 = vpop.f32.mrf.mxu0
      %v3263 = vadd.f32 0.0, %v3262
      %v3264 = vpop.f32.mrf.mxu0
      %3265 = vmatprep.mubr.f32.mxu0 0.0
      %3266 = vmatmul.mubr.f32.gmra.mxu0 %v3081
      %v3267 = vpop.f32.mrf.mxu0
      %v3268 = vadd.f32 0.0, %v3267
      %v3269 = vpop.f32.mrf.mxu0
      %3270 = vmatprep.mubr.f32.mxu0 0.0
      %3271 = vmatmul.mubr.f32.gmra.mxu0 %v3084
      %v3272 = vpop.f32.mrf.mxu0
      %v3273 = vadd.f32 0.0, %v3272
      %v3274 = vpop.f32.mrf.mxu0
      %3275 = vmatprep.mubr.f32.mxu0 0.0
      %3276 = vmatmul.mubr.f32.gmra.mxu0 %v3087
      %v3277 = vpop.f32.mrf.mxu0
      %v3278 = vadd.f32 0.0, %v3277
      %v3279 = vpop.f32.mrf.mxu0
      %3280 = vmatprep.mubr.f32.mxu0 0.0
      %3281 = vmatmul.mubr.f32.gmra.mxu0 %v3090
      %v3282 = vpop.f32.mrf.mxu0
      %v3283 = vadd.f32 0.0, %v3282
      %v3284 = vpop.f32.mrf.mxu0
      %3285 = vmatprep.mubr.f32.mxu0 0.0
      %3286 = vmatmul.mubr.f32.gmra.mxu0 %v3093
      %v3287 = vpop.f32.mrf.mxu0
      %v3288 = vadd.f32 0.0, %v3287
      %v3289 = vpop.f32.mrf.mxu0
      %3290 = vmatprep.mubr.f32.mxu0 0.0
      %3291 = vmatmul.mubr.f32.gmra.mxu0 %v3096
      %v3292 = vpop.f32.mrf.mxu0
      %v3293 = vadd.f32 0.0, %v3292
      %v3294 = vpop.f32.mrf.mxu0
      %3295 = vmatprep.mubr.f32.mxu0 0.0
      %3296 = vmatmul.mubr.f32.gmra.mxu0 %v3099
      %v3297 = vpop.f32.mrf.mxu0
      %v3298 = vadd.f32 0.0, %v3297
      %v3299 = vpop.f32.mrf.mxu0
      %3300 = vmatprep.mubr.f32.mxu0 0.0
      %3301 = vmatmul.mubr.f32.gmra.mxu0 %v3102
      %v3302 = vpop.f32.mrf.mxu0
      %v3303 = vadd.f32 0.0, %v3302
      %v3304 = vpop.f32.mrf.mxu0
      %3305 = vmatprep.mubr.f32.mxu0 0.0
      %3306 = vmatmul.mubr.f32.gmra.mxu0 %v3105
      %v3307 = vpop.f32.mrf.mxu0
      %v3308 = vadd.f32 0.0, %v3307
      %v3309 = vpop.f32.mrf.mxu0
      %3310 = vmatprep.mubr.f32.mxu0 0.0
      %3311 = vmatmul.mubr.f32.gmra.mxu0 %v3108
      %v3312 = vpop.f32.mrf.mxu0
      %v3313 = vadd.f32 0.0, %v3312
      %v3314 = vpop.f32.mrf.mxu0
      %3315 = vmatprep.mubr.f32.mxu0 0.0
      %3316 = vmatmul.mubr.f32.gmra.mxu0 %v3111
      %v3317 = vpop.f32.mrf.mxu0
      %v3318 = vadd.f32 0.0, %v3317
      %v3319 = vpop.f32.mrf.mxu0
      %3320 = vmatprep.mubr.f32.mxu0 0.0
      %3321 = vmatmul.mubr.f32.gmra.mxu0 %v3114
      %v3322 = vpop.f32.mrf.mxu0
      %v3323 = vadd.f32 0.0, %v3322
      %v3324 = vpop.f32.mrf.mxu0
      %3325 = vmatprep.mubr.f32.mxu0 0.0
      %3326 = vmatmul.mubr.f32.gmra.mxu0 %v3117
      %v3327 = vpop.f32.mrf.mxu0
      %v3328 = vadd.f32 0.0, %v3327
      %v3329 = vpop.f32.mrf.mxu0
      %3330 = vmatprep.mubr.f32.mxu0 0.0
      %3331 = vmatmul.mubr.f32.gmra.mxu0 %v3120
      %v3332 = vpop.f32.mrf.mxu0
      %v3333 = vadd.f32 0.0, %v3332
      %v3334 = vpop.f32.mrf.mxu0
      %3335 = vmatprep.mubr.f32.mxu0 0.0
      %3336 = vmatmul.mubr.f32.gmra.mxu0 %v3123
      %v3337 = vpop.f32.mrf.mxu0
      %v3338 = vadd.f32 0.0, %v3337
      %v3339 = vpop.f32.mrf.mxu0
      %3340 = vmatprep.mubr.f32.mxu0 0.0
      %3341 = vmatmul.mubr.f32.gmra.mxu0 %v3126
      %v3342 = vpop.f32.mrf.mxu0
      %v3343 = vadd.f32 0.0, %v3342
      %v3344 = vpop.f32.mrf.mxu0
      %3345 = vmatprep.mubr.f32.mxu0 0.0
      %3346 = vmatmul.mubr.f32.gmra.mxu0 %v3129
      %v3347 = vpop.f32.mrf.mxu0
      %v3348 = vadd.f32 0.0, %v3347
      %v3349 = vpop.f32.mrf.mxu0
      %3350 = vmatprep.mubr.f32.mxu0 0.0
      %3351 = vmatmul.mubr.f32.gmra.mxu0 %v3132
      %v3352 = vpop.f32.mrf.mxu0
      %v3353 = vadd.f32 0.0, %v3352
      %v3354 = vpop.f32.mrf.mxu0
      %3355 = vmatprep.mubr.f32.mxu0 0.0
      %3356 = vmatmul.mubr.f32.gmra.mxu0 %v3135
      %v3357 = vpop.f32.mrf.mxu0
      %v3358 = vadd.f32 0.0, %v3357
      %v3359 = vpop.f32.mrf.mxu0
      %3360 = vmatprep.mubr.f32.mxu0 0.0
      %3361 = vmatmul.mubr.f32.gmra.mxu0 %v3138
      %v3362 = vpop.f32.mrf.mxu0
      %v3363 = vadd.f32 0.0, %v3362
      %v3364 = vpop.f32.mrf.mxu0
      %3365 = vmatprep.mubr.f32.mxu0 0.0
      %3366 = vmatmul.mubr.f32.gmra.mxu0 %v3141
      %v3367 = vpop.f32.mrf.mxu0
      %v3368 = vadd.f32 0.0, %v3367
      %v3369 = vpop.f32.mrf.mxu0
      %3370 = vdwg.mxu0
      %v3371 = vadd.f32 %v2981, %v3213
      %v3372 = vadd.f32 %v2982, %v3218
      %v3373 = vadd.f32 %v2983, %v3223
      %v3374 = vadd.f32 %v2984, %v3228
      %v3375 = vadd.f32 %v2985, %v3233
      %v3376 = vadd.f32 %v2986, %v3238
      %v3377 = vadd.f32 %v2987, %v3243
      %v3378 = vadd.f32 %v2988, %v3248
      %v3379 = vadd.f32 %v2989, %v3253
      %v3380 = vadd.f32 %v2990, %v3258
      %v3381 = vadd.f32 %v2991, %v3263
      %v3382 = vadd.f32 %v2992, %v3268
      %v3383 = vadd.f32 %v2993, %v3273
      %v3384 = vadd.f32 %v2994, %v3278
      %v3385 = vadd.f32 %v2995, %v3283
      %v3386 = vadd.f32 %v2996, %v3288
      %v3387 = vadd.f32 %v2997, %v3293
      %v3388 = vadd.f32 %v2998, %v3298
      %v3389 = vadd.f32 %v2999, %v3303
      %v3390 = vadd.f32 %v3000, %v3308
      %v3391 = vadd.f32 %v3001, %v3313
      %v3392 = vadd.f32 %v3002, %v3318
      %v3393 = vadd.f32 %v3003, %v3323
      %v3394 = vadd.f32 %v3004, %v3328
      %v3395 = vadd.f32 %v3005, %v3333
      %v3396 = vadd.f32 %v3006, %v3338
      %v3397 = vadd.f32 %v3007, %v3343
      %v3398 = vadd.f32 %v3008, %v3348
      %v3399 = vadd.f32 %v3009, %v3353
      %v3400 = vadd.f32 %v3010, %v3358
      %v3401 = vadd.f32 %v3011, %v3363
      %v3402 = vadd.f32 %v3012, %v3368
      %v3403 = vld [vmem:[%s2622 + $0x2] sm:$0xff]
      %v3404 = vld [vmem:[%s2622 + $0xa] sm:$0xff]
      %v3405 = vld [vmem:[%s2622 + $0x1a] sm:$0xff]
      %v3406 = vld [vmem:[%s2622 + $0x22] sm:$0xff]
      %v3407 = vld [vmem:[%s2622 + $0x32] sm:$0xff]
      %v3408 = vld [vmem:[%s2622 + $0x3a] sm:$0xff]
      %v3409 = vld [vmem:[%s2622 + $0x4a] sm:$0xff]
      %v3410 = vld [vmem:[%s2622 + $0x52] sm:$0xff]
      %v3411 = vld [vmem:[%s2622 + $0x62] sm:$0xff]
      %v3412 = vld [vmem:[%s2622 + $0x6a] sm:$0xff]
      %v3413 = vld [vmem:[%s2622 + $0x7a] sm:$0xff]
      %v3414 = vld [vmem:[%s2622 + $0x82] sm:$0xff]
      %v3415 = vld [vmem:[%s2622 + $0x92] sm:$0xff]
      %v3416 = vld [vmem:[%s2622 + $0x9a] sm:$0xff]
      %v3417 = vld [vmem:[%s2622 + $0xaa] sm:$0xff]
      %v3418 = vld [vmem:[%s2622 + $0xb2] sm:$0xff]
      %v3419 = vld [vmem:[%s2622 + $0xc2] sm:$0xff]
      %v3420 = vld [vmem:[%s2622 + $0xca] sm:$0xff]
      %v3421 = vld [vmem:[%s2622 + $0xda] sm:$0xff]
      %v3422 = vld [vmem:[%s2622 + $0xe2] sm:$0xff]
      %v3423 = vld [vmem:[%s2622 + $0xf2] sm:$0xff]
      %v3424 = vld [vmem:[%s2622 + $0xfa] sm:$0xff]
      %v3425 = vld [vmem:[%s2622 + $0x10a] sm:$0xff]
      %v3426 = vld [vmem:[%s2622 + $0x112] sm:$0xff]
      %v3427 = vld [vmem:[%s2622 + $0x122] sm:$0xff]
      %v3428 = vld [vmem:[%s2622 + $0x12a] sm:$0xff]
      %v3429 = vld [vmem:[%s2622 + $0x13a] sm:$0xff]
      %v3430 = vld [vmem:[%s2622 + $0x142] sm:$0xff]
      %v3431 = vld [vmem:[%s2622 + $0x152] sm:$0xff]
      %v3432 = vld [vmem:[%s2622 + $0x15a] sm:$0xff]
      %v3433 = vld [vmem:[%s2622 + $0x16a] sm:$0xff]
      %v3434 = vld [vmem:[%s2622 + $0x172] sm:$0xff]
      %s3435 = scalar_lea.vmem %s1, 32
      %v3436 = vld [vmem:[%s3435] sm:$0x7]
      %v3438 = vsel %vm225, %v3403, 0
      %v3441 = vsel %vm225, %v3404, 0
      %v3444 = vsel %vm225, %v3405, 0
      %v3447 = vsel %vm225, %v3406, 0
      %v3450 = vsel %vm225, %v3407, 0
      %v3453 = vsel %vm225, %v3408, 0
      %v3456 = vsel %vm225, %v3409, 0
      %v3459 = vsel %vm225, %v3410, 0
      %v3462 = vsel %vm225, %v3411, 0
      %v3465 = vsel %vm225, %v3412, 0
      %v3468 = vsel %vm225, %v3413, 0
      %v3471 = vsel %vm225, %v3414, 0
      %v3474 = vsel %vm225, %v3415, 0
      %v3477 = vsel %vm225, %v3416, 0
      %v3480 = vsel %vm225, %v3417, 0
      %v3483 = vsel %vm225, %v3418, 0
      %v3486 = vsel %vm225, %v3419, 0
      %v3489 = vsel %vm225, %v3420, 0
      %v3492 = vsel %vm225, %v3421, 0
      %v3495 = vsel %vm225, %v3422, 0
      %v3498 = vsel %vm225, %v3423, 0
      %v3501 = vsel %vm225, %v3424, 0
      %v3504 = vsel %vm225, %v3425, 0
      %v3507 = vsel %vm225, %v3426, 0
      %v3510 = vsel %vm225, %v3427, 0
      %v3513 = vsel %vm225, %v3428, 0
      %v3516 = vsel %vm225, %v3429, 0
      %v3519 = vsel %vm225, %v3430, 0
      %v3522 = vsel %vm225, %v3431, 0
      %v3525 = vsel %vm225, %v3432, 0
      %v3528 = vsel %vm225, %v3433, 0
      %v3531 = vsel %vm225, %v3434, 0
      %v3534 = vsel %vm509, %v3436, 0
      %3536 = vmatprep.subr.mxu0 0.0
      %3537 = vmatpush1.msra.mxu0 0.0
      %3538 = vmatprep.subr.mxu0 0.0
      %3539 = vmatpush1.msra.mxu0 0.0
      %3540 = vmatprep.subr.mxu0 0.0
      %3541 = vmatpush1.msra.mxu0 0.0
      %3542 = vmatprep.subr.mxu0 0.0
      %3543 = vmatpush1.msra.mxu0 0.0
      %3544 = vmatprep.subr.mxu0 0.0
      %3545 = vmatpush1.msra.mxu0 0.0
      %3546 = vmatprep.subr.mxu0 0.0
      %3547 = vmatpush1.msra.mxu0 0.0
      %3548 = vmatprep.subr.mxu0 0.0
      %3549 = vmatpush1.msra.mxu0 0.0
      %3550 = vmatprep.subr.mxu0 0.0
      %3551 = vmatpush1.msra.mxu0 0.0
      %3552 = vmatprep.subr.mxu0 0.0
      %3553 = vmatpush1.msra.mxu0 0.0
      %3554 = vmatprep.subr.mxu0 0.0
      %3555 = vmatpush1.msra.mxu0 0.0
      %3556 = vmatprep.subr.mxu0 0.0
      %3557 = vmatpush1.msra.mxu0 0.0
      %3558 = vmatprep.subr.mxu0 0.0
      %3559 = vmatpush1.msra.mxu0 0.0
      %3560 = vmatprep.subr.mxu0 0.0
      %3561 = vmatpush1.msra.mxu0 0.0
      %3562 = vmatprep.subr.mxu0 0.0
      %3563 = vmatpush1.msra.mxu0 0.0
      %3564 = vmatprep.subr.mxu0 0.0
      %3565 = vmatpush1.msra.mxu0 0.0
      %3566 = vmatprep.subr.mxu0 0.0
      %3567 = vmatpush1.msra.mxu0 %v3534
      %3568 = vmatprep.subr.mxu0 0.0
      %3569 = vmatpush2.msra.mxu0 0.0
      %3570 = vmatprep.subr.mxu0 0.0
      %3571 = vmatpush2.msra.mxu0 0.0
      %3572 = vmatprep.subr.mxu0 0.0
      %3573 = vmatpush2.msra.mxu0 0.0
      %3574 = vmatprep.subr.mxu0 0.0
      %3575 = vmatpush2.msra.mxu0 0.0
      %3576 = vmatprep.subr.mxu0 0.0
      %3577 = vmatpush2.msra.mxu0 0.0
      %3578 = vmatprep.subr.mxu0 0.0
      %3579 = vmatpush2.msra.mxu0 0.0
      %3580 = vmatprep.subr.mxu0 0.0
      %3581 = vmatpush2.msra.mxu0 0.0
      %3582 = vmatprep.subr.mxu0 0.0
      %3583 = vmatpush2.msra.mxu0 0.0
      %3584 = vmatprep.subr.mxu0 0.0
      %3585 = vmatpush2.msra.mxu0 0.0
      %3586 = vmatprep.subr.mxu0 0.0
      %3587 = vmatpush2.msra.mxu0 0.0
      %3588 = vmatprep.subr.mxu0 0.0
      %3589 = vmatpush2.msra.mxu0 0.0
      %3590 = vmatprep.subr.mxu0 0.0
      %3591 = vmatpush2.msra.mxu0 0.0
      %3592 = vmatprep.subr.mxu0 0.0
      %3593 = vmatpush2.msra.mxu0 0.0
      %3594 = vmatprep.subr.mxu0 0.0
      %3595 = vmatpush2.msra.mxu0 0.0
      %3596 = vmatprep.subr.mxu0 0.0
      %3597 = vmatpush2.msra.mxu0 0.0
      %3598 = vmatprep.subr.mxu0 0.0
      %3599 = vmatpush2.msra.mxu0 0.0
      %3600 = vmatprep.mubr.f32.mxu0 0.0
      %3601 = vmatmul.mubr.f32.gmra.mxu0 %v3438
      %v3602 = vpop.f32.mrf.mxu0
      %v3603 = vadd.f32 0.0, %v3602
      %v3604 = vpop.f32.mrf.mxu0
      %3605 = vmatprep.mubr.f32.mxu0 0.0
      %3606 = vmatmul.mubr.f32.gmra.mxu0 %v3441
      %v3607 = vpop.f32.mrf.mxu0
      %v3608 = vadd.f32 0.0, %v3607
      %v3609 = vpop.f32.mrf.mxu0
      %3610 = vmatprep.mubr.f32.mxu0 0.0
      %3611 = vmatmul.mubr.f32.gmra.mxu0 %v3444
      %v3612 = vpop.f32.mrf.mxu0
      %v3613 = vadd.f32 0.0, %v3612
      %v3614 = vpop.f32.mrf.mxu0
      %3615 = vmatprep.mubr.f32.mxu0 0.0
      %3616 = vmatmul.mubr.f32.gmra.mxu0 %v3447
      %v3617 = vpop.f32.mrf.mxu0
      %v3618 = vadd.f32 0.0, %v3617
      %v3619 = vpop.f32.mrf.mxu0
      %3620 = vmatprep.mubr.f32.mxu0 0.0
      %3621 = vmatmul.mubr.f32.gmra.mxu0 %v3450
      %v3622 = vpop.f32.mrf.mxu0
      %v3623 = vadd.f32 0.0, %v3622
      %v3624 = vpop.f32.mrf.mxu0
      %3625 = vmatprep.mubr.f32.mxu0 0.0
      %3626 = vmatmul.mubr.f32.gmra.mxu0 %v3453
      %v3627 = vpop.f32.mrf.mxu0
      %v3628 = vadd.f32 0.0, %v3627
      %v3629 = vpop.f32.mrf.mxu0
      %3630 = vmatprep.mubr.f32.mxu0 0.0
      %3631 = vmatmul.mubr.f32.gmra.mxu0 %v3456
      %v3632 = vpop.f32.mrf.mxu0
      %v3633 = vadd.f32 0.0, %v3632
      %v3634 = vpop.f32.mrf.mxu0
      %3635 = vmatprep.mubr.f32.mxu0 0.0
      %3636 = vmatmul.mubr.f32.gmra.mxu0 %v3459
      %v3637 = vpop.f32.mrf.mxu0
      %v3638 = vadd.f32 0.0, %v3637
      %v3639 = vpop.f32.mrf.mxu0
      %3640 = vmatprep.mubr.f32.mxu0 0.0
      %3641 = vmatmul.mubr.f32.gmra.mxu0 %v3462
      %v3642 = vpop.f32.mrf.mxu0
      %v3643 = vadd.f32 0.0, %v3642
      %v3644 = vpop.f32.mrf.mxu0
      %3645 = vmatprep.mubr.f32.mxu0 0.0
      %3646 = vmatmul.mubr.f32.gmra.mxu0 %v3465
      %v3647 = vpop.f32.mrf.mxu0
      %v3648 = vadd.f32 0.0, %v3647
      %v3649 = vpop.f32.mrf.mxu0
      %3650 = vmatprep.mubr.f32.mxu0 0.0
      %3651 = vmatmul.mubr.f32.gmra.mxu0 %v3468
      %v3652 = vpop.f32.mrf.mxu0
      %v3653 = vadd.f32 0.0, %v3652
      %v3654 = vpop.f32.mrf.mxu0
      %3655 = vmatprep.mubr.f32.mxu0 0.0
      %3656 = vmatmul.mubr.f32.gmra.mxu0 %v3471
      %v3657 = vpop.f32.mrf.mxu0
      %v3658 = vadd.f32 0.0, %v3657
      %v3659 = vpop.f32.mrf.mxu0
      %3660 = vmatprep.mubr.f32.mxu0 0.0
      %3661 = vmatmul.mubr.f32.gmra.mxu0 %v3474
      %v3662 = vpop.f32.mrf.mxu0
      %v3663 = vadd.f32 0.0, %v3662
      %v3664 = vpop.f32.mrf.mxu0
      %3665 = vmatprep.mubr.f32.mxu0 0.0
      %3666 = vmatmul.mubr.f32.gmra.mxu0 %v3477
      %v3667 = vpop.f32.mrf.mxu0
      %v3668 = vadd.f32 0.0, %v3667
      %v3669 = vpop.f32.mrf.mxu0
      %3670 = vmatprep.mubr.f32.mxu0 0.0
      %3671 = vmatmul.mubr.f32.gmra.mxu0 %v3480
      %v3672 = vpop.f32.mrf.mxu0
      %v3673 = vadd.f32 0.0, %v3672
      %v3674 = vpop.f32.mrf.mxu0
      %3675 = vmatprep.mubr.f32.mxu0 0.0
      %3676 = vmatmul.mubr.f32.gmra.mxu0 %v3483
      %v3677 = vpop.f32.mrf.mxu0
      %v3678 = vadd.f32 0.0, %v3677
      %v3679 = vpop.f32.mrf.mxu0
      %3680 = vmatprep.mubr.f32.mxu0 0.0
      %3681 = vmatmul.mubr.f32.gmra.mxu0 %v3486
      %v3682 = vpop.f32.mrf.mxu0
      %v3683 = vadd.f32 0.0, %v3682
      %v3684 = vpop.f32.mrf.mxu0
      %3685 = vmatprep.mubr.f32.mxu0 0.0
      %3686 = vmatmul.mubr.f32.gmra.mxu0 %v3489
      %v3687 = vpop.f32.mrf.mxu0
      %v3688 = vadd.f32 0.0, %v3687
      %v3689 = vpop.f32.mrf.mxu0
      %3690 = vmatprep.mubr.f32.mxu0 0.0
      %3691 = vmatmul.mubr.f32.gmra.mxu0 %v3492
      %v3692 = vpop.f32.mrf.mxu0
      %v3693 = vadd.f32 0.0, %v3692
      %v3694 = vpop.f32.mrf.mxu0
      %3695 = vmatprep.mubr.f32.mxu0 0.0
      %3696 = vmatmul.mubr.f32.gmra.mxu0 %v3495
      %v3697 = vpop.f32.mrf.mxu0
      %v3698 = vadd.f32 0.0, %v3697
      %v3699 = vpop.f32.mrf.mxu0
      %3700 = vmatprep.mubr.f32.mxu0 0.0
      %3701 = vmatmul.mubr.f32.gmra.mxu0 %v3498
      %v3702 = vpop.f32.mrf.mxu0
      %v3703 = vadd.f32 0.0, %v3702
      %v3704 = vpop.f32.mrf.mxu0
      %3705 = vmatprep.mubr.f32.mxu0 0.0
      %3706 = vmatmul.mubr.f32.gmra.mxu0 %v3501
      %v3707 = vpop.f32.mrf.mxu0
      %v3708 = vadd.f32 0.0, %v3707
      %v3709 = vpop.f32.mrf.mxu0
      %3710 = vmatprep.mubr.f32.mxu0 0.0
      %3711 = vmatmul.mubr.f32.gmra.mxu0 %v3504
      %v3712 = vpop.f32.mrf.mxu0
      %v3713 = vadd.f32 0.0, %v3712
      %v3714 = vpop.f32.mrf.mxu0
      %3715 = vmatprep.mubr.f32.mxu0 0.0
      %3716 = vmatmul.mubr.f32.gmra.mxu0 %v3507
      %v3717 = vpop.f32.mrf.mxu0
      %v3718 = vadd.f32 0.0, %v3717
      %v3719 = vpop.f32.mrf.mxu0
      %3720 = vmatprep.mubr.f32.mxu0 0.0
      %3721 = vmatmul.mubr.f32.gmra.mxu0 %v3510
      %v3722 = vpop.f32.mrf.mxu0
      %v3723 = vadd.f32 0.0, %v3722
      %v3724 = vpop.f32.mrf.mxu0
      %3725 = vmatprep.mubr.f32.mxu0 0.0
      %3726 = vmatmul.mubr.f32.gmra.mxu0 %v3513
      %v3727 = vpop.f32.mrf.mxu0
      %v3728 = vadd.f32 0.0, %v3727
      %v3729 = vpop.f32.mrf.mxu0
      %3730 = vmatprep.mubr.f32.mxu0 0.0
      %3731 = vmatmul.mubr.f32.gmra.mxu0 %v3516
      %v3732 = vpop.f32.mrf.mxu0
      %v3733 = vadd.f32 0.0, %v3732
      %v3734 = vpop.f32.mrf.mxu0
      %3735 = vmatprep.mubr.f32.mxu0 0.0
      %3736 = vmatmul.mubr.f32.gmra.mxu0 %v3519
      %v3737 = vpop.f32.mrf.mxu0
      %v3738 = vadd.f32 0.0, %v3737
      %v3739 = vpop.f32.mrf.mxu0
      %3740 = vmatprep.mubr.f32.mxu0 0.0
      %3741 = vmatmul.mubr.f32.gmra.mxu0 %v3522
      %v3742 = vpop.f32.mrf.mxu0
      %v3743 = vadd.f32 0.0, %v3742
      %v3744 = vpop.f32.mrf.mxu0
      %3745 = vmatprep.mubr.f32.mxu0 0.0
      %3746 = vmatmul.mubr.f32.gmra.mxu0 %v3525
      %v3747 = vpop.f32.mrf.mxu0
      %v3748 = vadd.f32 0.0, %v3747
      %v3749 = vpop.f32.mrf.mxu0
      %3750 = vmatprep.mubr.f32.mxu0 0.0
      %3751 = vmatmul.mubr.f32.gmra.mxu0 %v3528
      %v3752 = vpop.f32.mrf.mxu0
      %v3753 = vadd.f32 0.0, %v3752
      %v3754 = vpop.f32.mrf.mxu0
      %3755 = vmatprep.mubr.f32.mxu0 0.0
      %3756 = vmatmul.mubr.f32.gmra.mxu0 %v3531
      %v3757 = vpop.f32.mrf.mxu0
      %v3758 = vadd.f32 0.0, %v3757
      %v3759 = vpop.f32.mrf.mxu0
      %3760 = vdwg.mxu0
      %v3761 = vadd.f32 %v3371, %v3603
      %v3762 = vadd.f32 %v3372, %v3608
      %v3763 = vadd.f32 %v3373, %v3613
      %v3764 = vadd.f32 %v3374, %v3618
      %v3765 = vadd.f32 %v3375, %v3623
      %v3766 = vadd.f32 %v3376, %v3628
      %v3767 = vadd.f32 %v3377, %v3633
      %v3768 = vadd.f32 %v3378, %v3638
      %v3769 = vadd.f32 %v3379, %v3643
      %v3770 = vadd.f32 %v3380, %v3648
      %v3771 = vadd.f32 %v3381, %v3653
      %v3772 = vadd.f32 %v3382, %v3658
      %v3773 = vadd.f32 %v3383, %v3663
      %v3774 = vadd.f32 %v3384, %v3668
      %v3775 = vadd.f32 %v3385, %v3673
      %v3776 = vadd.f32 %v3386, %v3678
      %v3777 = vadd.f32 %v3387, %v3683
      %v3778 = vadd.f32 %v3388, %v3688
      %v3779 = vadd.f32 %v3389, %v3693
      %v3780 = vadd.f32 %v3390, %v3698
      %v3781 = vadd.f32 %v3391, %v3703
      %v3782 = vadd.f32 %v3392, %v3708
      %v3783 = vadd.f32 %v3393, %v3713
      %v3784 = vadd.f32 %v3394, %v3718
      %v3785 = vadd.f32 %v3395, %v3723
      %v3786 = vadd.f32 %v3396, %v3728
      %v3787 = vadd.f32 %v3397, %v3733
      %v3788 = vadd.f32 %v3398, %v3738
      %v3789 = vadd.f32 %v3399, %v3743
      %v3790 = vadd.f32 %v3400, %v3748
      %v3791 = vadd.f32 %v3401, %v3753
      %v3792 = vadd.f32 %v3402, %v3758
      %v3793 = vld [vmem:[%s2] sm:$0x1]
      %v3795 = vlaneseq
      %v3796 = vshrl.u32 %v3795, 7
      %v3797 = vsub.s32 0, %v3796
      %v3798 = vrot.slane %v3793, %v3797
      %v3800 = vadd.f32 %v3761, %v3798
      %v3801 = vadd.f32 %v3762, %v3798
      %v3802 = vadd.f32 %v3763, %v3798
      %v3803 = vadd.f32 %v3764, %v3798
      %v3804 = vadd.f32 %v3765, %v3798
      %v3805 = vadd.f32 %v3766, %v3798
      %v3806 = vadd.f32 %v3767, %v3798
      %v3807 = vadd.f32 %v3768, %v3798
      %v3808 = vadd.f32 %v3769, %v3798
      %v3809 = vadd.f32 %v3770, %v3798
      %v3810 = vadd.f32 %v3771, %v3798
      %v3811 = vadd.f32 %v3772, %v3798
      %v3812 = vadd.f32 %v3773, %v3798
      %v3813 = vadd.f32 %v3774, %v3798
      %v3814 = vadd.f32 %v3775, %v3798
      %v3815 = vadd.f32 %v3776, %v3798
      %v3816 = vadd.f32 %v3777, %v3798
      %v3817 = vadd.f32 %v3778, %v3798
      %v3818 = vadd.f32 %v3779, %v3798
      %v3819 = vadd.f32 %v3780, %v3798
      %v3820 = vadd.f32 %v3781, %v3798
      %v3821 = vadd.f32 %v3782, %v3798
      %v3822 = vadd.f32 %v3783, %v3798
      %v3823 = vadd.f32 %v3784, %v3798
      %v3824 = vadd.f32 %v3785, %v3798
      %v3825 = vadd.f32 %v3786, %v3798
      %v3826 = vadd.f32 %v3787, %v3798
      %v3827 = vadd.f32 %v3788, %v3798
      %v3828 = vadd.f32 %v3789, %v3798
      %v3829 = vadd.f32 %v3790, %v3798
      %v3830 = vadd.f32 %v3791, %v3798
      %v3831 = vadd.f32 %v3792, %v3798
      %vm3832 = vcmask 64512
      %3833 = vst.msk [vmem:[#allocation3] sm:$0xff] %vm3832, 0.0
      %3834 = vst.msk [vmem:[#allocation3 + $0x8] sm:$0xff] %vm3832, 0.0
      %vm3835 = vcmask 58368
      %3836 = vst.msk [vmem:[#allocation3 + $0x10] sm:$0x3] %vm3835, 0.0
      %3837 = vst.msk [vmem:[#allocation3 + $0x18] sm:$0xff] %vm3832, 0.0
      %3838 = vst.msk [vmem:[#allocation3 + $0x20] sm:$0xff] %vm3832, 0.0
      %3839 = vst.msk [vmem:[#allocation3 + $0x28] sm:$0x3] %vm3835, 0.0
      %3840 = vst.msk [vmem:[#allocation3 + $0x30] sm:$0xff] %vm3832, 0.0
      %3841 = vst.msk [vmem:[#allocation3 + $0x38] sm:$0xff] %vm3832, 0.0
      %3842 = vst.msk [vmem:[#allocation3 + $0x40] sm:$0x3] %vm3835, 0.0
      %3843 = vst.msk [vmem:[#allocation3 + $0x48] sm:$0xff] %vm3832, 0.0
      %3844 = vst.msk [vmem:[#allocation3 + $0x50] sm:$0xff] %vm3832, 0.0
      %3845 = vst.msk [vmem:[#allocation3 + $0x58] sm:$0x3] %vm3835, 0.0
      %3846 = vst.msk [vmem:[#allocation3 + $0x60] sm:$0xff] %vm3832, 0.0
      %3847 = vst.msk [vmem:[#allocation3 + $0x68] sm:$0xff] %vm3832, 0.0
      %3848 = vst.msk [vmem:[#allocation3 + $0x70] sm:$0x3] %vm3835, 0.0
      %3849 = vst.msk [vmem:[#allocation3 + $0x78] sm:$0xff] %vm3832, 0.0
      %3850 = vst.msk [vmem:[#allocation3 + $0x80] sm:$0xff] %vm3832, 0.0
      %3851 = vst.msk [vmem:[#allocation3 + $0x88] sm:$0x3] %vm3835, 0.0
      %3852 = vst.msk [vmem:[#allocation3 + $0x90] sm:$0xff] %vm3832, 0.0
      %3853 = vst.msk [vmem:[#allocation3 + $0x98] sm:$0xff] %vm3832, 0.0
      %3854 = vst.msk [vmem:[#allocation3 + $0xa0] sm:$0x3] %vm3835, 0.0
      %3855 = vst.msk [vmem:[#allocation3 + $0xa8] sm:$0xff] %vm3832, 0.0
      %3856 = vst.msk [vmem:[#allocation3 + $0xb0] sm:$0xff] %vm3832, 0.0
      %3857 = vst.msk [vmem:[#allocation3 + $0xb8] sm:$0x3] %vm3835, 0.0
      %3858 = vst.msk [vmem:[#allocation3 + $0xc0] sm:$0xff] %vm3832, 0.0
      %3859 = vst.msk [vmem:[#allocation3 + $0xc8] sm:$0xff] %vm3832, 0.0
      %3860 = vst.msk [vmem:[#allocation3 + $0xd0] sm:$0x3] %vm3835, 0.0
      %3861 = vst.msk [vmem:[#allocation3 + $0xd8] sm:$0xff] %vm3832, 0.0
      %3862 = vst.msk [vmem:[#allocation3 + $0xe0] sm:$0xff] %vm3832, 0.0
      %3863 = vst.msk [vmem:[#allocation3 + $0xe8] sm:$0x3] %vm3835, 0.0
      %3864 = vst.msk [vmem:[#allocation3 + $0xf0] sm:$0xff] %vm3832, 0.0
      %3865 = vst.msk [vmem:[#allocation3 + $0xf8] sm:$0xff] %vm3832, 0.0
      %3866 = vst.msk [vmem:[#allocation3 + $0x100] sm:$0x3] %vm3835, 0.0
      %3867 = vst.msk [vmem:[#allocation3 + $0x108] sm:$0xff] %vm3832, 0.0
      %3868 = vst.msk [vmem:[#allocation3 + $0x110] sm:$0xff] %vm3832, 0.0
      %3869 = vst.msk [vmem:[#allocation3 + $0x118] sm:$0x3] %vm3835, 0.0
      %3870 = vst.msk [vmem:[#allocation3 + $0x120] sm:$0xff] %vm3832, 0.0
      %3871 = vst.msk [vmem:[#allocation3 + $0x128] sm:$0xff] %vm3832, 0.0
      %3872 = vst.msk [vmem:[#allocation3 + $0x130] sm:$0x3] %vm3835, 0.0
      %3873 = vst.msk [vmem:[#allocation3 + $0x138] sm:$0xff] %vm3832, 0.0
      %3874 = vst.msk [vmem:[#allocation3 + $0x140] sm:$0xff] %vm3832, 0.0
      %3875 = vst.msk [vmem:[#allocation3 + $0x148] sm:$0x3] %vm3835, 0.0
      %3876 = vst.msk [vmem:[#allocation3 + $0x150] sm:$0xff] %vm3832, 0.0
      %3877 = vst.msk [vmem:[#allocation3 + $0x158] sm:$0xff] %vm3832, 0.0
      %3878 = vst.msk [vmem:[#allocation3 + $0x160] sm:$0x3] %vm3835, 0.0
      %3879 = vst.msk [vmem:[#allocation3 + $0x168] sm:$0xff] %vm3832, 0.0
      %3880 = vst.msk [vmem:[#allocation3 + $0x170] sm:$0xff] %vm3832, 0.0
      %3881 = vst.msk [vmem:[#allocation3 + $0x178] sm:$0x3] %vm3835, 0.0
      %3882 = vst.msk [vmem:[#allocation3 + $0x180] sm:$0xff] %vm3832, 0.0
      %3883 = vst.msk [vmem:[#allocation3 + $0x188] sm:$0xff] %vm3832, 0.0
      %3884 = vst.msk [vmem:[#allocation3 + $0x190] sm:$0x3] %vm3835, 0.0
      %3885 = vst.msk [vmem:[#allocation3 + $0x198] sm:$0xff] %vm3832, 0.0
      %3886 = vst.msk [vmem:[#allocation3 + $0x1a0] sm:$0xff] %vm3832, 0.0
      %3887 = vst.msk [vmem:[#allocation3 + $0x1a8] sm:$0x3] %vm3835, 0.0
      %s3888 = scalar_lea.vmem [#allocation3], 24
      %3889 = vst.msk [vmem:[%s3888 + $0x1] sm:$0xff] %vm3832, %v3800
      %3890 = vst.msk [vmem:[%s3888 + $0x9] sm:$0xff] %vm3832, %v3801
      %3891 = vst.msk [vmem:[%s3888 + $0x19] sm:$0xff] %vm3832, %v3802
      %3892 = vst.msk [vmem:[%s3888 + $0x21] sm:$0xff] %vm3832, %v3803
      %3893 = vst.msk [vmem:[%s3888 + $0x31] sm:$0xff] %vm3832, %v3804
      %3894 = vst.msk [vmem:[%s3888 + $0x39] sm:$0xff] %vm3832, %v3805
      %3895 = vst.msk [vmem:[%s3888 + $0x49] sm:$0xff] %vm3832, %v3806
      %3896 = vst.msk [vmem:[%s3888 + $0x51] sm:$0xff] %vm3832, %v3807
      %3897 = vst.msk [vmem:[%s3888 + $0x61] sm:$0xff] %vm3832, %v3808
      %3898 = vst.msk [vmem:[%s3888 + $0x69] sm:$0xff] %vm3832, %v3809
      %3899 = vst.msk [vmem:[%s3888 + $0x79] sm:$0xff] %vm3832, %v3810
      %3900 = vst.msk [vmem:[%s3888 + $0x81] sm:$0xff] %vm3832, %v3811
      %3901 = vst.msk [vmem:[%s3888 + $0x91] sm:$0xff] %vm3832, %v3812
      %3902 = vst.msk [vmem:[%s3888 + $0x99] sm:$0xff] %vm3832, %v3813
      %3903 = vst.msk [vmem:[%s3888 + $0xa9] sm:$0xff] %vm3832, %v3814
      %3904 = vst.msk [vmem:[%s3888 + $0xb1] sm:$0xff] %vm3832, %v3815
      %3905 = vst.msk [vmem:[%s3888 + $0xc1] sm:$0xff] %vm3832, %v3816
      %3906 = vst.msk [vmem:[%s3888 + $0xc9] sm:$0xff] %vm3832, %v3817
      %3907 = vst.msk [vmem:[%s3888 + $0xd9] sm:$0xff] %vm3832, %v3818
      %3908 = vst.msk [vmem:[%s3888 + $0xe1] sm:$0xff] %vm3832, %v3819
      %3909 = vst.msk [vmem:[%s3888 + $0xf1] sm:$0xff] %vm3832, %v3820
      %3910 = vst.msk [vmem:[%s3888 + $0xf9] sm:$0xff] %vm3832, %v3821
      %3911 = vst.msk [vmem:[%s3888 + $0x109] sm:$0xff] %vm3832, %v3822
      %3912 = vst.msk [vmem:[%s3888 + $0x111] sm:$0xff] %vm3832, %v3823
      %3913 = vst.msk [vmem:[%s3888 + $0x121] sm:$0xff] %vm3832, %v3824
      %3914 = vst.msk [vmem:[%s3888 + $0x129] sm:$0xff] %vm3832, %v3825
      %3915 = vst.msk [vmem:[%s3888 + $0x139] sm:$0xff] %vm3832, %v3826
      %3916 = vst.msk [vmem:[%s3888 + $0x141] sm:$0xff] %vm3832, %v3827
      %3917 = vst.msk [vmem:[%s3888 + $0x151] sm:$0xff] %vm3832, %v3828
      %3918 = vst.msk [vmem:[%s3888 + $0x159] sm:$0xff] %vm3832, %v3829
      %3919 = vst.msk [vmem:[%s3888 + $0x169] sm:$0xff] %vm3832, %v3830
      %3920 = vst.msk [vmem:[%s3888 + $0x171] sm:$0xff] %vm3832, %v3831
      %v3921 = vld [vmem:[#allocation3] sm:$0xff]
      %v3922 = vld [vmem:[#allocation3 + $0x8] sm:$0xff]
      %v3923 = vld [vmem:[#allocation3 + $0x18] sm:$0xff]
      %v3924 = vld [vmem:[#allocation3 + $0x20] sm:$0xff]
      %v3925 = vld [vmem:[#allocation3 + $0x30] sm:$0xff]
      %v3926 = vld [vmem:[#allocation3 + $0x38] sm:$0xff]
      %v3927 = vld [vmem:[#allocation3 + $0x48] sm:$0xff]
      %v3928 = vld [vmem:[#allocation3 + $0x50] sm:$0xff]
      %v3929 = vld [vmem:[#allocation3 + $0x60] sm:$0xff]
      %v3930 = vld [vmem:[#allocation3 + $0x68] sm:$0xff]
      %v3931 = vld [vmem:[#allocation3 + $0x78] sm:$0xff]
      %v3932 = vld [vmem:[#allocation3 + $0x80] sm:$0xff]
      %v3933 = vld [vmem:[#allocation3 + $0x90] sm:$0xff]
      %v3934 = vld [vmem:[#allocation3 + $0x98] sm:$0xff]
      %v3935 = vld [vmem:[#allocation3 + $0xa8] sm:$0xff]
      %v3936 = vld [vmem:[#allocation3 + $0xb0] sm:$0xff]
      %v3937 = vld [vmem:[#allocation3 + $0xc0] sm:$0xff]
      %v3938 = vld [vmem:[#allocation3 + $0xc8] sm:$0xff]
      %v3939 = vld [vmem:[#allocation3 + $0xd8] sm:$0xff]
      %v3940 = vld [vmem:[#allocation3 + $0xe0] sm:$0xff]
      %v3941 = vld [vmem:[#allocation3 + $0xf0] sm:$0xff]
      %v3942 = vld [vmem:[#allocation3 + $0xf8] sm:$0xff]
      %v3943 = vld [vmem:[#allocation3 + $0x108] sm:$0xff]
      %v3944 = vld [vmem:[#allocation3 + $0x110] sm:$0xff]
      %v3945 = vld [vmem:[#allocation3 + $0x120] sm:$0xff]
      %v3946 = vld [vmem:[#allocation3 + $0x128] sm:$0xff]
      %v3947 = vld [vmem:[#allocation3 + $0x138] sm:$0xff]
      %v3948 = vld [vmem:[#allocation3 + $0x140] sm:$0xff]
      %v3949 = vld [vmem:[#allocation3 + $0x150] sm:$0xff]
      %v3950 = vld [vmem:[#allocation3 + $0x158] sm:$0xff]
      %v3951 = vld [vmem:[#allocation3 + $0x168] sm:$0xff]
      %v3952 = vld [vmem:[#allocation3 + $0x170] sm:$0xff]
      %v3953 = vld [vmem:[%s3] sm:$0xff]
      %v3954 = vld [vmem:[#allocation3 + $0x1] sm:$0xff]
      %v3955 = vld [vmem:[#allocation3 + $0x9] sm:$0xff]
      %v3956 = vld [vmem:[#allocation3 + $0x19] sm:$0xff]
      %v3957 = vld [vmem:[#allocation3 + $0x21] sm:$0xff]
      %v3958 = vld [vmem:[#allocation3 + $0x31] sm:$0xff]
      %v3959 = vld [vmem:[#allocation3 + $0x39] sm:$0xff]
      %v3960 = vld [vmem:[#allocation3 + $0x49] sm:$0xff]
      %v3961 = vld [vmem:[#allocation3 + $0x51] sm:$0xff]
      %v3962 = vld [vmem:[#allocation3 + $0x61] sm:$0xff]
      %v3963 = vld [vmem:[#allocation3 + $0x69] sm:$0xff]
      %v3964 = vld [vmem:[#allocation3 + $0x79] sm:$0xff]
      %v3965 = vld [vmem:[#allocation3 + $0x81] sm:$0xff]
      %v3966 = vld [vmem:[#allocation3 + $0x91] sm:$0xff]
      %v3967 = vld [vmem:[#allocation3 + $0x99] sm:$0xff]
      %v3968 = vld [vmem:[#allocation3 + $0xa9] sm:$0xff]
      %v3969 = vld [vmem:[#allocation3 + $0xb1] sm:$0xff]
      %v3970 = vld [vmem:[#allocation3 + $0xc1] sm:$0xff]
      %v3971 = vld [vmem:[#allocation3 + $0xc9] sm:$0xff]
      %v3972 = vld [vmem:[#allocation3 + $0xd9] sm:$0xff]
      %v3973 = vld [vmem:[#allocation3 + $0xe1] sm:$0xff]
      %v3974 = vld [vmem:[#allocation3 + $0xf1] sm:$0xff]
      %v3975 = vld [vmem:[#allocation3 + $0xf9] sm:$0xff]
      %v3976 = vld [vmem:[#allocation3 + $0x109] sm:$0xff]
      %v3977 = vld [vmem:[#allocation3 + $0x111] sm:$0xff]
      %v3978 = vld [vmem:[#allocation3 + $0x121] sm:$0xff]
      %v3979 = vld [vmem:[#allocation3 + $0x129] sm:$0xff]
      %v3980 = vld [vmem:[#allocation3 + $0x139] sm:$0xff]
      %v3981 = vld [vmem:[#allocation3 + $0x141] sm:$0xff]
      %v3982 = vld [vmem:[#allocation3 + $0x151] sm:$0xff]
      %v3983 = vld [vmem:[#allocation3 + $0x159] sm:$0xff]
      %v3984 = vld [vmem:[#allocation3 + $0x169] sm:$0xff]
      %v3985 = vld [vmem:[#allocation3 + $0x171] sm:$0xff]
      %s3986 = scalar_lea.vmem %s3, 8
      %v3987 = vld [vmem:[%s3986] sm:$0xff]
      %v3989 = vsel %vm3832, %v3954, 0
      %v3992 = vsel %vm3832, %v3955, 0
      %v3995 = vsel %vm3832, %v3956, 0
      %v3998 = vsel %vm3832, %v3957, 0
      %v4001 = vsel %vm3832, %v3958, 0
      %v4004 = vsel %vm3832, %v3959, 0
      %v4007 = vsel %vm3832, %v3960, 0
      %v4010 = vsel %vm3832, %v3961, 0
      %v4013 = vsel %vm3832, %v3962, 0
      %v4016 = vsel %vm3832, %v3963, 0
      %v4019 = vsel %vm3832, %v3964, 0
      %v4022 = vsel %vm3832, %v3965, 0
      %v4025 = vsel %vm3832, %v3966, 0
      %v4028 = vsel %vm3832, %v3967, 0
      %v4031 = vsel %vm3832, %v3968, 0
      %v4034 = vsel %vm3832, %v3969, 0
      %v4037 = vsel %vm3832, %v3970, 0
      %v4040 = vsel %vm3832, %v3971, 0
      %v4043 = vsel %vm3832, %v3972, 0
      %v4046 = vsel %vm3832, %v3973, 0
      %v4049 = vsel %vm3832, %v3974, 0
      %v4052 = vsel %vm3832, %v3975, 0
      %v4055 = vsel %vm3832, %v3976, 0
      %v4058 = vsel %vm3832, %v3977, 0
      %v4061 = vsel %vm3832, %v3978, 0
      %v4064 = vsel %vm3832, %v3979, 0
      %v4067 = vsel %vm3832, %v3980, 0
      %v4070 = vsel %vm3832, %v3981, 0
      %v4073 = vsel %vm3832, %v3982, 0
      %v4076 = vsel %vm3832, %v3983, 0
      %v4079 = vsel %vm3832, %v3984, 0
      %v4082 = vsel %vm3832, %v3985, 0
      %4084 = vmatprep.subr.mxu0 0.0
      %4085 = vmatpush1.msra.mxu0 0.0
      %4086 = vmatprep.subr.mxu0 0.0
      %4087 = vmatpush1.msra.mxu0 0.0
      %4088 = vmatprep.subr.mxu0 0.0
      %4089 = vmatpush1.msra.mxu0 0.0
      %4090 = vmatprep.subr.mxu0 0.0
      %4091 = vmatpush1.msra.mxu0 0.0
      %4092 = vmatprep.subr.mxu0 0.0
      %4093 = vmatpush1.msra.mxu0 0.0
      %4094 = vmatprep.subr.mxu0 0.0
      %4095 = vmatpush1.msra.mxu0 0.0
      %4096 = vmatprep.subr.mxu0 0.0
      %4097 = vmatpush1.msra.mxu0 0.0
      %4098 = vmatprep.subr.mxu0 0.0
      %4099 = vmatpush1.msra.mxu0 0.0
      %4100 = vmatprep.subr.mxu0 0.0
      %4101 = vmatpush1.msra.mxu0 0.0
      %4102 = vmatprep.subr.mxu0 0.0
      %4103 = vmatpush1.msra.mxu0 0.0
      %4104 = vmatprep.subr.mxu0 0.0
      %4105 = vmatpush1.msra.mxu0 0.0
      %4106 = vmatprep.subr.mxu0 0.0
      %4107 = vmatpush1.msra.mxu0 0.0
      %4108 = vmatprep.subr.mxu0 0.0
      %4109 = vmatpush1.msra.mxu0 0.0
      %4110 = vmatprep.subr.mxu0 0.0
      %4111 = vmatpush1.msra.mxu0 0.0
      %4112 = vmatprep.subr.mxu0 0.0
      %4113 = vmatpush1.msra.mxu0 0.0
      %4114 = vmatprep.subr.mxu0 0.0
      %4115 = vmatpush1.msra.mxu0 %v3987
      %4116 = vmatprep.subr.mxu0 0.0
      %4117 = vmatpush2.msra.mxu0 0.0
      %4118 = vmatprep.subr.mxu0 0.0
      %4119 = vmatpush2.msra.mxu0 0.0
      %4120 = vmatprep.subr.mxu0 0.0
      %4121 = vmatpush2.msra.mxu0 0.0
      %4122 = vmatprep.subr.mxu0 0.0
      %4123 = vmatpush2.msra.mxu0 0.0
      %4124 = vmatprep.subr.mxu0 0.0
      %4125 = vmatpush2.msra.mxu0 0.0
      %4126 = vmatprep.subr.mxu0 0.0
      %4127 = vmatpush2.msra.mxu0 0.0
      %4128 = vmatprep.subr.mxu0 0.0
      %4129 = vmatpush2.msra.mxu0 0.0
      %4130 = vmatprep.subr.mxu0 0.0
      %4131 = vmatpush2.msra.mxu0 0.0
      %4132 = vmatprep.subr.mxu0 0.0
      %4133 = vmatpush2.msra.mxu0 0.0
      %4134 = vmatprep.subr.mxu0 0.0
      %4135 = vmatpush2.msra.mxu0 0.0
      %4136 = vmatprep.subr.mxu0 0.0
      %4137 = vmatpush2.msra.mxu0 0.0
      %4138 = vmatprep.subr.mxu0 0.0
      %4139 = vmatpush2.msra.mxu0 0.0
      %4140 = vmatprep.subr.mxu0 0.0
      %4141 = vmatpush2.msra.mxu0 0.0
      %4142 = vmatprep.subr.mxu0 0.0
      %4143 = vmatpush2.msra.mxu0 0.0
      %4144 = vmatprep.subr.mxu0 0.0
      %4145 = vmatpush2.msra.mxu0 0.0
      %4146 = vmatprep.subr.mxu0 0.0
      %4147 = vmatpush2.msra.mxu0 0.0
      %4148 = vmatprep.mubr.f32.mxu0 0.0
      %4149 = vmatmul.mubr.f32.gmra.mxu0 %v3989
      %v4150 = vpop.f32.mrf.mxu0
      %v4151 = vadd.f32 0.0, %v4150
      %v4152 = vpop.f32.mrf.mxu0
      %4153 = vmatprep.mubr.f32.mxu0 0.0
      %4154 = vmatmul.mubr.f32.gmra.mxu0 %v3992
      %v4155 = vpop.f32.mrf.mxu0
      %v4156 = vadd.f32 0.0, %v4155
      %v4157 = vpop.f32.mrf.mxu0
      %4158 = vmatprep.mubr.f32.mxu0 0.0
      %4159 = vmatmul.mubr.f32.gmra.mxu0 %v3995
      %v4160 = vpop.f32.mrf.mxu0
      %v4161 = vadd.f32 0.0, %v4160
      %v4162 = vpop.f32.mrf.mxu0
      %4163 = vmatprep.mubr.f32.mxu0 0.0
      %4164 = vmatmul.mubr.f32.gmra.mxu0 %v3998
      %v4165 = vpop.f32.mrf.mxu0
      %v4166 = vadd.f32 0.0, %v4165
      %v4167 = vpop.f32.mrf.mxu0
      %4168 = vmatprep.mubr.f32.mxu0 0.0
      %4169 = vmatmul.mubr.f32.gmra.mxu0 %v4001
      %v4170 = vpop.f32.mrf.mxu0
      %v4171 = vadd.f32 0.0, %v4170
      %v4172 = vpop.f32.mrf.mxu0
      %4173 = vmatprep.mubr.f32.mxu0 0.0
      %4174 = vmatmul.mubr.f32.gmra.mxu0 %v4004
      %v4175 = vpop.f32.mrf.mxu0
      %v4176 = vadd.f32 0.0, %v4175
      %v4177 = vpop.f32.mrf.mxu0
      %4178 = vmatprep.mubr.f32.mxu0 0.0
      %4179 = vmatmul.mubr.f32.gmra.mxu0 %v4007
      %v4180 = vpop.f32.mrf.mxu0
      %v4181 = vadd.f32 0.0, %v4180
      %v4182 = vpop.f32.mrf.mxu0
      %4183 = vmatprep.mubr.f32.mxu0 0.0
      %4184 = vmatmul.mubr.f32.gmra.mxu0 %v4010
      %v4185 = vpop.f32.mrf.mxu0
      %v4186 = vadd.f32 0.0, %v4185
      %v4187 = vpop.f32.mrf.mxu0
      %4188 = vmatprep.mubr.f32.mxu0 0.0
      %4189 = vmatmul.mubr.f32.gmra.mxu0 %v4013
      %v4190 = vpop.f32.mrf.mxu0
      %v4191 = vadd.f32 0.0, %v4190
      %v4192 = vpop.f32.mrf.mxu0
      %4193 = vmatprep.mubr.f32.mxu0 0.0
      %4194 = vmatmul.mubr.f32.gmra.mxu0 %v4016
      %v4195 = vpop.f32.mrf.mxu0
      %v4196 = vadd.f32 0.0, %v4195
      %v4197 = vpop.f32.mrf.mxu0
      %4198 = vmatprep.mubr.f32.mxu0 0.0
      %4199 = vmatmul.mubr.f32.gmra.mxu0 %v4019
      %v4200 = vpop.f32.mrf.mxu0
      %v4201 = vadd.f32 0.0, %v4200
      %v4202 = vpop.f32.mrf.mxu0
      %4203 = vmatprep.mubr.f32.mxu0 0.0
      %4204 = vmatmul.mubr.f32.gmra.mxu0 %v4022
      %v4205 = vpop.f32.mrf.mxu0
      %v4206 = vadd.f32 0.0, %v4205
      %v4207 = vpop.f32.mrf.mxu0
      %4208 = vmatprep.mubr.f32.mxu0 0.0
      %4209 = vmatmul.mubr.f32.gmra.mxu0 %v4025
      %v4210 = vpop.f32.mrf.mxu0
      %v4211 = vadd.f32 0.0, %v4210
      %v4212 = vpop.f32.mrf.mxu0
      %4213 = vmatprep.mubr.f32.mxu0 0.0
      %4214 = vmatmul.mubr.f32.gmra.mxu0 %v4028
      %v4215 = vpop.f32.mrf.mxu0
      %v4216 = vadd.f32 0.0, %v4215
      %v4217 = vpop.f32.mrf.mxu0
      %4218 = vmatprep.mubr.f32.mxu0 0.0
      %4219 = vmatmul.mubr.f32.gmra.mxu0 %v4031
      %v4220 = vpop.f32.mrf.mxu0
      %v4221 = vadd.f32 0.0, %v4220
      %v4222 = vpop.f32.mrf.mxu0
      %4223 = vmatprep.mubr.f32.mxu0 0.0
      %4224 = vmatmul.mubr.f32.gmra.mxu0 %v4034
      %v4225 = vpop.f32.mrf.mxu0
      %v4226 = vadd.f32 0.0, %v4225
      %v4227 = vpop.f32.mrf.mxu0
      %4228 = vmatprep.mubr.f32.mxu0 0.0
      %4229 = vmatmul.mubr.f32.gmra.mxu0 %v4037
      %v4230 = vpop.f32.mrf.mxu0
      %v4231 = vadd.f32 0.0, %v4230
      %v4232 = vpop.f32.mrf.mxu0
      %4233 = vmatprep.mubr.f32.mxu0 0.0
      %4234 = vmatmul.mubr.f32.gmra.mxu0 %v4040
      %v4235 = vpop.f32.mrf.mxu0
      %v4236 = vadd.f32 0.0, %v4235
      %v4237 = vpop.f32.mrf.mxu0
      %4238 = vmatprep.mubr.f32.mxu0 0.0
      %4239 = vmatmul.mubr.f32.gmra.mxu0 %v4043
      %v4240 = vpop.f32.mrf.mxu0
      %v4241 = vadd.f32 0.0, %v4240
      %v4242 = vpop.f32.mrf.mxu0
      %4243 = vmatprep.mubr.f32.mxu0 0.0
      %4244 = vmatmul.mubr.f32.gmra.mxu0 %v4046
      %v4245 = vpop.f32.mrf.mxu0
      %v4246 = vadd.f32 0.0, %v4245
      %v4247 = vpop.f32.mrf.mxu0
      %4248 = vmatprep.mubr.f32.mxu0 0.0
      %4249 = vmatmul.mubr.f32.gmra.mxu0 %v4049
      %v4250 = vpop.f32.mrf.mxu0
      %v4251 = vadd.f32 0.0, %v4250
      %v4252 = vpop.f32.mrf.mxu0
      %4253 = vmatprep.mubr.f32.mxu0 0.0
      %4254 = vmatmul.mubr.f32.gmra.mxu0 %v4052
      %v4255 = vpop.f32.mrf.mxu0
      %v4256 = vadd.f32 0.0, %v4255
      %v4257 = vpop.f32.mrf.mxu0
      %4258 = vmatprep.mubr.f32.mxu0 0.0
      %4259 = vmatmul.mubr.f32.gmra.mxu0 %v4055
      %v4260 = vpop.f32.mrf.mxu0
      %v4261 = vadd.f32 0.0, %v4260
      %v4262 = vpop.f32.mrf.mxu0
      %4263 = vmatprep.mubr.f32.mxu0 0.0
      %4264 = vmatmul.mubr.f32.gmra.mxu0 %v4058
      %v4265 = vpop.f32.mrf.mxu0
      %v4266 = vadd.f32 0.0, %v4265
      %v4267 = vpop.f32.mrf.mxu0
      %4268 = vmatprep.mubr.f32.mxu0 0.0
      %4269 = vmatmul.mubr.f32.gmra.mxu0 %v4061
      %v4270 = vpop.f32.mrf.mxu0
      %v4271 = vadd.f32 0.0, %v4270
      %v4272 = vpop.f32.mrf.mxu0
      %4273 = vmatprep.mubr.f32.mxu0 0.0
      %4274 = vmatmul.mubr.f32.gmra.mxu0 %v4064
      %v4275 = vpop.f32.mrf.mxu0
      %v4276 = vadd.f32 0.0, %v4275
      %v4277 = vpop.f32.mrf.mxu0
      %4278 = vmatprep.mubr.f32.mxu0 0.0
      %4279 = vmatmul.mubr.f32.gmra.mxu0 %v4067
      %v4280 = vpop.f32.mrf.mxu0
      %v4281 = vadd.f32 0.0, %v4280
      %v4282 = vpop.f32.mrf.mxu0
      %4283 = vmatprep.mubr.f32.mxu0 0.0
      %4284 = vmatmul.mubr.f32.gmra.mxu0 %v4070
      %v4285 = vpop.f32.mrf.mxu0
      %v4286 = vadd.f32 0.0, %v4285
      %v4287 = vpop.f32.mrf.mxu0
      %4288 = vmatprep.mubr.f32.mxu0 0.0
      %4289 = vmatmul.mubr.f32.gmra.mxu0 %v4073
      %v4290 = vpop.f32.mrf.mxu0
      %v4291 = vadd.f32 0.0, %v4290
      %v4292 = vpop.f32.mrf.mxu0
      %4293 = vmatprep.mubr.f32.mxu0 0.0
      %4294 = vmatmul.mubr.f32.gmra.mxu0 %v4076
      %v4295 = vpop.f32.mrf.mxu0
      %v4296 = vadd.f32 0.0, %v4295
      %v4297 = vpop.f32.mrf.mxu0
      %4298 = vmatprep.mubr.f32.mxu0 0.0
      %4299 = vmatmul.mubr.f32.gmra.mxu0 %v4079
      %v4300 = vpop.f32.mrf.mxu0
      %v4301 = vadd.f32 0.0, %v4300
      %v4302 = vpop.f32.mrf.mxu0
      %4303 = vmatprep.mubr.f32.mxu0 0.0
      %4304 = vmatmul.mubr.f32.gmra.mxu0 %v4082
      %v4305 = vpop.f32.mrf.mxu0
      %v4306 = vadd.f32 0.0, %v4305
      %v4307 = vpop.f32.mrf.mxu0
      %4308 = vdwg.mxu0
      %v4310 = vsel %vm3832, %v3921, 0
      %v4313 = vsel %vm3832, %v3922, 0
      %v4316 = vsel %vm3832, %v3923, 0
      %v4319 = vsel %vm3832, %v3924, 0
      %v4322 = vsel %vm3832, %v3925, 0
      %v4325 = vsel %vm3832, %v3926, 0
      %v4328 = vsel %vm3832, %v3927, 0
      %v4331 = vsel %vm3832, %v3928, 0
      %v4334 = vsel %vm3832, %v3929, 0
      %v4337 = vsel %vm3832, %v3930, 0
      %v4340 = vsel %vm3832, %v3931, 0
      %v4343 = vsel %vm3832, %v3932, 0
      %v4346 = vsel %vm3832, %v3933, 0
      %v4349 = vsel %vm3832, %v3934, 0
      %v4352 = vsel %vm3832, %v3935, 0
      %v4355 = vsel %vm3832, %v3936, 0
      %v4358 = vsel %vm3832, %v3937, 0
      %v4361 = vsel %vm3832, %v3938, 0
      %v4364 = vsel %vm3832, %v3939, 0
      %v4367 = vsel %vm3832, %v3940, 0
      %v4370 = vsel %vm3832, %v3941, 0
      %v4373 = vsel %vm3832, %v3942, 0
      %v4376 = vsel %vm3832, %v3943, 0
      %v4379 = vsel %vm3832, %v3944, 0
      %v4382 = vsel %vm3832, %v3945, 0
      %v4385 = vsel %vm3832, %v3946, 0
      %v4388 = vsel %vm3832, %v3947, 0
      %v4391 = vsel %vm3832, %v3948, 0
      %v4394 = vsel %vm3832, %v3949, 0
      %v4397 = vsel %vm3832, %v3950, 0
      %v4400 = vsel %vm3832, %v3951, 0
      %v4403 = vsel %vm3832, %v3952, 0
      %4405 = vmatprep.subr.mxu0 0.0
      %4406 = vmatpush1.msra.mxu0 0.0
      %4407 = vmatprep.subr.mxu0 0.0
      %4408 = vmatpush1.msra.mxu0 0.0
      %4409 = vmatprep.subr.mxu0 0.0
      %4410 = vmatpush1.msra.mxu0 0.0
      %4411 = vmatprep.subr.mxu0 0.0
      %4412 = vmatpush1.msra.mxu0 0.0
      %4413 = vmatprep.subr.mxu0 0.0
      %4414 = vmatpush1.msra.mxu0 0.0
      %4415 = vmatprep.subr.mxu0 0.0
      %4416 = vmatpush1.msra.mxu0 0.0
      %4417 = vmatprep.subr.mxu0 0.0
      %4418 = vmatpush1.msra.mxu0 0.0
      %4419 = vmatprep.subr.mxu0 0.0
      %4420 = vmatpush1.msra.mxu0 0.0
      %4421 = vmatprep.subr.mxu0 0.0
      %4422 = vmatpush1.msra.mxu0 0.0
      %4423 = vmatprep.subr.mxu0 0.0
      %4424 = vmatpush1.msra.mxu0 0.0
      %4425 = vmatprep.subr.mxu0 0.0
      %4426 = vmatpush1.msra.mxu0 0.0
      %4427 = vmatprep.subr.mxu0 0.0
      %4428 = vmatpush1.msra.mxu0 0.0
      %4429 = vmatprep.subr.mxu0 0.0
      %4430 = vmatpush1.msra.mxu0 0.0
      %4431 = vmatprep.subr.mxu0 0.0
      %4432 = vmatpush1.msra.mxu0 0.0
      %4433 = vmatprep.subr.mxu0 0.0
      %4434 = vmatpush1.msra.mxu0 0.0
      %4435 = vmatprep.subr.mxu0 0.0
      %4436 = vmatpush1.msra.mxu0 %v3953
      %4437 = vmatprep.subr.mxu0 0.0
      %4438 = vmatpush2.msra.mxu0 0.0
      %4439 = vmatprep.subr.mxu0 0.0
      %4440 = vmatpush2.msra.mxu0 0.0
      %4441 = vmatprep.subr.mxu0 0.0
      %4442 = vmatpush2.msra.mxu0 0.0
      %4443 = vmatprep.subr.mxu0 0.0
      %4444 = vmatpush2.msra.mxu0 0.0
      %4445 = vmatprep.subr.mxu0 0.0
      %4446 = vmatpush2.msra.mxu0 0.0
      %4447 = vmatprep.subr.mxu0 0.0
      %4448 = vmatpush2.msra.mxu0 0.0
      %4449 = vmatprep.subr.mxu0 0.0
      %4450 = vmatpush2.msra.mxu0 0.0
      %4451 = vmatprep.subr.mxu0 0.0
      %4452 = vmatpush2.msra.mxu0 0.0
      %4453 = vmatprep.subr.mxu0 0.0
      %4454 = vmatpush2.msra.mxu0 0.0
      %4455 = vmatprep.subr.mxu0 0.0
      %4456 = vmatpush2.msra.mxu0 0.0
      %4457 = vmatprep.subr.mxu0 0.0
      %4458 = vmatpush2.msra.mxu0 0.0
      %4459 = vmatprep.subr.mxu0 0.0
      %4460 = vmatpush2.msra.mxu0 0.0
      %4461 = vmatprep.subr.mxu0 0.0
      %4462 = vmatpush2.msra.mxu0 0.0
      %4463 = vmatprep.subr.mxu0 0.0
      %4464 = vmatpush2.msra.mxu0 0.0
      %4465 = vmatprep.subr.mxu0 0.0
      %4466 = vmatpush2.msra.mxu0 0.0
      %4467 = vmatprep.subr.mxu0 0.0
      %4468 = vmatpush2.msra.mxu0 0.0
      %4469 = vmatprep.mubr.f32.mxu0 0.0
      %4470 = vmatmul.mubr.f32.gmra.mxu0 %v4310
      %v4471 = vpop.f32.mrf.mxu0
      %v4472 = vadd.f32 %v4151, %v4471
      %v4473 = vpop.f32.mrf.mxu0
      %4474 = vmatprep.mubr.f32.mxu0 0.0
      %4475 = vmatmul.mubr.f32.gmra.mxu0 %v4313
      %v4476 = vpop.f32.mrf.mxu0
      %v4477 = vadd.f32 %v4156, %v4476
      %v4478 = vpop.f32.mrf.mxu0
      %4479 = vmatprep.mubr.f32.mxu0 0.0
      %4480 = vmatmul.mubr.f32.gmra.mxu0 %v4316
      %v4481 = vpop.f32.mrf.mxu0
      %v4482 = vadd.f32 %v4161, %v4481
      %v4483 = vpop.f32.mrf.mxu0
      %4484 = vmatprep.mubr.f32.mxu0 0.0
      %4485 = vmatmul.mubr.f32.gmra.mxu0 %v4319
      %v4486 = vpop.f32.mrf.mxu0
      %v4487 = vadd.f32 %v4166, %v4486
      %v4488 = vpop.f32.mrf.mxu0
      %4489 = vmatprep.mubr.f32.mxu0 0.0
      %4490 = vmatmul.mubr.f32.gmra.mxu0 %v4322
      %v4491 = vpop.f32.mrf.mxu0
      %v4492 = vadd.f32 %v4171, %v4491
      %v4493 = vpop.f32.mrf.mxu0
      %4494 = vmatprep.mubr.f32.mxu0 0.0
      %4495 = vmatmul.mubr.f32.gmra.mxu0 %v4325
      %v4496 = vpop.f32.mrf.mxu0
      %v4497 = vadd.f32 %v4176, %v4496
      %v4498 = vpop.f32.mrf.mxu0
      %4499 = vmatprep.mubr.f32.mxu0 0.0
      %4500 = vmatmul.mubr.f32.gmra.mxu0 %v4328
      %v4501 = vpop.f32.mrf.mxu0
      %v4502 = vadd.f32 %v4181, %v4501
      %v4503 = vpop.f32.mrf.mxu0
      %4504 = vmatprep.mubr.f32.mxu0 0.0
      %4505 = vmatmul.mubr.f32.gmra.mxu0 %v4331
      %v4506 = vpop.f32.mrf.mxu0
      %v4507 = vadd.f32 %v4186, %v4506
      %v4508 = vpop.f32.mrf.mxu0
      %4509 = vmatprep.mubr.f32.mxu0 0.0
      %4510 = vmatmul.mubr.f32.gmra.mxu0 %v4334
      %v4511 = vpop.f32.mrf.mxu0
      %v4512 = vadd.f32 %v4191, %v4511
      %v4513 = vpop.f32.mrf.mxu0
      %4514 = vmatprep.mubr.f32.mxu0 0.0
      %4515 = vmatmul.mubr.f32.gmra.mxu0 %v4337
      %v4516 = vpop.f32.mrf.mxu0
      %v4517 = vadd.f32 %v4196, %v4516
      %v4518 = vpop.f32.mrf.mxu0
      %4519 = vmatprep.mubr.f32.mxu0 0.0
      %4520 = vmatmul.mubr.f32.gmra.mxu0 %v4340
      %v4521 = vpop.f32.mrf.mxu0
      %v4522 = vadd.f32 %v4201, %v4521
      %v4523 = vpop.f32.mrf.mxu0
      %4524 = vmatprep.mubr.f32.mxu0 0.0
      %4525 = vmatmul.mubr.f32.gmra.mxu0 %v4343
      %v4526 = vpop.f32.mrf.mxu0
      %v4527 = vadd.f32 %v4206, %v4526
      %v4528 = vpop.f32.mrf.mxu0
      %4529 = vmatprep.mubr.f32.mxu0 0.0
      %4530 = vmatmul.mubr.f32.gmra.mxu0 %v4346
      %v4531 = vpop.f32.mrf.mxu0
      %v4532 = vadd.f32 %v4211, %v4531
      %v4533 = vpop.f32.mrf.mxu0
      %4534 = vmatprep.mubr.f32.mxu0 0.0
      %4535 = vmatmul.mubr.f32.gmra.mxu0 %v4349
      %v4536 = vpop.f32.mrf.mxu0
      %v4537 = vadd.f32 %v4216, %v4536
      %v4538 = vpop.f32.mrf.mxu0
      %4539 = vmatprep.mubr.f32.mxu0 0.0
      %4540 = vmatmul.mubr.f32.gmra.mxu0 %v4352
      %v4541 = vpop.f32.mrf.mxu0
      %v4542 = vadd.f32 %v4221, %v4541
      %v4543 = vpop.f32.mrf.mxu0
      %4544 = vmatprep.mubr.f32.mxu0 0.0
      %4545 = vmatmul.mubr.f32.gmra.mxu0 %v4355
      %v4546 = vpop.f32.mrf.mxu0
      %v4547 = vadd.f32 %v4226, %v4546
      %v4548 = vpop.f32.mrf.mxu0
      %4549 = vmatprep.mubr.f32.mxu0 0.0
      %4550 = vmatmul.mubr.f32.gmra.mxu0 %v4358
      %v4551 = vpop.f32.mrf.mxu0
      %v4552 = vadd.f32 %v4231, %v4551
      %v4553 = vpop.f32.mrf.mxu0
      %4554 = vmatprep.mubr.f32.mxu0 0.0
      %4555 = vmatmul.mubr.f32.gmra.mxu0 %v4361
      %v4556 = vpop.f32.mrf.mxu0
      %v4557 = vadd.f32 %v4236, %v4556
      %v4558 = vpop.f32.mrf.mxu0
      %4559 = vmatprep.mubr.f32.mxu0 0.0
      %4560 = vmatmul.mubr.f32.gmra.mxu0 %v4364
      %v4561 = vpop.f32.mrf.mxu0
      %v4562 = vadd.f32 %v4241, %v4561
      %v4563 = vpop.f32.mrf.mxu0
      %4564 = vmatprep.mubr.f32.mxu0 0.0
      %4565 = vmatmul.mubr.f32.gmra.mxu0 %v4367
      %v4566 = vpop.f32.mrf.mxu0
      %v4567 = vadd.f32 %v4246, %v4566
      %v4568 = vpop.f32.mrf.mxu0
      %4569 = vmatprep.mubr.f32.mxu0 0.0
      %4570 = vmatmul.mubr.f32.gmra.mxu0 %v4370
      %v4571 = vpop.f32.mrf.mxu0
      %v4572 = vadd.f32 %v4251, %v4571
      %v4573 = vpop.f32.mrf.mxu0
      %4574 = vmatprep.mubr.f32.mxu0 0.0
      %4575 = vmatmul.mubr.f32.gmra.mxu0 %v4373
      %v4576 = vpop.f32.mrf.mxu0
      %v4577 = vadd.f32 %v4256, %v4576
      %v4578 = vpop.f32.mrf.mxu0
      %4579 = vmatprep.mubr.f32.mxu0 0.0
      %4580 = vmatmul.mubr.f32.gmra.mxu0 %v4376
      %v4581 = vpop.f32.mrf.mxu0
      %v4582 = vadd.f32 %v4261, %v4581
      %v4583 = vpop.f32.mrf.mxu0
      %4584 = vmatprep.mubr.f32.mxu0 0.0
      %4585 = vmatmul.mubr.f32.gmra.mxu0 %v4379
      %v4586 = vpop.f32.mrf.mxu0
      %v4587 = vadd.f32 %v4266, %v4586
      %v4588 = vpop.f32.mrf.mxu0
      %4589 = vmatprep.mubr.f32.mxu0 0.0
      %4590 = vmatmul.mubr.f32.gmra.mxu0 %v4382
      %v4591 = vpop.f32.mrf.mxu0
      %v4592 = vadd.f32 %v4271, %v4591
      %v4593 = vpop.f32.mrf.mxu0
      %4594 = vmatprep.mubr.f32.mxu0 0.0
      %4595 = vmatmul.mubr.f32.gmra.mxu0 %v4385
      %v4596 = vpop.f32.mrf.mxu0
      %v4597 = vadd.f32 %v4276, %v4596
      %v4598 = vpop.f32.mrf.mxu0
      %4599 = vmatprep.mubr.f32.mxu0 0.0
      %4600 = vmatmul.mubr.f32.gmra.mxu0 %v4388
      %v4601 = vpop.f32.mrf.mxu0
      %v4602 = vadd.f32 %v4281, %v4601
      %v4603 = vpop.f32.mrf.mxu0
      %4604 = vmatprep.mubr.f32.mxu0 0.0
      %4605 = vmatmul.mubr.f32.gmra.mxu0 %v4391
      %v4606 = vpop.f32.mrf.mxu0
      %v4607 = vadd.f32 %v4286, %v4606
      %v4608 = vpop.f32.mrf.mxu0
      %4609 = vmatprep.mubr.f32.mxu0 0.0
      %4610 = vmatmul.mubr.f32.gmra.mxu0 %v4394
      %v4611 = vpop.f32.mrf.mxu0
      %v4612 = vadd.f32 %v4291, %v4611
      %v4613 = vpop.f32.mrf.mxu0
      %4614 = vmatprep.mubr.f32.mxu0 0.0
      %4615 = vmatmul.mubr.f32.gmra.mxu0 %v4397
      %v4616 = vpop.f32.mrf.mxu0
      %v4617 = vadd.f32 %v4296, %v4616
      %v4618 = vpop.f32.mrf.mxu0
      %4619 = vmatprep.mubr.f32.mxu0 0.0
      %4620 = vmatmul.mubr.f32.gmra.mxu0 %v4400
      %v4621 = vpop.f32.mrf.mxu0
      %v4622 = vadd.f32 %v4301, %v4621
      %v4623 = vpop.f32.mrf.mxu0
      %4624 = vmatprep.mubr.f32.mxu0 0.0
      %4625 = vmatmul.mubr.f32.gmra.mxu0 %v4403
      %v4626 = vpop.f32.mrf.mxu0
      %v4627 = vadd.f32 %v4306, %v4626
      %v4628 = vpop.f32.mrf.mxu0
      %4629 = vdwg.mxu0
      %v4630 = vld [vmem:[#allocation3 + $0x2] sm:$0xff]
      %v4631 = vld [vmem:[#allocation3 + $0xa] sm:$0xff]
      %v4632 = vld [vmem:[#allocation3 + $0x1a] sm:$0xff]
      %v4633 = vld [vmem:[#allocation3 + $0x22] sm:$0xff]
      %v4634 = vld [vmem:[#allocation3 + $0x32] sm:$0xff]
      %v4635 = vld [vmem:[#allocation3 + $0x3a] sm:$0xff]
      %v4636 = vld [vmem:[#allocation3 + $0x4a] sm:$0xff]
      %v4637 = vld [vmem:[#allocation3 + $0x52] sm:$0xff]
      %v4638 = vld [vmem:[#allocation3 + $0x62] sm:$0xff]
      %v4639 = vld [vmem:[#allocation3 + $0x6a] sm:$0xff]
      %v4640 = vld [vmem:[#allocation3 + $0x7a] sm:$0xff]
      %v4641 = vld [vmem:[#allocation3 + $0x82] sm:$0xff]
      %v4642 = vld [vmem:[#allocation3 + $0x92] sm:$0xff]
      %v4643 = vld [vmem:[#allocation3 + $0x9a] sm:$0xff]
      %v4644 = vld [vmem:[#allocation3 + $0xaa] sm:$0xff]
      %v4645 = vld [vmem:[#allocation3 + $0xb2] sm:$0xff]
      %v4646 = vld [vmem:[#allocation3 + $0xc2] sm:$0xff]
      %v4647 = vld [vmem:[#allocation3 + $0xca] sm:$0xff]
      %v4648 = vld [vmem:[#allocation3 + $0xda] sm:$0xff]
      %v4649 = vld [vmem:[#allocation3 + $0xe2] sm:$0xff]
      %v4650 = vld [vmem:[#allocation3 + $0xf2] sm:$0xff]
      %v4651 = vld [vmem:[#allocation3 + $0xfa] sm:$0xff]
      %v4652 = vld [vmem:[#allocation3 + $0x10a] sm:$0xff]
      %v4653 = vld [vmem:[#allocation3 + $0x112] sm:$0xff]
      %v4654 = vld [vmem:[#allocation3 + $0x122] sm:$0xff]
      %v4655 = vld [vmem:[#allocation3 + $0x12a] sm:$0xff]
      %v4656 = vld [vmem:[#allocation3 + $0x13a] sm:$0xff]
      %v4657 = vld [vmem:[#allocation3 + $0x142] sm:$0xff]
      %v4658 = vld [vmem:[#allocation3 + $0x152] sm:$0xff]
      %v4659 = vld [vmem:[#allocation3 + $0x15a] sm:$0xff]
      %v4660 = vld [vmem:[#allocation3 + $0x16a] sm:$0xff]
      %v4661 = vld [vmem:[#allocation3 + $0x172] sm:$0xff]
      %s4662 = scalar_lea.vmem %s3, 16
      %v4663 = vld [vmem:[%s4662] sm:$0xff]
      %v4665 = vsel %vm3832, %v4630, 0
      %v4668 = vsel %vm3832, %v4631, 0
      %v4671 = vsel %vm3832, %v4632, 0
      %v4674 = vsel %vm3832, %v4633, 0
      %v4677 = vsel %vm3832, %v4634, 0
      %v4680 = vsel %vm3832, %v4635, 0
      %v4683 = vsel %vm3832, %v4636, 0
      %v4686 = vsel %vm3832, %v4637, 0
      %v4689 = vsel %vm3832, %v4638, 0
      %v4692 = vsel %vm3832, %v4639, 0
      %v4695 = vsel %vm3832, %v4640, 0
      %v4698 = vsel %vm3832, %v4641, 0
      %v4701 = vsel %vm3832, %v4642, 0
      %v4704 = vsel %vm3832, %v4643, 0
      %v4707 = vsel %vm3832, %v4644, 0
      %v4710 = vsel %vm3832, %v4645, 0
      %v4713 = vsel %vm3832, %v4646, 0
      %v4716 = vsel %vm3832, %v4647, 0
      %v4719 = vsel %vm3832, %v4648, 0
      %v4722 = vsel %vm3832, %v4649, 0
      %v4725 = vsel %vm3832, %v4650, 0
      %v4728 = vsel %vm3832, %v4651, 0
      %v4731 = vsel %vm3832, %v4652, 0
      %v4734 = vsel %vm3832, %v4653, 0
      %v4737 = vsel %vm3832, %v4654, 0
      %v4740 = vsel %vm3832, %v4655, 0
      %v4743 = vsel %vm3832, %v4656, 0
      %v4746 = vsel %vm3832, %v4657, 0
      %v4749 = vsel %vm3832, %v4658, 0
      %v4752 = vsel %vm3832, %v4659, 0
      %v4755 = vsel %vm3832, %v4660, 0
      %v4758 = vsel %vm3832, %v4661, 0
      %4760 = vmatprep.subr.mxu0 0.0
      %4761 = vmatpush1.msra.mxu0 0.0
      %4762 = vmatprep.subr.mxu0 0.0
      %4763 = vmatpush1.msra.mxu0 0.0
      %4764 = vmatprep.subr.mxu0 0.0
      %4765 = vmatpush1.msra.mxu0 0.0
      %4766 = vmatprep.subr.mxu0 0.0
      %4767 = vmatpush1.msra.mxu0 0.0
      %4768 = vmatprep.subr.mxu0 0.0
      %4769 = vmatpush1.msra.mxu0 0.0
      %4770 = vmatprep.subr.mxu0 0.0
      %4771 = vmatpush1.msra.mxu0 0.0
      %4772 = vmatprep.subr.mxu0 0.0
      %4773 = vmatpush1.msra.mxu0 0.0
      %4774 = vmatprep.subr.mxu0 0.0
      %4775 = vmatpush1.msra.mxu0 0.0
      %4776 = vmatprep.subr.mxu0 0.0
      %4777 = vmatpush1.msra.mxu0 0.0
      %4778 = vmatprep.subr.mxu0 0.0
      %4779 = vmatpush1.msra.mxu0 0.0
      %4780 = vmatprep.subr.mxu0 0.0
      %4781 = vmatpush1.msra.mxu0 0.0
      %4782 = vmatprep.subr.mxu0 0.0
      %4783 = vmatpush1.msra.mxu0 0.0
      %4784 = vmatprep.subr.mxu0 0.0
      %4785 = vmatpush1.msra.mxu0 0.0
      %4786 = vmatprep.subr.mxu0 0.0
      %4787 = vmatpush1.msra.mxu0 0.0
      %4788 = vmatprep.subr.mxu0 0.0
      %4789 = vmatpush1.msra.mxu0 0.0
      %4790 = vmatprep.subr.mxu0 0.0
      %4791 = vmatpush1.msra.mxu0 %v4663
      %4792 = vmatprep.subr.mxu0 0.0
      %4793 = vmatpush2.msra.mxu0 0.0
      %4794 = vmatprep.subr.mxu0 0.0
      %4795 = vmatpush2.msra.mxu0 0.0
      %4796 = vmatprep.subr.mxu0 0.0
      %4797 = vmatpush2.msra.mxu0 0.0
      %4798 = vmatprep.subr.mxu0 0.0
      %4799 = vmatpush2.msra.mxu0 0.0
      %4800 = vmatprep.subr.mxu0 0.0
      %4801 = vmatpush2.msra.mxu0 0.0
      %4802 = vmatprep.subr.mxu0 0.0
      %4803 = vmatpush2.msra.mxu0 0.0
      %4804 = vmatprep.subr.mxu0 0.0
      %4805 = vmatpush2.msra.mxu0 0.0
      %4806 = vmatprep.subr.mxu0 0.0
      %4807 = vmatpush2.msra.mxu0 0.0
      %4808 = vmatprep.subr.mxu0 0.0
      %4809 = vmatpush2.msra.mxu0 0.0
      %4810 = vmatprep.subr.mxu0 0.0
      %4811 = vmatpush2.msra.mxu0 0.0
      %4812 = vmatprep.subr.mxu0 0.0
      %4813 = vmatpush2.msra.mxu0 0.0
      %4814 = vmatprep.subr.mxu0 0.0
      %4815 = vmatpush2.msra.mxu0 0.0
      %4816 = vmatprep.subr.mxu0 0.0
      %4817 = vmatpush2.msra.mxu0 0.0
      %4818 = vmatprep.subr.mxu0 0.0
      %4819 = vmatpush2.msra.mxu0 0.0
      %4820 = vmatprep.subr.mxu0 0.0
      %4821 = vmatpush2.msra.mxu0 0.0
      %4822 = vmatprep.subr.mxu0 0.0
      %4823 = vmatpush2.msra.mxu0 0.0
      %4824 = vmatprep.mubr.f32.mxu0 0.0
      %4825 = vmatmul.mubr.f32.gmra.mxu0 %v4665
      %v4826 = vpop.f32.mrf.mxu0
      %v4827 = vadd.f32 0.0, %v4826
      %v4828 = vpop.f32.mrf.mxu0
      %4829 = vmatprep.mubr.f32.mxu0 0.0
      %4830 = vmatmul.mubr.f32.gmra.mxu0 %v4668
      %v4831 = vpop.f32.mrf.mxu0
      %v4832 = vadd.f32 0.0, %v4831
      %v4833 = vpop.f32.mrf.mxu0
      %4834 = vmatprep.mubr.f32.mxu0 0.0
      %4835 = vmatmul.mubr.f32.gmra.mxu0 %v4671
      %v4836 = vpop.f32.mrf.mxu0
      %v4837 = vadd.f32 0.0, %v4836
      %v4838 = vpop.f32.mrf.mxu0
      %4839 = vmatprep.mubr.f32.mxu0 0.0
      %4840 = vmatmul.mubr.f32.gmra.mxu0 %v4674
      %v4841 = vpop.f32.mrf.mxu0
      %v4842 = vadd.f32 0.0, %v4841
      %v4843 = vpop.f32.mrf.mxu0
      %4844 = vmatprep.mubr.f32.mxu0 0.0
      %4845 = vmatmul.mubr.f32.gmra.mxu0 %v4677
      %v4846 = vpop.f32.mrf.mxu0
      %v4847 = vadd.f32 0.0, %v4846
      %v4848 = vpop.f32.mrf.mxu0
      %4849 = vmatprep.mubr.f32.mxu0 0.0
      %4850 = vmatmul.mubr.f32.gmra.mxu0 %v4680
      %v4851 = vpop.f32.mrf.mxu0
      %v4852 = vadd.f32 0.0, %v4851
      %v4853 = vpop.f32.mrf.mxu0
      %4854 = vmatprep.mubr.f32.mxu0 0.0
      %4855 = vmatmul.mubr.f32.gmra.mxu0 %v4683
      %v4856 = vpop.f32.mrf.mxu0
      %v4857 = vadd.f32 0.0, %v4856
      %v4858 = vpop.f32.mrf.mxu0
      %4859 = vmatprep.mubr.f32.mxu0 0.0
      %4860 = vmatmul.mubr.f32.gmra.mxu0 %v4686
      %v4861 = vpop.f32.mrf.mxu0
      %v4862 = vadd.f32 0.0, %v4861
      %v4863 = vpop.f32.mrf.mxu0
      %4864 = vmatprep.mubr.f32.mxu0 0.0
      %4865 = vmatmul.mubr.f32.gmra.mxu0 %v4689
      %v4866 = vpop.f32.mrf.mxu0
      %v4867 = vadd.f32 0.0, %v4866
      %v4868 = vpop.f32.mrf.mxu0
      %4869 = vmatprep.mubr.f32.mxu0 0.0
      %4870 = vmatmul.mubr.f32.gmra.mxu0 %v4692
      %v4871 = vpop.f32.mrf.mxu0
      %v4872 = vadd.f32 0.0, %v4871
      %v4873 = vpop.f32.mrf.mxu0
      %4874 = vmatprep.mubr.f32.mxu0 0.0
      %4875 = vmatmul.mubr.f32.gmra.mxu0 %v4695
      %v4876 = vpop.f32.mrf.mxu0
      %v4877 = vadd.f32 0.0, %v4876
      %v4878 = vpop.f32.mrf.mxu0
      %4879 = vmatprep.mubr.f32.mxu0 0.0
      %4880 = vmatmul.mubr.f32.gmra.mxu0 %v4698
      %v4881 = vpop.f32.mrf.mxu0
      %v4882 = vadd.f32 0.0, %v4881
      %v4883 = vpop.f32.mrf.mxu0
      %4884 = vmatprep.mubr.f32.mxu0 0.0
      %4885 = vmatmul.mubr.f32.gmra.mxu0 %v4701
      %v4886 = vpop.f32.mrf.mxu0
      %v4887 = vadd.f32 0.0, %v4886
      %v4888 = vpop.f32.mrf.mxu0
      %4889 = vmatprep.mubr.f32.mxu0 0.0
      %4890 = vmatmul.mubr.f32.gmra.mxu0 %v4704
      %v4891 = vpop.f32.mrf.mxu0
      %v4892 = vadd.f32 0.0, %v4891
      %v4893 = vpop.f32.mrf.mxu0
      %4894 = vmatprep.mubr.f32.mxu0 0.0
      %4895 = vmatmul.mubr.f32.gmra.mxu0 %v4707
      %v4896 = vpop.f32.mrf.mxu0
      %v4897 = vadd.f32 0.0, %v4896
      %v4898 = vpop.f32.mrf.mxu0
      %4899 = vmatprep.mubr.f32.mxu0 0.0
      %4900 = vmatmul.mubr.f32.gmra.mxu0 %v4710
      %v4901 = vpop.f32.mrf.mxu0
      %v4902 = vadd.f32 0.0, %v4901
      %v4903 = vpop.f32.mrf.mxu0
      %4904 = vmatprep.mubr.f32.mxu0 0.0
      %4905 = vmatmul.mubr.f32.gmra.mxu0 %v4713
      %v4906 = vpop.f32.mrf.mxu0
      %v4907 = vadd.f32 0.0, %v4906
      %v4908 = vpop.f32.mrf.mxu0
      %4909 = vmatprep.mubr.f32.mxu0 0.0
      %4910 = vmatmul.mubr.f32.gmra.mxu0 %v4716
      %v4911 = vpop.f32.mrf.mxu0
      %v4912 = vadd.f32 0.0, %v4911
      %v4913 = vpop.f32.mrf.mxu0
      %4914 = vmatprep.mubr.f32.mxu0 0.0
      %4915 = vmatmul.mubr.f32.gmra.mxu0 %v4719
      %v4916 = vpop.f32.mrf.mxu0
      %v4917 = vadd.f32 0.0, %v4916
      %v4918 = vpop.f32.mrf.mxu0
      %4919 = vmatprep.mubr.f32.mxu0 0.0
      %4920 = vmatmul.mubr.f32.gmra.mxu0 %v4722
      %v4921 = vpop.f32.mrf.mxu0
      %v4922 = vadd.f32 0.0, %v4921
      %v4923 = vpop.f32.mrf.mxu0
      %4924 = vmatprep.mubr.f32.mxu0 0.0
      %4925 = vmatmul.mubr.f32.gmra.mxu0 %v4725
      %v4926 = vpop.f32.mrf.mxu0
      %v4927 = vadd.f32 0.0, %v4926
      %v4928 = vpop.f32.mrf.mxu0
      %4929 = vmatprep.mubr.f32.mxu0 0.0
      %4930 = vmatmul.mubr.f32.gmra.mxu0 %v4728
      %v4931 = vpop.f32.mrf.mxu0
      %v4932 = vadd.f32 0.0, %v4931
      %v4933 = vpop.f32.mrf.mxu0
      %4934 = vmatprep.mubr.f32.mxu0 0.0
      %4935 = vmatmul.mubr.f32.gmra.mxu0 %v4731
      %v4936 = vpop.f32.mrf.mxu0
      %v4937 = vadd.f32 0.0, %v4936
      %v4938 = vpop.f32.mrf.mxu0
      %4939 = vmatprep.mubr.f32.mxu0 0.0
      %4940 = vmatmul.mubr.f32.gmra.mxu0 %v4734
      %v4941 = vpop.f32.mrf.mxu0
      %v4942 = vadd.f32 0.0, %v4941
      %v4943 = vpop.f32.mrf.mxu0
      %4944 = vmatprep.mubr.f32.mxu0 0.0
      %4945 = vmatmul.mubr.f32.gmra.mxu0 %v4737
      %v4946 = vpop.f32.mrf.mxu0
      %v4947 = vadd.f32 0.0, %v4946
      %v4948 = vpop.f32.mrf.mxu0
      %4949 = vmatprep.mubr.f32.mxu0 0.0
      %4950 = vmatmul.mubr.f32.gmra.mxu0 %v4740
      %v4951 = vpop.f32.mrf.mxu0
      %v4952 = vadd.f32 0.0, %v4951
      %v4953 = vpop.f32.mrf.mxu0
      %4954 = vmatprep.mubr.f32.mxu0 0.0
      %4955 = vmatmul.mubr.f32.gmra.mxu0 %v4743
      %v4956 = vpop.f32.mrf.mxu0
      %v4957 = vadd.f32 0.0, %v4956
      %v4958 = vpop.f32.mrf.mxu0
      %4959 = vmatprep.mubr.f32.mxu0 0.0
      %4960 = vmatmul.mubr.f32.gmra.mxu0 %v4746
      %v4961 = vpop.f32.mrf.mxu0
      %v4962 = vadd.f32 0.0, %v4961
      %v4963 = vpop.f32.mrf.mxu0
      %4964 = vmatprep.mubr.f32.mxu0 0.0
      %4965 = vmatmul.mubr.f32.gmra.mxu0 %v4749
      %v4966 = vpop.f32.mrf.mxu0
      %v4967 = vadd.f32 0.0, %v4966
      %v4968 = vpop.f32.mrf.mxu0
      %4969 = vmatprep.mubr.f32.mxu0 0.0
      %4970 = vmatmul.mubr.f32.gmra.mxu0 %v4752
      %v4971 = vpop.f32.mrf.mxu0
      %v4972 = vadd.f32 0.0, %v4971
      %v4973 = vpop.f32.mrf.mxu0
      %4974 = vmatprep.mubr.f32.mxu0 0.0
      %4975 = vmatmul.mubr.f32.gmra.mxu0 %v4755
      %v4976 = vpop.f32.mrf.mxu0
      %v4977 = vadd.f32 0.0, %v4976
      %v4978 = vpop.f32.mrf.mxu0
      %4979 = vmatprep.mubr.f32.mxu0 0.0
      %4980 = vmatmul.mubr.f32.gmra.mxu0 %v4758
      %v4981 = vpop.f32.mrf.mxu0
      %v4982 = vadd.f32 0.0, %v4981
      %v4983 = vpop.f32.mrf.mxu0
      %4984 = vdwg.mxu0
      %v4985 = vadd.f32 %v4472, %v4827
      %v4986 = vadd.f32 %v4477, %v4832
      %v4987 = vadd.f32 %v4482, %v4837
      %v4988 = vadd.f32 %v4487, %v4842
      %v4989 = vadd.f32 %v4492, %v4847
      %v4990 = vadd.f32 %v4497, %v4852
      %v4991 = vadd.f32 %v4502, %v4857
      %v4992 = vadd.f32 %v4507, %v4862
      %v4993 = vadd.f32 %v4512, %v4867
      %v4994 = vadd.f32 %v4517, %v4872
      %v4995 = vadd.f32 %v4522, %v4877
      %v4996 = vadd.f32 %v4527, %v4882
      %v4997 = vadd.f32 %v4532, %v4887
      %v4998 = vadd.f32 %v4537, %v4892
      %v4999 = vadd.f32 %v4542, %v4897
      %v5000 = vadd.f32 %v4547, %v4902
      %v5001 = vadd.f32 %v4552, %v4907
      %v5002 = vadd.f32 %v4557, %v4912
      %v5003 = vadd.f32 %v4562, %v4917
      %v5004 = vadd.f32 %v4567, %v4922
      %v5005 = vadd.f32 %v4572, %v4927
      %v5006 = vadd.f32 %v4577, %v4932
      %v5007 = vadd.f32 %v4582, %v4937
      %v5008 = vadd.f32 %v4587, %v4942
      %v5009 = vadd.f32 %v4592, %v4947
      %v5010 = vadd.f32 %v4597, %v4952
      %v5011 = vadd.f32 %v4602, %v4957
      %v5012 = vadd.f32 %v4607, %v4962
      %v5013 = vadd.f32 %v4612, %v4967
      %v5014 = vadd.f32 %v4617, %v4972
      %v5015 = vadd.f32 %v4622, %v4977
      %v5016 = vadd.f32 %v4627, %v4982
      %v5017 = vld [vmem:[%s3888] sm:$0xff]
      %v5018 = vld [vmem:[%s3888 + $0x8] sm:$0xff]
      %v5019 = vld [vmem:[%s3888 + $0x18] sm:$0xff]
      %v5020 = vld [vmem:[%s3888 + $0x20] sm:$0xff]
      %v5021 = vld [vmem:[%s3888 + $0x30] sm:$0xff]
      %v5022 = vld [vmem:[%s3888 + $0x38] sm:$0xff]
      %v5023 = vld [vmem:[%s3888 + $0x48] sm:$0xff]
      %v5024 = vld [vmem:[%s3888 + $0x50] sm:$0xff]
      %v5025 = vld [vmem:[%s3888 + $0x60] sm:$0xff]
      %v5026 = vld [vmem:[%s3888 + $0x68] sm:$0xff]
      %v5027 = vld [vmem:[%s3888 + $0x78] sm:$0xff]
      %v5028 = vld [vmem:[%s3888 + $0x80] sm:$0xff]
      %v5029 = vld [vmem:[%s3888 + $0x90] sm:$0xff]
      %v5030 = vld [vmem:[%s3888 + $0x98] sm:$0xff]
      %v5031 = vld [vmem:[%s3888 + $0xa8] sm:$0xff]
      %v5032 = vld [vmem:[%s3888 + $0xb0] sm:$0xff]
      %v5033 = vld [vmem:[%s3888 + $0xc0] sm:$0xff]
      %v5034 = vld [vmem:[%s3888 + $0xc8] sm:$0xff]
      %v5035 = vld [vmem:[%s3888 + $0xd8] sm:$0xff]
      %v5036 = vld [vmem:[%s3888 + $0xe0] sm:$0xff]
      %v5037 = vld [vmem:[%s3888 + $0xf0] sm:$0xff]
      %v5038 = vld [vmem:[%s3888 + $0xf8] sm:$0xff]
      %v5039 = vld [vmem:[%s3888 + $0x108] sm:$0xff]
      %v5040 = vld [vmem:[%s3888 + $0x110] sm:$0xff]
      %v5041 = vld [vmem:[%s3888 + $0x120] sm:$0xff]
      %v5042 = vld [vmem:[%s3888 + $0x128] sm:$0xff]
      %v5043 = vld [vmem:[%s3888 + $0x138] sm:$0xff]
      %v5044 = vld [vmem:[%s3888 + $0x140] sm:$0xff]
      %v5045 = vld [vmem:[%s3888 + $0x150] sm:$0xff]
      %v5046 = vld [vmem:[%s3888 + $0x158] sm:$0xff]
      %v5047 = vld [vmem:[%s3888 + $0x168] sm:$0xff]
      %v5048 = vld [vmem:[%s3888 + $0x170] sm:$0xff]
      %s5049 = scalar_lea.vmem %s3, 24
      %v5050 = vld [vmem:[%s5049] sm:$0xff]
      %v5052 = vsel %vm3832, %v5017, 0
      %v5055 = vsel %vm3832, %v5018, 0
      %v5058 = vsel %vm3832, %v5019, 0
      %v5061 = vsel %vm3832, %v5020, 0
      %v5064 = vsel %vm3832, %v5021, 0
      %v5067 = vsel %vm3832, %v5022, 0
      %v5070 = vsel %vm3832, %v5023, 0
      %v5073 = vsel %vm3832, %v5024, 0
      %v5076 = vsel %vm3832, %v5025, 0
      %v5079 = vsel %vm3832, %v5026, 0
      %v5082 = vsel %vm3832, %v5027, 0
      %v5085 = vsel %vm3832, %v5028, 0
      %v5088 = vsel %vm3832, %v5029, 0
      %v5091 = vsel %vm3832, %v5030, 0
      %v5094 = vsel %vm3832, %v5031, 0
      %v5097 = vsel %vm3832, %v5032, 0
      %v5100 = vsel %vm3832, %v5033, 0
      %v5103 = vsel %vm3832, %v5034, 0
      %v5106 = vsel %vm3832, %v5035, 0
      %v5109 = vsel %vm3832, %v5036, 0
      %v5112 = vsel %vm3832, %v5037, 0
      %v5115 = vsel %vm3832, %v5038, 0
      %v5118 = vsel %vm3832, %v5039, 0
      %v5121 = vsel %vm3832, %v5040, 0
      %v5124 = vsel %vm3832, %v5041, 0
      %v5127 = vsel %vm3832, %v5042, 0
      %v5130 = vsel %vm3832, %v5043, 0
      %v5133 = vsel %vm3832, %v5044, 0
      %v5136 = vsel %vm3832, %v5045, 0
      %v5139 = vsel %vm3832, %v5046, 0
      %v5142 = vsel %vm3832, %v5047, 0
      %v5145 = vsel %vm3832, %v5048, 0
      %5147 = vmatprep.subr.mxu0 0.0
      %5148 = vmatpush1.msra.mxu0 0.0
      %5149 = vmatprep.subr.mxu0 0.0
      %5150 = vmatpush1.msra.mxu0 0.0
      %5151 = vmatprep.subr.mxu0 0.0
      %5152 = vmatpush1.msra.mxu0 0.0
      %5153 = vmatprep.subr.mxu0 0.0
      %5154 = vmatpush1.msra.mxu0 0.0
      %5155 = vmatprep.subr.mxu0 0.0
      %5156 = vmatpush1.msra.mxu0 0.0
      %5157 = vmatprep.subr.mxu0 0.0
      %5158 = vmatpush1.msra.mxu0 0.0
      %5159 = vmatprep.subr.mxu0 0.0
      %5160 = vmatpush1.msra.mxu0 0.0
      %5161 = vmatprep.subr.mxu0 0.0
      %5162 = vmatpush1.msra.mxu0 0.0
      %5163 = vmatprep.subr.mxu0 0.0
      %5164 = vmatpush1.msra.mxu0 0.0
      %5165 = vmatprep.subr.mxu0 0.0
      %5166 = vmatpush1.msra.mxu0 0.0
      %5167 = vmatprep.subr.mxu0 0.0
      %5168 = vmatpush1.msra.mxu0 0.0
      %5169 = vmatprep.subr.mxu0 0.0
      %5170 = vmatpush1.msra.mxu0 0.0
      %5171 = vmatprep.subr.mxu0 0.0
      %5172 = vmatpush1.msra.mxu0 0.0
      %5173 = vmatprep.subr.mxu0 0.0
      %5174 = vmatpush1.msra.mxu0 0.0
      %5175 = vmatprep.subr.mxu0 0.0
      %5176 = vmatpush1.msra.mxu0 0.0
      %5177 = vmatprep.subr.mxu0 0.0
      %5178 = vmatpush1.msra.mxu0 %v5050
      %5179 = vmatprep.subr.mxu0 0.0
      %5180 = vmatpush2.msra.mxu0 0.0
      %5181 = vmatprep.subr.mxu0 0.0
      %5182 = vmatpush2.msra.mxu0 0.0
      %5183 = vmatprep.subr.mxu0 0.0
      %5184 = vmatpush2.msra.mxu0 0.0
      %5185 = vmatprep.subr.mxu0 0.0
      %5186 = vmatpush2.msra.mxu0 0.0
      %5187 = vmatprep.subr.mxu0 0.0
      %5188 = vmatpush2.msra.mxu0 0.0
      %5189 = vmatprep.subr.mxu0 0.0
      %5190 = vmatpush2.msra.mxu0 0.0
      %5191 = vmatprep.subr.mxu0 0.0
      %5192 = vmatpush2.msra.mxu0 0.0
      %5193 = vmatprep.subr.mxu0 0.0
      %5194 = vmatpush2.msra.mxu0 0.0
      %5195 = vmatprep.subr.mxu0 0.0
      %5196 = vmatpush2.msra.mxu0 0.0
      %5197 = vmatprep.subr.mxu0 0.0
      %5198 = vmatpush2.msra.mxu0 0.0
      %5199 = vmatprep.subr.mxu0 0.0
      %5200 = vmatpush2.msra.mxu0 0.0
      %5201 = vmatprep.subr.mxu0 0.0
      %5202 = vmatpush2.msra.mxu0 0.0
      %5203 = vmatprep.subr.mxu0 0.0
      %5204 = vmatpush2.msra.mxu0 0.0
      %5205 = vmatprep.subr.mxu0 0.0
      %5206 = vmatpush2.msra.mxu0 0.0
      %5207 = vmatprep.subr.mxu0 0.0
      %5208 = vmatpush2.msra.mxu0 0.0
      %5209 = vmatprep.subr.mxu0 0.0
      %5210 = vmatpush2.msra.mxu0 0.0
      %5211 = vmatprep.mubr.f32.mxu0 0.0
      %5212 = vmatmul.mubr.f32.gmra.mxu0 %v5052
      %v5213 = vpop.f32.mrf.mxu0
      %v5214 = vadd.f32 0.0, %v5213
      %v5215 = vpop.f32.mrf.mxu0
      %5216 = vmatprep.mubr.f32.mxu0 0.0
      %5217 = vmatmul.mubr.f32.gmra.mxu0 %v5055
      %v5218 = vpop.f32.mrf.mxu0
      %v5219 = vadd.f32 0.0, %v5218
      %v5220 = vpop.f32.mrf.mxu0
      %5221 = vmatprep.mubr.f32.mxu0 0.0
      %5222 = vmatmul.mubr.f32.gmra.mxu0 %v5058
      %v5223 = vpop.f32.mrf.mxu0
      %v5224 = vadd.f32 0.0, %v5223
      %v5225 = vpop.f32.mrf.mxu0
      %5226 = vmatprep.mubr.f32.mxu0 0.0
      %5227 = vmatmul.mubr.f32.gmra.mxu0 %v5061
      %v5228 = vpop.f32.mrf.mxu0
      %v5229 = vadd.f32 0.0, %v5228
      %v5230 = vpop.f32.mrf.mxu0
      %5231 = vmatprep.mubr.f32.mxu0 0.0
      %5232 = vmatmul.mubr.f32.gmra.mxu0 %v5064
      %v5233 = vpop.f32.mrf.mxu0
      %v5234 = vadd.f32 0.0, %v5233
      %v5235 = vpop.f32.mrf.mxu0
      %5236 = vmatprep.mubr.f32.mxu0 0.0
      %5237 = vmatmul.mubr.f32.gmra.mxu0 %v5067
      %v5238 = vpop.f32.mrf.mxu0
      %v5239 = vadd.f32 0.0, %v5238
      %v5240 = vpop.f32.mrf.mxu0
      %5241 = vmatprep.mubr.f32.mxu0 0.0
      %5242 = vmatmul.mubr.f32.gmra.mxu0 %v5070
      %v5243 = vpop.f32.mrf.mxu0
      %v5244 = vadd.f32 0.0, %v5243
      %v5245 = vpop.f32.mrf.mxu0
      %5246 = vmatprep.mubr.f32.mxu0 0.0
      %5247 = vmatmul.mubr.f32.gmra.mxu0 %v5073
      %v5248 = vpop.f32.mrf.mxu0
      %v5249 = vadd.f32 0.0, %v5248
      %v5250 = vpop.f32.mrf.mxu0
      %5251 = vmatprep.mubr.f32.mxu0 0.0
      %5252 = vmatmul.mubr.f32.gmra.mxu0 %v5076
      %v5253 = vpop.f32.mrf.mxu0
      %v5254 = vadd.f32 0.0, %v5253
      %v5255 = vpop.f32.mrf.mxu0
      %5256 = vmatprep.mubr.f32.mxu0 0.0
      %5257 = vmatmul.mubr.f32.gmra.mxu0 %v5079
      %v5258 = vpop.f32.mrf.mxu0
      %v5259 = vadd.f32 0.0, %v5258
      %v5260 = vpop.f32.mrf.mxu0
      %5261 = vmatprep.mubr.f32.mxu0 0.0
      %5262 = vmatmul.mubr.f32.gmra.mxu0 %v5082
      %v5263 = vpop.f32.mrf.mxu0
      %v5264 = vadd.f32 0.0, %v5263
      %v5265 = vpop.f32.mrf.mxu0
      %5266 = vmatprep.mubr.f32.mxu0 0.0
      %5267 = vmatmul.mubr.f32.gmra.mxu0 %v5085
      %v5268 = vpop.f32.mrf.mxu0
      %v5269 = vadd.f32 0.0, %v5268
      %v5270 = vpop.f32.mrf.mxu0
      %5271 = vmatprep.mubr.f32.mxu0 0.0
      %5272 = vmatmul.mubr.f32.gmra.mxu0 %v5088
      %v5273 = vpop.f32.mrf.mxu0
      %v5274 = vadd.f32 0.0, %v5273
      %v5275 = vpop.f32.mrf.mxu0
      %5276 = vmatprep.mubr.f32.mxu0 0.0
      %5277 = vmatmul.mubr.f32.gmra.mxu0 %v5091
      %v5278 = vpop.f32.mrf.mxu0
      %v5279 = vadd.f32 0.0, %v5278
      %v5280 = vpop.f32.mrf.mxu0
      %5281 = vmatprep.mubr.f32.mxu0 0.0
      %5282 = vmatmul.mubr.f32.gmra.mxu0 %v5094
      %v5283 = vpop.f32.mrf.mxu0
      %v5284 = vadd.f32 0.0, %v5283
      %v5285 = vpop.f32.mrf.mxu0
      %5286 = vmatprep.mubr.f32.mxu0 0.0
      %5287 = vmatmul.mubr.f32.gmra.mxu0 %v5097
      %v5288 = vpop.f32.mrf.mxu0
      %v5289 = vadd.f32 0.0, %v5288
      %v5290 = vpop.f32.mrf.mxu0
      %5291 = vmatprep.mubr.f32.mxu0 0.0
      %5292 = vmatmul.mubr.f32.gmra.mxu0 %v5100
      %v5293 = vpop.f32.mrf.mxu0
      %v5294 = vadd.f32 0.0, %v5293
      %v5295 = vpop.f32.mrf.mxu0
      %5296 = vmatprep.mubr.f32.mxu0 0.0
      %5297 = vmatmul.mubr.f32.gmra.mxu0 %v5103
      %v5298 = vpop.f32.mrf.mxu0
      %v5299 = vadd.f32 0.0, %v5298
      %v5300 = vpop.f32.mrf.mxu0
      %5301 = vmatprep.mubr.f32.mxu0 0.0
      %5302 = vmatmul.mubr.f32.gmra.mxu0 %v5106
      %v5303 = vpop.f32.mrf.mxu0
      %v5304 = vadd.f32 0.0, %v5303
      %v5305 = vpop.f32.mrf.mxu0
      %5306 = vmatprep.mubr.f32.mxu0 0.0
      %5307 = vmatmul.mubr.f32.gmra.mxu0 %v5109
      %v5308 = vpop.f32.mrf.mxu0
      %v5309 = vadd.f32 0.0, %v5308
      %v5310 = vpop.f32.mrf.mxu0
      %5311 = vmatprep.mubr.f32.mxu0 0.0
      %5312 = vmatmul.mubr.f32.gmra.mxu0 %v5112
      %v5313 = vpop.f32.mrf.mxu0
      %v5314 = vadd.f32 0.0, %v5313
      %v5315 = vpop.f32.mrf.mxu0
      %5316 = vmatprep.mubr.f32.mxu0 0.0
      %5317 = vmatmul.mubr.f32.gmra.mxu0 %v5115
      %v5318 = vpop.f32.mrf.mxu0
      %v5319 = vadd.f32 0.0, %v5318
      %v5320 = vpop.f32.mrf.mxu0
      %5321 = vmatprep.mubr.f32.mxu0 0.0
      %5322 = vmatmul.mubr.f32.gmra.mxu0 %v5118
      %v5323 = vpop.f32.mrf.mxu0
      %v5324 = vadd.f32 0.0, %v5323
      %v5325 = vpop.f32.mrf.mxu0
      %5326 = vmatprep.mubr.f32.mxu0 0.0
      %5327 = vmatmul.mubr.f32.gmra.mxu0 %v5121
      %v5328 = vpop.f32.mrf.mxu0
      %v5329 = vadd.f32 0.0, %v5328
      %v5330 = vpop.f32.mrf.mxu0
      %5331 = vmatprep.mubr.f32.mxu0 0.0
      %5332 = vmatmul.mubr.f32.gmra.mxu0 %v5124
      %v5333 = vpop.f32.mrf.mxu0
      %v5334 = vadd.f32 0.0, %v5333
      %v5335 = vpop.f32.mrf.mxu0
      %5336 = vmatprep.mubr.f32.mxu0 0.0
      %5337 = vmatmul.mubr.f32.gmra.mxu0 %v5127
      %v5338 = vpop.f32.mrf.mxu0
      %v5339 = vadd.f32 0.0, %v5338
      %v5340 = vpop.f32.mrf.mxu0
      %5341 = vmatprep.mubr.f32.mxu0 0.0
      %5342 = vmatmul.mubr.f32.gmra.mxu0 %v5130
      %v5343 = vpop.f32.mrf.mxu0
      %v5344 = vadd.f32 0.0, %v5343
      %v5345 = vpop.f32.mrf.mxu0
      %5346 = vmatprep.mubr.f32.mxu0 0.0
      %5347 = vmatmul.mubr.f32.gmra.mxu0 %v5133
      %v5348 = vpop.f32.mrf.mxu0
      %v5349 = vadd.f32 0.0, %v5348
      %v5350 = vpop.f32.mrf.mxu0
      %5351 = vmatprep.mubr.f32.mxu0 0.0
      %5352 = vmatmul.mubr.f32.gmra.mxu0 %v5136
      %v5353 = vpop.f32.mrf.mxu0
      %v5354 = vadd.f32 0.0, %v5353
      %v5355 = vpop.f32.mrf.mxu0
      %5356 = vmatprep.mubr.f32.mxu0 0.0
      %5357 = vmatmul.mubr.f32.gmra.mxu0 %v5139
      %v5358 = vpop.f32.mrf.mxu0
      %v5359 = vadd.f32 0.0, %v5358
      %v5360 = vpop.f32.mrf.mxu0
      %5361 = vmatprep.mubr.f32.mxu0 0.0
      %5362 = vmatmul.mubr.f32.gmra.mxu0 %v5142
      %v5363 = vpop.f32.mrf.mxu0
      %v5364 = vadd.f32 0.0, %v5363
      %v5365 = vpop.f32.mrf.mxu0
      %5366 = vmatprep.mubr.f32.mxu0 0.0
      %5367 = vmatmul.mubr.f32.gmra.mxu0 %v5145
      %v5368 = vpop.f32.mrf.mxu0
      %v5369 = vadd.f32 0.0, %v5368
      %v5370 = vpop.f32.mrf.mxu0
      %5371 = vdwg.mxu0
      %v5372 = vadd.f32 %v4985, %v5214
      %v5373 = vadd.f32 %v4986, %v5219
      %v5374 = vadd.f32 %v4987, %v5224
      %v5375 = vadd.f32 %v4988, %v5229
      %v5376 = vadd.f32 %v4989, %v5234
      %v5377 = vadd.f32 %v4990, %v5239
      %v5378 = vadd.f32 %v4991, %v5244
      %v5379 = vadd.f32 %v4992, %v5249
      %v5380 = vadd.f32 %v4993, %v5254
      %v5381 = vadd.f32 %v4994, %v5259
      %v5382 = vadd.f32 %v4995, %v5264
      %v5383 = vadd.f32 %v4996, %v5269
      %v5384 = vadd.f32 %v4997, %v5274
      %v5385 = vadd.f32 %v4998, %v5279
      %v5386 = vadd.f32 %v4999, %v5284
      %v5387 = vadd.f32 %v5000, %v5289
      %v5388 = vadd.f32 %v5001, %v5294
      %v5389 = vadd.f32 %v5002, %v5299
      %v5390 = vadd.f32 %v5003, %v5304
      %v5391 = vadd.f32 %v5004, %v5309
      %v5392 = vadd.f32 %v5005, %v5314
      %v5393 = vadd.f32 %v5006, %v5319
      %v5394 = vadd.f32 %v5007, %v5324
      %v5395 = vadd.f32 %v5008, %v5329
      %v5396 = vadd.f32 %v5009, %v5334
      %v5397 = vadd.f32 %v5010, %v5339
      %v5398 = vadd.f32 %v5011, %v5344
      %v5399 = vadd.f32 %v5012, %v5349
      %v5400 = vadd.f32 %v5013, %v5354
      %v5401 = vadd.f32 %v5014, %v5359
      %v5402 = vadd.f32 %v5015, %v5364
      %v5403 = vadd.f32 %v5016, %v5369
      %v5404 = vld [vmem:[%s3888 + $0x1] sm:$0xff]
      %v5405 = vld [vmem:[%s3888 + $0x9] sm:$0xff]
      %v5406 = vld [vmem:[%s3888 + $0x19] sm:$0xff]
      %v5407 = vld [vmem:[%s3888 + $0x21] sm:$0xff]
      %v5408 = vld [vmem:[%s3888 + $0x31] sm:$0xff]
      %v5409 = vld [vmem:[%s3888 + $0x39] sm:$0xff]
      %v5410 = vld [vmem:[%s3888 + $0x49] sm:$0xff]
      %v5411 = vld [vmem:[%s3888 + $0x51] sm:$0xff]
      %v5412 = vld [vmem:[%s3888 + $0x61] sm:$0xff]
      %v5413 = vld [vmem:[%s3888 + $0x69] sm:$0xff]
      %v5414 = vld [vmem:[%s3888 + $0x79] sm:$0xff]
      %v5415 = vld [vmem:[%s3888 + $0x81] sm:$0xff]
      %v5416 = vld [vmem:[%s3888 + $0x91] sm:$0xff]
      %v5417 = vld [vmem:[%s3888 + $0x99] sm:$0xff]
      %v5418 = vld [vmem:[%s3888 + $0xa9] sm:$0xff]
      %v5419 = vld [vmem:[%s3888 + $0xb1] sm:$0xff]
      %v5420 = vld [vmem:[%s3888 + $0xc1] sm:$0xff]
      %v5421 = vld [vmem:[%s3888 + $0xc9] sm:$0xff]
      %v5422 = vld [vmem:[%s3888 + $0xd9] sm:$0xff]
      %v5423 = vld [vmem:[%s3888 + $0xe1] sm:$0xff]
      %v5424 = vld [vmem:[%s3888 + $0xf1] sm:$0xff]
      %v5425 = vld [vmem:[%s3888 + $0xf9] sm:$0xff]
      %v5426 = vld [vmem:[%s3888 + $0x109] sm:$0xff]
      %v5427 = vld [vmem:[%s3888 + $0x111] sm:$0xff]
      %v5428 = vld [vmem:[%s3888 + $0x121] sm:$0xff]
      %v5429 = vld [vmem:[%s3888 + $0x129] sm:$0xff]
      %v5430 = vld [vmem:[%s3888 + $0x139] sm:$0xff]
      %v5431 = vld [vmem:[%s3888 + $0x141] sm:$0xff]
      %v5432 = vld [vmem:[%s3888 + $0x151] sm:$0xff]
      %v5433 = vld [vmem:[%s3888 + $0x159] sm:$0xff]
      %v5434 = vld [vmem:[%s3888 + $0x169] sm:$0xff]
      %v5435 = vld [vmem:[%s3888 + $0x171] sm:$0xff]
      %s5436 = scalar_lea.vmem %s3, 32
      %v5437 = vld [vmem:[%s5436] sm:$0xff]
      %v5439 = vsel %vm3832, %v5404, 0
      %v5442 = vsel %vm3832, %v5405, 0
      %v5445 = vsel %vm3832, %v5406, 0
      %v5448 = vsel %vm3832, %v5407, 0
      %v5451 = vsel %vm3832, %v5408, 0
      %v5454 = vsel %vm3832, %v5409, 0
      %v5457 = vsel %vm3832, %v5410, 0
      %v5460 = vsel %vm3832, %v5411, 0
      %v5463 = vsel %vm3832, %v5412, 0
      %v5466 = vsel %vm3832, %v5413, 0
      %v5469 = vsel %vm3832, %v5414, 0
      %v5472 = vsel %vm3832, %v5415, 0
      %v5475 = vsel %vm3832, %v5416, 0
      %v5478 = vsel %vm3832, %v5417, 0
      %v5481 = vsel %vm3832, %v5418, 0
      %v5484 = vsel %vm3832, %v5419, 0
      %v5487 = vsel %vm3832, %v5420, 0
      %v5490 = vsel %vm3832, %v5421, 0
      %v5493 = vsel %vm3832, %v5422, 0
      %v5496 = vsel %vm3832, %v5423, 0
      %v5499 = vsel %vm3832, %v5424, 0
      %v5502 = vsel %vm3832, %v5425, 0
      %v5505 = vsel %vm3832, %v5426, 0
      %v5508 = vsel %vm3832, %v5427, 0
      %v5511 = vsel %vm3832, %v5428, 0
      %v5514 = vsel %vm3832, %v5429, 0
      %v5517 = vsel %vm3832, %v5430, 0
      %v5520 = vsel %vm3832, %v5431, 0
      %v5523 = vsel %vm3832, %v5432, 0
      %v5526 = vsel %vm3832, %v5433, 0
      %v5529 = vsel %vm3832, %v5434, 0
      %v5532 = vsel %vm3832, %v5435, 0
      %5534 = vmatprep.subr.mxu0 0.0
      %5535 = vmatpush1.msra.mxu0 0.0
      %5536 = vmatprep.subr.mxu0 0.0
      %5537 = vmatpush1.msra.mxu0 0.0
      %5538 = vmatprep.subr.mxu0 0.0
      %5539 = vmatpush1.msra.mxu0 0.0
      %5540 = vmatprep.subr.mxu0 0.0
      %5541 = vmatpush1.msra.mxu0 0.0
      %5542 = vmatprep.subr.mxu0 0.0
      %5543 = vmatpush1.msra.mxu0 0.0
      %5544 = vmatprep.subr.mxu0 0.0
      %5545 = vmatpush1.msra.mxu0 0.0
      %5546 = vmatprep.subr.mxu0 0.0
      %5547 = vmatpush1.msra.mxu0 0.0
      %5548 = vmatprep.subr.mxu0 0.0
      %5549 = vmatpush1.msra.mxu0 0.0
      %5550 = vmatprep.subr.mxu0 0.0
      %5551 = vmatpush1.msra.mxu0 0.0
      %5552 = vmatprep.subr.mxu0 0.0
      %5553 = vmatpush1.msra.mxu0 0.0
      %5554 = vmatprep.subr.mxu0 0.0
      %5555 = vmatpush1.msra.mxu0 0.0
      %5556 = vmatprep.subr.mxu0 0.0
      %5557 = vmatpush1.msra.mxu0 0.0
      %5558 = vmatprep.subr.mxu0 0.0
      %5559 = vmatpush1.msra.mxu0 0.0
      %5560 = vmatprep.subr.mxu0 0.0
      %5561 = vmatpush1.msra.mxu0 0.0
      %5562 = vmatprep.subr.mxu0 0.0
      %5563 = vmatpush1.msra.mxu0 0.0
      %5564 = vmatprep.subr.mxu0 0.0
      %5565 = vmatpush1.msra.mxu0 %v5437
      %5566 = vmatprep.subr.mxu0 0.0
      %5567 = vmatpush2.msra.mxu0 0.0
      %5568 = vmatprep.subr.mxu0 0.0
      %5569 = vmatpush2.msra.mxu0 0.0
      %5570 = vmatprep.subr.mxu0 0.0
      %5571 = vmatpush2.msra.mxu0 0.0
      %5572 = vmatprep.subr.mxu0 0.0
      %5573 = vmatpush2.msra.mxu0 0.0
      %5574 = vmatprep.subr.mxu0 0.0
      %5575 = vmatpush2.msra.mxu0 0.0
      %5576 = vmatprep.subr.mxu0 0.0
      %5577 = vmatpush2.msra.mxu0 0.0
      %5578 = vmatprep.subr.mxu0 0.0
      %5579 = vmatpush2.msra.mxu0 0.0
      %5580 = vmatprep.subr.mxu0 0.0
      %5581 = vmatpush2.msra.mxu0 0.0
      %5582 = vmatprep.subr.mxu0 0.0
      %5583 = vmatpush2.msra.mxu0 0.0
      %5584 = vmatprep.subr.mxu0 0.0
      %5585 = vmatpush2.msra.mxu0 0.0
      %5586 = vmatprep.subr.mxu0 0.0
      %5587 = vmatpush2.msra.mxu0 0.0
      %5588 = vmatprep.subr.mxu0 0.0
      %5589 = vmatpush2.msra.mxu0 0.0
      %5590 = vmatprep.subr.mxu0 0.0
      %5591 = vmatpush2.msra.mxu0 0.0
      %5592 = vmatprep.subr.mxu0 0.0
      %5593 = vmatpush2.msra.mxu0 0.0
      %5594 = vmatprep.subr.mxu0 0.0
      %5595 = vmatpush2.msra.mxu0 0.0
      %5596 = vmatprep.subr.mxu0 0.0
      %5597 = vmatpush2.msra.mxu0 0.0
      %5598 = vmatprep.mubr.f32.mxu0 0.0
      %5599 = vmatmul.mubr.f32.gmra.mxu0 %v5439
      %v5600 = vpop.f32.mrf.mxu0
      %v5601 = vadd.f32 0.0, %v5600
      %v5602 = vpop.f32.mrf.mxu0
      %5603 = vmatprep.mubr.f32.mxu0 0.0
      %5604 = vmatmul.mubr.f32.gmra.mxu0 %v5442
      %v5605 = vpop.f32.mrf.mxu0
      %v5606 = vadd.f32 0.0, %v5605
      %v5607 = vpop.f32.mrf.mxu0
      %5608 = vmatprep.mubr.f32.mxu0 0.0
      %5609 = vmatmul.mubr.f32.gmra.mxu0 %v5445
      %v5610 = vpop.f32.mrf.mxu0
      %v5611 = vadd.f32 0.0, %v5610
      %v5612 = vpop.f32.mrf.mxu0
      %5613 = vmatprep.mubr.f32.mxu0 0.0
      %5614 = vmatmul.mubr.f32.gmra.mxu0 %v5448
      %v5615 = vpop.f32.mrf.mxu0
      %v5616 = vadd.f32 0.0, %v5615
      %v5617 = vpop.f32.mrf.mxu0
      %5618 = vmatprep.mubr.f32.mxu0 0.0
      %5619 = vmatmul.mubr.f32.gmra.mxu0 %v5451
      %v5620 = vpop.f32.mrf.mxu0
      %v5621 = vadd.f32 0.0, %v5620
      %v5622 = vpop.f32.mrf.mxu0
      %5623 = vmatprep.mubr.f32.mxu0 0.0
      %5624 = vmatmul.mubr.f32.gmra.mxu0 %v5454
      %v5625 = vpop.f32.mrf.mxu0
      %v5626 = vadd.f32 0.0, %v5625
      %v5627 = vpop.f32.mrf.mxu0
      %5628 = vmatprep.mubr.f32.mxu0 0.0
      %5629 = vmatmul.mubr.f32.gmra.mxu0 %v5457
      %v5630 = vpop.f32.mrf.mxu0
      %v5631 = vadd.f32 0.0, %v5630
      %v5632 = vpop.f32.mrf.mxu0
      %5633 = vmatprep.mubr.f32.mxu0 0.0
      %5634 = vmatmul.mubr.f32.gmra.mxu0 %v5460
      %v5635 = vpop.f32.mrf.mxu0
      %v5636 = vadd.f32 0.0, %v5635
      %v5637 = vpop.f32.mrf.mxu0
      %5638 = vmatprep.mubr.f32.mxu0 0.0
      %5639 = vmatmul.mubr.f32.gmra.mxu0 %v5463
      %v5640 = vpop.f32.mrf.mxu0
      %v5641 = vadd.f32 0.0, %v5640
      %v5642 = vpop.f32.mrf.mxu0
      %5643 = vmatprep.mubr.f32.mxu0 0.0
      %5644 = vmatmul.mubr.f32.gmra.mxu0 %v5466
      %v5645 = vpop.f32.mrf.mxu0
      %v5646 = vadd.f32 0.0, %v5645
      %v5647 = vpop.f32.mrf.mxu0
      %5648 = vmatprep.mubr.f32.mxu0 0.0
      %5649 = vmatmul.mubr.f32.gmra.mxu0 %v5469
      %v5650 = vpop.f32.mrf.mxu0
      %v5651 = vadd.f32 0.0, %v5650
      %v5652 = vpop.f32.mrf.mxu0
      %5653 = vmatprep.mubr.f32.mxu0 0.0
      %5654 = vmatmul.mubr.f32.gmra.mxu0 %v5472
      %v5655 = vpop.f32.mrf.mxu0
      %v5656 = vadd.f32 0.0, %v5655
      %v5657 = vpop.f32.mrf.mxu0
      %5658 = vmatprep.mubr.f32.mxu0 0.0
      %5659 = vmatmul.mubr.f32.gmra.mxu0 %v5475
      %v5660 = vpop.f32.mrf.mxu0
      %v5661 = vadd.f32 0.0, %v5660
      %v5662 = vpop.f32.mrf.mxu0
      %5663 = vmatprep.mubr.f32.mxu0 0.0
      %5664 = vmatmul.mubr.f32.gmra.mxu0 %v5478
      %v5665 = vpop.f32.mrf.mxu0
      %v5666 = vadd.f32 0.0, %v5665
      %v5667 = vpop.f32.mrf.mxu0
      %5668 = vmatprep.mubr.f32.mxu0 0.0
      %5669 = vmatmul.mubr.f32.gmra.mxu0 %v5481
      %v5670 = vpop.f32.mrf.mxu0
      %v5671 = vadd.f32 0.0, %v5670
      %v5672 = vpop.f32.mrf.mxu0
      %5673 = vmatprep.mubr.f32.mxu0 0.0
      %5674 = vmatmul.mubr.f32.gmra.mxu0 %v5484
      %v5675 = vpop.f32.mrf.mxu0
      %v5676 = vadd.f32 0.0, %v5675
      %v5677 = vpop.f32.mrf.mxu0
      %5678 = vmatprep.mubr.f32.mxu0 0.0
      %5679 = vmatmul.mubr.f32.gmra.mxu0 %v5487
      %v5680 = vpop.f32.mrf.mxu0
      %v5681 = vadd.f32 0.0, %v5680
      %v5682 = vpop.f32.mrf.mxu0
      %5683 = vmatprep.mubr.f32.mxu0 0.0
      %5684 = vmatmul.mubr.f32.gmra.mxu0 %v5490
      %v5685 = vpop.f32.mrf.mxu0
      %v5686 = vadd.f32 0.0, %v5685
      %v5687 = vpop.f32.mrf.mxu0
      %5688 = vmatprep.mubr.f32.mxu0 0.0
      %5689 = vmatmul.mubr.f32.gmra.mxu0 %v5493
      %v5690 = vpop.f32.mrf.mxu0
      %v5691 = vadd.f32 0.0, %v5690
      %v5692 = vpop.f32.mrf.mxu0
      %5693 = vmatprep.mubr.f32.mxu0 0.0
      %5694 = vmatmul.mubr.f32.gmra.mxu0 %v5496
      %v5695 = vpop.f32.mrf.mxu0
      %v5696 = vadd.f32 0.0, %v5695
      %v5697 = vpop.f32.mrf.mxu0
      %5698 = vmatprep.mubr.f32.mxu0 0.0
      %5699 = vmatmul.mubr.f32.gmra.mxu0 %v5499
      %v5700 = vpop.f32.mrf.mxu0
      %v5701 = vadd.f32 0.0, %v5700
      %v5702 = vpop.f32.mrf.mxu0
      %5703 = vmatprep.mubr.f32.mxu0 0.0
      %5704 = vmatmul.mubr.f32.gmra.mxu0 %v5502
      %v5705 = vpop.f32.mrf.mxu0
      %v5706 = vadd.f32 0.0, %v5705
      %v5707 = vpop.f32.mrf.mxu0
      %5708 = vmatprep.mubr.f32.mxu0 0.0
      %5709 = vmatmul.mubr.f32.gmra.mxu0 %v5505
      %v5710 = vpop.f32.mrf.mxu0
      %v5711 = vadd.f32 0.0, %v5710
      %v5712 = vpop.f32.mrf.mxu0
      %5713 = vmatprep.mubr.f32.mxu0 0.0
      %5714 = vmatmul.mubr.f32.gmra.mxu0 %v5508
      %v5715 = vpop.f32.mrf.mxu0
      %v5716 = vadd.f32 0.0, %v5715
      %v5717 = vpop.f32.mrf.mxu0
      %5718 = vmatprep.mubr.f32.mxu0 0.0
      %5719 = vmatmul.mubr.f32.gmra.mxu0 %v5511
      %v5720 = vpop.f32.mrf.mxu0
      %v5721 = vadd.f32 0.0, %v5720
      %v5722 = vpop.f32.mrf.mxu0
      %5723 = vmatprep.mubr.f32.mxu0 0.0
      %5724 = vmatmul.mubr.f32.gmra.mxu0 %v5514
      %v5725 = vpop.f32.mrf.mxu0
      %v5726 = vadd.f32 0.0, %v5725
      %v5727 = vpop.f32.mrf.mxu0
      %5728 = vmatprep.mubr.f32.mxu0 0.0
      %5729 = vmatmul.mubr.f32.gmra.mxu0 %v5517
      %v5730 = vpop.f32.mrf.mxu0
      %v5731 = vadd.f32 0.0, %v5730
      %v5732 = vpop.f32.mrf.mxu0
      %5733 = vmatprep.mubr.f32.mxu0 0.0
      %5734 = vmatmul.mubr.f32.gmra.mxu0 %v5520
      %v5735 = vpop.f32.mrf.mxu0
      %v5736 = vadd.f32 0.0, %v5735
      %v5737 = vpop.f32.mrf.mxu0
      %5738 = vmatprep.mubr.f32.mxu0 0.0
      %5739 = vmatmul.mubr.f32.gmra.mxu0 %v5523
      %v5740 = vpop.f32.mrf.mxu0
      %v5741 = vadd.f32 0.0, %v5740
      %v5742 = vpop.f32.mrf.mxu0
      %5743 = vmatprep.mubr.f32.mxu0 0.0
      %5744 = vmatmul.mubr.f32.gmra.mxu0 %v5526
      %v5745 = vpop.f32.mrf.mxu0
      %v5746 = vadd.f32 0.0, %v5745
      %v5747 = vpop.f32.mrf.mxu0
      %5748 = vmatprep.mubr.f32.mxu0 0.0
      %5749 = vmatmul.mubr.f32.gmra.mxu0 %v5529
      %v5750 = vpop.f32.mrf.mxu0
      %v5751 = vadd.f32 0.0, %v5750
      %v5752 = vpop.f32.mrf.mxu0
      %5753 = vmatprep.mubr.f32.mxu0 0.0
      %5754 = vmatmul.mubr.f32.gmra.mxu0 %v5532
      %v5755 = vpop.f32.mrf.mxu0
      %v5756 = vadd.f32 0.0, %v5755
      %v5757 = vpop.f32.mrf.mxu0
      %5758 = vdwg.mxu0
      %v5759 = vadd.f32 %v5372, %v5601
      %v5760 = vadd.f32 %v5373, %v5606
      %v5761 = vadd.f32 %v5374, %v5611
      %v5762 = vadd.f32 %v5375, %v5616
      %v5763 = vadd.f32 %v5376, %v5621
      %v5764 = vadd.f32 %v5377, %v5626
      %v5765 = vadd.f32 %v5378, %v5631
      %v5766 = vadd.f32 %v5379, %v5636
      %v5767 = vadd.f32 %v5380, %v5641
      %v5768 = vadd.f32 %v5381, %v5646
      %v5769 = vadd.f32 %v5382, %v5651
      %v5770 = vadd.f32 %v5383, %v5656
      %v5771 = vadd.f32 %v5384, %v5661
      %v5772 = vadd.f32 %v5385, %v5666
      %v5773 = vadd.f32 %v5386, %v5671
      %v5774 = vadd.f32 %v5387, %v5676
      %v5775 = vadd.f32 %v5388, %v5681
      %v5776 = vadd.f32 %v5389, %v5686
      %v5777 = vadd.f32 %v5390, %v5691
      %v5778 = vadd.f32 %v5391, %v5696
      %v5779 = vadd.f32 %v5392, %v5701
      %v5780 = vadd.f32 %v5393, %v5706
      %v5781 = vadd.f32 %v5394, %v5711
      %v5782 = vadd.f32 %v5395, %v5716
      %v5783 = vadd.f32 %v5396, %v5721
      %v5784 = vadd.f32 %v5397, %v5726
      %v5785 = vadd.f32 %v5398, %v5731
      %v5786 = vadd.f32 %v5399, %v5736
      %v5787 = vadd.f32 %v5400, %v5741
      %v5788 = vadd.f32 %v5401, %v5746
      %v5789 = vadd.f32 %v5402, %v5751
      %v5790 = vadd.f32 %v5403, %v5756
      %v5791 = vld [vmem:[%s3888 + $0x2] sm:$0xff]
      %v5792 = vld [vmem:[%s3888 + $0xa] sm:$0xff]
      %v5793 = vld [vmem:[%s3888 + $0x1a] sm:$0xff]
      %v5794 = vld [vmem:[%s3888 + $0x22] sm:$0xff]
      %v5795 = vld [vmem:[%s3888 + $0x32] sm:$0xff]
      %v5796 = vld [vmem:[%s3888 + $0x3a] sm:$0xff]
      %v5797 = vld [vmem:[%s3888 + $0x4a] sm:$0xff]
      %v5798 = vld [vmem:[%s3888 + $0x52] sm:$0xff]
      %v5799 = vld [vmem:[%s3888 + $0x62] sm:$0xff]
      %v5800 = vld [vmem:[%s3888 + $0x6a] sm:$0xff]
      %v5801 = vld [vmem:[%s3888 + $0x7a] sm:$0xff]
      %v5802 = vld [vmem:[%s3888 + $0x82] sm:$0xff]
      %v5803 = vld [vmem:[%s3888 + $0x92] sm:$0xff]
      %v5804 = vld [vmem:[%s3888 + $0x9a] sm:$0xff]
      %v5805 = vld [vmem:[%s3888 + $0xaa] sm:$0xff]
      %v5806 = vld [vmem:[%s3888 + $0xb2] sm:$0xff]
      %v5807 = vld [vmem:[%s3888 + $0xc2] sm:$0xff]
      %v5808 = vld [vmem:[%s3888 + $0xca] sm:$0xff]
      %v5809 = vld [vmem:[%s3888 + $0xda] sm:$0xff]
      %v5810 = vld [vmem:[%s3888 + $0xe2] sm:$0xff]
      %v5811 = vld [vmem:[%s3888 + $0xf2] sm:$0xff]
      %v5812 = vld [vmem:[%s3888 + $0xfa] sm:$0xff]
      %v5813 = vld [vmem:[%s3888 + $0x10a] sm:$0xff]
      %v5814 = vld [vmem:[%s3888 + $0x112] sm:$0xff]
      %v5815 = vld [vmem:[%s3888 + $0x122] sm:$0xff]
      %v5816 = vld [vmem:[%s3888 + $0x12a] sm:$0xff]
      %v5817 = vld [vmem:[%s3888 + $0x13a] sm:$0xff]
      %v5818 = vld [vmem:[%s3888 + $0x142] sm:$0xff]
      %v5819 = vld [vmem:[%s3888 + $0x152] sm:$0xff]
      %v5820 = vld [vmem:[%s3888 + $0x15a] sm:$0xff]
      %v5821 = vld [vmem:[%s3888 + $0x16a] sm:$0xff]
      %v5822 = vld [vmem:[%s3888 + $0x172] sm:$0xff]
      %s5823 = scalar_lea.vmem %s3, 40
      %v5824 = vld [vmem:[%s5823] sm:$0xff]
      %v5826 = vsel %vm3832, %v5791, 0
      %v5829 = vsel %vm3832, %v5792, 0
      %v5832 = vsel %vm3832, %v5793, 0
      %v5835 = vsel %vm3832, %v5794, 0
      %v5838 = vsel %vm3832, %v5795, 0
      %v5841 = vsel %vm3832, %v5796, 0
      %v5844 = vsel %vm3832, %v5797, 0
      %v5847 = vsel %vm3832, %v5798, 0
      %v5850 = vsel %vm3832, %v5799, 0
      %v5853 = vsel %vm3832, %v5800, 0
      %v5856 = vsel %vm3832, %v5801, 0
      %v5859 = vsel %vm3832, %v5802, 0
      %v5862 = vsel %vm3832, %v5803, 0
      %v5865 = vsel %vm3832, %v5804, 0
      %v5868 = vsel %vm3832, %v5805, 0
      %v5871 = vsel %vm3832, %v5806, 0
      %v5874 = vsel %vm3832, %v5807, 0
      %v5877 = vsel %vm3832, %v5808, 0
      %v5880 = vsel %vm3832, %v5809, 0
      %v5883 = vsel %vm3832, %v5810, 0
      %v5886 = vsel %vm3832, %v5811, 0
      %v5889 = vsel %vm3832, %v5812, 0
      %v5892 = vsel %vm3832, %v5813, 0
      %v5895 = vsel %vm3832, %v5814, 0
      %v5898 = vsel %vm3832, %v5815, 0
      %v5901 = vsel %vm3832, %v5816, 0
      %v5904 = vsel %vm3832, %v5817, 0
      %v5907 = vsel %vm3832, %v5818, 0
      %v5910 = vsel %vm3832, %v5819, 0
      %v5913 = vsel %vm3832, %v5820, 0
      %v5916 = vsel %vm3832, %v5821, 0
      %v5919 = vsel %vm3832, %v5822, 0
      %5921 = vmatprep.subr.mxu0 0.0
      %5922 = vmatpush1.msra.mxu0 0.0
      %5923 = vmatprep.subr.mxu0 0.0
      %5924 = vmatpush1.msra.mxu0 0.0
      %5925 = vmatprep.subr.mxu0 0.0
      %5926 = vmatpush1.msra.mxu0 0.0
      %5927 = vmatprep.subr.mxu0 0.0
      %5928 = vmatpush1.msra.mxu0 0.0
      %5929 = vmatprep.subr.mxu0 0.0
      %5930 = vmatpush1.msra.mxu0 0.0
      %5931 = vmatprep.subr.mxu0 0.0
      %5932 = vmatpush1.msra.mxu0 0.0
      %5933 = vmatprep.subr.mxu0 0.0
      %5934 = vmatpush1.msra.mxu0 0.0
      %5935 = vmatprep.subr.mxu0 0.0
      %5936 = vmatpush1.msra.mxu0 0.0
      %5937 = vmatprep.subr.mxu0 0.0
      %5938 = vmatpush1.msra.mxu0 0.0
      %5939 = vmatprep.subr.mxu0 0.0
      %5940 = vmatpush1.msra.mxu0 0.0
      %5941 = vmatprep.subr.mxu0 0.0
      %5942 = vmatpush1.msra.mxu0 0.0
      %5943 = vmatprep.subr.mxu0 0.0
      %5944 = vmatpush1.msra.mxu0 0.0
      %5945 = vmatprep.subr.mxu0 0.0
      %5946 = vmatpush1.msra.mxu0 0.0
      %5947 = vmatprep.subr.mxu0 0.0
      %5948 = vmatpush1.msra.mxu0 0.0
      %5949 = vmatprep.subr.mxu0 0.0
      %5950 = vmatpush1.msra.mxu0 0.0
      %5951 = vmatprep.subr.mxu0 0.0
      %5952 = vmatpush1.msra.mxu0 %v5824
      %5953 = vmatprep.subr.mxu0 0.0
      %5954 = vmatpush2.msra.mxu0 0.0
      %5955 = vmatprep.subr.mxu0 0.0
      %5956 = vmatpush2.msra.mxu0 0.0
      %5957 = vmatprep.subr.mxu0 0.0
      %5958 = vmatpush2.msra.mxu0 0.0
      %5959 = vmatprep.subr.mxu0 0.0
      %5960 = vmatpush2.msra.mxu0 0.0
      %5961 = vmatprep.subr.mxu0 0.0
      %5962 = vmatpush2.msra.mxu0 0.0
      %5963 = vmatprep.subr.mxu0 0.0
      %5964 = vmatpush2.msra.mxu0 0.0
      %5965 = vmatprep.subr.mxu0 0.0
      %5966 = vmatpush2.msra.mxu0 0.0
      %5967 = vmatprep.subr.mxu0 0.0
      %5968 = vmatpush2.msra.mxu0 0.0
      %5969 = vmatprep.subr.mxu0 0.0
      %5970 = vmatpush2.msra.mxu0 0.0
      %5971 = vmatprep.subr.mxu0 0.0
      %5972 = vmatpush2.msra.mxu0 0.0
      %5973 = vmatprep.subr.mxu0 0.0
      %5974 = vmatpush2.msra.mxu0 0.0
      %5975 = vmatprep.subr.mxu0 0.0
      %5976 = vmatpush2.msra.mxu0 0.0
      %5977 = vmatprep.subr.mxu0 0.0
      %5978 = vmatpush2.msra.mxu0 0.0
      %5979 = vmatprep.subr.mxu0 0.0
      %5980 = vmatpush2.msra.mxu0 0.0
      %5981 = vmatprep.subr.mxu0 0.0
      %5982 = vmatpush2.msra.mxu0 0.0
      %5983 = vmatprep.subr.mxu0 0.0
      %5984 = vmatpush2.msra.mxu0 0.0
      %5985 = vmatprep.mubr.f32.mxu0 0.0
      %5986 = vmatmul.mubr.f32.gmra.mxu0 %v5826
      %v5987 = vpop.f32.mrf.mxu0
      %v5988 = vadd.f32 0.0, %v5987
      %v5989 = vpop.f32.mrf.mxu0
      %5990 = vmatprep.mubr.f32.mxu0 0.0
      %5991 = vmatmul.mubr.f32.gmra.mxu0 %v5829
      %v5992 = vpop.f32.mrf.mxu0
      %v5993 = vadd.f32 0.0, %v5992
      %v5994 = vpop.f32.mrf.mxu0
      %5995 = vmatprep.mubr.f32.mxu0 0.0
      %5996 = vmatmul.mubr.f32.gmra.mxu0 %v5832
      %v5997 = vpop.f32.mrf.mxu0
      %v5998 = vadd.f32 0.0, %v5997
      %v5999 = vpop.f32.mrf.mxu0
      %6000 = vmatprep.mubr.f32.mxu0 0.0
      %6001 = vmatmul.mubr.f32.gmra.mxu0 %v5835
      %v6002 = vpop.f32.mrf.mxu0
      %v6003 = vadd.f32 0.0, %v6002
      %v6004 = vpop.f32.mrf.mxu0
      %6005 = vmatprep.mubr.f32.mxu0 0.0
      %6006 = vmatmul.mubr.f32.gmra.mxu0 %v5838
      %v6007 = vpop.f32.mrf.mxu0
      %v6008 = vadd.f32 0.0, %v6007
      %v6009 = vpop.f32.mrf.mxu0
      %6010 = vmatprep.mubr.f32.mxu0 0.0
      %6011 = vmatmul.mubr.f32.gmra.mxu0 %v5841
      %v6012 = vpop.f32.mrf.mxu0
      %v6013 = vadd.f32 0.0, %v6012
      %v6014 = vpop.f32.mrf.mxu0
      %6015 = vmatprep.mubr.f32.mxu0 0.0
      %6016 = vmatmul.mubr.f32.gmra.mxu0 %v5844
      %v6017 = vpop.f32.mrf.mxu0
      %v6018 = vadd.f32 0.0, %v6017
      %v6019 = vpop.f32.mrf.mxu0
      %6020 = vmatprep.mubr.f32.mxu0 0.0
      %6021 = vmatmul.mubr.f32.gmra.mxu0 %v5847
      %v6022 = vpop.f32.mrf.mxu0
      %v6023 = vadd.f32 0.0, %v6022
      %v6024 = vpop.f32.mrf.mxu0
      %6025 = vmatprep.mubr.f32.mxu0 0.0
      %6026 = vmatmul.mubr.f32.gmra.mxu0 %v5850
      %v6027 = vpop.f32.mrf.mxu0
      %v6028 = vadd.f32 0.0, %v6027
      %v6029 = vpop.f32.mrf.mxu0
      %6030 = vmatprep.mubr.f32.mxu0 0.0
      %6031 = vmatmul.mubr.f32.gmra.mxu0 %v5853
      %v6032 = vpop.f32.mrf.mxu0
      %v6033 = vadd.f32 0.0, %v6032
      %v6034 = vpop.f32.mrf.mxu0
      %6035 = vmatprep.mubr.f32.mxu0 0.0
      %6036 = vmatmul.mubr.f32.gmra.mxu0 %v5856
      %v6037 = vpop.f32.mrf.mxu0
      %v6038 = vadd.f32 0.0, %v6037
      %v6039 = vpop.f32.mrf.mxu0
      %6040 = vmatprep.mubr.f32.mxu0 0.0
      %6041 = vmatmul.mubr.f32.gmra.mxu0 %v5859
      %v6042 = vpop.f32.mrf.mxu0
      %v6043 = vadd.f32 0.0, %v6042
      %v6044 = vpop.f32.mrf.mxu0
      %6045 = vmatprep.mubr.f32.mxu0 0.0
      %6046 = vmatmul.mubr.f32.gmra.mxu0 %v5862
      %v6047 = vpop.f32.mrf.mxu0
      %v6048 = vadd.f32 0.0, %v6047
      %v6049 = vpop.f32.mrf.mxu0
      %6050 = vmatprep.mubr.f32.mxu0 0.0
      %6051 = vmatmul.mubr.f32.gmra.mxu0 %v5865
      %v6052 = vpop.f32.mrf.mxu0
      %v6053 = vadd.f32 0.0, %v6052
      %v6054 = vpop.f32.mrf.mxu0
      %6055 = vmatprep.mubr.f32.mxu0 0.0
      %6056 = vmatmul.mubr.f32.gmra.mxu0 %v5868
      %v6057 = vpop.f32.mrf.mxu0
      %v6058 = vadd.f32 0.0, %v6057
      %v6059 = vpop.f32.mrf.mxu0
      %6060 = vmatprep.mubr.f32.mxu0 0.0
      %6061 = vmatmul.mubr.f32.gmra.mxu0 %v5871
      %v6062 = vpop.f32.mrf.mxu0
      %v6063 = vadd.f32 0.0, %v6062
      %v6064 = vpop.f32.mrf.mxu0
      %6065 = vmatprep.mubr.f32.mxu0 0.0
      %6066 = vmatmul.mubr.f32.gmra.mxu0 %v5874
      %v6067 = vpop.f32.mrf.mxu0
      %v6068 = vadd.f32 0.0, %v6067
      %v6069 = vpop.f32.mrf.mxu0
      %6070 = vmatprep.mubr.f32.mxu0 0.0
      %6071 = vmatmul.mubr.f32.gmra.mxu0 %v5877
      %v6072 = vpop.f32.mrf.mxu0
      %v6073 = vadd.f32 0.0, %v6072
      %v6074 = vpop.f32.mrf.mxu0
      %6075 = vmatprep.mubr.f32.mxu0 0.0
      %6076 = vmatmul.mubr.f32.gmra.mxu0 %v5880
      %v6077 = vpop.f32.mrf.mxu0
      %v6078 = vadd.f32 0.0, %v6077
      %v6079 = vpop.f32.mrf.mxu0
      %6080 = vmatprep.mubr.f32.mxu0 0.0
      %6081 = vmatmul.mubr.f32.gmra.mxu0 %v5883
      %v6082 = vpop.f32.mrf.mxu0
      %v6083 = vadd.f32 0.0, %v6082
      %v6084 = vpop.f32.mrf.mxu0
      %6085 = vmatprep.mubr.f32.mxu0 0.0
      %6086 = vmatmul.mubr.f32.gmra.mxu0 %v5886
      %v6087 = vpop.f32.mrf.mxu0
      %v6088 = vadd.f32 0.0, %v6087
      %v6089 = vpop.f32.mrf.mxu0
      %6090 = vmatprep.mubr.f32.mxu0 0.0
      %6091 = vmatmul.mubr.f32.gmra.mxu0 %v5889
      %v6092 = vpop.f32.mrf.mxu0
      %v6093 = vadd.f32 0.0, %v6092
      %v6094 = vpop.f32.mrf.mxu0
      %6095 = vmatprep.mubr.f32.mxu0 0.0
      %6096 = vmatmul.mubr.f32.gmra.mxu0 %v5892
      %v6097 = vpop.f32.mrf.mxu0
      %v6098 = vadd.f32 0.0, %v6097
      %v6099 = vpop.f32.mrf.mxu0
      %6100 = vmatprep.mubr.f32.mxu0 0.0
      %6101 = vmatmul.mubr.f32.gmra.mxu0 %v5895
      %v6102 = vpop.f32.mrf.mxu0
      %v6103 = vadd.f32 0.0, %v6102
      %v6104 = vpop.f32.mrf.mxu0
      %6105 = vmatprep.mubr.f32.mxu0 0.0
      %6106 = vmatmul.mubr.f32.gmra.mxu0 %v5898
      %v6107 = vpop.f32.mrf.mxu0
      %v6108 = vadd.f32 0.0, %v6107
      %v6109 = vpop.f32.mrf.mxu0
      %6110 = vmatprep.mubr.f32.mxu0 0.0
      %6111 = vmatmul.mubr.f32.gmra.mxu0 %v5901
      %v6112 = vpop.f32.mrf.mxu0
      %v6113 = vadd.f32 0.0, %v6112
      %v6114 = vpop.f32.mrf.mxu0
      %6115 = vmatprep.mubr.f32.mxu0 0.0
      %6116 = vmatmul.mubr.f32.gmra.mxu0 %v5904
      %v6117 = vpop.f32.mrf.mxu0
      %v6118 = vadd.f32 0.0, %v6117
      %v6119 = vpop.f32.mrf.mxu0
      %6120 = vmatprep.mubr.f32.mxu0 0.0
      %6121 = vmatmul.mubr.f32.gmra.mxu0 %v5907
      %v6122 = vpop.f32.mrf.mxu0
      %v6123 = vadd.f32 0.0, %v6122
      %v6124 = vpop.f32.mrf.mxu0
      %6125 = vmatprep.mubr.f32.mxu0 0.0
      %6126 = vmatmul.mubr.f32.gmra.mxu0 %v5910
      %v6127 = vpop.f32.mrf.mxu0
      %v6128 = vadd.f32 0.0, %v6127
      %v6129 = vpop.f32.mrf.mxu0
      %6130 = vmatprep.mubr.f32.mxu0 0.0
      %6131 = vmatmul.mubr.f32.gmra.mxu0 %v5913
      %v6132 = vpop.f32.mrf.mxu0
      %v6133 = vadd.f32 0.0, %v6132
      %v6134 = vpop.f32.mrf.mxu0
      %6135 = vmatprep.mubr.f32.mxu0 0.0
      %6136 = vmatmul.mubr.f32.gmra.mxu0 %v5916
      %v6137 = vpop.f32.mrf.mxu0
      %v6138 = vadd.f32 0.0, %v6137
      %v6139 = vpop.f32.mrf.mxu0
      %6140 = vmatprep.mubr.f32.mxu0 0.0
      %6141 = vmatmul.mubr.f32.gmra.mxu0 %v5919
      %v6142 = vpop.f32.mrf.mxu0
      %v6143 = vadd.f32 0.0, %v6142
      %v6144 = vpop.f32.mrf.mxu0
      %6145 = vdwg.mxu0
      %v6146 = vadd.f32 %v5759, %v5988
      %v6147 = vadd.f32 %v5760, %v5993
      %v6148 = vadd.f32 %v5761, %v5998
      %v6149 = vadd.f32 %v5762, %v6003
      %v6150 = vadd.f32 %v5763, %v6008
      %v6151 = vadd.f32 %v5764, %v6013
      %v6152 = vadd.f32 %v5765, %v6018
      %v6153 = vadd.f32 %v5766, %v6023
      %v6154 = vadd.f32 %v5767, %v6028
      %v6155 = vadd.f32 %v5768, %v6033
      %v6156 = vadd.f32 %v5769, %v6038
      %v6157 = vadd.f32 %v5770, %v6043
      %v6158 = vadd.f32 %v5771, %v6048
      %v6159 = vadd.f32 %v5772, %v6053
      %v6160 = vadd.f32 %v5773, %v6058
      %v6161 = vadd.f32 %v5774, %v6063
      %v6162 = vadd.f32 %v5775, %v6068
      %v6163 = vadd.f32 %v5776, %v6073
      %v6164 = vadd.f32 %v5777, %v6078
      %v6165 = vadd.f32 %v5778, %v6083
      %v6166 = vadd.f32 %v5779, %v6088
      %v6167 = vadd.f32 %v5780, %v6093
      %v6168 = vadd.f32 %v5781, %v6098
      %v6169 = vadd.f32 %v5782, %v6103
      %v6170 = vadd.f32 %v5783, %v6108
      %v6171 = vadd.f32 %v5784, %v6113
      %v6172 = vadd.f32 %v5785, %v6118
      %v6173 = vadd.f32 %v5786, %v6123
      %v6174 = vadd.f32 %v5787, %v6128
      %v6175 = vadd.f32 %v5788, %v6133
      %v6176 = vadd.f32 %v5789, %v6138
      %v6177 = vadd.f32 %v5790, %v6143
      %s6178 = scalar_lea.vmem [#allocation3], 48
      %v6179 = vld [vmem:[%s6178] sm:$0xff]
      %v6180 = vld [vmem:[%s6178 + $0x8] sm:$0xff]
      %v6181 = vld [vmem:[%s6178 + $0x18] sm:$0xff]
      %v6182 = vld [vmem:[%s6178 + $0x20] sm:$0xff]
      %v6183 = vld [vmem:[%s6178 + $0x30] sm:$0xff]
      %v6184 = vld [vmem:[%s6178 + $0x38] sm:$0xff]
      %v6185 = vld [vmem:[%s6178 + $0x48] sm:$0xff]
      %v6186 = vld [vmem:[%s6178 + $0x50] sm:$0xff]
      %v6187 = vld [vmem:[%s6178 + $0x60] sm:$0xff]
      %v6188 = vld [vmem:[%s6178 + $0x68] sm:$0xff]
      %v6189 = vld [vmem:[%s6178 + $0x78] sm:$0xff]
      %v6190 = vld [vmem:[%s6178 + $0x80] sm:$0xff]
      %v6191 = vld [vmem:[%s6178 + $0x90] sm:$0xff]
      %v6192 = vld [vmem:[%s6178 + $0x98] sm:$0xff]
      %v6193 = vld [vmem:[%s6178 + $0xa8] sm:$0xff]
      %v6194 = vld [vmem:[%s6178 + $0xb0] sm:$0xff]
      %v6195 = vld [vmem:[%s6178 + $0xc0] sm:$0xff]
      %v6196 = vld [vmem:[%s6178 + $0xc8] sm:$0xff]
      %v6197 = vld [vmem:[%s6178 + $0xd8] sm:$0xff]
      %v6198 = vld [vmem:[%s6178 + $0xe0] sm:$0xff]
      %v6199 = vld [vmem:[%s6178 + $0xf0] sm:$0xff]
      %v6200 = vld [vmem:[%s6178 + $0xf8] sm:$0xff]
      %v6201 = vld [vmem:[%s6178 + $0x108] sm:$0xff]
      %v6202 = vld [vmem:[%s6178 + $0x110] sm:$0xff]
      %v6203 = vld [vmem:[%s6178 + $0x120] sm:$0xff]
      %v6204 = vld [vmem:[%s6178 + $0x128] sm:$0xff]
      %v6205 = vld [vmem:[%s6178 + $0x138] sm:$0xff]
      %v6206 = vld [vmem:[%s6178 + $0x140] sm:$0xff]
      %v6207 = vld [vmem:[%s6178 + $0x150] sm:$0xff]
      %v6208 = vld [vmem:[%s6178 + $0x158] sm:$0xff]
      %v6209 = vld [vmem:[%s6178 + $0x168] sm:$0xff]
      %v6210 = vld [vmem:[%s6178 + $0x170] sm:$0xff]
      %s6211 = scalar_lea.vmem %s3, 48
      %v6212 = vld [vmem:[%s6211] sm:$0xff]
      %v6214 = vsel %vm3832, %v6179, 0
      %v6217 = vsel %vm3832, %v6180, 0
      %v6220 = vsel %vm3832, %v6181, 0
      %v6223 = vsel %vm3832, %v6182, 0
      %v6226 = vsel %vm3832, %v6183, 0
      %v6229 = vsel %vm3832, %v6184, 0
      %v6232 = vsel %vm3832, %v6185, 0
      %v6235 = vsel %vm3832, %v6186, 0
      %v6238 = vsel %vm3832, %v6187, 0
      %v6241 = vsel %vm3832, %v6188, 0
      %v6244 = vsel %vm3832, %v6189, 0
      %v6247 = vsel %vm3832, %v6190, 0
      %v6250 = vsel %vm3832, %v6191, 0
      %v6253 = vsel %vm3832, %v6192, 0
      %v6256 = vsel %vm3832, %v6193, 0
      %v6259 = vsel %vm3832, %v6194, 0
      %v6262 = vsel %vm3832, %v6195, 0
      %v6265 = vsel %vm3832, %v6196, 0
      %v6268 = vsel %vm3832, %v6197, 0
      %v6271 = vsel %vm3832, %v6198, 0
      %v6274 = vsel %vm3832, %v6199, 0
      %v6277 = vsel %vm3832, %v6200, 0
      %v6280 = vsel %vm3832, %v6201, 0
      %v6283 = vsel %vm3832, %v6202, 0
      %v6286 = vsel %vm3832, %v6203, 0
      %v6289 = vsel %vm3832, %v6204, 0
      %v6292 = vsel %vm3832, %v6205, 0
      %v6295 = vsel %vm3832, %v6206, 0
      %v6298 = vsel %vm3832, %v6207, 0
      %v6301 = vsel %vm3832, %v6208, 0
      %v6304 = vsel %vm3832, %v6209, 0
      %v6307 = vsel %vm3832, %v6210, 0
      %6309 = vmatprep.subr.mxu0 0.0
      %6310 = vmatpush1.msra.mxu0 0.0
      %6311 = vmatprep.subr.mxu0 0.0
      %6312 = vmatpush1.msra.mxu0 0.0
      %6313 = vmatprep.subr.mxu0 0.0
      %6314 = vmatpush1.msra.mxu0 0.0
      %6315 = vmatprep.subr.mxu0 0.0
      %6316 = vmatpush1.msra.mxu0 0.0
      %6317 = vmatprep.subr.mxu0 0.0
      %6318 = vmatpush1.msra.mxu0 0.0
      %6319 = vmatprep.subr.mxu0 0.0
      %6320 = vmatpush1.msra.mxu0 0.0
      %6321 = vmatprep.subr.mxu0 0.0
      %6322 = vmatpush1.msra.mxu0 0.0
      %6323 = vmatprep.subr.mxu0 0.0
      %6324 = vmatpush1.msra.mxu0 0.0
      %6325 = vmatprep.subr.mxu0 0.0
      %6326 = vmatpush1.msra.mxu0 0.0
      %6327 = vmatprep.subr.mxu0 0.0
      %6328 = vmatpush1.msra.mxu0 0.0
      %6329 = vmatprep.subr.mxu0 0.0
      %6330 = vmatpush1.msra.mxu0 0.0
      %6331 = vmatprep.subr.mxu0 0.0
      %6332 = vmatpush1.msra.mxu0 0.0
      %6333 = vmatprep.subr.mxu0 0.0
      %6334 = vmatpush1.msra.mxu0 0.0
      %6335 = vmatprep.subr.mxu0 0.0
      %6336 = vmatpush1.msra.mxu0 0.0
      %6337 = vmatprep.subr.mxu0 0.0
      %6338 = vmatpush1.msra.mxu0 0.0
      %6339 = vmatprep.subr.mxu0 0.0
      %6340 = vmatpush1.msra.mxu0 %v6212
      %6341 = vmatprep.subr.mxu0 0.0
      %6342 = vmatpush2.msra.mxu0 0.0
      %6343 = vmatprep.subr.mxu0 0.0
      %6344 = vmatpush2.msra.mxu0 0.0
      %6345 = vmatprep.subr.mxu0 0.0
      %6346 = vmatpush2.msra.mxu0 0.0
      %6347 = vmatprep.subr.mxu0 0.0
      %6348 = vmatpush2.msra.mxu0 0.0
      %6349 = vmatprep.subr.mxu0 0.0
      %6350 = vmatpush2.msra.mxu0 0.0
      %6351 = vmatprep.subr.mxu0 0.0
      %6352 = vmatpush2.msra.mxu0 0.0
      %6353 = vmatprep.subr.mxu0 0.0
      %6354 = vmatpush2.msra.mxu0 0.0
      %6355 = vmatprep.subr.mxu0 0.0
      %6356 = vmatpush2.msra.mxu0 0.0
      %6357 = vmatprep.subr.mxu0 0.0
      %6358 = vmatpush2.msra.mxu0 0.0
      %6359 = vmatprep.subr.mxu0 0.0
      %6360 = vmatpush2.msra.mxu0 0.0
      %6361 = vmatprep.subr.mxu0 0.0
      %6362 = vmatpush2.msra.mxu0 0.0
      %6363 = vmatprep.subr.mxu0 0.0
      %6364 = vmatpush2.msra.mxu0 0.0
      %6365 = vmatprep.subr.mxu0 0.0
      %6366 = vmatpush2.msra.mxu0 0.0
      %6367 = vmatprep.subr.mxu0 0.0
      %6368 = vmatpush2.msra.mxu0 0.0
      %6369 = vmatprep.subr.mxu0 0.0
      %6370 = vmatpush2.msra.mxu0 0.0
      %6371 = vmatprep.subr.mxu0 0.0
      %6372 = vmatpush2.msra.mxu0 0.0
      %6373 = vmatprep.mubr.f32.mxu0 0.0
      %6374 = vmatmul.mubr.f32.gmra.mxu0 %v6214
      %v6375 = vpop.f32.mrf.mxu0
      %v6376 = vadd.f32 0.0, %v6375
      %v6377 = vpop.f32.mrf.mxu0
      %6378 = vmatprep.mubr.f32.mxu0 0.0
      %6379 = vmatmul.mubr.f32.gmra.mxu0 %v6217
      %v6380 = vpop.f32.mrf.mxu0
      %v6381 = vadd.f32 0.0, %v6380
      %v6382 = vpop.f32.mrf.mxu0
      %6383 = vmatprep.mubr.f32.mxu0 0.0
      %6384 = vmatmul.mubr.f32.gmra.mxu0 %v6220
      %v6385 = vpop.f32.mrf.mxu0
      %v6386 = vadd.f32 0.0, %v6385
      %v6387 = vpop.f32.mrf.mxu0
      %6388 = vmatprep.mubr.f32.mxu0 0.0
      %6389 = vmatmul.mubr.f32.gmra.mxu0 %v6223
      %v6390 = vpop.f32.mrf.mxu0
      %v6391 = vadd.f32 0.0, %v6390
      %v6392 = vpop.f32.mrf.mxu0
      %6393 = vmatprep.mubr.f32.mxu0 0.0
      %6394 = vmatmul.mubr.f32.gmra.mxu0 %v6226
      %v6395 = vpop.f32.mrf.mxu0
      %v6396 = vadd.f32 0.0, %v6395
      %v6397 = vpop.f32.mrf.mxu0
      %6398 = vmatprep.mubr.f32.mxu0 0.0
      %6399 = vmatmul.mubr.f32.gmra.mxu0 %v6229
      %v6400 = vpop.f32.mrf.mxu0
      %v6401 = vadd.f32 0.0, %v6400
      %v6402 = vpop.f32.mrf.mxu0
      %6403 = vmatprep.mubr.f32.mxu0 0.0
      %6404 = vmatmul.mubr.f32.gmra.mxu0 %v6232
      %v6405 = vpop.f32.mrf.mxu0
      %v6406 = vadd.f32 0.0, %v6405
      %v6407 = vpop.f32.mrf.mxu0
      %6408 = vmatprep.mubr.f32.mxu0 0.0
      %6409 = vmatmul.mubr.f32.gmra.mxu0 %v6235
      %v6410 = vpop.f32.mrf.mxu0
      %v6411 = vadd.f32 0.0, %v6410
      %v6412 = vpop.f32.mrf.mxu0
      %6413 = vmatprep.mubr.f32.mxu0 0.0
      %6414 = vmatmul.mubr.f32.gmra.mxu0 %v6238
      %v6415 = vpop.f32.mrf.mxu0
      %v6416 = vadd.f32 0.0, %v6415
      %v6417 = vpop.f32.mrf.mxu0
      %6418 = vmatprep.mubr.f32.mxu0 0.0
      %6419 = vmatmul.mubr.f32.gmra.mxu0 %v6241
      %v6420 = vpop.f32.mrf.mxu0
      %v6421 = vadd.f32 0.0, %v6420
      %v6422 = vpop.f32.mrf.mxu0
      %6423 = vmatprep.mubr.f32.mxu0 0.0
      %6424 = vmatmul.mubr.f32.gmra.mxu0 %v6244
      %v6425 = vpop.f32.mrf.mxu0
      %v6426 = vadd.f32 0.0, %v6425
      %v6427 = vpop.f32.mrf.mxu0
      %6428 = vmatprep.mubr.f32.mxu0 0.0
      %6429 = vmatmul.mubr.f32.gmra.mxu0 %v6247
      %v6430 = vpop.f32.mrf.mxu0
      %v6431 = vadd.f32 0.0, %v6430
      %v6432 = vpop.f32.mrf.mxu0
      %6433 = vmatprep.mubr.f32.mxu0 0.0
      %6434 = vmatmul.mubr.f32.gmra.mxu0 %v6250
      %v6435 = vpop.f32.mrf.mxu0
      %v6436 = vadd.f32 0.0, %v6435
      %v6437 = vpop.f32.mrf.mxu0
      %6438 = vmatprep.mubr.f32.mxu0 0.0
      %6439 = vmatmul.mubr.f32.gmra.mxu0 %v6253
      %v6440 = vpop.f32.mrf.mxu0
      %v6441 = vadd.f32 0.0, %v6440
      %v6442 = vpop.f32.mrf.mxu0
      %6443 = vmatprep.mubr.f32.mxu0 0.0
      %6444 = vmatmul.mubr.f32.gmra.mxu0 %v6256
      %v6445 = vpop.f32.mrf.mxu0
      %v6446 = vadd.f32 0.0, %v6445
      %v6447 = vpop.f32.mrf.mxu0
      %6448 = vmatprep.mubr.f32.mxu0 0.0
      %6449 = vmatmul.mubr.f32.gmra.mxu0 %v6259
      %v6450 = vpop.f32.mrf.mxu0
      %v6451 = vadd.f32 0.0, %v6450
      %v6452 = vpop.f32.mrf.mxu0
      %6453 = vmatprep.mubr.f32.mxu0 0.0
      %6454 = vmatmul.mubr.f32.gmra.mxu0 %v6262
      %v6455 = vpop.f32.mrf.mxu0
      %v6456 = vadd.f32 0.0, %v6455
      %v6457 = vpop.f32.mrf.mxu0
      %6458 = vmatprep.mubr.f32.mxu0 0.0
      %6459 = vmatmul.mubr.f32.gmra.mxu0 %v6265
      %v6460 = vpop.f32.mrf.mxu0
      %v6461 = vadd.f32 0.0, %v6460
      %v6462 = vpop.f32.mrf.mxu0
      %6463 = vmatprep.mubr.f32.mxu0 0.0
      %6464 = vmatmul.mubr.f32.gmra.mxu0 %v6268
      %v6465 = vpop.f32.mrf.mxu0
      %v6466 = vadd.f32 0.0, %v6465
      %v6467 = vpop.f32.mrf.mxu0
      %6468 = vmatprep.mubr.f32.mxu0 0.0
      %6469 = vmatmul.mubr.f32.gmra.mxu0 %v6271
      %v6470 = vpop.f32.mrf.mxu0
      %v6471 = vadd.f32 0.0, %v6470
      %v6472 = vpop.f32.mrf.mxu0
      %6473 = vmatprep.mubr.f32.mxu0 0.0
      %6474 = vmatmul.mubr.f32.gmra.mxu0 %v6274
      %v6475 = vpop.f32.mrf.mxu0
      %v6476 = vadd.f32 0.0, %v6475
      %v6477 = vpop.f32.mrf.mxu0
      %6478 = vmatprep.mubr.f32.mxu0 0.0
      %6479 = vmatmul.mubr.f32.gmra.mxu0 %v6277
      %v6480 = vpop.f32.mrf.mxu0
      %v6481 = vadd.f32 0.0, %v6480
      %v6482 = vpop.f32.mrf.mxu0
      %6483 = vmatprep.mubr.f32.mxu0 0.0
      %6484 = vmatmul.mubr.f32.gmra.mxu0 %v6280
      %v6485 = vpop.f32.mrf.mxu0
      %v6486 = vadd.f32 0.0, %v6485
      %v6487 = vpop.f32.mrf.mxu0
      %6488 = vmatprep.mubr.f32.mxu0 0.0
      %6489 = vmatmul.mubr.f32.gmra.mxu0 %v6283
      %v6490 = vpop.f32.mrf.mxu0
      %v6491 = vadd.f32 0.0, %v6490
      %v6492 = vpop.f32.mrf.mxu0
      %6493 = vmatprep.mubr.f32.mxu0 0.0
      %6494 = vmatmul.mubr.f32.gmra.mxu0 %v6286
      %v6495 = vpop.f32.mrf.mxu0
      %v6496 = vadd.f32 0.0, %v6495
      %v6497 = vpop.f32.mrf.mxu0
      %6498 = vmatprep.mubr.f32.mxu0 0.0
      %6499 = vmatmul.mubr.f32.gmra.mxu0 %v6289
      %v6500 = vpop.f32.mrf.mxu0
      %v6501 = vadd.f32 0.0, %v6500
      %v6502 = vpop.f32.mrf.mxu0
      %6503 = vmatprep.mubr.f32.mxu0 0.0
      %6504 = vmatmul.mubr.f32.gmra.mxu0 %v6292
      %v6505 = vpop.f32.mrf.mxu0
      %v6506 = vadd.f32 0.0, %v6505
      %v6507 = vpop.f32.mrf.mxu0
      %6508 = vmatprep.mubr.f32.mxu0 0.0
      %6509 = vmatmul.mubr.f32.gmra.mxu0 %v6295
      %v6510 = vpop.f32.mrf.mxu0
      %v6511 = vadd.f32 0.0, %v6510
      %v6512 = vpop.f32.mrf.mxu0
      %6513 = vmatprep.mubr.f32.mxu0 0.0
      %6514 = vmatmul.mubr.f32.gmra.mxu0 %v6298
      %v6515 = vpop.f32.mrf.mxu0
      %v6516 = vadd.f32 0.0, %v6515
      %v6517 = vpop.f32.mrf.mxu0
      %6518 = vmatprep.mubr.f32.mxu0 0.0
      %6519 = vmatmul.mubr.f32.gmra.mxu0 %v6301
      %v6520 = vpop.f32.mrf.mxu0
      %v6521 = vadd.f32 0.0, %v6520
      %v6522 = vpop.f32.mrf.mxu0
      %6523 = vmatprep.mubr.f32.mxu0 0.0
      %6524 = vmatmul.mubr.f32.gmra.mxu0 %v6304
      %v6525 = vpop.f32.mrf.mxu0
      %v6526 = vadd.f32 0.0, %v6525
      %v6527 = vpop.f32.mrf.mxu0
      %6528 = vmatprep.mubr.f32.mxu0 0.0
      %6529 = vmatmul.mubr.f32.gmra.mxu0 %v6307
      %v6530 = vpop.f32.mrf.mxu0
      %v6531 = vadd.f32 0.0, %v6530
      %v6532 = vpop.f32.mrf.mxu0
      %6533 = vdwg.mxu0
      %v6534 = vadd.f32 %v6146, %v6376
      %v6535 = vadd.f32 %v6147, %v6381
      %v6536 = vadd.f32 %v6148, %v6386
      %v6537 = vadd.f32 %v6149, %v6391
      %v6538 = vadd.f32 %v6150, %v6396
      %v6539 = vadd.f32 %v6151, %v6401
      %v6540 = vadd.f32 %v6152, %v6406
      %v6541 = vadd.f32 %v6153, %v6411
      %v6542 = vadd.f32 %v6154, %v6416
      %v6543 = vadd.f32 %v6155, %v6421
      %v6544 = vadd.f32 %v6156, %v6426
      %v6545 = vadd.f32 %v6157, %v6431
      %v6546 = vadd.f32 %v6158, %v6436
      %v6547 = vadd.f32 %v6159, %v6441
      %v6548 = vadd.f32 %v6160, %v6446
      %v6549 = vadd.f32 %v6161, %v6451
      %v6550 = vadd.f32 %v6162, %v6456
      %v6551 = vadd.f32 %v6163, %v6461
      %v6552 = vadd.f32 %v6164, %v6466
      %v6553 = vadd.f32 %v6165, %v6471
      %v6554 = vadd.f32 %v6166, %v6476
      %v6555 = vadd.f32 %v6167, %v6481
      %v6556 = vadd.f32 %v6168, %v6486
      %v6557 = vadd.f32 %v6169, %v6491
      %v6558 = vadd.f32 %v6170, %v6496
      %v6559 = vadd.f32 %v6171, %v6501
      %v6560 = vadd.f32 %v6172, %v6506
      %v6561 = vadd.f32 %v6173, %v6511
      %v6562 = vadd.f32 %v6174, %v6516
      %v6563 = vadd.f32 %v6175, %v6521
      %v6564 = vadd.f32 %v6176, %v6526
      %v6565 = vadd.f32 %v6177, %v6531
      %v6566 = vld [vmem:[%s6178 + $0x1] sm:$0xff]
      %v6567 = vld [vmem:[%s6178 + $0x9] sm:$0xff]
      %v6568 = vld [vmem:[%s6178 + $0x19] sm:$0xff]
      %v6569 = vld [vmem:[%s6178 + $0x21] sm:$0xff]
      %v6570 = vld [vmem:[%s6178 + $0x31] sm:$0xff]
      %v6571 = vld [vmem:[%s6178 + $0x39] sm:$0xff]
      %v6572 = vld [vmem:[%s6178 + $0x49] sm:$0xff]
      %v6573 = vld [vmem:[%s6178 + $0x51] sm:$0xff]
      %v6574 = vld [vmem:[%s6178 + $0x61] sm:$0xff]
      %v6575 = vld [vmem:[%s6178 + $0x69] sm:$0xff]
      %v6576 = vld [vmem:[%s6178 + $0x79] sm:$0xff]
      %v6577 = vld [vmem:[%s6178 + $0x81] sm:$0xff]
      %v6578 = vld [vmem:[%s6178 + $0x91] sm:$0xff]
      %v6579 = vld [vmem:[%s6178 + $0x99] sm:$0xff]
      %v6580 = vld [vmem:[%s6178 + $0xa9] sm:$0xff]
      %v6581 = vld [vmem:[%s6178 + $0xb1] sm:$0xff]
      %v6582 = vld [vmem:[%s6178 + $0xc1] sm:$0xff]
      %v6583 = vld [vmem:[%s6178 + $0xc9] sm:$0xff]
      %v6584 = vld [vmem:[%s6178 + $0xd9] sm:$0xff]
      %v6585 = vld [vmem:[%s6178 + $0xe1] sm:$0xff]
      %v6586 = vld [vmem:[%s6178 + $0xf1] sm:$0xff]
      %v6587 = vld [vmem:[%s6178 + $0xf9] sm:$0xff]
      %v6588 = vld [vmem:[%s6178 + $0x109] sm:$0xff]
      %v6589 = vld [vmem:[%s6178 + $0x111] sm:$0xff]
      %v6590 = vld [vmem:[%s6178 + $0x121] sm:$0xff]
      %v6591 = vld [vmem:[%s6178 + $0x129] sm:$0xff]
      %v6592 = vld [vmem:[%s6178 + $0x139] sm:$0xff]
      %v6593 = vld [vmem:[%s6178 + $0x141] sm:$0xff]
      %v6594 = vld [vmem:[%s6178 + $0x151] sm:$0xff]
      %v6595 = vld [vmem:[%s6178 + $0x159] sm:$0xff]
      %v6596 = vld [vmem:[%s6178 + $0x169] sm:$0xff]
      %v6597 = vld [vmem:[%s6178 + $0x171] sm:$0xff]
      %s6598 = scalar_lea.vmem %s3, 56
      %v6599 = vld [vmem:[%s6598] sm:$0xff]
      %v6601 = vsel %vm3832, %v6566, 0
      %v6604 = vsel %vm3832, %v6567, 0
      %v6607 = vsel %vm3832, %v6568, 0
      %v6610 = vsel %vm3832, %v6569, 0
      %v6613 = vsel %vm3832, %v6570, 0
      %v6616 = vsel %vm3832, %v6571, 0
      %v6619 = vsel %vm3832, %v6572, 0
      %v6622 = vsel %vm3832, %v6573, 0
      %v6625 = vsel %vm3832, %v6574, 0
      %v6628 = vsel %vm3832, %v6575, 0
      %v6631 = vsel %vm3832, %v6576, 0
      %v6634 = vsel %vm3832, %v6577, 0
      %v6637 = vsel %vm3832, %v6578, 0
      %v6640 = vsel %vm3832, %v6579, 0
      %v6643 = vsel %vm3832, %v6580, 0
      %v6646 = vsel %vm3832, %v6581, 0
      %v6649 = vsel %vm3832, %v6582, 0
      %v6652 = vsel %vm3832, %v6583, 0
      %v6655 = vsel %vm3832, %v6584, 0
      %v6658 = vsel %vm3832, %v6585, 0
      %v6661 = vsel %vm3832, %v6586, 0
      %v6664 = vsel %vm3832, %v6587, 0
      %v6667 = vsel %vm3832, %v6588, 0
      %v6670 = vsel %vm3832, %v6589, 0
      %v6673 = vsel %vm3832, %v6590, 0
      %v6676 = vsel %vm3832, %v6591, 0
      %v6679 = vsel %vm3832, %v6592, 0
      %v6682 = vsel %vm3832, %v6593, 0
      %v6685 = vsel %vm3832, %v6594, 0
      %v6688 = vsel %vm3832, %v6595, 0
      %v6691 = vsel %vm3832, %v6596, 0
      %v6694 = vsel %vm3832, %v6597, 0
      %6696 = vmatprep.subr.mxu0 0.0
      %6697 = vmatpush1.msra.mxu0 0.0
      %6698 = vmatprep.subr.mxu0 0.0
      %6699 = vmatpush1.msra.mxu0 0.0
      %6700 = vmatprep.subr.mxu0 0.0
      %6701 = vmatpush1.msra.mxu0 0.0
      %6702 = vmatprep.subr.mxu0 0.0
      %6703 = vmatpush1.msra.mxu0 0.0
      %6704 = vmatprep.subr.mxu0 0.0
      %6705 = vmatpush1.msra.mxu0 0.0
      %6706 = vmatprep.subr.mxu0 0.0
      %6707 = vmatpush1.msra.mxu0 0.0
      %6708 = vmatprep.subr.mxu0 0.0
      %6709 = vmatpush1.msra.mxu0 0.0
      %6710 = vmatprep.subr.mxu0 0.0
      %6711 = vmatpush1.msra.mxu0 0.0
      %6712 = vmatprep.subr.mxu0 0.0
      %6713 = vmatpush1.msra.mxu0 0.0
      %6714 = vmatprep.subr.mxu0 0.0
      %6715 = vmatpush1.msra.mxu0 0.0
      %6716 = vmatprep.subr.mxu0 0.0
      %6717 = vmatpush1.msra.mxu0 0.0
      %6718 = vmatprep.subr.mxu0 0.0
      %6719 = vmatpush1.msra.mxu0 0.0
      %6720 = vmatprep.subr.mxu0 0.0
      %6721 = vmatpush1.msra.mxu0 0.0
      %6722 = vmatprep.subr.mxu0 0.0
      %6723 = vmatpush1.msra.mxu0 0.0
      %6724 = vmatprep.subr.mxu0 0.0
      %6725 = vmatpush1.msra.mxu0 0.0
      %6726 = vmatprep.subr.mxu0 0.0
      %6727 = vmatpush1.msra.mxu0 %v6599
      %6728 = vmatprep.subr.mxu0 0.0
      %6729 = vmatpush2.msra.mxu0 0.0
      %6730 = vmatprep.subr.mxu0 0.0
      %6731 = vmatpush2.msra.mxu0 0.0
      %6732 = vmatprep.subr.mxu0 0.0
      %6733 = vmatpush2.msra.mxu0 0.0
      %6734 = vmatprep.subr.mxu0 0.0
      %6735 = vmatpush2.msra.mxu0 0.0
      %6736 = vmatprep.subr.mxu0 0.0
      %6737 = vmatpush2.msra.mxu0 0.0
      %6738 = vmatprep.subr.mxu0 0.0
      %6739 = vmatpush2.msra.mxu0 0.0
      %6740 = vmatprep.subr.mxu0 0.0
      %6741 = vmatpush2.msra.mxu0 0.0
      %6742 = vmatprep.subr.mxu0 0.0
      %6743 = vmatpush2.msra.mxu0 0.0
      %6744 = vmatprep.subr.mxu0 0.0
      %6745 = vmatpush2.msra.mxu0 0.0
      %6746 = vmatprep.subr.mxu0 0.0
      %6747 = vmatpush2.msra.mxu0 0.0
      %6748 = vmatprep.subr.mxu0 0.0
      %6749 = vmatpush2.msra.mxu0 0.0
      %6750 = vmatprep.subr.mxu0 0.0
      %6751 = vmatpush2.msra.mxu0 0.0
      %6752 = vmatprep.subr.mxu0 0.0
      %6753 = vmatpush2.msra.mxu0 0.0
      %6754 = vmatprep.subr.mxu0 0.0
      %6755 = vmatpush2.msra.mxu0 0.0
      %6756 = vmatprep.subr.mxu0 0.0
      %6757 = vmatpush2.msra.mxu0 0.0
      %6758 = vmatprep.subr.mxu0 0.0
      %6759 = vmatpush2.msra.mxu0 0.0
      %6760 = vmatprep.mubr.f32.mxu0 0.0
      %6761 = vmatmul.mubr.f32.gmra.mxu0 %v6601
      %v6762 = vpop.f32.mrf.mxu0
      %v6763 = vadd.f32 0.0, %v6762
      %v6764 = vpop.f32.mrf.mxu0
      %6765 = vmatprep.mubr.f32.mxu0 0.0
      %6766 = vmatmul.mubr.f32.gmra.mxu0 %v6604
      %v6767 = vpop.f32.mrf.mxu0
      %v6768 = vadd.f32 0.0, %v6767
      %v6769 = vpop.f32.mrf.mxu0
      %6770 = vmatprep.mubr.f32.mxu0 0.0
      %6771 = vmatmul.mubr.f32.gmra.mxu0 %v6607
      %v6772 = vpop.f32.mrf.mxu0
      %v6773 = vadd.f32 0.0, %v6772
      %v6774 = vpop.f32.mrf.mxu0
      %6775 = vmatprep.mubr.f32.mxu0 0.0
      %6776 = vmatmul.mubr.f32.gmra.mxu0 %v6610
      %v6777 = vpop.f32.mrf.mxu0
      %v6778 = vadd.f32 0.0, %v6777
      %v6779 = vpop.f32.mrf.mxu0
      %6780 = vmatprep.mubr.f32.mxu0 0.0
      %6781 = vmatmul.mubr.f32.gmra.mxu0 %v6613
      %v6782 = vpop.f32.mrf.mxu0
      %v6783 = vadd.f32 0.0, %v6782
      %v6784 = vpop.f32.mrf.mxu0
      %6785 = vmatprep.mubr.f32.mxu0 0.0
      %6786 = vmatmul.mubr.f32.gmra.mxu0 %v6616
      %v6787 = vpop.f32.mrf.mxu0
      %v6788 = vadd.f32 0.0, %v6787
      %v6789 = vpop.f32.mrf.mxu0
      %6790 = vmatprep.mubr.f32.mxu0 0.0
      %6791 = vmatmul.mubr.f32.gmra.mxu0 %v6619
      %v6792 = vpop.f32.mrf.mxu0
      %v6793 = vadd.f32 0.0, %v6792
      %v6794 = vpop.f32.mrf.mxu0
      %6795 = vmatprep.mubr.f32.mxu0 0.0
      %6796 = vmatmul.mubr.f32.gmra.mxu0 %v6622
      %v6797 = vpop.f32.mrf.mxu0
      %v6798 = vadd.f32 0.0, %v6797
      %v6799 = vpop.f32.mrf.mxu0
      %6800 = vmatprep.mubr.f32.mxu0 0.0
      %6801 = vmatmul.mubr.f32.gmra.mxu0 %v6625
      %v6802 = vpop.f32.mrf.mxu0
      %v6803 = vadd.f32 0.0, %v6802
      %v6804 = vpop.f32.mrf.mxu0
      %6805 = vmatprep.mubr.f32.mxu0 0.0
      %6806 = vmatmul.mubr.f32.gmra.mxu0 %v6628
      %v6807 = vpop.f32.mrf.mxu0
      %v6808 = vadd.f32 0.0, %v6807
      %v6809 = vpop.f32.mrf.mxu0
      %6810 = vmatprep.mubr.f32.mxu0 0.0
      %6811 = vmatmul.mubr.f32.gmra.mxu0 %v6631
      %v6812 = vpop.f32.mrf.mxu0
      %v6813 = vadd.f32 0.0, %v6812
      %v6814 = vpop.f32.mrf.mxu0
      %6815 = vmatprep.mubr.f32.mxu0 0.0
      %6816 = vmatmul.mubr.f32.gmra.mxu0 %v6634
      %v6817 = vpop.f32.mrf.mxu0
      %v6818 = vadd.f32 0.0, %v6817
      %v6819 = vpop.f32.mrf.mxu0
      %6820 = vmatprep.mubr.f32.mxu0 0.0
      %6821 = vmatmul.mubr.f32.gmra.mxu0 %v6637
      %v6822 = vpop.f32.mrf.mxu0
      %v6823 = vadd.f32 0.0, %v6822
      %v6824 = vpop.f32.mrf.mxu0
      %6825 = vmatprep.mubr.f32.mxu0 0.0
      %6826 = vmatmul.mubr.f32.gmra.mxu0 %v6640
      %v6827 = vpop.f32.mrf.mxu0
      %v6828 = vadd.f32 0.0, %v6827
      %v6829 = vpop.f32.mrf.mxu0
      %6830 = vmatprep.mubr.f32.mxu0 0.0
      %6831 = vmatmul.mubr.f32.gmra.mxu0 %v6643
      %v6832 = vpop.f32.mrf.mxu0
      %v6833 = vadd.f32 0.0, %v6832
      %v6834 = vpop.f32.mrf.mxu0
      %6835 = vmatprep.mubr.f32.mxu0 0.0
      %6836 = vmatmul.mubr.f32.gmra.mxu0 %v6646
      %v6837 = vpop.f32.mrf.mxu0
      %v6838 = vadd.f32 0.0, %v6837
      %v6839 = vpop.f32.mrf.mxu0
      %6840 = vmatprep.mubr.f32.mxu0 0.0
      %6841 = vmatmul.mubr.f32.gmra.mxu0 %v6649
      %v6842 = vpop.f32.mrf.mxu0
      %v6843 = vadd.f32 0.0, %v6842
      %v6844 = vpop.f32.mrf.mxu0
      %6845 = vmatprep.mubr.f32.mxu0 0.0
      %6846 = vmatmul.mubr.f32.gmra.mxu0 %v6652
      %v6847 = vpop.f32.mrf.mxu0
      %v6848 = vadd.f32 0.0, %v6847
      %v6849 = vpop.f32.mrf.mxu0
      %6850 = vmatprep.mubr.f32.mxu0 0.0
      %6851 = vmatmul.mubr.f32.gmra.mxu0 %v6655
      %v6852 = vpop.f32.mrf.mxu0
      %v6853 = vadd.f32 0.0, %v6852
      %v6854 = vpop.f32.mrf.mxu0
      %6855 = vmatprep.mubr.f32.mxu0 0.0
      %6856 = vmatmul.mubr.f32.gmra.mxu0 %v6658
      %v6857 = vpop.f32.mrf.mxu0
      %v6858 = vadd.f32 0.0, %v6857
      %v6859 = vpop.f32.mrf.mxu0
      %6860 = vmatprep.mubr.f32.mxu0 0.0
      %6861 = vmatmul.mubr.f32.gmra.mxu0 %v6661
      %v6862 = vpop.f32.mrf.mxu0
      %v6863 = vadd.f32 0.0, %v6862
      %v6864 = vpop.f32.mrf.mxu0
      %6865 = vmatprep.mubr.f32.mxu0 0.0
      %6866 = vmatmul.mubr.f32.gmra.mxu0 %v6664
      %v6867 = vpop.f32.mrf.mxu0
      %v6868 = vadd.f32 0.0, %v6867
      %v6869 = vpop.f32.mrf.mxu0
      %6870 = vmatprep.mubr.f32.mxu0 0.0
      %6871 = vmatmul.mubr.f32.gmra.mxu0 %v6667
      %v6872 = vpop.f32.mrf.mxu0
      %v6873 = vadd.f32 0.0, %v6872
      %v6874 = vpop.f32.mrf.mxu0
      %6875 = vmatprep.mubr.f32.mxu0 0.0
      %6876 = vmatmul.mubr.f32.gmra.mxu0 %v6670
      %v6877 = vpop.f32.mrf.mxu0
      %v6878 = vadd.f32 0.0, %v6877
      %v6879 = vpop.f32.mrf.mxu0
      %6880 = vmatprep.mubr.f32.mxu0 0.0
      %6881 = vmatmul.mubr.f32.gmra.mxu0 %v6673
      %v6882 = vpop.f32.mrf.mxu0
      %v6883 = vadd.f32 0.0, %v6882
      %v6884 = vpop.f32.mrf.mxu0
      %6885 = vmatprep.mubr.f32.mxu0 0.0
      %6886 = vmatmul.mubr.f32.gmra.mxu0 %v6676
      %v6887 = vpop.f32.mrf.mxu0
      %v6888 = vadd.f32 0.0, %v6887
      %v6889 = vpop.f32.mrf.mxu0
      %6890 = vmatprep.mubr.f32.mxu0 0.0
      %6891 = vmatmul.mubr.f32.gmra.mxu0 %v6679
      %v6892 = vpop.f32.mrf.mxu0
      %v6893 = vadd.f32 0.0, %v6892
      %v6894 = vpop.f32.mrf.mxu0
      %6895 = vmatprep.mubr.f32.mxu0 0.0
      %6896 = vmatmul.mubr.f32.gmra.mxu0 %v6682
      %v6897 = vpop.f32.mrf.mxu0
      %v6898 = vadd.f32 0.0, %v6897
      %v6899 = vpop.f32.mrf.mxu0
      %6900 = vmatprep.mubr.f32.mxu0 0.0
      %6901 = vmatmul.mubr.f32.gmra.mxu0 %v6685
      %v6902 = vpop.f32.mrf.mxu0
      %v6903 = vadd.f32 0.0, %v6902
      %v6904 = vpop.f32.mrf.mxu0
      %6905 = vmatprep.mubr.f32.mxu0 0.0
      %6906 = vmatmul.mubr.f32.gmra.mxu0 %v6688
      %v6907 = vpop.f32.mrf.mxu0
      %v6908 = vadd.f32 0.0, %v6907
      %v6909 = vpop.f32.mrf.mxu0
      %6910 = vmatprep.mubr.f32.mxu0 0.0
      %6911 = vmatmul.mubr.f32.gmra.mxu0 %v6691
      %v6912 = vpop.f32.mrf.mxu0
      %v6913 = vadd.f32 0.0, %v6912
      %v6914 = vpop.f32.mrf.mxu0
      %6915 = vmatprep.mubr.f32.mxu0 0.0
      %6916 = vmatmul.mubr.f32.gmra.mxu0 %v6694
      %v6917 = vpop.f32.mrf.mxu0
      %v6918 = vadd.f32 0.0, %v6917
      %v6919 = vpop.f32.mrf.mxu0
      %6920 = vdwg.mxu0
      %v6921 = vadd.f32 %v6534, %v6763
      %v6922 = vadd.f32 %v6535, %v6768
      %v6923 = vadd.f32 %v6536, %v6773
      %v6924 = vadd.f32 %v6537, %v6778
      %v6925 = vadd.f32 %v6538, %v6783
      %v6926 = vadd.f32 %v6539, %v6788
      %v6927 = vadd.f32 %v6540, %v6793
      %v6928 = vadd.f32 %v6541, %v6798
      %v6929 = vadd.f32 %v6542, %v6803
      %v6930 = vadd.f32 %v6543, %v6808
      %v6931 = vadd.f32 %v6544, %v6813
      %v6932 = vadd.f32 %v6545, %v6818
      %v6933 = vadd.f32 %v6546, %v6823
      %v6934 = vadd.f32 %v6547, %v6828
      %v6935 = vadd.f32 %v6548, %v6833
      %v6936 = vadd.f32 %v6549, %v6838
      %v6937 = vadd.f32 %v6550, %v6843
      %v6938 = vadd.f32 %v6551, %v6848
      %v6939 = vadd.f32 %v6552, %v6853
      %v6940 = vadd.f32 %v6553, %v6858
      %v6941 = vadd.f32 %v6554, %v6863
      %v6942 = vadd.f32 %v6555, %v6868
      %v6943 = vadd.f32 %v6556, %v6873
      %v6944 = vadd.f32 %v6557, %v6878
      %v6945 = vadd.f32 %v6558, %v6883
      %v6946 = vadd.f32 %v6559, %v6888
      %v6947 = vadd.f32 %v6560, %v6893
      %v6948 = vadd.f32 %v6561, %v6898
      %v6949 = vadd.f32 %v6562, %v6903
      %v6950 = vadd.f32 %v6563, %v6908
      %v6951 = vadd.f32 %v6564, %v6913
      %v6952 = vadd.f32 %v6565, %v6918
      %v6953 = vld [vmem:[%s6178 + $0x2] sm:$0xff]
      %v6954 = vld [vmem:[%s6178 + $0xa] sm:$0xff]
      %v6955 = vld [vmem:[%s6178 + $0x1a] sm:$0xff]
      %v6956 = vld [vmem:[%s6178 + $0x22] sm:$0xff]
      %v6957 = vld [vmem:[%s6178 + $0x32] sm:$0xff]
      %v6958 = vld [vmem:[%s6178 + $0x3a] sm:$0xff]
      %v6959 = vld [vmem:[%s6178 + $0x4a] sm:$0xff]
      %v6960 = vld [vmem:[%s6178 + $0x52] sm:$0xff]
      %v6961 = vld [vmem:[%s6178 + $0x62] sm:$0xff]
      %v6962 = vld [vmem:[%s6178 + $0x6a] sm:$0xff]
      %v6963 = vld [vmem:[%s6178 + $0x7a] sm:$0xff]
      %v6964 = vld [vmem:[%s6178 + $0x82] sm:$0xff]
      %v6965 = vld [vmem:[%s6178 + $0x92] sm:$0xff]
      %v6966 = vld [vmem:[%s6178 + $0x9a] sm:$0xff]
      %v6967 = vld [vmem:[%s6178 + $0xaa] sm:$0xff]
      %v6968 = vld [vmem:[%s6178 + $0xb2] sm:$0xff]
      %v6969 = vld [vmem:[%s6178 + $0xc2] sm:$0xff]
      %v6970 = vld [vmem:[%s6178 + $0xca] sm:$0xff]
      %v6971 = vld [vmem:[%s6178 + $0xda] sm:$0xff]
      %v6972 = vld [vmem:[%s6178 + $0xe2] sm:$0xff]
      %v6973 = vld [vmem:[%s6178 + $0xf2] sm:$0xff]
      %v6974 = vld [vmem:[%s6178 + $0xfa] sm:$0xff]
      %v6975 = vld [vmem:[%s6178 + $0x10a] sm:$0xff]
      %v6976 = vld [vmem:[%s6178 + $0x112] sm:$0xff]
      %v6977 = vld [vmem:[%s6178 + $0x122] sm:$0xff]
      %v6978 = vld [vmem:[%s6178 + $0x12a] sm:$0xff]
      %v6979 = vld [vmem:[%s6178 + $0x13a] sm:$0xff]
      %v6980 = vld [vmem:[%s6178 + $0x142] sm:$0xff]
      %v6981 = vld [vmem:[%s6178 + $0x152] sm:$0xff]
      %v6982 = vld [vmem:[%s6178 + $0x15a] sm:$0xff]
      %v6983 = vld [vmem:[%s6178 + $0x16a] sm:$0xff]
      %v6984 = vld [vmem:[%s6178 + $0x172] sm:$0xff]
      %s6985 = scalar_lea.vmem %s3, 64
      %v6986 = vld [vmem:[%s6985] sm:$0xff]
      %v6988 = vsel %vm3832, %v6953, 0
      %v6991 = vsel %vm3832, %v6954, 0
      %v6994 = vsel %vm3832, %v6955, 0
      %v6997 = vsel %vm3832, %v6956, 0
      %v7000 = vsel %vm3832, %v6957, 0
      %v7003 = vsel %vm3832, %v6958, 0
      %v7006 = vsel %vm3832, %v6959, 0
      %v7009 = vsel %vm3832, %v6960, 0
      %v7012 = vsel %vm3832, %v6961, 0
      %v7015 = vsel %vm3832, %v6962, 0
      %v7018 = vsel %vm3832, %v6963, 0
      %v7021 = vsel %vm3832, %v6964, 0
      %v7024 = vsel %vm3832, %v6965, 0
      %v7027 = vsel %vm3832, %v6966, 0
      %v7030 = vsel %vm3832, %v6967, 0
      %v7033 = vsel %vm3832, %v6968, 0
      %v7036 = vsel %vm3832, %v6969, 0
      %v7039 = vsel %vm3832, %v6970, 0
      %v7042 = vsel %vm3832, %v6971, 0
      %v7045 = vsel %vm3832, %v6972, 0
      %v7048 = vsel %vm3832, %v6973, 0
      %v7051 = vsel %vm3832, %v6974, 0
      %v7054 = vsel %vm3832, %v6975, 0
      %v7057 = vsel %vm3832, %v6976, 0
      %v7060 = vsel %vm3832, %v6977, 0
      %v7063 = vsel %vm3832, %v6978, 0
      %v7066 = vsel %vm3832, %v6979, 0
      %v7069 = vsel %vm3832, %v6980, 0
      %v7072 = vsel %vm3832, %v6981, 0
      %v7075 = vsel %vm3832, %v6982, 0
      %v7078 = vsel %vm3832, %v6983, 0
      %v7081 = vsel %vm3832, %v6984, 0
      %7083 = vmatprep.subr.mxu0 0.0
      %7084 = vmatpush1.msra.mxu0 0.0
      %7085 = vmatprep.subr.mxu0 0.0
      %7086 = vmatpush1.msra.mxu0 0.0
      %7087 = vmatprep.subr.mxu0 0.0
      %7088 = vmatpush1.msra.mxu0 0.0
      %7089 = vmatprep.subr.mxu0 0.0
      %7090 = vmatpush1.msra.mxu0 0.0
      %7091 = vmatprep.subr.mxu0 0.0
      %7092 = vmatpush1.msra.mxu0 0.0
      %7093 = vmatprep.subr.mxu0 0.0
      %7094 = vmatpush1.msra.mxu0 0.0
      %7095 = vmatprep.subr.mxu0 0.0
      %7096 = vmatpush1.msra.mxu0 0.0
      %7097 = vmatprep.subr.mxu0 0.0
      %7098 = vmatpush1.msra.mxu0 0.0
      %7099 = vmatprep.subr.mxu0 0.0
      %7100 = vmatpush1.msra.mxu0 0.0
      %7101 = vmatprep.subr.mxu0 0.0
      %7102 = vmatpush1.msra.mxu0 0.0
      %7103 = vmatprep.subr.mxu0 0.0
      %7104 = vmatpush1.msra.mxu0 0.0
      %7105 = vmatprep.subr.mxu0 0.0
      %7106 = vmatpush1.msra.mxu0 0.0
      %7107 = vmatprep.subr.mxu0 0.0
      %7108 = vmatpush1.msra.mxu0 0.0
      %7109 = vmatprep.subr.mxu0 0.0
      %7110 = vmatpush1.msra.mxu0 0.0
      %7111 = vmatprep.subr.mxu0 0.0
      %7112 = vmatpush1.msra.mxu0 0.0
      %7113 = vmatprep.subr.mxu0 0.0
      %7114 = vmatpush1.msra.mxu0 %v6986
      %7115 = vmatprep.subr.mxu0 0.0
      %7116 = vmatpush2.msra.mxu0 0.0
      %7117 = vmatprep.subr.mxu0 0.0
      %7118 = vmatpush2.msra.mxu0 0.0
      %7119 = vmatprep.subr.mxu0 0.0
      %7120 = vmatpush2.msra.mxu0 0.0
      %7121 = vmatprep.subr.mxu0 0.0
      %7122 = vmatpush2.msra.mxu0 0.0
      %7123 = vmatprep.subr.mxu0 0.0
      %7124 = vmatpush2.msra.mxu0 0.0
      %7125 = vmatprep.subr.mxu0 0.0
      %7126 = vmatpush2.msra.mxu0 0.0
      %7127 = vmatprep.subr.mxu0 0.0
      %7128 = vmatpush2.msra.mxu0 0.0
      %7129 = vmatprep.subr.mxu0 0.0
      %7130 = vmatpush2.msra.mxu0 0.0
      %7131 = vmatprep.subr.mxu0 0.0
      %7132 = vmatpush2.msra.mxu0 0.0
      %7133 = vmatprep.subr.mxu0 0.0
      %7134 = vmatpush2.msra.mxu0 0.0
      %7135 = vmatprep.subr.mxu0 0.0
      %7136 = vmatpush2.msra.mxu0 0.0
      %7137 = vmatprep.subr.mxu0 0.0
      %7138 = vmatpush2.msra.mxu0 0.0
      %7139 = vmatprep.subr.mxu0 0.0
      %7140 = vmatpush2.msra.mxu0 0.0
      %7141 = vmatprep.subr.mxu0 0.0
      %7142 = vmatpush2.msra.mxu0 0.0
      %7143 = vmatprep.subr.mxu0 0.0
      %7144 = vmatpush2.msra.mxu0 0.0
      %7145 = vmatprep.subr.mxu0 0.0
      %7146 = vmatpush2.msra.mxu0 0.0
      %7147 = vmatprep.mubr.f32.mxu0 0.0
      %7148 = vmatmul.mubr.f32.gmra.mxu0 %v6988
      %v7149 = vpop.f32.mrf.mxu0
      %v7150 = vadd.f32 0.0, %v7149
      %v7151 = vpop.f32.mrf.mxu0
      %7152 = vmatprep.mubr.f32.mxu0 0.0
      %7153 = vmatmul.mubr.f32.gmra.mxu0 %v6991
      %v7154 = vpop.f32.mrf.mxu0
      %v7155 = vadd.f32 0.0, %v7154
      %v7156 = vpop.f32.mrf.mxu0
      %7157 = vmatprep.mubr.f32.mxu0 0.0
      %7158 = vmatmul.mubr.f32.gmra.mxu0 %v6994
      %v7159 = vpop.f32.mrf.mxu0
      %v7160 = vadd.f32 0.0, %v7159
      %v7161 = vpop.f32.mrf.mxu0
      %7162 = vmatprep.mubr.f32.mxu0 0.0
      %7163 = vmatmul.mubr.f32.gmra.mxu0 %v6997
      %v7164 = vpop.f32.mrf.mxu0
      %v7165 = vadd.f32 0.0, %v7164
      %v7166 = vpop.f32.mrf.mxu0
      %7167 = vmatprep.mubr.f32.mxu0 0.0
      %7168 = vmatmul.mubr.f32.gmra.mxu0 %v7000
      %v7169 = vpop.f32.mrf.mxu0
      %v7170 = vadd.f32 0.0, %v7169
      %v7171 = vpop.f32.mrf.mxu0
      %7172 = vmatprep.mubr.f32.mxu0 0.0
      %7173 = vmatmul.mubr.f32.gmra.mxu0 %v7003
      %v7174 = vpop.f32.mrf.mxu0
      %v7175 = vadd.f32 0.0, %v7174
      %v7176 = vpop.f32.mrf.mxu0
      %7177 = vmatprep.mubr.f32.mxu0 0.0
      %7178 = vmatmul.mubr.f32.gmra.mxu0 %v7006
      %v7179 = vpop.f32.mrf.mxu0
      %v7180 = vadd.f32 0.0, %v7179
      %v7181 = vpop.f32.mrf.mxu0
      %7182 = vmatprep.mubr.f32.mxu0 0.0
      %7183 = vmatmul.mubr.f32.gmra.mxu0 %v7009
      %v7184 = vpop.f32.mrf.mxu0
      %v7185 = vadd.f32 0.0, %v7184
      %v7186 = vpop.f32.mrf.mxu0
      %7187 = vmatprep.mubr.f32.mxu0 0.0
      %7188 = vmatmul.mubr.f32.gmra.mxu0 %v7012
      %v7189 = vpop.f32.mrf.mxu0
      %v7190 = vadd.f32 0.0, %v7189
      %v7191 = vpop.f32.mrf.mxu0
      %7192 = vmatprep.mubr.f32.mxu0 0.0
      %7193 = vmatmul.mubr.f32.gmra.mxu0 %v7015
      %v7194 = vpop.f32.mrf.mxu0
      %v7195 = vadd.f32 0.0, %v7194
      %v7196 = vpop.f32.mrf.mxu0
      %7197 = vmatprep.mubr.f32.mxu0 0.0
      %7198 = vmatmul.mubr.f32.gmra.mxu0 %v7018
      %v7199 = vpop.f32.mrf.mxu0
      %v7200 = vadd.f32 0.0, %v7199
      %v7201 = vpop.f32.mrf.mxu0
      %7202 = vmatprep.mubr.f32.mxu0 0.0
      %7203 = vmatmul.mubr.f32.gmra.mxu0 %v7021
      %v7204 = vpop.f32.mrf.mxu0
      %v7205 = vadd.f32 0.0, %v7204
      %v7206 = vpop.f32.mrf.mxu0
      %7207 = vmatprep.mubr.f32.mxu0 0.0
      %7208 = vmatmul.mubr.f32.gmra.mxu0 %v7024
      %v7209 = vpop.f32.mrf.mxu0
      %v7210 = vadd.f32 0.0, %v7209
      %v7211 = vpop.f32.mrf.mxu0
      %7212 = vmatprep.mubr.f32.mxu0 0.0
      %7213 = vmatmul.mubr.f32.gmra.mxu0 %v7027
      %v7214 = vpop.f32.mrf.mxu0
      %v7215 = vadd.f32 0.0, %v7214
      %v7216 = vpop.f32.mrf.mxu0
      %7217 = vmatprep.mubr.f32.mxu0 0.0
      %7218 = vmatmul.mubr.f32.gmra.mxu0 %v7030
      %v7219 = vpop.f32.mrf.mxu0
      %v7220 = vadd.f32 0.0, %v7219
      %v7221 = vpop.f32.mrf.mxu0
      %7222 = vmatprep.mubr.f32.mxu0 0.0
      %7223 = vmatmul.mubr.f32.gmra.mxu0 %v7033
      %v7224 = vpop.f32.mrf.mxu0
      %v7225 = vadd.f32 0.0, %v7224
      %v7226 = vpop.f32.mrf.mxu0
      %7227 = vmatprep.mubr.f32.mxu0 0.0
      %7228 = vmatmul.mubr.f32.gmra.mxu0 %v7036
      %v7229 = vpop.f32.mrf.mxu0
      %v7230 = vadd.f32 0.0, %v7229
      %v7231 = vpop.f32.mrf.mxu0
      %7232 = vmatprep.mubr.f32.mxu0 0.0
      %7233 = vmatmul.mubr.f32.gmra.mxu0 %v7039
      %v7234 = vpop.f32.mrf.mxu0
      %v7235 = vadd.f32 0.0, %v7234
      %v7236 = vpop.f32.mrf.mxu0
      %7237 = vmatprep.mubr.f32.mxu0 0.0
      %7238 = vmatmul.mubr.f32.gmra.mxu0 %v7042
      %v7239 = vpop.f32.mrf.mxu0
      %v7240 = vadd.f32 0.0, %v7239
      %v7241 = vpop.f32.mrf.mxu0
      %7242 = vmatprep.mubr.f32.mxu0 0.0
      %7243 = vmatmul.mubr.f32.gmra.mxu0 %v7045
      %v7244 = vpop.f32.mrf.mxu0
      %v7245 = vadd.f32 0.0, %v7244
      %v7246 = vpop.f32.mrf.mxu0
      %7247 = vmatprep.mubr.f32.mxu0 0.0
      %7248 = vmatmul.mubr.f32.gmra.mxu0 %v7048
      %v7249 = vpop.f32.mrf.mxu0
      %v7250 = vadd.f32 0.0, %v7249
      %v7251 = vpop.f32.mrf.mxu0
      %7252 = vmatprep.mubr.f32.mxu0 0.0
      %7253 = vmatmul.mubr.f32.gmra.mxu0 %v7051
      %v7254 = vpop.f32.mrf.mxu0
      %v7255 = vadd.f32 0.0, %v7254
      %v7256 = vpop.f32.mrf.mxu0
      %7257 = vmatprep.mubr.f32.mxu0 0.0
      %7258 = vmatmul.mubr.f32.gmra.mxu0 %v7054
      %v7259 = vpop.f32.mrf.mxu0
      %v7260 = vadd.f32 0.0, %v7259
      %v7261 = vpop.f32.mrf.mxu0
      %7262 = vmatprep.mubr.f32.mxu0 0.0
      %7263 = vmatmul.mubr.f32.gmra.mxu0 %v7057
      %v7264 = vpop.f32.mrf.mxu0
      %v7265 = vadd.f32 0.0, %v7264
      %v7266 = vpop.f32.mrf.mxu0
      %7267 = vmatprep.mubr.f32.mxu0 0.0
      %7268 = vmatmul.mubr.f32.gmra.mxu0 %v7060
      %v7269 = vpop.f32.mrf.mxu0
      %v7270 = vadd.f32 0.0, %v7269
      %v7271 = vpop.f32.mrf.mxu0
      %7272 = vmatprep.mubr.f32.mxu0 0.0
      %7273 = vmatmul.mubr.f32.gmra.mxu0 %v7063
      %v7274 = vpop.f32.mrf.mxu0
      %v7275 = vadd.f32 0.0, %v7274
      %v7276 = vpop.f32.mrf.mxu0
      %7277 = vmatprep.mubr.f32.mxu0 0.0
      %7278 = vmatmul.mubr.f32.gmra.mxu0 %v7066
      %v7279 = vpop.f32.mrf.mxu0
      %v7280 = vadd.f32 0.0, %v7279
      %v7281 = vpop.f32.mrf.mxu0
      %7282 = vmatprep.mubr.f32.mxu0 0.0
      %7283 = vmatmul.mubr.f32.gmra.mxu0 %v7069
      %v7284 = vpop.f32.mrf.mxu0
      %v7285 = vadd.f32 0.0, %v7284
      %v7286 = vpop.f32.mrf.mxu0
      %7287 = vmatprep.mubr.f32.mxu0 0.0
      %7288 = vmatmul.mubr.f32.gmra.mxu0 %v7072
      %v7289 = vpop.f32.mrf.mxu0
      %v7290 = vadd.f32 0.0, %v7289
      %v7291 = vpop.f32.mrf.mxu0
      %7292 = vmatprep.mubr.f32.mxu0 0.0
      %7293 = vmatmul.mubr.f32.gmra.mxu0 %v7075
      %v7294 = vpop.f32.mrf.mxu0
      %v7295 = vadd.f32 0.0, %v7294
      %v7296 = vpop.f32.mrf.mxu0
      %7297 = vmatprep.mubr.f32.mxu0 0.0
      %7298 = vmatmul.mubr.f32.gmra.mxu0 %v7078
      %v7299 = vpop.f32.mrf.mxu0
      %v7300 = vadd.f32 0.0, %v7299
      %v7301 = vpop.f32.mrf.mxu0
      %7302 = vmatprep.mubr.f32.mxu0 0.0
      %7303 = vmatmul.mubr.f32.gmra.mxu0 %v7081
      %v7304 = vpop.f32.mrf.mxu0
      %v7305 = vadd.f32 0.0, %v7304
      %v7306 = vpop.f32.mrf.mxu0
      %7307 = vdwg.mxu0
      %v7308 = vadd.f32 %v6921, %v7150
      %v7309 = vadd.f32 %v6922, %v7155
      %v7310 = vadd.f32 %v6923, %v7160
      %v7311 = vadd.f32 %v6924, %v7165
      %v7312 = vadd.f32 %v6925, %v7170
      %v7313 = vadd.f32 %v6926, %v7175
      %v7314 = vadd.f32 %v6927, %v7180
      %v7315 = vadd.f32 %v6928, %v7185
      %v7316 = vadd.f32 %v6929, %v7190
      %v7317 = vadd.f32 %v6930, %v7195
      %v7318 = vadd.f32 %v6931, %v7200
      %v7319 = vadd.f32 %v6932, %v7205
      %v7320 = vadd.f32 %v6933, %v7210
      %v7321 = vadd.f32 %v6934, %v7215
      %v7322 = vadd.f32 %v6935, %v7220
      %v7323 = vadd.f32 %v6936, %v7225
      %v7324 = vadd.f32 %v6937, %v7230
      %v7325 = vadd.f32 %v6938, %v7235
      %v7326 = vadd.f32 %v6939, %v7240
      %v7327 = vadd.f32 %v6940, %v7245
      %v7328 = vadd.f32 %v6941, %v7250
      %v7329 = vadd.f32 %v6942, %v7255
      %v7330 = vadd.f32 %v6943, %v7260
      %v7331 = vadd.f32 %v6944, %v7265
      %v7332 = vadd.f32 %v6945, %v7270
      %v7333 = vadd.f32 %v6946, %v7275
      %v7334 = vadd.f32 %v6947, %v7280
      %v7335 = vadd.f32 %v6948, %v7285
      %v7336 = vadd.f32 %v6949, %v7290
      %v7337 = vadd.f32 %v6950, %v7295
      %v7338 = vadd.f32 %v6951, %v7300
      %v7339 = vadd.f32 %v6952, %v7305
      %v7340 = vld [vmem:[%s4] sm:$0x1]
      %v7342 = vlaneseq
      %v7343 = vshrl.u32 %v7342, 7
      %v7344 = vsub.s32 0, %v7343
      %v7345 = vrot.slane %v7340, %v7344
      %v7347 = vadd.f32 %v7308, %v7345
      %v7348 = vadd.f32 %v7309, %v7345
      %v7349 = vadd.f32 %v7310, %v7345
      %v7350 = vadd.f32 %v7311, %v7345
      %v7351 = vadd.f32 %v7312, %v7345
      %v7352 = vadd.f32 %v7313, %v7345
      %v7353 = vadd.f32 %v7314, %v7345
      %v7354 = vadd.f32 %v7315, %v7345
      %v7355 = vadd.f32 %v7316, %v7345
      %v7356 = vadd.f32 %v7317, %v7345
      %v7357 = vadd.f32 %v7318, %v7345
      %v7358 = vadd.f32 %v7319, %v7345
      %v7359 = vadd.f32 %v7320, %v7345
      %v7360 = vadd.f32 %v7321, %v7345
      %v7361 = vadd.f32 %v7322, %v7345
      %v7362 = vadd.f32 %v7323, %v7345
      %v7363 = vadd.f32 %v7324, %v7345
      %v7364 = vadd.f32 %v7325, %v7345
      %v7365 = vadd.f32 %v7326, %v7345
      %v7366 = vadd.f32 %v7327, %v7345
      %v7367 = vadd.f32 %v7328, %v7345
      %v7368 = vadd.f32 %v7329, %v7345
      %v7369 = vadd.f32 %v7330, %v7345
      %v7370 = vadd.f32 %v7331, %v7345
      %v7371 = vadd.f32 %v7332, %v7345
      %v7372 = vadd.f32 %v7333, %v7345
      %v7373 = vadd.f32 %v7334, %v7345
      %v7374 = vadd.f32 %v7335, %v7345
      %v7375 = vadd.f32 %v7336, %v7345
      %v7376 = vadd.f32 %v7337, %v7345
      %v7377 = vadd.f32 %v7338, %v7345
      %v7378 = vadd.f32 %v7339, %v7345
      %v7379 = vadd.f32 %v7347, %v3800
      %v7380 = vadd.f32 %v7348, %v3801
      %v7381 = vadd.f32 %v7349, %v3802
      %v7382 = vadd.f32 %v7350, %v3803
      %v7383 = vadd.f32 %v7351, %v3804
      %v7384 = vadd.f32 %v7352, %v3805
      %v7385 = vadd.f32 %v7353, %v3806
      %v7386 = vadd.f32 %v7354, %v3807
      %v7387 = vadd.f32 %v7355, %v3808
      %v7388 = vadd.f32 %v7356, %v3809
      %v7389 = vadd.f32 %v7357, %v3810
      %v7390 = vadd.f32 %v7358, %v3811
      %v7391 = vadd.f32 %v7359, %v3812
      %v7392 = vadd.f32 %v7360, %v3813
      %v7393 = vadd.f32 %v7361, %v3814
      %v7394 = vadd.f32 %v7362, %v3815
      %v7395 = vadd.f32 %v7363, %v3816
      %v7396 = vadd.f32 %v7364, %v3817
      %v7397 = vadd.f32 %v7365, %v3818
      %v7398 = vadd.f32 %v7366, %v3819
      %v7399 = vadd.f32 %v7367, %v3820
      %v7400 = vadd.f32 %v7368, %v3821
      %v7401 = vadd.f32 %v7369, %v3822
      %v7402 = vadd.f32 %v7370, %v3823
      %v7403 = vadd.f32 %v7371, %v3824
      %v7404 = vadd.f32 %v7372, %v3825
      %v7405 = vadd.f32 %v7373, %v3826
      %v7406 = vadd.f32 %v7374, %v3827
      %v7407 = vadd.f32 %v7375, %v3828
      %v7408 = vadd.f32 %v7376, %v3829
      %v7409 = vadd.f32 %v7377, %v3830
      %v7410 = vadd.f32 %v7378, %v3831
      %7411 = vst.msk [vmem:[%s224] sm:$0xff] %vm3832, %v7379
      %7412 = vst.msk [vmem:[%s224 + $0x8] sm:$0xff] %vm3832, %v7380
      %7413 = vst.msk [vmem:[%s224 + $0x10] sm:$0xff] %vm3832, %v7381
      %7414 = vst.msk [vmem:[%s224 + $0x18] sm:$0xff] %vm3832, %v7382
      %7415 = vst.msk [vmem:[%s224 + $0x20] sm:$0xff] %vm3832, %v7383
      %7416 = vst.msk [vmem:[%s224 + $0x28] sm:$0xff] %vm3832, %v7384
      %7417 = vst.msk [vmem:[%s224 + $0x30] sm:$0xff] %vm3832, %v7385
      %7418 = vst.msk [vmem:[%s224 + $0x38] sm:$0xff] %vm3832, %v7386
      %7419 = vst.msk [vmem:[%s224 + $0x40] sm:$0xff] %vm3832, %v7387
      %7420 = vst.msk [vmem:[%s224 + $0x48] sm:$0xff] %vm3832, %v7388
      %7421 = vst.msk [vmem:[%s224 + $0x50] sm:$0xff] %vm3832, %v7389
      %7422 = vst.msk [vmem:[%s224 + $0x58] sm:$0xff] %vm3832, %v7390
      %7423 = vst.msk [vmem:[%s224 + $0x60] sm:$0xff] %vm3832, %v7391
      %7424 = vst.msk [vmem:[%s224 + $0x68] sm:$0xff] %vm3832, %v7392
      %7425 = vst.msk [vmem:[%s224 + $0x70] sm:$0xff] %vm3832, %v7393
      %7426 = vst.msk [vmem:[%s224 + $0x78] sm:$0xff] %vm3832, %v7394
      %7427 = vst.msk [vmem:[%s224 + $0x80] sm:$0xff] %vm3832, %v7395
      %7428 = vst.msk [vmem:[%s224 + $0x88] sm:$0xff] %vm3832, %v7396
      %7429 = vst.msk [vmem:[%s224 + $0x90] sm:$0xff] %vm3832, %v7397
      %7430 = vst.msk [vmem:[%s224 + $0x98] sm:$0xff] %vm3832, %v7398
      %7431 = vst.msk [vmem:[%s224 + $0xa0] sm:$0xff] %vm3832, %v7399
      %7432 = vst.msk [vmem:[%s224 + $0xa8] sm:$0xff] %vm3832, %v7400
      %7433 = vst.msk [vmem:[%s224 + $0xb0] sm:$0xff] %vm3832, %v7401
      %7434 = vst.msk [vmem:[%s224 + $0xb8] sm:$0xff] %vm3832, %v7402
      %7435 = vst.msk [vmem:[%s224 + $0xc0] sm:$0xff] %vm3832, %v7403
      %7436 = vst.msk [vmem:[%s224 + $0xc8] sm:$0xff] %vm3832, %v7404
      %7437 = vst.msk [vmem:[%s224 + $0xd0] sm:$0xff] %vm3832, %v7405
      %7438 = vst.msk [vmem:[%s224 + $0xd8] sm:$0xff] %vm3832, %v7406
      %7439 = vst.msk [vmem:[%s224 + $0xe0] sm:$0xff] %vm3832, %v7407
      %7440 = vst.msk [vmem:[%s224 + $0xe8] sm:$0xff] %vm3832, %v7408
      %7441 = vst.msk [vmem:[%s224 + $0xf0] sm:$0xff] %vm3832, %v7409
      %7442 = vst.msk [vmem:[%s224 + $0xf8] sm:$0xff] %vm3832, %v7410
      %p7443 = scmp.lt.s32.totalorder %s16, 1
      %s7444 = scalar_select %p7443, %s16, 1
      %s7445 = smul.addr %s7444, 32
      %s7446 = smul.addr %s7445, 8
      %s7447 = scalar_lea.vmem %s5, %s7446
      // Predicated region
      $region41: #{feature_forward.1} parent=39 // pred_check
        %p7448 = pneg %p144
      $region42: #{feature_forward.1} parent=39 // pred_check_branch
        %7450 = sbr.rel (%p7448) target = $region44
      $region43: #{feature_forward.1} parent=39 // pred_region
        _
      $region44: #{feature_forward.1} parent=39 // pred_fallthru
        _
    $region40: #{feature_forward.1} parent=5 // pred_fallthru
      _
    %p7451 = scmp.le.s32.totalorder 2, %s11
    // Predicated region
    $region45: #{feature_forward.1} parent=5 // pred_check
      %p7452 = pneg %p7451
    $region46: #{feature_forward.1} parent=5 // pred_check_branch
      %7454 = sbr.rel (%p7452) target = $region48
    $region47: #{feature_forward.1} parent=5 // pred_region
      %s7455 = ssub.s32 %s11, 2
      // Predicated region
      $region49: #{feature_forward.1} parent=47 // pred_check
        %p7456 = pneg %p150
      $region50: #{feature_forward.1} parent=47 // pred_check_branch
        %7458 = sbr.rel (%p7456) target = $region52
      $region51: #{feature_forward.1} parent=47 // pred_region
        %p7459 = scmp.lt.s32.totalorder %s17, 1
        %s7460 = scalar_select %p7459, %s17, 1
        %s7461 = smul.addr %s7460, 32
        %s7462 = smul.addr %s7461, 8
        %s7463 = scalar_lea.vmem %s5, %s7462
      $region52: #{feature_forward.1} parent=47 // pred_fallthru
        _
    $region48: #{feature_forward.1} parent=5 // pred_fallthru
      _
  $region6: #{feature_forward.1} parent=0 // loop_footer
    %s15 = sadd.s32 1, %s11
  $region7: #{feature_forward.1} parent=0 // loop_footer_branch
    %10 = sbr.rel target = $region3
  $region8: #{feature_forward.1} parent=0 // loop_exit
    _

</llo_original>
